<compile_context>
chip_gen: v5e
topology: v5e:2x2
jax: 0.10.0
libtpu: 0.0.40
codegen_flags: <defaults>
</compile_context>

<pallas_src>
import math
import functools

import jax
import jax.numpy as jnp
from jax.experimental import pallas as pl
from jax.experimental.pallas import tpu as pltpu


def _encoder_layer_kernel(xq_ref, *rest, num_heads: int, d_k: int,
                          compute_dtype, separate_kv: bool, layout_free: bool,
                          eps: float = 1e-5):
    f32 = jnp.float32
    cd = compute_dtype
    nh = num_heads
    d = nh * d_k
    tq = xq_ref.shape[0]

    if separate_kv:
        (xkv_ref, wq_ref, bq_ref, wkv_ref, bkv_ref, wo_ref, bo_ref,
         w1_ref, b1_ref, w2_ref, b2_ref,
         g1_ref, beta1_ref, g2_ref, beta2_ref, o_ref, k_scr, v_scr) = rest
        s = xkv_ref.shape[0]

        # Project K/V for the whole sequence once per batch element and cache
        # it in VMEM scratch; every subsequent q-tile of this batch element
        # (qi axis is "arbitrary") reuses it.
        @pl.when(pl.program_id(1) == 0)
        def _():
            xkv_c = xkv_ref[...].astype(cd)
            kv = jnp.dot(xkv_c, wkv_ref[...].astype(cd),
                         preferred_element_type=f32) + bkv_ref[...]
            k_scr[...] = kv[:, :d].astype(cd)
            v_scr[...] = kv[:, d:].astype(cd)

        k2 = k_scr[...]
        v2 = v_scr[...]
    else:
        (wq_ref, bq_ref, wkv_ref, bkv_ref, wo_ref, bo_ref,
         w1_ref, b1_ref, w2_ref, b2_ref,
         g1_ref, beta1_ref, g2_ref, beta2_ref, o_ref) = rest
        s = tq

    xq = xq_ref[...]                      # residual stream stays f32
    xq_c = xq.astype(cd)

    q = jnp.dot(xq_c, wq_ref[...].astype(cd),
                preferred_element_type=f32) + bq_ref[...]
    if not separate_kv:
        # Single-tile case: the query tile IS the whole sequence.
        kv = jnp.dot(xq_c, wkv_ref[...].astype(cd),
                     preferred_element_type=f32) + bkv_ref[...]
        k2 = kv[:, :d].astype(cd)
        v2 = kv[:, d:].astype(cd)

    q3 = q.astype(cd).reshape(tq, nh, d_k)
    k3 = k2.reshape(s, nh, d_k)
    v3 = v2.reshape(s, nh, d_k)

    scale = 1.0 / math.sqrt(d_k)
    if layout_free:
        # Head-batched matmuls without explicit (1,0,2) transposes: let
        # dot_general pick operand layouts.
        scores = jnp.einsum("qhd,khd->hqk", q3, k3,
                            preferred_element_type=f32) * scale
    else:
        # Proven head-major fallback (explicit relayouts).
        q3 = q3.transpose(1, 0, 2)
        k3 = k3.transpose(1, 0, 2)
        v3 = v3.transpose(1, 0, 2)
        scores = jnp.einsum("hqd,hkd->hqk", q3, k3,
                            preferred_element_type=f32) * scale

    # Softmax in f32 (VPU/EUP have no bf16 on v5e); exp could be done in bf16
    # on v6e/v7x if the single EUP port ever saturates.
    scores = scores - jnp.max(scores, axis=-1, keepdims=True)
    p = jnp.exp(scores)
    p = p * pl.reciprocal(jnp.sum(p, axis=-1, keepdims=True), approx=True)
    p = p.astype(cd)

    if layout_free:
        ctx = jnp.einsum("hqk,khd->qhd", p, v3, preferred_element_type=f32)
        attn = ctx.reshape(tq, d)
    else:
        ctx = jnp.einsum("hqk,hkd->hqd", p, v3, preferred_element_type=f32)
        attn = ctx.transpose(1, 0, 2).reshape(tq, d)

    attn = jnp.dot(attn.astype(cd), wo_ref[...].astype(cd),
                   preferred_element_type=f32) + bo_ref[...]

    # --- residual + LayerNorm 1 (dropout = identity in eval) --------------
    y = xq + attn
    mu = jnp.mean(y, axis=-1, keepdims=True)
    var = jnp.mean((y - mu) ** 2, axis=-1, keepdims=True)
    y = (y - mu) * jax.lax.rsqrt(var + eps) * g1_ref[...] + beta1_ref[...]

    # --- position-wise feed-forward ----------------------------------------
    h1 = jnp.dot(y.astype(cd), w1_ref[...].astype(cd),
                 preferred_element_type=f32) + b1_ref[...]
    h1 = jnp.maximum(h1, 0.0)
    ff = jnp.dot(h1.astype(cd), w2_ref[...].astype(cd),
                 preferred_element_type=f32) + b2_ref[...]

    # --- residual + LayerNorm 2 --------------------------------------------
    z = y + ff
    mu2 = jnp.mean(z, axis=-1, keepdims=True)
    var2 = jnp.mean((z - mu2) ** 2, axis=-1, keepdims=True)
    z = (z - mu2) * jax.lax.rsqrt(var2 + eps) * g2_ref[...] + beta2_ref[...]

    o_ref[...] = z.astype(o_ref.dtype)


def _pick_q_tile(S: int) -> int:
    if S <= 256:
        return S
    for cand in (256, 128, 64, 32, 16, 8):
        if S % cand == 0:
            return cand
    return S


# Memoized (layout_free, weight_buffers) configs that compiled on this backend.
_WORKING_CFGS: list = []


def encoder_layer(x, params, *, num_heads: int, q_tile: int | None = None,
                  compute_dtype=jnp.bfloat16):
    """x: (B, S, D) f32; params use the PyTorch convention W[out, in]."""
    B, S, D = x.shape
    assert D % num_heads == 0
    d_k = D // num_heads

    if q_tile is None:
        q_tile = _pick_q_tile(S)
    assert S % q_tile == 0, "q_tile must divide S"
    n_q = S // q_tile
    separate_kv = n_q > 1

    is_f32 = jnp.dtype(compute_dtype) == jnp.dtype(jnp.float32)

    # Host-side, once per model in production: pre-transpose to (in, out),
    # fuse the K/V weights, cast matmul operands to the compute dtype.
    wq = params["wq"].T                                               # (D, D)
    wkv = jnp.concatenate([params["wk"].T, params["wv"].T], axis=1)   # (D, 2D)
    bq = params["bq"]
    bkv = jnp.concatenate([params["bk"], params["bv"]], axis=1)       # (1, 2D)
    wo = params["wo"].T                                               # (D, D)
    w1 = params["w1"].T                                               # (D, d_ff)
    w2 = params["w2"].T                                               # (d_ff, D)
    d_ff = w1.shape[1]
    if not is_f32:
        wq, wkv, wo, w1, w2 = (w.astype(compute_dtype)
                               for w in (wq, wkv, wo, w1, w2))

    weights = (wq, bq, wkv, bkv, wo, params["bo"], w1, params["b1"],
               w2, params["b2"], params["g1"], params["beta1"],
               params["g2"], params["beta2"])
    weight_shapes = ((D, D), (1, D), (D, 2 * D), (1, 2 * D), (D, D), (1, D),
                     (D, d_ff), (1, d_ff), (d_ff, D), (1, D),
                     (1, D), (1, D), (1, D), (1, D))

    xkv = None
    if separate_kv:
        # K/V-path copy pre-cast (residual tile stays f32 via the first arg).
        xkv = x if is_f32 else x.astype(compute_dtype)

    def _build_and_run(layout_free: bool, weight_buffers):
        use_buffered = weight_buffers is not None and hasattr(pl, "Buffered")

        def wspec(shape):
            idx = lambda b, qi: (0, 0)
            if use_buffered:
                return pl.BlockSpec(shape, idx,
                                    pipeline_mode=pl.Buffered(weight_buffers))
            return pl.BlockSpec(shape, idx)

        in_specs = [pl.BlockSpec((None, q_tile, D), lambda b, qi: (b, qi, 0))]
        args = [x]
        scratch = []
        if separate_kv:
            in_specs.append(pl.BlockSpec((None, S, D), lambda b, qi: (b, 0, 0)))
            args.append(xkv)
            scratch = [pltpu.VMEM((S, D), compute_dtype),   # cached K
                       pltpu.VMEM((S, D), compute_dtype)]   # cached V
        in_specs += [wspec(s) for s in weight_shapes]
        args += list(weights)

        # VMEM budget: 2x for pipelined activation/output blocks, 1x (single
        # buffered) or 2x for resident weights, + K/V scratch + headroom,
        # clamped against physical VMEM minus Mosaic-internal headroom.
        nb = lambda a: int(a.size) * a.dtype.itemsize
        act_block_bytes = 2 * q_tile * D * 4                 # xq block + out block
        if separate_kv:
            act_block_bytes += S * D * jnp.dtype(xkv.dtype).itemsize
        weight_bytes = sum(nb(w) for w in weights)
        w_mult = 1 if (use_buffered and weight_buffers == 1) else 2
        scratch_bytes = (2 * S * D * jnp.dtype(compute_dtype).itemsize
                         if separate_kv else 0)
        need = 2 * act_block_bytes + w_mult * weight_bytes + scratch_bytes + (8 << 20)
        try:
            phys = int(pltpu.get_tpu_info().vmem_capacity_bytes)
        except Exception:
            phys = 64 << 20                                  # v7x per-core floor
        cap = max(phys - (8 << 20), 32 << 20)
        vmem_limit = int(min(max(need, 32 << 20), cap))

        kernel = functools.partial(
            _encoder_layer_kernel,
            num_heads=num_heads, d_k=d_k, compute_dtype=compute_dtype,
            separate_kv=separate_kv, layout_free=layout_free)

        return pl.pallas_call(
            kernel,
            out_shape=jax.ShapeDtypeStruct((B, S, D), jnp.float32),
            grid_spec=pltpu.PrefetchScalarGridSpec(
                num_scalar_prefetch=0,
                grid=(B, n_q),
                in_specs=in_specs,
                out_specs=pl.BlockSpec((None, q_tile, D),
                                       lambda b, qi: (b, qi, 0)),
                scratch_shapes=scratch),
            compiler_params=pltpu.CompilerParams(
                # batch axis parallel (megacore); q-tile axis arbitrary so the
                # per-batch K/V scratch carries across q-tiles.
                dimension_semantics=("parallel", "arbitrary"),
                vmem_limit_bytes=vmem_limit),
        )(*args)

    # Preferred config first; degrade gracefully if this Mosaic build rejects
    # layout-free batched dot_general dim numbers or Buffered(1) weights.
    default_cfgs = [(True, 1), (True, None), (False, 1), (False, None)]
    cfgs = list(_WORKING_CFGS) + [c for c in default_cfgs if c not in _WORKING_CFGS]
    last_err = None
    for cfg in cfgs:
        try:
            out = _build_and_run(*cfg)
        except Exception as err:     # LoweringException / NotImplementedError
            last_err = err
            continue
        if cfg not in _WORKING_CFGS:
            _WORKING_CFGS.insert(0, cfg)
        return out
    raise last_err


def _reference(x, p, num_heads):
    """Plain-JAX reference mirroring the PyTorch forward (eval mode)."""
    B, S, D = x.shape
    d_k = D // num_heads

    def lin(v, w, b):
        return v @ w.T + b

    q = lin(x, p["wq"], p["bq"]).reshape(B, S, num_heads, d_k).transpose(0, 2, 1, 3)
    k = lin(x, p["wk"], p["bk"]).reshape(B, S, num_heads, d_k).transpose(0, 2, 1, 3)
    v = lin(x, p["wv"], p["bv"]).reshape(B, S, num_heads, d_k).transpose(0, 2, 1, 3)
    s = jnp.einsum("bhqd,bhkd->bhqk", q, k) / math.sqrt(d_k)
    pr = jax.nn.softmax(s, axis=-1)
    o = jnp.einsum("bhqk,bhkd->bhqd", pr, v).transpose(0, 2, 1, 3).reshape(B, S, D)
    attn_out = lin(o, p["wo"], p["bo"])

    def ln(y, g, b, eps=1e-5):
        mu = jnp.mean(y, axis=-1, keepdims=True)
        var = jnp.mean((y - mu) ** 2, axis=-1, keepdims=True)
        return (y - mu) * jax.lax.rsqrt(var + eps) * g + b

    y = ln(x + attn_out, p["g1"], p["beta1"])
    ff = lin(jnp.maximum(lin(y, p["w1"], p["b1"]), 0.0), p["w2"], p["b2"])
    return ln(y + ff, p["g2"], p["beta2"])


def make_params(key, d_model, d_ff):
    ks = jax.random.split(key, 8)
    scale = 0.1
    p = {
        "wq": scale * jax.random.normal(ks[0], (d_model, d_model), jnp.float32),
        "bq": scale * jax.random.normal(ks[1], (1, d_model), jnp.float32),
        "wk": scale * jax.random.normal(ks[2], (d_model, d_model), jnp.float32),
        "bk": scale * jax.random.normal(ks[3], (1, d_model), jnp.float32),
        "wv": scale * jax.random.normal(ks[4], (d_model, d_model), jnp.float32),
        "bv": scale * jax.random.normal(ks[5], (1, d_model), jnp.float32),
        "wo": scale * jax.random.normal(ks[6], (d_model, d_model), jnp.float32),
        "bo": scale * jax.random.normal(ks[7], (1, d_model), jnp.float32),
    }
    ks2 = jax.random.split(jax.random.fold_in(key, 1), 4)
    p["w1"] = scale * jax.random.normal(ks2[0], (d_ff, d_model), jnp.float32)
    p["b1"] = scale * jax.random.normal(ks2[1], (1, d_ff), jnp.float32)
    p["w2"] = scale * jax.random.normal(ks2[2], (d_model, d_ff), jnp.float32)
    p["b2"] = scale * jax.random.normal(ks2[3], (1, d_model), jnp.float32)
    # LayerNorm params as nn.LayerNorm init (gamma=1, beta=0)
    p["g1"] = jnp.ones((1, d_model), jnp.float32)
    p["beta1"] = jnp.zeros((1, d_model), jnp.float32)
    p["g2"] = jnp.ones((1, d_model), jnp.float32)
    p["beta2"] = jnp.zeros((1, d_model), jnp.float32)
    return p


if __name__ == "__main__":
    key = jax.random.PRNGKey(0)

    # --- small shapes consistent with the module (single q-tile path) ------
    B, S, D, H, D_FF = 2, 8, 32, 4, 64
    kx, kp = jax.random.split(key)
    x = jax.random.normal(kx, (B, S, D), jnp.float32)
    params = make_params(kp, D, D_FF)
    ref = _reference(x, params, H)

    out_f32 = jax.block_until_ready(
        encoder_layer(x, params, num_heads=H, compute_dtype=jnp.float32))
    assert out_f32.shape == (B, S, D)
    assert jnp.allclose(out_f32, ref, atol=5e-3, rtol=5e-3), "fp32 mismatch"

    out_bf16 = jax.block_until_ready(encoder_layer(x, params, num_heads=H))
    assert out_bf16.shape == (B, S, D)
    assert float(jnp.max(jnp.abs(out_bf16 - ref))) < 0.25, "bf16 path diverged"

    # --- medium, lane-aligned shapes: exercises the per-batch K/V cache
    #     (n_q > 1) and 128-wide tiles ---------------------------------------
    B2, S2, D2, H2, DFF2 = 2, 256, 128, 4, 256
    kx2, kp2 = jax.random.split(jax.random.fold_in(key, 7))
    x2 = jax.random.normal(kx2, (B2, S2, D2), jnp.float32)
    params2 = make_params(kp2, D2, DFF2)
    ref2 = _reference(x2, params2, H2)

    out2_f32 = jax.block_until_ready(
        encoder_layer(x2, params2, num_heads=H2, q_tile=128,
                      compute_dtype=jnp.float32))
    assert out2_f32.shape == (B2, S2, D2)
    assert jnp.allclose(out2_f32, ref2, atol=2e-2, rtol=2e-2), \
        "fp32 (tiled K/V-cache path) mismatch"

    out2_bf16 = jax.block_until_ready(
        encoder_layer(x2, params2, num_heads=H2, q_tile=128))
    assert float(jnp.max(jnp.abs(out2_bf16 - ref2))) < 0.35, \
        "bf16 (tiled K/V-cache path) diverged"

    print("KERNEL_OK")
</pallas_src>

<mosaic_0001>
module attributes {stable_mosaic.version = 11 : i64} {
  func.func @_encoder_layer_kernel(%arg0: i32, %arg1: i32, %arg2: memref<1x8x32xf32, #tpu.memory_space<vmem>>, %arg3: memref<32x32xf32, #tpu.memory_space<vmem>>, %arg4: memref<1x32xf32, #tpu.memory_space<vmem>>, %arg5: memref<32x64xf32, #tpu.memory_space<vmem>>, %arg6: memref<1x64xf32, #tpu.memory_space<vmem>>, %arg7: memref<32x32xf32, #tpu.memory_space<vmem>>, %arg8: memref<1x32xf32, #tpu.memory_space<vmem>>, %arg9: memref<32x64xf32, #tpu.memory_space<vmem>>, %arg10: memref<1x64xf32, #tpu.memory_space<vmem>>, %arg11: memref<64x32xf32, #tpu.memory_space<vmem>>, %arg12: memref<1x32xf32, #tpu.memory_space<vmem>>, %arg13: memref<1x32xf32, #tpu.memory_space<vmem>>, %arg14: memref<1x32xf32, #tpu.memory_space<vmem>>, %arg15: memref<1x32xf32, #tpu.memory_space<vmem>>, %arg16: memref<1x32xf32, #tpu.memory_space<vmem>>, %arg17: memref<1x8x32xf32, #tpu.memory_space<vmem>>) attributes {dimension_semantics = [#tpu.dimension_semantics<parallel>, #tpu.dimension_semantics<arbitrary>], iteration_bounds = array<i64: 2, 1>, scalar_prefetch = 0 : i64, scratch_operands = 0 : i64, tpu.core_type = #tpu.core_type<tc>, window_params = [{transform_indices = @transform_0, window_bounds = array<i64: 1, 8, 32>}, {pipeline_mode = #tpu.pipeline_mode<synchronous>, transform_indices = @transform_1, window_bounds = array<i64: 32, 32>}, {pipeline_mode = #tpu.pipeline_mode<synchronous>, transform_indices = @transform_2, window_bounds = array<i64: 1, 32>}, {pipeline_mode = #tpu.pipeline_mode<synchronous>, transform_indices = @transform_3, window_bounds = array<i64: 32, 64>}, {pipeline_mode = #tpu.pipeline_mode<synchronous>, transform_indices = @transform_4, window_bounds = array<i64: 1, 64>}, {pipeline_mode = #tpu.pipeline_mode<synchronous>, transform_indices = @transform_5, window_bounds = array<i64: 32, 32>}, {pipeline_mode = #tpu.pipeline_mode<synchronous>, transform_indices = @transform_6, window_bounds = array<i64: 1, 32>}, {pipeline_mode = #tpu.pipeline_mode<synchronous>, transform_indices = @transform_7, window_bounds = array<i64: 32, 64>}, {pipeline_mode = #tpu.pipeline_mode<synchronous>, transform_indices = @transform_8, window_bounds = array<i64: 1, 64>}, {pipeline_mode = #tpu.pipeline_mode<synchronous>, transform_indices = @transform_9, window_bounds = array<i64: 64, 32>}, {pipeline_mode = #tpu.pipeline_mode<synchronous>, transform_indices = @transform_10, window_bounds = array<i64: 1, 32>}, {pipeline_mode = #tpu.pipeline_mode<synchronous>, transform_indices = @transform_11, window_bounds = array<i64: 1, 32>}, {pipeline_mode = #tpu.pipeline_mode<synchronous>, transform_indices = @transform_12, window_bounds = array<i64: 1, 32>}, {pipeline_mode = #tpu.pipeline_mode<synchronous>, transform_indices = @transform_13, window_bounds = array<i64: 1, 32>}, {pipeline_mode = #tpu.pipeline_mode<synchronous>, transform_indices = @transform_14, window_bounds = array<i64: 1, 32>}, {transform_indices = @transform_15, window_bounds = array<i64: 1, 8, 32>}]} {
    %c0 = arith.constant 0 : index
    %c0_0 = arith.constant 0 : index
    %c0_1 = arith.constant 0 : index
    %0 = vector.load %arg2[%c0, %c0_0, %c0_1] : memref<1x8x32xf32, #tpu.memory_space<vmem>>, vector<1x8x32xf32>
    %1 = vector.shape_cast %0 : vector<1x8x32xf32> to vector<8x32xf32>
    %c0_2 = arith.constant 0 : index
    %c0_3 = arith.constant 0 : index
    %2 = vector.load %arg3[%c0_2, %c0_3] : memref<32x32xf32, #tpu.memory_space<vmem>>, vector<32x32xf32>
    %cst = arith.constant dense<0.000000e+00> : vector<8x32xf32>
    %3 = tpu.matmul %1, %2, %cst {dimension_numbers = #tpu.dot_dimension_numbers<[1], [0], [0], [1], [0, 0, 1, 1], [], []>} : vector<8x32xf32>, vector<32x32xf32>, vector<8x32xf32> -> vector<8x32xf32>
    %c0_4 = arith.constant 0 : index
    %c0_5 = arith.constant 0 : index
    %4 = vector.load %arg4[%c0_4, %c0_5] : memref<1x32xf32, #tpu.memory_space<vmem>>, vector<1x32xf32>
    %5 = vector.broadcast %4 : vector<1x32xf32> to vector<8x32xf32>
    %6 = arith.addf %3, %5 : vector<8x32xf32>
    %c0_6 = arith.constant 0 : index
    %c0_7 = arith.constant 0 : index
    %7 = vector.load %arg5[%c0_6, %c0_7] : memref<32x64xf32, #tpu.memory_space<vmem>>, vector<32x64xf32>
    %cst_8 = arith.constant dense<0.000000e+00> : vector<8x64xf32>
    %8 = tpu.matmul %1, %7, %cst_8 {dimension_numbers = #tpu.dot_dimension_numbers<[1], [0], [0], [1], [0, 0, 1, 1], [], []>} : vector<8x32xf32>, vector<32x64xf32>, vector<8x64xf32> -> vector<8x64xf32>
    %c0_9 = arith.constant 0 : index
    %c0_10 = arith.constant 0 : index
    %9 = vector.load %arg6[%c0_9, %c0_10] : memref<1x64xf32, #tpu.memory_space<vmem>>, vector<1x64xf32>
    %10 = vector.broadcast %9 : vector<1x64xf32> to vector<8x64xf32>
    %11 = arith.addf %8, %10 : vector<8x64xf32>
    %12 = vector.extract_strided_slice %11 {offsets = [0, 0], sizes = [8, 32], strides = [1, 1]} : vector<8x64xf32> to vector<8x32xf32>
    %13 = vector.extract_strided_slice %11 {offsets = [0, 32], sizes = [8, 32], strides = [1, 1]} : vector<8x64xf32> to vector<8x32xf32>
    %14 = vector.shape_cast %6 : vector<8x32xf32> to vector<8x4x8xf32>
    %15 = vector.shape_cast %12 : vector<8x32xf32> to vector<8x4x8xf32>
    %16 = vector.shape_cast %13 : vector<8x32xf32> to vector<8x4x8xf32>
    "tpu.trace_start"() <{level = 10 : i32, message = "qhd,khd->hqk"}> : () -> ()
    %cst_11 = arith.constant dense<0.000000e+00> : vector<4x8x8xf32>
    %17 = tpu.matmul %14, %15, %cst_11 {dimension_numbers = #tpu.dot_dimension_numbers<[2], [2], [0], [0], [0, 1, 0, 0, 1, 0], [1], [1]>} : vector<8x4x8xf32>, vector<8x4x8xf32>, vector<4x8x8xf32> -> vector<4x8x8xf32>
    "tpu.trace_stop"() : () -> ()
    %cst_12 = arith.constant 0.353553385 : f32
    %18 = vector.broadcast %cst_12 : f32 to vector<4x8x8xf32>
    %19 = arith.mulf %17, %18 : vector<4x8x8xf32>
    %cst_13 = arith.constant dense<0xFF800000> : vector<4x8xf32>
    %20 = vector.multi_reduction <maximumf>, %19, %cst_13 [2] : vector<4x8x8xf32> to vector<4x8xf32>
    %21 = vector.shape_cast %20 : vector<4x8xf32> to vector<4x8x1xf32>
    %22 = vector.broadcast %21 : vector<4x8x1xf32> to vector<4x8x8xf32>
    %23 = arith.subf %19, %22 : vector<4x8x8xf32>
    %24 = math.exp %23 : vector<4x8x8xf32>
    %cst_14 = arith.constant dense<0.000000e+00> : vector<4x8xf32>
    %25 = vector.multi_reduction <add>, %24, %cst_14 [2] : vector<4x8x8xf32> to vector<4x8xf32>
    %26 = vector.shape_cast %25 : vector<4x8xf32> to vector<4x8x1xf32>
    %27 = tpu.reciprocal %26 {approx = true} : vector<4x8x1xf32> -> vector<4x8x1xf32>
    %28 = vector.broadcast %27 : vector<4x8x1xf32> to vector<4x8x8xf32>
    %29 = arith.mulf %24, %28 : vector<4x8x8xf32>
    "tpu.trace_start"() <{level = 10 : i32, message = "hqk,khd->qhd"}> : () -> ()
    %cst_15 = arith.constant dense<0.000000e+00> : vector<4x8x8xf32>
    %30 = tpu.matmul %16, %29, %cst_15 {dimension_numbers = #tpu.dot_dimension_numbers<[0], [2], [2], [1], [0, 1, 0, 2, 1, 1], [1], [0]>} : vector<8x4x8xf32>, vector<4x8x8xf32>, vector<4x8x8xf32> -> vector<4x8x8xf32>
    %31 = tpu.transpose %30, [2, 0, 1] : vector<4x8x8xf32> -> vector<8x4x8xf32>
    "tpu.trace_stop"() : () -> ()
    %32 = vector.shape_cast %31 : vector<8x4x8xf32> to vector<8x32xf32>
    %c0_16 = arith.constant 0 : index
    %c0_17 = arith.constant 0 : index
    %33 = vector.load %arg7[%c0_16, %c0_17] : memref<32x32xf32, #tpu.memory_space<vmem>>, vector<32x32xf32>
    %cst_18 = arith.constant dense<0.000000e+00> : vector<8x32xf32>
    %34 = tpu.matmul %32, %33, %cst_18 {dimension_numbers = #tpu.dot_dimension_numbers<[1], [0], [0], [1], [0, 0, 1, 1], [], []>} : vector<8x32xf32>, vector<32x32xf32>, vector<8x32xf32> -> vector<8x32xf32>
    %c0_19 = arith.constant 0 : index
    %c0_20 = arith.constant 0 : index
    %35 = vector.load %arg8[%c0_19, %c0_20] : memref<1x32xf32, #tpu.memory_space<vmem>>, vector<1x32xf32>
    %36 = vector.broadcast %35 : vector<1x32xf32> to vector<8x32xf32>
    %37 = arith.addf %34, %36 : vector<8x32xf32>
    %38 = arith.addf %1, %37 : vector<8x32xf32>
    %cst_21 = arith.constant dense<0.000000e+00> : vector<8xf32>
    %39 = vector.multi_reduction <add>, %38, %cst_21 [1] : vector<8x32xf32> to vector<8xf32>
    %40 = vector.shape_cast %39 : vector<8xf32> to vector<8x1xf32>
    %cst_22 = arith.constant 3.200000e+01 : f32
    %41 = vector.broadcast %cst_22 : f32 to vector<8x1xf32>
    %42 = arith.divf %40, %41 : vector<8x1xf32>
    %43 = vector.broadcast %42 : vector<8x1xf32> to vector<8x32xf32>
    %44 = arith.subf %38, %43 : vector<8x32xf32>
    %45 = arith.mulf %44, %44 : vector<8x32xf32>
    %cst_23 = arith.constant dense<0.000000e+00> : vector<8xf32>
    %46 = vector.multi_reduction <add>, %45, %cst_23 [1] : vector<8x32xf32> to vector<8xf32>
    %47 = vector.shape_cast %46 : vector<8xf32> to vector<8x1xf32>
    %cst_24 = arith.constant 3.200000e+01 : f32
    %48 = vector.broadcast %cst_24 : f32 to vector<8x1xf32>
    %49 = arith.divf %47, %48 : vector<8x1xf32>
    %50 = vector.broadcast %42 : vector<8x1xf32> to vector<8x32xf32>
    %51 = arith.subf %38, %50 : vector<8x32xf32>
    %cst_25 = arith.constant 9.99999974E-6 : f32
    %52 = vector.broadcast %cst_25 : f32 to vector<8x1xf32>
    %53 = arith.addf %49, %52 : vector<8x1xf32>
    %54 = math.rsqrt %53 : vector<8x1xf32>
    %55 = vector.broadcast %54 : vector<8x1xf32> to vector<8x32xf32>
    %56 = arith.mulf %51, %55 : vector<8x32xf32>
    %c0_26 = arith.constant 0 : index
    %c0_27 = arith.constant 0 : index
    %57 = vector.load %arg13[%c0_26, %c0_27] : memref<1x32xf32, #tpu.memory_space<vmem>>, vector<1x32xf32>
    %58 = vector.broadcast %57 : vector<1x32xf32> to vector<8x32xf32>
    %59 = arith.mulf %56, %58 : vector<8x32xf32>
    %c0_28 = arith.constant 0 : index
    %c0_29 = arith.constant 0 : index
    %60 = vector.load %arg14[%c0_28, %c0_29] : memref<1x32xf32, #tpu.memory_space<vmem>>, vector<1x32xf32>
    %61 = vector.broadcast %60 : vector<1x32xf32> to vector<8x32xf32>
    %62 = arith.addf %59, %61 : vector<8x32xf32>
    %c0_30 = arith.constant 0 : index
    %c0_31 = arith.constant 0 : index
    %63 = vector.load %arg9[%c0_30, %c0_31] : memref<32x64xf32, #tpu.memory_space<vmem>>, vector<32x64xf32>
    %cst_32 = arith.constant dense<0.000000e+00> : vector<8x64xf32>
    %64 = tpu.matmul %62, %63, %cst_32 {dimension_numbers = #tpu.dot_dimension_numbers<[1], [0], [0], [1], [0, 0, 1, 1], [], []>} : vector<8x32xf32>, vector<32x64xf32>, vector<8x64xf32> -> vector<8x64xf32>
    %c0_33 = arith.constant 0 : index
    %c0_34 = arith.constant 0 : index
    %65 = vector.load %arg10[%c0_33, %c0_34] : memref<1x64xf32, #tpu.memory_space<vmem>>, vector<1x64xf32>
    %66 = vector.broadcast %65 : vector<1x64xf32> to vector<8x64xf32>
    %67 = arith.addf %64, %66 : vector<8x64xf32>
    %cst_35 = arith.constant 0.000000e+00 : f32
    %68 = vector.broadcast %cst_35 : f32 to vector<8x64xf32>
    %69 = arith.maximumf %67, %68 : vector<8x64xf32>
    %c0_36 = arith.constant 0 : index
    %c0_37 = arith.constant 0 : index
    %70 = vector.load %arg11[%c0_36, %c0_37] : memref<64x32xf32, #tpu.memory_space<vmem>>, vector<64x32xf32>
    %cst_38 = arith.constant dense<0.000000e+00> : vector<8x32xf32>
    %71 = tpu.matmul %69, %70, %cst_38 {dimension_numbers = #tpu.dot_dimension_numbers<[1], [0], [0], [1], [0, 0, 1, 1], [], []>} : vector<8x64xf32>, vector<64x32xf32>, vector<8x32xf32> -> vector<8x32xf32>
    %c0_39 = arith.constant 0 : index
    %c0_40 = arith.constant 0 : index
    %72 = vector.load %arg12[%c0_39, %c0_40] : memref<1x32xf32, #tpu.memory_space<vmem>>, vector<1x32xf32>
    %73 = vector.broadcast %72 : vector<1x32xf32> to vector<8x32xf32>
    %74 = arith.addf %71, %73 : vector<8x32xf32>
    %75 = arith.addf %62, %74 : vector<8x32xf32>
    %cst_41 = arith.constant dense<0.000000e+00> : vector<8xf32>
    %76 = vector.multi_reduction <add>, %75, %cst_41 [1] : vector<8x32xf32> to vector<8xf32>
    %77 = vector.shape_cast %76 : vector<8xf32> to vector<8x1xf32>
    %cst_42 = arith.constant 3.200000e+01 : f32
    %78 = vector.broadcast %cst_42 : f32 to vector<8x1xf32>
    %79 = arith.divf %77, %78 : vector<8x1xf32>
    %80 = vector.broadcast %79 : vector<8x1xf32> to vector<8x32xf32>
    %81 = arith.subf %75, %80 : vector<8x32xf32>
    %82 = arith.mulf %81, %81 : vector<8x32xf32>
    %cst_43 = arith.constant dense<0.000000e+00> : vector<8xf32>
    %83 = vector.multi_reduction <add>, %82, %cst_43 [1] : vector<8x32xf32> to vector<8xf32>
    %84 = vector.shape_cast %83 : vector<8xf32> to vector<8x1xf32>
    %cst_44 = arith.constant 3.200000e+01 : f32
    %85 = vector.broadcast %cst_44 : f32 to vector<8x1xf32>
    %86 = arith.divf %84, %85 : vector<8x1xf32>
    %87 = vector.broadcast %79 : vector<8x1xf32> to vector<8x32xf32>
    %88 = arith.subf %75, %87 : vector<8x32xf32>
    %cst_45 = arith.constant 9.99999974E-6 : f32
    %89 = vector.broadcast %cst_45 : f32 to vector<8x1xf32>
    %90 = arith.addf %86, %89 : vector<8x1xf32>
    %91 = math.rsqrt %90 : vector<8x1xf32>
    %92 = vector.broadcast %91 : vector<8x1xf32> to vector<8x32xf32>
    %93 = arith.mulf %88, %92 : vector<8x32xf32>
    %c0_46 = arith.constant 0 : index
    %c0_47 = arith.constant 0 : index
    %94 = vector.load %arg15[%c0_46, %c0_47] : memref<1x32xf32, #tpu.memory_space<vmem>>, vector<1x32xf32>
    %95 = vector.broadcast %94 : vector<1x32xf32> to vector<8x32xf32>
    %96 = arith.mulf %93, %95 : vector<8x32xf32>
    %c0_48 = arith.constant 0 : index
    %c0_49 = arith.constant 0 : index
    %97 = vector.load %arg16[%c0_48, %c0_49] : memref<1x32xf32, #tpu.memory_space<vmem>>, vector<1x32xf32>
    %98 = vector.broadcast %97 : vector<1x32xf32> to vector<8x32xf32>
    %99 = arith.addf %96, %98 : vector<8x32xf32>
    %c0_50 = arith.constant 0 : index
    %c0_51 = arith.constant 0 : index
    %c0_52 = arith.constant 0 : index
    %100 = vector.load %arg17[%c0_50, %c0_51, %c0_52] : memref<1x8x32xf32, #tpu.memory_space<vmem>>, vector<1x8x32xf32>
    %101 = vector.shape_cast %100 : vector<1x8x32xf32> to vector<8x32xf32>
    %102 = vector.shape_cast %99 : vector<8x32xf32> to vector<1x8x32xf32>
    tpu.vector_store %arg17[%c0_50, %c0_51, %c0_52], %102 {strides = array<i32>} : memref<1x8x32xf32, #tpu.memory_space<vmem>>, vector<1x8x32xf32>,
    return
  }
  func.func @transform_0(%arg0: i32, %arg1: i32) -> (i32, i32, i32) {
    %c0_i32 = arith.constant 0 : i32
    %c0_i32_0 = arith.constant 0 : i32
    return %arg0, %arg1, %c0_i32 : i32, i32, i32
  }
  func.func @transform_1(%arg0: i32, %arg1: i32) -> (i32, i32) {
    %c0_i32 = arith.constant 0 : i32
    %c0_i32_0 = arith.constant 0 : i32
    %c0_i32_1 = arith.constant 0 : i32
    return %c0_i32, %c0_i32_0 : i32, i32
  }
  func.func @transform_2(%arg0: i32, %arg1: i32) -> (i32, i32) {
    %c0_i32 = arith.constant 0 : i32
    %c0_i32_0 = arith.constant 0 : i32
    %c0_i32_1 = arith.constant 0 : i32
    return %c0_i32, %c0_i32_0 : i32, i32
  }
  func.func @transform_3(%arg0: i32, %arg1: i32) -> (i32, i32) {
    %c0_i32 = arith.constant 0 : i32
    %c0_i32_0 = arith.constant 0 : i32
    %c0_i32_1 = arith.constant 0 : i32
    return %c0_i32, %c0_i32_0 : i32, i32
  }
  func.func @transform_4(%arg0: i32, %arg1: i32) -> (i32, i32) {
    %c0_i32 = arith.constant 0 : i32
    %c0_i32_0 = arith.constant 0 : i32
    %c0_i32_1 = arith.constant 0 : i32
    return %c0_i32, %c0_i32_0 : i32, i32
  }
  func.func @transform_5(%arg0: i32, %arg1: i32) -> (i32, i32) {
    %c0_i32 = arith.constant 0 : i32
    %c0_i32_0 = arith.constant 0 : i32
    %c0_i32_1 = arith.constant 0 : i32
    return %c0_i32, %c0_i32_0 : i32, i32
  }
  func.func @transform_6(%arg0: i32, %arg1: i32) -> (i32, i32) {
    %c0_i32 = arith.constant 0 : i32
    %c0_i32_0 = arith.constant 0 : i32
    %c0_i32_1 = arith.constant 0 : i32
    return %c0_i32, %c0_i32_0 : i32, i32
  }
  func.func @transform_7(%arg0: i32, %arg1: i32) -> (i32, i32) {
    %c0_i32 = arith.constant 0 : i32
    %c0_i32_0 = arith.constant 0 : i32
    %c0_i32_1 = arith.constant 0 : i32
    return %c0_i32, %c0_i32_0 : i32, i32
  }
  func.func @transform_8(%arg0: i32, %arg1: i32) -> (i32, i32) {
    %c0_i32 = arith.constant 0 : i32
    %c0_i32_0 = arith.constant 0 : i32
    %c0_i32_1 = arith.constant 0 : i32
    return %c0_i32, %c0_i32_0 : i32, i32
  }
  func.func @transform_9(%arg0: i32, %arg1: i32) -> (i32, i32) {
    %c0_i32 = arith.constant 0 : i32
    %c0_i32_0 = arith.constant 0 : i32
    %c0_i32_1 = arith.constant 0 : i32
    return %c0_i32, %c0_i32_0 : i32, i32
  }
  func.func @transform_10(%arg0: i32, %arg1: i32) -> (i32, i32) {
    %c0_i32 = arith.constant 0 : i32
    %c0_i32_0 = arith.constant 0 : i32
    %c0_i32_1 = arith.constant 0 : i32
    return %c0_i32, %c0_i32_0 : i32, i32
  }
  func.func @transform_11(%arg0: i32, %arg1: i32) -> (i32, i32) {
    %c0_i32 = arith.constant 0 : i32
    %c0_i32_0 = arith.constant 0 : i32
    %c0_i32_1 = arith.constant 0 : i32
    return %c0_i32, %c0_i32_0 : i32, i32
  }
  func.func @transform_12(%arg0: i32, %arg1: i32) -> (i32, i32) {
    %c0_i32 = arith.constant 0 : i32
    %c0_i32_0 = arith.constant 0 : i32
    %c0_i32_1 = arith.constant 0 : i32
    return %c0_i32, %c0_i32_0 : i32, i32
  }
  func.func @transform_13(%arg0: i32, %arg1: i32) -> (i32, i32) {
    %c0_i32 = arith.constant 0 : i32
    %c0_i32_0 = arith.constant 0 : i32
    %c0_i32_1 = arith.constant 0 : i32
    return %c0_i32, %c0_i32_0 : i32, i32
  }
  func.func @transform_14(%arg0: i32, %arg1: i32) -> (i32, i32) {
    %c0_i32 = arith.constant 0 : i32
    %c0_i32_0 = arith.constant 0 : i32
    %c0_i32_1 = arith.constant 0 : i32
    return %c0_i32, %c0_i32_0 : i32, i32
  }
  func.func @transform_15(%arg0: i32, %arg1: i32) -> (i32, i32, i32) {
    %c0_i32 = arith.constant 0 : i32
    %c0_i32_0 = arith.constant 0 : i32
    return %arg0, %arg1, %c0_i32 : i32, i32, i32
  }
}

module attributes {stable_mosaic.version = 11 : i64} {
  func.func @_encoder_layer_kernel(%arg0: i32, %arg1: i32, %arg2: memref<1x8x32xf32, #tpu.memory_space<vmem>>, %arg3: memref<32x32xf32, #tpu.memory_space<vmem>>, %arg4: memref<1x32xf32, #tpu.memory_space<vmem>>, %arg5: memref<32x64xf32, #tpu.memory_space<vmem>>, %arg6: memref<1x64xf32, #tpu.memory_space<vmem>>, %arg7: memref<32x32xf32, #tpu.memory_space<vmem>>, %arg8: memref<1x32xf32, #tpu.memory_space<vmem>>, %arg9: memref<32x64xf32, #tpu.memory_space<vmem>>, %arg10: memref<1x64xf32, #tpu.memory_space<vmem>>, %arg11: memref<64x32xf32, #tpu.memory_space<vmem>>, %arg12: memref<1x32xf32, #tpu.memory_space<vmem>>, %arg13: memref<1x32xf32, #tpu.memory_space<vmem>>, %arg14: memref<1x32xf32, #tpu.memory_space<vmem>>, %arg15: memref<1x32xf32, #tpu.memory_space<vmem>>, %arg16: memref<1x32xf32, #tpu.memory_space<vmem>>, %arg17: memref<1x8x32xf32, #tpu.memory_space<vmem>>) attributes {dimension_semantics = [#tpu.dimension_semantics<parallel>, #tpu.dimension_semantics<arbitrary>], iteration_bounds = array<i64: 2, 1>, scalar_prefetch = 0 : i64, scratch_operands = 0 : i64, tpu.core_type = #tpu.core_type<tc>, window_params = [{transform_indices = @transform_0, window_bounds = array<i64: 1, 8, 32>}, {pipeline_mode = #tpu.pipeline_mode<synchronous>, transform_indices = @transform_1, window_bounds = array<i64: 32, 32>}, {pipeline_mode = #tpu.pipeline_mode<synchronous>, transform_indices = @transform_2, window_bounds = array<i64: 1, 32>}, {pipeline_mode = #tpu.pipeline_mode<synchronous>, transform_indices = @transform_3, window_bounds = array<i64: 32, 64>}, {pipeline_mode = #tpu.pipeline_mode<synchronous>, transform_indices = @transform_4, window_bounds = array<i64: 1, 64>}, {pipeline_mode = #tpu.pipeline_mode<synchronous>, transform_indices = @transform_5, window_bounds = array<i64: 32, 32>}, {pipeline_mode = #tpu.pipeline_mode<synchronous>, transform_indices = @transform_6, window_bounds = array<i64: 1, 32>}, {pipeline_mode = #tpu.pipeline_mode<synchronous>, transform_indices = @transform_7, window_bounds = array<i64: 32, 64>}, {pipeline_mode = #tpu.pipeline_mode<synchronous>, transform_indices = @transform_8, window_bounds = array<i64: 1, 64>}, {pipeline_mode = #tpu.pipeline_mode<synchronous>, transform_indices = @transform_9, window_bounds = array<i64: 64, 32>}, {pipeline_mode = #tpu.pipeline_mode<synchronous>, transform_indices = @transform_10, window_bounds = array<i64: 1, 32>}, {pipeline_mode = #tpu.pipeline_mode<synchronous>, transform_indices = @transform_11, window_bounds = array<i64: 1, 32>}, {pipeline_mode = #tpu.pipeline_mode<synchronous>, transform_indices = @transform_12, window_bounds = array<i64: 1, 32>}, {pipeline_mode = #tpu.pipeline_mode<synchronous>, transform_indices = @transform_13, window_bounds = array<i64: 1, 32>}, {pipeline_mode = #tpu.pipeline_mode<synchronous>, transform_indices = @transform_14, window_bounds = array<i64: 1, 32>}, {transform_indices = @transform_15, window_bounds = array<i64: 1, 8, 32>}]} {
    %c0 = arith.constant 0 : index
    %c0_0 = arith.constant 0 : index
    %c0_1 = arith.constant 0 : index
    %0 = vector.load %arg2[%c0, %c0_0, %c0_1] : memref<1x8x32xf32, #tpu.memory_space<vmem>>, vector<1x8x32xf32>
    %1 = vector.shape_cast %0 : vector<1x8x32xf32> to vector<8x32xf32>
    %c0_2 = arith.constant 0 : index
    %c0_3 = arith.constant 0 : index
    %2 = vector.load %arg3[%c0_2, %c0_3] : memref<32x32xf32, #tpu.memory_space<vmem>>, vector<32x32xf32>
    %cst = arith.constant dense<0.000000e+00> : vector<8x32xf32>
    %3 = tpu.matmul %1, %2, %cst {dimension_numbers = #tpu.dot_dimension_numbers<[1], [0], [0], [1], [0, 0, 1, 1], [], []>} : vector<8x32xf32>, vector<32x32xf32>, vector<8x32xf32> -> vector<8x32xf32>
    %c0_4 = arith.constant 0 : index
    %c0_5 = arith.constant 0 : index
    %4 = vector.load %arg4[%c0_4, %c0_5] : memref<1x32xf32, #tpu.memory_space<vmem>>, vector<1x32xf32>
    %5 = vector.broadcast %4 : vector<1x32xf32> to vector<8x32xf32>
    %6 = arith.addf %3, %5 : vector<8x32xf32>
    %c0_6 = arith.constant 0 : index
    %c0_7 = arith.constant 0 : index
    %7 = vector.load %arg5[%c0_6, %c0_7] : memref<32x64xf32, #tpu.memory_space<vmem>>, vector<32x64xf32>
    %cst_8 = arith.constant dense<0.000000e+00> : vector<8x64xf32>
    %8 = tpu.matmul %1, %7, %cst_8 {dimension_numbers = #tpu.dot_dimension_numbers<[1], [0], [0], [1], [0, 0, 1, 1], [], []>} : vector<8x32xf32>, vector<32x64xf32>, vector<8x64xf32> -> vector<8x64xf32>
    %c0_9 = arith.constant 0 : index
    %c0_10 = arith.constant 0 : index
    %9 = vector.load %arg6[%c0_9, %c0_10] : memref<1x64xf32, #tpu.memory_space<vmem>>, vector<1x64xf32>
    %10 = vector.broadcast %9 : vector<1x64xf32> to vector<8x64xf32>
    %11 = arith.addf %8, %10 : vector<8x64xf32>
    %12 = vector.extract_strided_slice %11 {offsets = [0, 0], sizes = [8, 32], strides = [1, 1]} : vector<8x64xf32> to vector<8x32xf32>
    %13 = vector.extract_strided_slice %11 {offsets = [0, 32], sizes = [8, 32], strides = [1, 1]} : vector<8x64xf32> to vector<8x32xf32>
    %14 = vector.shape_cast %6 : vector<8x32xf32> to vector<8x4x8xf32>
    %15 = vector.shape_cast %12 : vector<8x32xf32> to vector<8x4x8xf32>
    %16 = vector.shape_cast %13 : vector<8x32xf32> to vector<8x4x8xf32>
    "tpu.trace_start"() <{level = 10 : i32, message = "qhd,khd->hqk"}> : () -> ()
    %cst_11 = arith.constant dense<0.000000e+00> : vector<4x8x8xf32>
    %17 = tpu.matmul %14, %15, %cst_11 {dimension_numbers = #tpu.dot_dimension_numbers<[2], [2], [0], [0], [0, 1, 0, 0, 1, 0], [1], [1]>} : vector<8x4x8xf32>, vector<8x4x8xf32>, vector<4x8x8xf32> -> vector<4x8x8xf32>
    "tpu.trace_stop"() : () -> ()
    %cst_12 = arith.constant 0.353553385 : f32
    %18 = vector.broadcast %cst_12 : f32 to vector<4x8x8xf32>
    %19 = arith.mulf %17, %18 : vector<4x8x8xf32>
    %cst_13 = arith.constant dense<0xFF800000> : vector<4x8xf32>
    %20 = vector.multi_reduction <maximumf>, %19, %cst_13 [2] : vector<4x8x8xf32> to vector<4x8xf32>
    %21 = vector.shape_cast %20 : vector<4x8xf32> to vector<4x8x1xf32>
    %22 = vector.broadcast %21 : vector<4x8x1xf32> to vector<4x8x8xf32>
    %23 = arith.subf %19, %22 : vector<4x8x8xf32>
    %24 = math.exp %23 : vector<4x8x8xf32>
    %cst_14 = arith.constant dense<0.000000e+00> : vector<4x8xf32>
    %25 = vector.multi_reduction <add>, %24, %cst_14 [2] : vector<4x8x8xf32> to vector<4x8xf32>
    %26 = vector.shape_cast %25 : vector<4x8xf32> to vector<4x8x1xf32>
    %27 = tpu.reciprocal %26 {approx = true} : vector<4x8x1xf32> -> vector<4x8x1xf32>
    %28 = vector.broadcast %27 : vector<4x8x1xf32> to vector<4x8x8xf32>
    %29 = arith.mulf %24, %28 : vector<4x8x8xf32>
    "tpu.trace_start"() <{level = 10 : i32, message = "hqk,khd->qhd"}> : () -> ()
    %cst_15 = arith.constant dense<0.000000e+00> : vector<4x8x8xf32>
    %30 = tpu.matmul %16, %29, %cst_15 {dimension_numbers = #tpu.dot_dimension_numbers<[0], [2], [2], [1], [0, 1, 0, 2, 1, 1], [1], [0]>} : vector<8x4x8xf32>, vector<4x8x8xf32>, vector<4x8x8xf32> -> vector<4x8x8xf32>
    %31 = tpu.transpose %30, [2, 0, 1] : vector<4x8x8xf32> -> vector<8x4x8xf32>
    "tpu.trace_stop"() : () -> ()
    %32 = vector.shape_cast %31 : vector<8x4x8xf32> to vector<8x32xf32>
    %c0_16 = arith.constant 0 : index
    %c0_17 = arith.constant 0 : index
    %33 = vector.load %arg7[%c0_16, %c0_17] : memref<32x32xf32, #tpu.memory_space<vmem>>, vector<32x32xf32>
    %cst_18 = arith.constant dense<0.000000e+00> : vector<8x32xf32>
    %34 = tpu.matmul %32, %33, %cst_18 {dimension_numbers = #tpu.dot_dimension_numbers<[1], [0], [0], [1], [0, 0, 1, 1], [], []>} : vector<8x32xf32>, vector<32x32xf32>, vector<8x32xf32> -> vector<8x32xf32>
    %c0_19 = arith.constant 0 : index
    %c0_20 = arith.constant 0 : index
    %35 = vector.load %arg8[%c0_19, %c0_20] : memref<1x32xf32, #tpu.memory_space<vmem>>, vector<1x32xf32>
    %36 = vector.broadcast %35 : vector<1x32xf32> to vector<8x32xf32>
    %37 = arith.addf %34, %36 : vector<8x32xf32>
    %38 = arith.addf %1, %37 : vector<8x32xf32>
    %cst_21 = arith.constant dense<0.000000e+00> : vector<8xf32>
    %39 = vector.multi_reduction <add>, %38, %cst_21 [1] : vector<8x32xf32> to vector<8xf32>
    %40 = vector.shape_cast %39 : vector<8xf32> to vector<8x1xf32>
    %cst_22 = arith.constant 3.200000e+01 : f32
    %41 = vector.broadcast %cst_22 : f32 to vector<8x1xf32>
    %42 = arith.divf %40, %41 : vector<8x1xf32>
    %43 = vector.broadcast %42 : vector<8x1xf32> to vector<8x32xf32>
    %44 = arith.subf %38, %43 : vector<8x32xf32>
    %45 = arith.mulf %44, %44 : vector<8x32xf32>
    %cst_23 = arith.constant dense<0.000000e+00> : vector<8xf32>
    %46 = vector.multi_reduction <add>, %45, %cst_23 [1] : vector<8x32xf32> to vector<8xf32>
    %47 = vector.shape_cast %46 : vector<8xf32> to vector<8x1xf32>
    %cst_24 = arith.constant 3.200000e+01 : f32
    %48 = vector.broadcast %cst_24 : f32 to vector<8x1xf32>
    %49 = arith.divf %47, %48 : vector<8x1xf32>
    %50 = vector.broadcast %42 : vector<8x1xf32> to vector<8x32xf32>
    %51 = arith.subf %38, %50 : vector<8x32xf32>
    %cst_25 = arith.constant 9.99999974E-6 : f32
    %52 = vector.broadcast %cst_25 : f32 to vector<8x1xf32>
    %53 = arith.addf %49, %52 : vector<8x1xf32>
    %54 = math.rsqrt %53 : vector<8x1xf32>
    %55 = vector.broadcast %54 : vector<8x1xf32> to vector<8x32xf32>
    %56 = arith.mulf %51, %55 : vector<8x32xf32>
    %c0_26 = arith.constant 0 : index
    %c0_27 = arith.constant 0 : index
    %57 = vector.load %arg13[%c0_26, %c0_27] : memref<1x32xf32, #tpu.memory_space<vmem>>, vector<1x32xf32>
    %58 = vector.broadcast %57 : vector<1x32xf32> to vector<8x32xf32>
    %59 = arith.mulf %56, %58 : vector<8x32xf32>
    %c0_28 = arith.constant 0 : index
    %c0_29 = arith.constant 0 : index
    %60 = vector.load %arg14[%c0_28, %c0_29] : memref<1x32xf32, #tpu.memory_space<vmem>>, vector<1x32xf32>
    %61 = vector.broadcast %60 : vector<1x32xf32> to vector<8x32xf32>
    %62 = arith.addf %59, %61 : vector<8x32xf32>
    %c0_30 = arith.constant 0 : index
    %c0_31 = arith.constant 0 : index
    %63 = vector.load %arg9[%c0_30, %c0_31] : memref<32x64xf32, #tpu.memory_space<vmem>>, vector<32x64xf32>
    %cst_32 = arith.constant dense<0.000000e+00> : vector<8x64xf32>
    %64 = tpu.matmul %62, %63, %cst_32 {dimension_numbers = #tpu.dot_dimension_numbers<[1], [0], [0], [1], [0, 0, 1, 1], [], []>} : vector<8x32xf32>, vector<32x64xf32>, vector<8x64xf32> -> vector<8x64xf32>
    %c0_33 = arith.constant 0 : index
    %c0_34 = arith.constant 0 : index
    %65 = vector.load %arg10[%c0_33, %c0_34] : memref<1x64xf32, #tpu.memory_space<vmem>>, vector<1x64xf32>
    %66 = vector.broadcast %65 : vector<1x64xf32> to vector<8x64xf32>
    %67 = arith.addf %64, %66 : vector<8x64xf32>
    %cst_35 = arith.constant 0.000000e+00 : f32
    %68 = vector.broadcast %cst_35 : f32 to vector<8x64xf32>
    %69 = arith.maximumf %67, %68 : vector<8x64xf32>
    %c0_36 = arith.constant 0 : index
    %c0_37 = arith.constant 0 : index
    %70 = vector.load %arg11[%c0_36, %c0_37] : memref<64x32xf32, #tpu.memory_space<vmem>>, vector<64x32xf32>
    %cst_38 = arith.constant dense<0.000000e+00> : vector<8x32xf32>
    %71 = tpu.matmul %69, %70, %cst_38 {dimension_numbers = #tpu.dot_dimension_numbers<[1], [0], [0], [1], [0, 0, 1, 1], [], []>} : vector<8x64xf32>, vector<64x32xf32>, vector<8x32xf32> -> vector<8x32xf32>
    %c0_39 = arith.constant 0 : index
    %c0_40 = arith.constant 0 : index
    %72 = vector.load %arg12[%c0_39, %c0_40] : memref<1x32xf32, #tpu.memory_space<vmem>>, vector<1x32xf32>
    %73 = vector.broadcast %72 : vector<1x32xf32> to vector<8x32xf32>
    %74 = arith.addf %71, %73 : vector<8x32xf32>
    %75 = arith.addf %62, %74 : vector<8x32xf32>
    %cst_41 = arith.constant dense<0.000000e+00> : vector<8xf32>
    %76 = vector.multi_reduction <add>, %75, %cst_41 [1] : vector<8x32xf32> to vector<8xf32>
    %77 = vector.shape_cast %76 : vector<8xf32> to vector<8x1xf32>
    %cst_42 = arith.constant 3.200000e+01 : f32
    %78 = vector.broadcast %cst_42 : f32 to vector<8x1xf32>
    %79 = arith.divf %77, %78 : vector<8x1xf32>
    %80 = vector.broadcast %79 : vector<8x1xf32> to vector<8x32xf32>
    %81 = arith.subf %75, %80 : vector<8x32xf32>
    %82 = arith.mulf %81, %81 : vector<8x32xf32>
    %cst_43 = arith.constant dense<0.000000e+00> : vector<8xf32>
    %83 = vector.multi_reduction <add>, %82, %cst_43 [1] : vector<8x32xf32> to vector<8xf32>
    %84 = vector.shape_cast %83 : vector<8xf32> to vector<8x1xf32>
    %cst_44 = arith.constant 3.200000e+01 : f32
    %85 = vector.broadcast %cst_44 : f32 to vector<8x1xf32>
    %86 = arith.divf %84, %85 : vector<8x1xf32>
    %87 = vector.broadcast %79 : vector<8x1xf32> to vector<8x32xf32>
    %88 = arith.subf %75, %87 : vector<8x32xf32>
    %cst_45 = arith.constant 9.99999974E-6 : f32
    %89 = vector.broadcast %cst_45 : f32 to vector<8x1xf32>
    %90 = arith.addf %86, %89 : vector<8x1xf32>
    %91 = math.rsqrt %90 : vector<8x1xf32>
    %92 = vector.broadcast %91 : vector<8x1xf32> to vector<8x32xf32>
    %93 = arith.mulf %88, %92 : vector<8x32xf32>
    %c0_46 = arith.constant 0 : index
    %c0_47 = arith.constant 0 : index
    %94 = vector.load %arg15[%c0_46, %c0_47] : memref<1x32xf32, #tpu.memory_space<vmem>>, vector<1x32xf32>
    %95 = vector.broadcast %94 : vector<1x32xf32> to vector<8x32xf32>
    %96 = arith.mulf %93, %95 : vector<8x32xf32>
    %c0_48 = arith.constant 0 : index
    %c0_49 = arith.constant 0 : index
    %97 = vector.load %arg16[%c0_48, %c0_49] : memref<1x32xf32, #tpu.memory_space<vmem>>, vector<1x32xf32>
    %98 = vector.broadcast %97 : vector<1x32xf32> to vector<8x32xf32>
    %99 = arith.addf %96, %98 : vector<8x32xf32>
    %c0_50 = arith.constant 0 : index
    %c0_51 = arith.constant 0 : index
    %c0_52 = arith.constant 0 : index
    %100 = vector.load %arg17[%c0_50, %c0_51, %c0_52] : memref<1x8x32xf32, #tpu.memory_space<vmem>>, vector<1x8x32xf32>
    %101 = vector.shape_cast %100 : vector<1x8x32xf32> to vector<8x32xf32>
    %102 = vector.shape_cast %99 : vector<8x32xf32> to vector<1x8x32xf32>
    tpu.vector_store %arg17[%c0_50, %c0_51, %c0_52], %102 {strides = array<i32>} : memref<1x8x32xf32, #tpu.memory_space<vmem>>, vector<1x8x32xf32>,
    return
  }
  func.func @transform_0(%arg0: i32, %arg1: i32) -> (i32, i32, i32) {
    %c0_i32 = arith.constant 0 : i32
    %c0_i32_0 = arith.constant 0 : i32
    return %arg0, %arg1, %c0_i32 : i32, i32, i32
  }
  func.func @transform_1(%arg0: i32, %arg1: i32) -> (i32, i32) {
    %c0_i32 = arith.constant 0 : i32
    %c0_i32_0 = arith.constant 0 : i32
    %c0_i32_1 = arith.constant 0 : i32
    return %c0_i32, %c0_i32_0 : i32, i32
  }
  func.func @transform_2(%arg0: i32, %arg1: i32) -> (i32, i32) {
    %c0_i32 = arith.constant 0 : i32
    %c0_i32_0 = arith.constant 0 : i32
    %c0_i32_1 = arith.constant 0 : i32
    return %c0_i32, %c0_i32_0 : i32, i32
  }
  func.func @transform_3(%arg0: i32, %arg1: i32) -> (i32, i32) {
    %c0_i32 = arith.constant 0 : i32
    %c0_i32_0 = arith.constant 0 : i32
    %c0_i32_1 = arith.constant 0 : i32
    return %c0_i32, %c0_i32_0 : i32, i32
  }
  func.func @transform_4(%arg0: i32, %arg1: i32) -> (i32, i32) {
    %c0_i32 = arith.constant 0 : i32
    %c0_i32_0 = arith.constant 0 : i32
    %c0_i32_1 = arith.constant 0 : i32
    return %c0_i32, %c0_i32_0 : i32, i32
  }
  func.func @transform_5(%arg0: i32, %arg1: i32) -> (i32, i32) {
    %c0_i32 = arith.constant 0 : i32
    %c0_i32_0 = arith.constant 0 : i32
    %c0_i32_1 = arith.constant 0 : i32
    return %c0_i32, %c0_i32_0 : i32, i32
  }
  func.func @transform_6(%arg0: i32, %arg1: i32) -> (i32, i32) {
    %c0_i32 = arith.constant 0 : i32
    %c0_i32_0 = arith.constant 0 : i32
    %c0_i32_1 = arith.constant 0 : i32
    return %c0_i32, %c0_i32_0 : i32, i32
  }
  func.func @transform_7(%arg0: i32, %arg1: i32) -> (i32, i32) {
    %c0_i32 = arith.constant 0 : i32
    %c0_i32_0 = arith.constant 0 : i32
    %c0_i32_1 = arith.constant 0 : i32
    return %c0_i32, %c0_i32_0 : i32, i32
  }
  func.func @transform_8(%arg0: i32, %arg1: i32) -> (i32, i32) {
    %c0_i32 = arith.constant 0 : i32
    %c0_i32_0 = arith.constant 0 : i32
    %c0_i32_1 = arith.constant 0 : i32
    return %c0_i32, %c0_i32_0 : i32, i32
  }
  func.func @transform_9(%arg0: i32, %arg1: i32) -> (i32, i32) {
    %c0_i32 = arith.constant 0 : i32
    %c0_i32_0 = arith.constant 0 : i32
    %c0_i32_1 = arith.constant 0 : i32
    return %c0_i32, %c0_i32_0 : i32, i32
  }
  func.func @transform_10(%arg0: i32, %arg1: i32) -> (i32, i32) {
    %c0_i32 = arith.constant 0 : i32
    %c0_i32_0 = arith.constant 0 : i32
    %c0_i32_1 = arith.constant 0 : i32
    return %c0_i32, %c0_i32_0 : i32, i32
  }
  func.func @transform_11(%arg0: i32, %arg1: i32) -> (i32, i32) {
    %c0_i32 = arith.constant 0 : i32
    %c0_i32_0 = arith.constant 0 : i32
    %c0_i32_1 = arith.constant 0 : i32
    return %c0_i32, %c0_i32_0 : i32, i32
  }
  func.func @transform_12(%arg0: i32, %arg1: i32) -> (i32, i32) {
    %c0_i32 = arith.constant 0 : i32
    %c0_i32_0 = arith.constant 0 : i32
    %c0_i32_1 = arith.constant 0 : i32
    return %c0_i32, %c0_i32_0 : i32, i32
  }
  func.func @transform_13(%arg0: i32, %arg1: i32) -> (i32, i32) {
    %c0_i32 = arith.constant 0 : i32
    %c0_i32_0 = arith.constant 0 : i32
    %c0_i32_1 = arith.constant 0 : i32
    return %c0_i32, %c0_i32_0 : i32, i32
  }
  func.func @transform_14(%arg0: i32, %arg1: i32) -> (i32, i32) {
    %c0_i32 = arith.constant 0 : i32
    %c0_i32_0 = arith.constant 0 : i32
    %c0_i32_1 = arith.constant 0 : i32
    return %c0_i32, %c0_i32_0 : i32, i32
  }
  func.func @transform_15(%arg0: i32, %arg1: i32) -> (i32, i32, i32) {
    %c0_i32 = arith.constant 0 : i32
    %c0_i32_0 = arith.constant 0 : i32
    return %arg0, %arg1, %c0_i32 : i32, i32, i32
  }
}

module attributes {stable_mosaic.version = 11 : i64} {
  func.func @_encoder_layer_kernel(%arg0: i32, %arg1: i32, %arg2: memref<1x8x32xf32, #tpu.memory_space<vmem>>, %arg3: memref<32x32xf32, #tpu.memory_space<vmem>>, %arg4: memref<1x32xf32, #tpu.memory_space<vmem>>, %arg5: memref<32x64xf32, #tpu.memory_space<vmem>>, %arg6: memref<1x64xf32, #tpu.memory_space<vmem>>, %arg7: memref<32x32xf32, #tpu.memory_space<vmem>>, %arg8: memref<1x32xf32, #tpu.memory_space<vmem>>, %arg9: memref<32x64xf32, #tpu.memory_space<vmem>>, %arg10: memref<1x64xf32, #tpu.memory_space<vmem>>, %arg11: memref<64x32xf32, #tpu.memory_space<vmem>>, %arg12: memref<1x32xf32, #tpu.memory_space<vmem>>, %arg13: memref<1x32xf32, #tpu.memory_space<vmem>>, %arg14: memref<1x32xf32, #tpu.memory_space<vmem>>, %arg15: memref<1x32xf32, #tpu.memory_space<vmem>>, %arg16: memref<1x32xf32, #tpu.memory_space<vmem>>, %arg17: memref<1x8x32xf32, #tpu.memory_space<vmem>>) attributes {dimension_semantics = [#tpu.dimension_semantics<parallel>, #tpu.dimension_semantics<arbitrary>], iteration_bounds = array<i64: 2, 1>, scalar_prefetch = 0 : i64, scratch_operands = 0 : i64, tpu.core_type = #tpu.core_type<tc>, window_params = [{transform_indices = @transform_0, window_bounds = array<i64: 1, 8, 32>}, {pipeline_mode = #tpu.pipeline_mode<synchronous>, transform_indices = @transform_1, window_bounds = array<i64: 32, 32>}, {pipeline_mode = #tpu.pipeline_mode<synchronous>, transform_indices = @transform_2, window_bounds = array<i64: 1, 32>}, {pipeline_mode = #tpu.pipeline_mode<synchronous>, transform_indices = @transform_3, window_bounds = array<i64: 32, 64>}, {pipeline_mode = #tpu.pipeline_mode<synchronous>, transform_indices = @transform_4, window_bounds = array<i64: 1, 64>}, {pipeline_mode = #tpu.pipeline_mode<synchronous>, transform_indices = @transform_5, window_bounds = array<i64: 32, 32>}, {pipeline_mode = #tpu.pipeline_mode<synchronous>, transform_indices = @transform_6, window_bounds = array<i64: 1, 32>}, {pipeline_mode = #tpu.pipeline_mode<synchronous>, transform_indices = @transform_7, window_bounds = array<i64: 32, 64>}, {pipeline_mode = #tpu.pipeline_mode<synchronous>, transform_indices = @transform_8, window_bounds = array<i64: 1, 64>}, {pipeline_mode = #tpu.pipeline_mode<synchronous>, transform_indices = @transform_9, window_bounds = array<i64: 64, 32>}, {pipeline_mode = #tpu.pipeline_mode<synchronous>, transform_indices = @transform_10, window_bounds = array<i64: 1, 32>}, {pipeline_mode = #tpu.pipeline_mode<synchronous>, transform_indices = @transform_11, window_bounds = array<i64: 1, 32>}, {pipeline_mode = #tpu.pipeline_mode<synchronous>, transform_indices = @transform_12, window_bounds = array<i64: 1, 32>}, {pipeline_mode = #tpu.pipeline_mode<synchronous>, transform_indices = @transform_13, window_bounds = array<i64: 1, 32>}, {pipeline_mode = #tpu.pipeline_mode<synchronous>, transform_indices = @transform_14, window_bounds = array<i64: 1, 32>}, {transform_indices = @transform_15, window_bounds = array<i64: 1, 8, 32>}]} {
    %c0 = arith.constant 0 : index
    %c0_0 = arith.constant 0 : index
    %c0_1 = arith.constant 0 : index
    %0 = vector.load %arg2[%c0, %c0_0, %c0_1] : memref<1x8x32xf32, #tpu.memory_space<vmem>>, vector<1x8x32xf32>
    %1 = vector.shape_cast %0 : vector<1x8x32xf32> to vector<8x32xf32>
    %c0_2 = arith.constant 0 : index
    %c0_3 = arith.constant 0 : index
    %2 = vector.load %arg3[%c0_2, %c0_3] : memref<32x32xf32, #tpu.memory_space<vmem>>, vector<32x32xf32>
    %cst = arith.constant dense<0.000000e+00> : vector<8x32xf32>
    %3 = tpu.matmul %1, %2, %cst {dimension_numbers = #tpu.dot_dimension_numbers<[1], [0], [0], [1], [0, 0, 1, 1], [], []>} : vector<8x32xf32>, vector<32x32xf32>, vector<8x32xf32> -> vector<8x32xf32>
    %c0_4 = arith.constant 0 : index
    %c0_5 = arith.constant 0 : index
    %4 = vector.load %arg4[%c0_4, %c0_5] : memref<1x32xf32, #tpu.memory_space<vmem>>, vector<1x32xf32>
    %5 = vector.broadcast %4 : vector<1x32xf32> to vector<8x32xf32>
    %6 = arith.addf %3, %5 : vector<8x32xf32>
    %c0_6 = arith.constant 0 : index
    %c0_7 = arith.constant 0 : index
    %7 = vector.load %arg5[%c0_6, %c0_7] : memref<32x64xf32, #tpu.memory_space<vmem>>, vector<32x64xf32>
    %cst_8 = arith.constant dense<0.000000e+00> : vector<8x64xf32>
    %8 = tpu.matmul %1, %7, %cst_8 {dimension_numbers = #tpu.dot_dimension_numbers<[1], [0], [0], [1], [0, 0, 1, 1], [], []>} : vector<8x32xf32>, vector<32x64xf32>, vector<8x64xf32> -> vector<8x64xf32>
    %c0_9 = arith.constant 0 : index
    %c0_10 = arith.constant 0 : index
    %9 = vector.load %arg6[%c0_9, %c0_10] : memref<1x64xf32, #tpu.memory_space<vmem>>, vector<1x64xf32>
    %10 = vector.broadcast %9 : vector<1x64xf32> to vector<8x64xf32>
    %11 = arith.addf %8, %10 : vector<8x64xf32>
    %12 = vector.extract_strided_slice %11 {offsets = [0, 0], sizes = [8, 32], strides = [1, 1]} : vector<8x64xf32> to vector<8x32xf32>
    %13 = vector.extract_strided_slice %11 {offsets = [0, 32], sizes = [8, 32], strides = [1, 1]} : vector<8x64xf32> to vector<8x32xf32>
    %14 = vector.shape_cast %6 : vector<8x32xf32> to vector<8x4x8xf32>
    %15 = vector.shape_cast %12 : vector<8x32xf32> to vector<8x4x8xf32>
    %16 = vector.shape_cast %13 : vector<8x32xf32> to vector<8x4x8xf32>
    %17 = tpu.transpose %14, [1, 0, 2] : vector<8x4x8xf32> -> vector<4x8x8xf32>
    %18 = tpu.transpose %15, [1, 0, 2] : vector<8x4x8xf32> -> vector<4x8x8xf32>
    %19 = tpu.transpose %16, [1, 0, 2] : vector<8x4x8xf32> -> vector<4x8x8xf32>
    "tpu.trace_start"() <{level = 10 : i32, message = "hqd,hkd->hqk"}> : () -> ()
    %cst_11 = arith.constant dense<0.000000e+00> : vector<4x8x8xf32>
    %20 = tpu.matmul %17, %18, %cst_11 {dimension_numbers = #tpu.dot_dimension_numbers<[2], [2], [1], [1], [0, 0, 0, 1, 1, 1], [0], [0]>} : vector<4x8x8xf32>, vector<4x8x8xf32>, vector<4x8x8xf32> -> vector<4x8x8xf32>
    "tpu.trace_stop"() : () -> ()
    %cst_12 = arith.constant 0.353553385 : f32
    %21 = vector.broadcast %cst_12 : f32 to vector<4x8x8xf32>
    %22 = arith.mulf %20, %21 : vector<4x8x8xf32>
    %cst_13 = arith.constant dense<0xFF800000> : vector<4x8xf32>
    %23 = vector.multi_reduction <maximumf>, %22, %cst_13 [2] : vector<4x8x8xf32> to vector<4x8xf32>
    %24 = vector.shape_cast %23 : vector<4x8xf32> to vector<4x8x1xf32>
    %25 = vector.broadcast %24 : vector<4x8x1xf32> to vector<4x8x8xf32>
    %26 = arith.subf %22, %25 : vector<4x8x8xf32>
    %27 = math.exp %26 : vector<4x8x8xf32>
    %cst_14 = arith.constant dense<0.000000e+00> : vector<4x8xf32>
    %28 = vector.multi_reduction <add>, %27, %cst_14 [2] : vector<4x8x8xf32> to vector<4x8xf32>
    %29 = vector.shape_cast %28 : vector<4x8xf32> to vector<4x8x1xf32>
    %30 = tpu.reciprocal %29 {approx = true} : vector<4x8x1xf32> -> vector<4x8x1xf32>
    %31 = vector.broadcast %30 : vector<4x8x1xf32> to vector<4x8x8xf32>
    %32 = arith.mulf %27, %31 : vector<4x8x8xf32>
    "tpu.trace_start"() <{level = 10 : i32, message = "hqk,hkd->hqd"}> : () -> ()
    %cst_15 = arith.constant dense<0.000000e+00> : vector<4x8x8xf32>
    %33 = tpu.matmul %32, %19, %cst_15 {dimension_numbers = #tpu.dot_dimension_numbers<[2], [1], [1], [2], [0, 0, 0, 1, 1, 2], [0], [0]>} : vector<4x8x8xf32>, vector<4x8x8xf32>, vector<4x8x8xf32> -> vector<4x8x8xf32>
    "tpu.trace_stop"() : () -> ()
    %34 = tpu.transpose %33, [1, 0, 2] : vector<4x8x8xf32> -> vector<8x4x8xf32>
    %35 = vector.shape_cast %34 : vector<8x4x8xf32> to vector<8x32xf32>
    %c0_16 = arith.constant 0 : index
    %c0_17 = arith.constant 0 : index
    %36 = vector.load %arg7[%c0_16, %c0_17] : memref<32x32xf32, #tpu.memory_space<vmem>>, vector<32x32xf32>
    %cst_18 = arith.constant dense<0.000000e+00> : vector<8x32xf32>
    %37 = tpu.matmul %35, %36, %cst_18 {dimension_numbers = #tpu.dot_dimension_numbers<[1], [0], [0], [1], [0, 0, 1, 1], [], []>} : vector<8x32xf32>, vector<32x32xf32>, vector<8x32xf32> -> vector<8x32xf32>
    %c0_19 = arith.constant 0 : index
    %c0_20 = arith.constant 0 : index
    %38 = vector.load %arg8[%c0_19, %c0_20] : memref<1x32xf32, #tpu.memory_space<vmem>>, vector<1x32xf32>
    %39 = vector.broadcast %38 : vector<1x32xf32> to vector<8x32xf32>
    %40 = arith.addf %37, %39 : vector<8x32xf32>
    %41 = arith.addf %1, %40 : vector<8x32xf32>
    %cst_21 = arith.constant dense<0.000000e+00> : vector<8xf32>
    %42 = vector.multi_reduction <add>, %41, %cst_21 [1] : vector<8x32xf32> to vector<8xf32>
    %43 = vector.shape_cast %42 : vector<8xf32> to vector<8x1xf32>
    %cst_22 = arith.constant 3.200000e+01 : f32
    %44 = vector.broadcast %cst_22 : f32 to vector<8x1xf32>
    %45 = arith.divf %43, %44 : vector<8x1xf32>
    %46 = vector.broadcast %45 : vector<8x1xf32> to vector<8x32xf32>
    %47 = arith.subf %41, %46 : vector<8x32xf32>
    %48 = arith.mulf %47, %47 : vector<8x32xf32>
    %cst_23 = arith.constant dense<0.000000e+00> : vector<8xf32>
    %49 = vector.multi_reduction <add>, %48, %cst_23 [1] : vector<8x32xf32> to vector<8xf32>
    %50 = vector.shape_cast %49 : vector<8xf32> to vector<8x1xf32>
    %cst_24 = arith.constant 3.200000e+01 : f32
    %51 = vector.broadcast %cst_24 : f32 to vector<8x1xf32>
    %52 = arith.divf %50, %51 : vector<8x1xf32>
    %53 = vector.broadcast %45 : vector<8x1xf32> to vector<8x32xf32>
    %54 = arith.subf %41, %53 : vector<8x32xf32>
    %cst_25 = arith.constant 9.99999974E-6 : f32
    %55 = vector.broadcast %cst_25 : f32 to vector<8x1xf32>
    %56 = arith.addf %52, %55 : vector<8x1xf32>
    %57 = math.rsqrt %56 : vector<8x1xf32>
    %58 = vector.broadcast %57 : vector<8x1xf32> to vector<8x32xf32>
    %59 = arith.mulf %54, %58 : vector<8x32xf32>
    %c0_26 = arith.constant 0 : index
    %c0_27 = arith.constant 0 : index
    %60 = vector.load %arg13[%c0_26, %c0_27] : memref<1x32xf32, #tpu.memory_space<vmem>>, vector<1x32xf32>
    %61 = vector.broadcast %60 : vector<1x32xf32> to vector<8x32xf32>
    %62 = arith.mulf %59, %61 : vector<8x32xf32>
    %c0_28 = arith.constant 0 : index
    %c0_29 = arith.constant 0 : index
    %63 = vector.load %arg14[%c0_28, %c0_29] : memref<1x32xf32, #tpu.memory_space<vmem>>, vector<1x32xf32>
    %64 = vector.broadcast %63 : vector<1x32xf32> to vector<8x32xf32>
    %65 = arith.addf %62, %64 : vector<8x32xf32>
    %c0_30 = arith.constant 0 : index
    %c0_31 = arith.constant 0 : index
    %66 = vector.load %arg9[%c0_30, %c0_31] : memref<32x64xf32, #tpu.memory_space<vmem>>, vector<32x64xf32>
    %cst_32 = arith.constant dense<0.000000e+00> : vector<8x64xf32>
    %67 = tpu.matmul %65, %66, %cst_32 {dimension_numbers = #tpu.dot_dimension_numbers<[1], [0], [0], [1], [0, 0, 1, 1], [], []>} : vector<8x32xf32>, vector<32x64xf32>, vector<8x64xf32> -> vector<8x64xf32>
    %c0_33 = arith.constant 0 : index
    %c0_34 = arith.constant 0 : index
    %68 = vector.load %arg10[%c0_33, %c0_34] : memref<1x64xf32, #tpu.memory_space<vmem>>, vector<1x64xf32>
    %69 = vector.broadcast %68 : vector<1x64xf32> to vector<8x64xf32>
    %70 = arith.addf %67, %69 : vector<8x64xf32>
    %cst_35 = arith.constant 0.000000e+00 : f32
    %71 = vector.broadcast %cst_35 : f32 to vector<8x64xf32>
    %72 = arith.maximumf %70, %71 : vector<8x64xf32>
    %c0_36 = arith.constant 0 : index
    %c0_37 = arith.constant 0 : index
    %73 = vector.load %arg11[%c0_36, %c0_37] : memref<64x32xf32, #tpu.memory_space<vmem>>, vector<64x32xf32>
    %cst_38 = arith.constant dense<0.000000e+00> : vector<8x32xf32>
    %74 = tpu.matmul %72, %73, %cst_38 {dimension_numbers = #tpu.dot_dimension_numbers<[1], [0], [0], [1], [0, 0, 1, 1], [], []>} : vector<8x64xf32>, vector<64x32xf32>, vector<8x32xf32> -> vector<8x32xf32>
    %c0_39 = arith.constant 0 : index
    %c0_40 = arith.constant 0 : index
    %75 = vector.load %arg12[%c0_39, %c0_40] : memref<1x32xf32, #tpu.memory_space<vmem>>, vector<1x32xf32>
    %76 = vector.broadcast %75 : vector<1x32xf32> to vector<8x32xf32>
    %77 = arith.addf %74, %76 : vector<8x32xf32>
    %78 = arith.addf %65, %77 : vector<8x32xf32>
    %cst_41 = arith.constant dense<0.000000e+00> : vector<8xf32>
    %79 = vector.multi_reduction <add>, %78, %cst_41 [1] : vector<8x32xf32> to vector<8xf32>
    %80 = vector.shape_cast %79 : vector<8xf32> to vector<8x1xf32>
    %cst_42 = arith.constant 3.200000e+01 : f32
    %81 = vector.broadcast %cst_42 : f32 to vector<8x1xf32>
    %82 = arith.divf %80, %81 : vector<8x1xf32>
    %83 = vector.broadcast %82 : vector<8x1xf32> to vector<8x32xf32>
    %84 = arith.subf %78, %83 : vector<8x32xf32>
    %85 = arith.mulf %84, %84 : vector<8x32xf32>
    %cst_43 = arith.constant dense<0.000000e+00> : vector<8xf32>
    %86 = vector.multi_reduction <add>, %85, %cst_43 [1] : vector<8x32xf32> to vector<8xf32>
    %87 = vector.shape_cast %86 : vector<8xf32> to vector<8x1xf32>
    %cst_44 = arith.constant 3.200000e+01 : f32
    %88 = vector.broadcast %cst_44 : f32 to vector<8x1xf32>
    %89 = arith.divf %87, %88 : vector<8x1xf32>
    %90 = vector.broadcast %82 : vector<8x1xf32> to vector<8x32xf32>
    %91 = arith.subf %78, %90 : vector<8x32xf32>
    %cst_45 = arith.constant 9.99999974E-6 : f32
    %92 = vector.broadcast %cst_45 : f32 to vector<8x1xf32>
    %93 = arith.addf %89, %92 : vector<8x1xf32>
    %94 = math.rsqrt %93 : vector<8x1xf32>
    %95 = vector.broadcast %94 : vector<8x1xf32> to vector<8x32xf32>
    %96 = arith.mulf %91, %95 : vector<8x32xf32>
    %c0_46 = arith.constant 0 : index
    %c0_47 = arith.constant 0 : index
    %97 = vector.load %arg15[%c0_46, %c0_47] : memref<1x32xf32, #tpu.memory_space<vmem>>, vector<1x32xf32>
    %98 = vector.broadcast %97 : vector<1x32xf32> to vector<8x32xf32>
    %99 = arith.mulf %96, %98 : vector<8x32xf32>
    %c0_48 = arith.constant 0 : index
    %c0_49 = arith.constant 0 : index
    %100 = vector.load %arg16[%c0_48, %c0_49] : memref<1x32xf32, #tpu.memory_space<vmem>>, vector<1x32xf32>
    %101 = vector.broadcast %100 : vector<1x32xf32> to vector<8x32xf32>
    %102 = arith.addf %99, %101 : vector<8x32xf32>
    %c0_50 = arith.constant 0 : index
    %c0_51 = arith.constant 0 : index
    %c0_52 = arith.constant 0 : index
    %103 = vector.load %arg17[%c0_50, %c0_51, %c0_52] : memref<1x8x32xf32, #tpu.memory_space<vmem>>, vector<1x8x32xf32>
    %104 = vector.shape_cast %103 : vector<1x8x32xf32> to vector<8x32xf32>
    %105 = vector.shape_cast %102 : vector<8x32xf32> to vector<1x8x32xf32>
    tpu.vector_store %arg17[%c0_50, %c0_51, %c0_52], %105 {strides = array<i32>} : memref<1x8x32xf32, #tpu.memory_space<vmem>>, vector<1x8x32xf32>,
    return
  }
  func.func @transform_0(%arg0: i32, %arg1: i32) -> (i32, i32, i32) {
    %c0_i32 = arith.constant 0 : i32
    %c0_i32_0 = arith.constant 0 : i32
    return %arg0, %arg1, %c0_i32 : i32, i32, i32
  }
  func.func @transform_1(%arg0: i32, %arg1: i32) -> (i32, i32) {
    %c0_i32 = arith.constant 0 : i32
    %c0_i32_0 = arith.constant 0 : i32
    %c0_i32_1 = arith.constant 0 : i32
    return %c0_i32, %c0_i32_0 : i32, i32
  }
  func.func @transform_2(%arg0: i32, %arg1: i32) -> (i32, i32) {
    %c0_i32 = arith.constant 0 : i32
    %c0_i32_0 = arith.constant 0 : i32
    %c0_i32_1 = arith.constant 0 : i32
    return %c0_i32, %c0_i32_0 : i32, i32
  }
  func.func @transform_3(%arg0: i32, %arg1: i32) -> (i32, i32) {
    %c0_i32 = arith.constant 0 : i32
    %c0_i32_0 = arith.constant 0 : i32
    %c0_i32_1 = arith.constant 0 : i32
    return %c0_i32, %c0_i32_0 : i32, i32
  }
  func.func @transform_4(%arg0: i32, %arg1: i32) -> (i32, i32) {
    %c0_i32 = arith.constant 0 : i32
    %c0_i32_0 = arith.constant 0 : i32
    %c0_i32_1 = arith.constant 0 : i32
    return %c0_i32, %c0_i32_0 : i32, i32
  }
  func.func @transform_5(%arg0: i32, %arg1: i32) -> (i32, i32) {
    %c0_i32 = arith.constant 0 : i32
    %c0_i32_0 = arith.constant 0 : i32
    %c0_i32_1 = arith.constant 0 : i32
    return %c0_i32, %c0_i32_0 : i32, i32
  }
  func.func @transform_6(%arg0: i32, %arg1: i32) -> (i32, i32) {
    %c0_i32 = arith.constant 0 : i32
    %c0_i32_0 = arith.constant 0 : i32
    %c0_i32_1 = arith.constant 0 : i32
    return %c0_i32, %c0_i32_0 : i32, i32
  }
  func.func @transform_7(%arg0: i32, %arg1: i32) -> (i32, i32) {
    %c0_i32 = arith.constant 0 : i32
    %c0_i32_0 = arith.constant 0 : i32
    %c0_i32_1 = arith.constant 0 : i32
    return %c0_i32, %c0_i32_0 : i32, i32
  }
  func.func @transform_8(%arg0: i32, %arg1: i32) -> (i32, i32) {
    %c0_i32 = arith.constant 0 : i32
    %c0_i32_0 = arith.constant 0 : i32
    %c0_i32_1 = arith.constant 0 : i32
    return %c0_i32, %c0_i32_0 : i32, i32
  }
  func.func @transform_9(%arg0: i32, %arg1: i32) -> (i32, i32) {
    %c0_i32 = arith.constant 0 : i32
    %c0_i32_0 = arith.constant 0 : i32
    %c0_i32_1 = arith.constant 0 : i32
    return %c0_i32, %c0_i32_0 : i32, i32
  }
  func.func @transform_10(%arg0: i32, %arg1: i32) -> (i32, i32) {
    %c0_i32 = arith.constant 0 : i32
    %c0_i32_0 = arith.constant 0 : i32
    %c0_i32_1 = arith.constant 0 : i32
    return %c0_i32, %c0_i32_0 : i32, i32
  }
  func.func @transform_11(%arg0: i32, %arg1: i32) -> (i32, i32) {
    %c0_i32 = arith.constant 0 : i32
    %c0_i32_0 = arith.constant 0 : i32
    %c0_i32_1 = arith.constant 0 : i32
    return %c0_i32, %c0_i32_0 : i32, i32
  }
  func.func @transform_12(%arg0: i32, %arg1: i32) -> (i32, i32) {
    %c0_i32 = arith.constant 0 : i32
    %c0_i32_0 = arith.constant 0 : i32
    %c0_i32_1 = arith.constant 0 : i32
    return %c0_i32, %c0_i32_0 : i32, i32
  }
  func.func @transform_13(%arg0: i32, %arg1: i32) -> (i32, i32) {
    %c0_i32 = arith.constant 0 : i32
    %c0_i32_0 = arith.constant 0 : i32
    %c0_i32_1 = arith.constant 0 : i32
    return %c0_i32, %c0_i32_0 : i32, i32
  }
  func.func @transform_14(%arg0: i32, %arg1: i32) -> (i32, i32) {
    %c0_i32 = arith.constant 0 : i32
    %c0_i32_0 = arith.constant 0 : i32
    %c0_i32_1 = arith.constant 0 : i32
    return %c0_i32, %c0_i32_0 : i32, i32
  }
  func.func @transform_15(%arg0: i32, %arg1: i32) -> (i32, i32, i32) {
    %c0_i32 = arith.constant 0 : i32
    %c0_i32_0 = arith.constant 0 : i32
    return %arg0, %arg1, %c0_i32 : i32, i32, i32
  }
}

module attributes {stable_mosaic.version = 11 : i64} {
  func.func @_encoder_layer_kernel(%arg0: i32, %arg1: i32, %arg2: memref<1x8x32xf32, #tpu.memory_space<vmem>>, %arg3: memref<32x32xf32, #tpu.memory_space<vmem>>, %arg4: memref<1x32xf32, #tpu.memory_space<vmem>>, %arg5: memref<32x64xf32, #tpu.memory_space<vmem>>, %arg6: memref<1x64xf32, #tpu.memory_space<vmem>>, %arg7: memref<32x32xf32, #tpu.memory_space<vmem>>, %arg8: memref<1x32xf32, #tpu.memory_space<vmem>>, %arg9: memref<32x64xf32, #tpu.memory_space<vmem>>, %arg10: memref<1x64xf32, #tpu.memory_space<vmem>>, %arg11: memref<64x32xf32, #tpu.memory_space<vmem>>, %arg12: memref<1x32xf32, #tpu.memory_space<vmem>>, %arg13: memref<1x32xf32, #tpu.memory_space<vmem>>, %arg14: memref<1x32xf32, #tpu.memory_space<vmem>>, %arg15: memref<1x32xf32, #tpu.memory_space<vmem>>, %arg16: memref<1x32xf32, #tpu.memory_space<vmem>>, %arg17: memref<1x8x32xf32, #tpu.memory_space<vmem>>) attributes {dimension_semantics = [#tpu.dimension_semantics<parallel>, #tpu.dimension_semantics<arbitrary>], iteration_bounds = array<i64: 2, 1>, scalar_prefetch = 0 : i64, scratch_operands = 0 : i64, tpu.core_type = #tpu.core_type<tc>, window_params = [{transform_indices = @transform_0, window_bounds = array<i64: 1, 8, 32>}, {pipeline_mode = #tpu.pipeline_mode<synchronous>, transform_indices = @transform_1, window_bounds = array<i64: 32, 32>}, {pipeline_mode = #tpu.pipeline_mode<synchronous>, transform_indices = @transform_2, window_bounds = array<i64: 1, 32>}, {pipeline_mode = #tpu.pipeline_mode<synchronous>, transform_indices = @transform_3, window_bounds = array<i64: 32, 64>}, {pipeline_mode = #tpu.pipeline_mode<synchronous>, transform_indices = @transform_4, window_bounds = array<i64: 1, 64>}, {pipeline_mode = #tpu.pipeline_mode<synchronous>, transform_indices = @transform_5, window_bounds = array<i64: 32, 32>}, {pipeline_mode = #tpu.pipeline_mode<synchronous>, transform_indices = @transform_6, window_bounds = array<i64: 1, 32>}, {pipeline_mode = #tpu.pipeline_mode<synchronous>, transform_indices = @transform_7, window_bounds = array<i64: 32, 64>}, {pipeline_mode = #tpu.pipeline_mode<synchronous>, transform_indices = @transform_8, window_bounds = array<i64: 1, 64>}, {pipeline_mode = #tpu.pipeline_mode<synchronous>, transform_indices = @transform_9, window_bounds = array<i64: 64, 32>}, {pipeline_mode = #tpu.pipeline_mode<synchronous>, transform_indices = @transform_10, window_bounds = array<i64: 1, 32>}, {pipeline_mode = #tpu.pipeline_mode<synchronous>, transform_indices = @transform_11, window_bounds = array<i64: 1, 32>}, {pipeline_mode = #tpu.pipeline_mode<synchronous>, transform_indices = @transform_12, window_bounds = array<i64: 1, 32>}, {pipeline_mode = #tpu.pipeline_mode<synchronous>, transform_indices = @transform_13, window_bounds = array<i64: 1, 32>}, {pipeline_mode = #tpu.pipeline_mode<synchronous>, transform_indices = @transform_14, window_bounds = array<i64: 1, 32>}, {transform_indices = @transform_15, window_bounds = array<i64: 1, 8, 32>}]} {
    %c0 = arith.constant 0 : index
    %c0_0 = arith.constant 0 : index
    %c0_1 = arith.constant 0 : index
    %0 = vector.load %arg2[%c0, %c0_0, %c0_1] : memref<1x8x32xf32, #tpu.memory_space<vmem>>, vector<1x8x32xf32>
    %1 = vector.shape_cast %0 : vector<1x8x32xf32> to vector<8x32xf32>
    %c0_2 = arith.constant 0 : index
    %c0_3 = arith.constant 0 : index
    %2 = vector.load %arg3[%c0_2, %c0_3] : memref<32x32xf32, #tpu.memory_space<vmem>>, vector<32x32xf32>
    %cst = arith.constant dense<0.000000e+00> : vector<8x32xf32>
    %3 = tpu.matmul %1, %2, %cst {dimension_numbers = #tpu.dot_dimension_numbers<[1], [0], [0], [1], [0, 0, 1, 1], [], []>} : vector<8x32xf32>, vector<32x32xf32>, vector<8x32xf32> -> vector<8x32xf32>
    %c0_4 = arith.constant 0 : index
    %c0_5 = arith.constant 0 : index
    %4 = vector.load %arg4[%c0_4, %c0_5] : memref<1x32xf32, #tpu.memory_space<vmem>>, vector<1x32xf32>
    %5 = vector.broadcast %4 : vector<1x32xf32> to vector<8x32xf32>
    %6 = arith.addf %3, %5 : vector<8x32xf32>
    %c0_6 = arith.constant 0 : index
    %c0_7 = arith.constant 0 : index
    %7 = vector.load %arg5[%c0_6, %c0_7] : memref<32x64xf32, #tpu.memory_space<vmem>>, vector<32x64xf32>
    %cst_8 = arith.constant dense<0.000000e+00> : vector<8x64xf32>
    %8 = tpu.matmul %1, %7, %cst_8 {dimension_numbers = #tpu.dot_dimension_numbers<[1], [0], [0], [1], [0, 0, 1, 1], [], []>} : vector<8x32xf32>, vector<32x64xf32>, vector<8x64xf32> -> vector<8x64xf32>
    %c0_9 = arith.constant 0 : index
    %c0_10 = arith.constant 0 : index
    %9 = vector.load %arg6[%c0_9, %c0_10] : memref<1x64xf32, #tpu.memory_space<vmem>>, vector<1x64xf32>
    %10 = vector.broadcast %9 : vector<1x64xf32> to vector<8x64xf32>
    %11 = arith.addf %8, %10 : vector<8x64xf32>
    %12 = vector.extract_strided_slice %11 {offsets = [0, 0], sizes = [8, 32], strides = [1, 1]} : vector<8x64xf32> to vector<8x32xf32>
    %13 = vector.extract_strided_slice %11 {offsets = [0, 32], sizes = [8, 32], strides = [1, 1]} : vector<8x64xf32> to vector<8x32xf32>
    %14 = vector.shape_cast %6 : vector<8x32xf32> to vector<8x4x8xf32>
    %15 = vector.shape_cast %12 : vector<8x32xf32> to vector<8x4x8xf32>
    %16 = vector.shape_cast %13 : vector<8x32xf32> to vector<8x4x8xf32>
    %17 = tpu.transpose %14, [1, 0, 2] : vector<8x4x8xf32> -> vector<4x8x8xf32>
    %18 = tpu.transpose %15, [1, 0, 2] : vector<8x4x8xf32> -> vector<4x8x8xf32>
    %19 = tpu.transpose %16, [1, 0, 2] : vector<8x4x8xf32> -> vector<4x8x8xf32>
    "tpu.trace_start"() <{level = 10 : i32, message = "hqd,hkd->hqk"}> : () -> ()
    %cst_11 = arith.constant dense<0.000000e+00> : vector<4x8x8xf32>
    %20 = tpu.matmul %17, %18, %cst_11 {dimension_numbers = #tpu.dot_dimension_numbers<[2], [2], [1], [1], [0, 0, 0, 1, 1, 1], [0], [0]>} : vector<4x8x8xf32>, vector<4x8x8xf32>, vector<4x8x8xf32> -> vector<4x8x8xf32>
    "tpu.trace_stop"() : () -> ()
    %cst_12 = arith.constant 0.353553385 : f32
    %21 = vector.broadcast %cst_12 : f32 to vector<4x8x8xf32>
    %22 = arith.mulf %20, %21 : vector<4x8x8xf32>
    %cst_13 = arith.constant dense<0xFF800000> : vector<4x8xf32>
    %23 = vector.multi_reduction <maximumf>, %22, %cst_13 [2] : vector<4x8x8xf32> to vector<4x8xf32>
    %24 = vector.shape_cast %23 : vector<4x8xf32> to vector<4x8x1xf32>
    %25 = vector.broadcast %24 : vector<4x8x1xf32> to vector<4x8x8xf32>
    %26 = arith.subf %22, %25 : vector<4x8x8xf32>
    %27 = math.exp %26 : vector<4x8x8xf32>
    %cst_14 = arith.constant dense<0.000000e+00> : vector<4x8xf32>
    %28 = vector.multi_reduction <add>, %27, %cst_14 [2] : vector<4x8x8xf32> to vector<4x8xf32>
    %29 = vector.shape_cast %28 : vector<4x8xf32> to vector<4x8x1xf32>
    %30 = tpu.reciprocal %29 {approx = true} : vector<4x8x1xf32> -> vector<4x8x1xf32>
    %31 = vector.broadcast %30 : vector<4x8x1xf32> to vector<4x8x8xf32>
    %32 = arith.mulf %27, %31 : vector<4x8x8xf32>
    "tpu.trace_start"() <{level = 10 : i32, message = "hqk,hkd->hqd"}> : () -> ()
    %cst_15 = arith.constant dense<0.000000e+00> : vector<4x8x8xf32>
    %33 = tpu.matmul %32, %19, %cst_15 {dimension_numbers = #tpu.dot_dimension_numbers<[2], [1], [1], [2], [0, 0, 0, 1, 1, 2], [0], [0]>} : vector<4x8x8xf32>, vector<4x8x8xf32>, vector<4x8x8xf32> -> vector<4x8x8xf32>
    "tpu.trace_stop"() : () -> ()
    %34 = tpu.transpose %33, [1, 0, 2] : vector<4x8x8xf32> -> vector<8x4x8xf32>
    %35 = vector.shape_cast %34 : vector<8x4x8xf32> to vector<8x32xf32>
    %c0_16 = arith.constant 0 : index
    %c0_17 = arith.constant 0 : index
    %36 = vector.load %arg7[%c0_16, %c0_17] : memref<32x32xf32, #tpu.memory_space<vmem>>, vector<32x32xf32>
    %cst_18 = arith.constant dense<0.000000e+00> : vector<8x32xf32>
    %37 = tpu.matmul %35, %36, %cst_18 {dimension_numbers = #tpu.dot_dimension_numbers<[1], [0], [0], [1], [0, 0, 1, 1], [], []>} : vector<8x32xf32>, vector<32x32xf32>, vector<8x32xf32> -> vector<8x32xf32>
    %c0_19 = arith.constant 0 : index
    %c0_20 = arith.constant 0 : index
    %38 = vector.load %arg8[%c0_19, %c0_20] : memref<1x32xf32, #tpu.memory_space<vmem>>, vector<1x32xf32>
    %39 = vector.broadcast %38 : vector<1x32xf32> to vector<8x32xf32>
    %40 = arith.addf %37, %39 : vector<8x32xf32>
    %41 = arith.addf %1, %40 : vector<8x32xf32>
    %cst_21 = arith.constant dense<0.000000e+00> : vector<8xf32>
    %42 = vector.multi_reduction <add>, %41, %cst_21 [1] : vector<8x32xf32> to vector<8xf32>
    %43 = vector.shape_cast %42 : vector<8xf32> to vector<8x1xf32>
    %cst_22 = arith.constant 3.200000e+01 : f32
    %44 = vector.broadcast %cst_22 : f32 to vector<8x1xf32>
    %45 = arith.divf %43, %44 : vector<8x1xf32>
    %46 = vector.broadcast %45 : vector<8x1xf32> to vector<8x32xf32>
    %47 = arith.subf %41, %46 : vector<8x32xf32>
    %48 = arith.mulf %47, %47 : vector<8x32xf32>
    %cst_23 = arith.constant dense<0.000000e+00> : vector<8xf32>
    %49 = vector.multi_reduction <add>, %48, %cst_23 [1] : vector<8x32xf32> to vector<8xf32>
    %50 = vector.shape_cast %49 : vector<8xf32> to vector<8x1xf32>
    %cst_24 = arith.constant 3.200000e+01 : f32
    %51 = vector.broadcast %cst_24 : f32 to vector<8x1xf32>
    %52 = arith.divf %50, %51 : vector<8x1xf32>
    %53 = vector.broadcast %45 : vector<8x1xf32> to vector<8x32xf32>
    %54 = arith.subf %41, %53 : vector<8x32xf32>
    %cst_25 = arith.constant 9.99999974E-6 : f32
    %55 = vector.broadcast %cst_25 : f32 to vector<8x1xf32>
    %56 = arith.addf %52, %55 : vector<8x1xf32>
    %57 = math.rsqrt %56 : vector<8x1xf32>
    %58 = vector.broadcast %57 : vector<8x1xf32> to vector<8x32xf32>
    %59 = arith.mulf %54, %58 : vector<8x32xf32>
    %c0_26 = arith.constant 0 : index
    %c0_27 = arith.constant 0 : index
    %60 = vector.load %arg13[%c0_26, %c0_27] : memref<1x32xf32, #tpu.memory_space<vmem>>, vector<1x32xf32>
    %61 = vector.broadcast %60 : vector<1x32xf32> to vector<8x32xf32>
    %62 = arith.mulf %59, %61 : vector<8x32xf32>
    %c0_28 = arith.constant 0 : index
    %c0_29 = arith.constant 0 : index
    %63 = vector.load %arg14[%c0_28, %c0_29] : memref<1x32xf32, #tpu.memory_space<vmem>>, vector<1x32xf32>
    %64 = vector.broadcast %63 : vector<1x32xf32> to vector<8x32xf32>
    %65 = arith.addf %62, %64 : vector<8x32xf32>
    %c0_30 = arith.constant 0 : index
    %c0_31 = arith.constant 0 : index
    %66 = vector.load %arg9[%c0_30, %c0_31] : memref<32x64xf32, #tpu.memory_space<vmem>>, vector<32x64xf32>
    %cst_32 = arith.constant dense<0.000000e+00> : vector<8x64xf32>
    %67 = tpu.matmul %65, %66, %cst_32 {dimension_numbers = #tpu.dot_dimension_numbers<[1], [0], [0], [1], [0, 0, 1, 1], [], []>} : vector<8x32xf32>, vector<32x64xf32>, vector<8x64xf32> -> vector<8x64xf32>
    %c0_33 = arith.constant 0 : index
    %c0_34 = arith.constant 0 : index
    %68 = vector.load %arg10[%c0_33, %c0_34] : memref<1x64xf32, #tpu.memory_space<vmem>>, vector<1x64xf32>
    %69 = vector.broadcast %68 : vector<1x64xf32> to vector<8x64xf32>
    %70 = arith.addf %67, %69 : vector<8x64xf32>
    %cst_35 = arith.constant 0.000000e+00 : f32
    %71 = vector.broadcast %cst_35 : f32 to vector<8x64xf32>
    %72 = arith.maximumf %70, %71 : vector<8x64xf32>
    %c0_36 = arith.constant 0 : index
    %c0_37 = arith.constant 0 : index
    %73 = vector.load %arg11[%c0_36, %c0_37] : memref<64x32xf32, #tpu.memory_space<vmem>>, vector<64x32xf32>
    %cst_38 = arith.constant dense<0.000000e+00> : vector<8x32xf32>
    %74 = tpu.matmul %72, %73, %cst_38 {dimension_numbers = #tpu.dot_dimension_numbers<[1], [0], [0], [1], [0, 0, 1, 1], [], []>} : vector<8x64xf32>, vector<64x32xf32>, vector<8x32xf32> -> vector<8x32xf32>
    %c0_39 = arith.constant 0 : index
    %c0_40 = arith.constant 0 : index
    %75 = vector.load %arg12[%c0_39, %c0_40] : memref<1x32xf32, #tpu.memory_space<vmem>>, vector<1x32xf32>
    %76 = vector.broadcast %75 : vector<1x32xf32> to vector<8x32xf32>
    %77 = arith.addf %74, %76 : vector<8x32xf32>
    %78 = arith.addf %65, %77 : vector<8x32xf32>
    %cst_41 = arith.constant dense<0.000000e+00> : vector<8xf32>
    %79 = vector.multi_reduction <add>, %78, %cst_41 [1] : vector<8x32xf32> to vector<8xf32>
    %80 = vector.shape_cast %79 : vector<8xf32> to vector<8x1xf32>
    %cst_42 = arith.constant 3.200000e+01 : f32
    %81 = vector.broadcast %cst_42 : f32 to vector<8x1xf32>
    %82 = arith.divf %80, %81 : vector<8x1xf32>
    %83 = vector.broadcast %82 : vector<8x1xf32> to vector<8x32xf32>
    %84 = arith.subf %78, %83 : vector<8x32xf32>
    %85 = arith.mulf %84, %84 : vector<8x32xf32>
    %cst_43 = arith.constant dense<0.000000e+00> : vector<8xf32>
    %86 = vector.multi_reduction <add>, %85, %cst_43 [1] : vector<8x32xf32> to vector<8xf32>
    %87 = vector.shape_cast %86 : vector<8xf32> to vector<8x1xf32>
    %cst_44 = arith.constant 3.200000e+01 : f32
    %88 = vector.broadcast %cst_44 : f32 to vector<8x1xf32>
    %89 = arith.divf %87, %88 : vector<8x1xf32>
    %90 = vector.broadcast %82 : vector<8x1xf32> to vector<8x32xf32>
    %91 = arith.subf %78, %90 : vector<8x32xf32>
    %cst_45 = arith.constant 9.99999974E-6 : f32
    %92 = vector.broadcast %cst_45 : f32 to vector<8x1xf32>
    %93 = arith.addf %89, %92 : vector<8x1xf32>
    %94 = math.rsqrt %93 : vector<8x1xf32>
    %95 = vector.broadcast %94 : vector<8x1xf32> to vector<8x32xf32>
    %96 = arith.mulf %91, %95 : vector<8x32xf32>
    %c0_46 = arith.constant 0 : index
    %c0_47 = arith.constant 0 : index
    %97 = vector.load %arg15[%c0_46, %c0_47] : memref<1x32xf32, #tpu.memory_space<vmem>>, vector<1x32xf32>
    %98 = vector.broadcast %97 : vector<1x32xf32> to vector<8x32xf32>
    %99 = arith.mulf %96, %98 : vector<8x32xf32>
    %c0_48 = arith.constant 0 : index
    %c0_49 = arith.constant 0 : index
    %100 = vector.load %arg16[%c0_48, %c0_49] : memref<1x32xf32, #tpu.memory_space<vmem>>, vector<1x32xf32>
    %101 = vector.broadcast %100 : vector<1x32xf32> to vector<8x32xf32>
    %102 = arith.addf %99, %101 : vector<8x32xf32>
    %c0_50 = arith.constant 0 : index
    %c0_51 = arith.constant 0 : index
    %c0_52 = arith.constant 0 : index
    %103 = vector.load %arg17[%c0_50, %c0_51, %c0_52] : memref<1x8x32xf32, #tpu.memory_space<vmem>>, vector<1x8x32xf32>
    %104 = vector.shape_cast %103 : vector<1x8x32xf32> to vector<8x32xf32>
    %105 = vector.shape_cast %102 : vector<8x32xf32> to vector<1x8x32xf32>
    tpu.vector_store %arg17[%c0_50, %c0_51, %c0_52], %105 {strides = array<i32>} : memref<1x8x32xf32, #tpu.memory_space<vmem>>, vector<1x8x32xf32>,
    return
  }
  func.func @transform_0(%arg0: i32, %arg1: i32) -> (i32, i32, i32) {
    %c0_i32 = arith.constant 0 : i32
    %c0_i32_0 = arith.constant 0 : i32
    return %arg0, %arg1, %c0_i32 : i32, i32, i32
  }
  func.func @transform_1(%arg0: i32, %arg1: i32) -> (i32, i32) {
    %c0_i32 = arith.constant 0 : i32
    %c0_i32_0 = arith.constant 0 : i32
    %c0_i32_1 = arith.constant 0 : i32
    return %c0_i32, %c0_i32_0 : i32, i32
  }
  func.func @transform_2(%arg0: i32, %arg1: i32) -> (i32, i32) {
    %c0_i32 = arith.constant 0 : i32
    %c0_i32_0 = arith.constant 0 : i32
    %c0_i32_1 = arith.constant 0 : i32
    return %c0_i32, %c0_i32_0 : i32, i32
  }
  func.func @transform_3(%arg0: i32, %arg1: i32) -> (i32, i32) {
    %c0_i32 = arith.constant 0 : i32
    %c0_i32_0 = arith.constant 0 : i32
    %c0_i32_1 = arith.constant 0 : i32
    return %c0_i32, %c0_i32_0 : i32, i32
  }
  func.func @transform_4(%arg0: i32, %arg1: i32) -> (i32, i32) {
    %c0_i32 = arith.constant 0 : i32
    %c0_i32_0 = arith.constant 0 : i32
    %c0_i32_1 = arith.constant 0 : i32
    return %c0_i32, %c0_i32_0 : i32, i32
  }
  func.func @transform_5(%arg0: i32, %arg1: i32) -> (i32, i32) {
    %c0_i32 = arith.constant 0 : i32
    %c0_i32_0 = arith.constant 0 : i32
    %c0_i32_1 = arith.constant 0 : i32
    return %c0_i32, %c0_i32_0 : i32, i32
  }
  func.func @transform_6(%arg0: i32, %arg1: i32) -> (i32, i32) {
    %c0_i32 = arith.constant 0 : i32
    %c0_i32_0 = arith.constant 0 : i32
    %c0_i32_1 = arith.constant 0 : i32
    return %c0_i32, %c0_i32_0 : i32, i32
  }
  func.func @transform_7(%arg0: i32, %arg1: i32) -> (i32, i32) {
    %c0_i32 = arith.constant 0 : i32
    %c0_i32_0 = arith.constant 0 : i32
    %c0_i32_1 = arith.constant 0 : i32
    return %c0_i32, %c0_i32_0 : i32, i32
  }
  func.func @transform_8(%arg0: i32, %arg1: i32) -> (i32, i32) {
    %c0_i32 = arith.constant 0 : i32
    %c0_i32_0 = arith.constant 0 : i32
    %c0_i32_1 = arith.constant 0 : i32
    return %c0_i32, %c0_i32_0 : i32, i32
  }
  func.func @transform_9(%arg0: i32, %arg1: i32) -> (i32, i32) {
    %c0_i32 = arith.constant 0 : i32
    %c0_i32_0 = arith.constant 0 : i32
    %c0_i32_1 = arith.constant 0 : i32
    return %c0_i32, %c0_i32_0 : i32, i32
  }
  func.func @transform_10(%arg0: i32, %arg1: i32) -> (i32, i32) {
    %c0_i32 = arith.constant 0 : i32
    %c0_i32_0 = arith.constant 0 : i32
    %c0_i32_1 = arith.constant 0 : i32
    return %c0_i32, %c0_i32_0 : i32, i32
  }
  func.func @transform_11(%arg0: i32, %arg1: i32) -> (i32, i32) {
    %c0_i32 = arith.constant 0 : i32
    %c0_i32_0 = arith.constant 0 : i32
    %c0_i32_1 = arith.constant 0 : i32
    return %c0_i32, %c0_i32_0 : i32, i32
  }
  func.func @transform_12(%arg0: i32, %arg1: i32) -> (i32, i32) {
    %c0_i32 = arith.constant 0 : i32
    %c0_i32_0 = arith.constant 0 : i32
    %c0_i32_1 = arith.constant 0 : i32
    return %c0_i32, %c0_i32_0 : i32, i32
  }
  func.func @transform_13(%arg0: i32, %arg1: i32) -> (i32, i32) {
    %c0_i32 = arith.constant 0 : i32
    %c0_i32_0 = arith.constant 0 : i32
    %c0_i32_1 = arith.constant 0 : i32
    return %c0_i32, %c0_i32_0 : i32, i32
  }
  func.func @transform_14(%arg0: i32, %arg1: i32) -> (i32, i32) {
    %c0_i32 = arith.constant 0 : i32
    %c0_i32_0 = arith.constant 0 : i32
    %c0_i32_1 = arith.constant 0 : i32
    return %c0_i32, %c0_i32_0 : i32, i32
  }
  func.func @transform_15(%arg0: i32, %arg1: i32) -> (i32, i32, i32) {
    %c0_i32 = arith.constant 0 : i32
    %c0_i32_0 = arith.constant 0 : i32
    return %arg0, %arg1, %c0_i32 : i32, i32, i32
  }
}

</mosaic_0001>

<llo_original>
// kernel: tpu_custom_call.1
$region0: #{tpu_custom_call.1}
  #allocation0 [shape = 'u32[]', space=smem, size = 0x4, offset = 0x4, fixed_abs, tag = 'smem constant byte address 0x4 - core index']
  #allocation1 [shape = 'u32[72,128]{1,0:T(1,128)}', space=vmem, size = 0x9000, scoped, tag = 'internal scratch']
  %s0 = inlined_call_operand.hbm [shape: f32[2,8,32], index: 0, kind: input, shape index: {}]
  %s1 = inlined_call_operand.vmem [shape: f32[32,32], index: 1, kind: input, shape index: {}]
  %s2 = inlined_call_operand.vmem [shape: f32[1,32], index: 2, kind: input, shape index: {}]
  %s3 = inlined_call_operand.vmem [shape: f32[32,64], index: 3, kind: input, shape index: {}]
  %s4 = inlined_call_operand.vmem [shape: f32[1,64], index: 4, kind: input, shape index: {}]
  %s5 = inlined_call_operand.vmem [shape: f32[32,32], index: 5, kind: input, shape index: {}]
  %s6 = inlined_call_operand.vmem [shape: f32[1,32], index: 6, kind: input, shape index: {}]
  %s7 = inlined_call_operand.hbm [shape: f32[32,64], index: 7, kind: input, shape index: {}]
  %s8 = inlined_call_operand.vmem [shape: f32[1,64], index: 8, kind: input, shape index: {}]
  %s9 = inlined_call_operand.vmem [shape: f32[64,32], index: 9, kind: input, shape index: {}]
  %s10 = inlined_call_operand.vmem [shape: f32[1,32], index: 10, kind: input, shape index: {}]
  %s11 = inlined_call_operand.vmem [shape: f32[1,32], index: 11, kind: input, shape index: {}]
  %s12 = inlined_call_operand.vmem [shape: f32[1,32], index: 12, kind: input, shape index: {}]
  %s13 = inlined_call_operand.vmem [shape: f32[1,32], index: 13, kind: input, shape index: {}]
  %s14 = inlined_call_operand.vmem [shape: f32[1,32], index: 14, kind: input, shape index: {}]
  %s15 = inlined_call_operand.hbm [shape: f32[2,8,32], index: 15, kind: output, shape index: {}]
  %s16 = sld [smem:[#allocation0]]
  $region101: #{tpu_custom_call.1} parent=0
    _
  %s18 = ssub.s32 1, %s16
  %s19 = scalar_select 0, %s18, %s16
  $region1: #{tpu_custom_call.1} parent=0
    #allocation2 [shape = 'u8[8192]{0}', space=vmem, size = 0x2000, scoped, tag = 'input window, operand 0']
    #allocation3 [shape = 's32[2]{0}', space=sflag, size = 0x8, scoped, tag = 'scoped memory for tpu_custom_call.1']
    #allocation4 [shape = 's32[2]{0}', space=sflag, size = 0x8, scoped, tag = 'scoped memory for tpu_custom_call.1']
    #allocation5 [shape = 'u8[16384]{0}', space=vmem, size = 0x4000, scoped, tag = 'input window, operand 7, single buffered']
    #allocation6 [shape = 's32[1]{0}', space=sflag, size = 0x4, scoped, tag = 'scoped memory for tpu_custom_call.1']
    #allocation7 [shape = 'u8[8192]{0}', space=vmem, size = 0x2000, scoped, tag = 'output window, operand 0']
    %20 = vsyncpa [#allocation3], 0
    %s21 = scalar_lea.sflag [#allocation3], 1
    %22 = vsyncpa %s21, 0
    %23 = vsyncpa [#allocation6], 0
    %24 = vsyncpa [#allocation4], 0
    %s25 = scalar_lea.sflag [#allocation4], 1
    %26 = vsyncpa %s25, 0
    loop: start=0, step=1, limit=4
    $region2: #{tpu_custom_call.1} parent=1 // loop_pre_header
      _
    $region3: #{tpu_custom_call.1} parent=1 // loop_header
      %s28 = sphi 0, %s32
      %p29 = scmp.ge.s32.totalorder %s28, 4
      %s35 = sphi 0, %s47
      %s36 = sphi 0, %s43
      %s37 = sphi 0, %s35
      %s38 = sphi 0, %s36
      %s39 = sphi 0, %s37
      %s40 = sphi 0, %s38
      %s52 = sphi 0, %s54
      %s55 = sphi 0, %s52
      %s56 = sphi 0, %s55
      %s72 = sphi 0, %s56
      %s76 = sphi 0, %s76
      %s78 = sphi 0, %s76
      %s79 = sphi 0, %s78
      %s93 = sphi 0, %s79
      %s97 = sphi 0, %s97
      %s99 = sphi 0, %s97
      %s100 = sphi 0, %s99
      %s114 = sphi 0, %s100
      %s118 = sphi 0, %s118
      %s120 = sphi 0, %s118
      %s121 = sphi 0, %s120
      %s135 = sphi 0, %s121
      %s139 = sphi 0, %s139
      %s141 = sphi 0, %s139
      %s142 = sphi 0, %s141
      %s156 = sphi 0, %s142
      %s160 = sphi 0, %s160
      %s162 = sphi 0, %s160
      %s163 = sphi 0, %s162
      %s177 = sphi 0, %s163
      %s181 = sphi 0, %s181
      %s183 = sphi 0, %s181
      %s184 = sphi 0, %s183
      %s198 = sphi 0, %s184
      %s202 = sphi 0, %s202
      %s204 = sphi 0, %s202
      %s205 = sphi 0, %s204
      %s219 = sphi 0, %s205
      %s223 = sphi 0, %s223
      %s225 = sphi 0, %s223
      %s226 = sphi 0, %s225
      %s240 = sphi 0, %s226
      %s244 = sphi 0, %s244
      %s246 = sphi 0, %s244
      %s247 = sphi 0, %s246
      %s261 = sphi 0, %s247
      %s265 = sphi 0, %s265
      %s267 = sphi 0, %s265
      %s268 = sphi 0, %s267
      %s282 = sphi 0, %s268
      %s286 = sphi 0, %s286
      %s288 = sphi 0, %s286
      %s289 = sphi 0, %s288
      %s303 = sphi 0, %s289
      %s307 = sphi 0, %s307
      %s309 = sphi 0, %s307
      %s310 = sphi 0, %s309
      %s324 = sphi 0, %s310
      %s328 = sphi 0, %s328
      %s330 = sphi 0, %s328
      %s331 = sphi 0, %s330
      %s345 = sphi 0, %s331
      %s349 = sphi 0, %s349
      %s351 = sphi 0, %s349
      %s352 = sphi 0, %s351
      %s366 = sphi 0, %s352
      %s374 = sphi 0, %s376
      %s377 = sphi 0, %s374
      %s378 = sphi 0, %s377
      %s394 = sphi 0, %s378
    $region4: #{tpu_custom_call.1} parent=1 // loop_header_branch
      %31 = sbr.rel (%p29) target = $region8
    $region5: #{tpu_custom_call.1} parent=1 // loop_body
      %s33 = ssub.s32 %s28, 1
      %s34 = ssub.s32 %s28, 2
      %s41 = sadd.s32 1, %s36
      %p42 = scmp.ge.s32.totalorder %s41, 1
      %s43 = scalar_select %p42, 0, %s41
      %s44 = sadd.s32 1, %s35
      %s45 = scalar_select %p42, %s44, %s35
      %p46 = scmp.ge.s32.totalorder %s45, 2
      %s47 = scalar_select %p46, 0, %s45
      %s48 = ssub.s32 %s35, %s47
      %s49 = ssub.s32 %s36, %s43
      %s50 = sor.u32 %s48, %s49
      %p51 = scmp.eq.s32.totalorder %s50, 0
      %s53 = sadd.s32 %s52, 1
      %s54 = scalar_select %p51, %s52, %s53
      %p57 = pneg %p51
      %p58 = scmp.eq.s32.totalorder %s28, 1
      %p59 = por %p57, %p58
      %p60 = scmp.ne.s32.totalorder %s52, %s55
      %p61 = scmp.eq.s32.totalorder %s28, 0
      %p62 = por %p60, %p61
      %p63 = scmp.ne.s32.totalorder %s52, %s55
      %p64 = scmp.eq.s32.totalorder %s33, 1
      %p65 = por %p63, %p64
      %p66 = scmp.ne.s32.totalorder %s55, %s56
      %p67 = scmp.eq.s32.totalorder %s33, 0
      %p68 = por %p66, %p67
      %p69 = scmp.ne.s32.totalorder %s55, %s56
      %p70 = scmp.eq.s32.totalorder %s34, 1
      %p71 = por %p69, %p70
      %p73 = scmp.ne.s32.totalorder %s56, %s72
      %p74 = scmp.eq.s32.totalorder %s34, 0
      %p75 = por %p73, %p74
      %s77 = sadd.s32 %s76, 1
      %p80 = scmp.eq.s32.totalorder %s28, 1
      %p81 = scmp.ne.s32.totalorder %s76, %s78
      %p82 = scmp.eq.s32.totalorder %s28, 0
      %p83 = por %p81, %p82
      %p84 = scmp.ne.s32.totalorder %s76, %s78
      %p85 = scmp.eq.s32.totalorder %s33, 1
      %p86 = por %p84, %p85
      %p87 = scmp.ne.s32.totalorder %s78, %s79
      %p88 = scmp.eq.s32.totalorder %s33, 0
      %p89 = por %p87, %p88
      %p90 = scmp.ne.s32.totalorder %s78, %s79
      %p91 = scmp.eq.s32.totalorder %s34, 1
      %p92 = por %p90, %p91
      %p94 = scmp.ne.s32.totalorder %s79, %s93
      %p95 = scmp.eq.s32.totalorder %s34, 0
      %p96 = por %p94, %p95
      %s98 = sadd.s32 %s97, 1
      %p101 = scmp.eq.s32.totalorder %s28, 1
      %p102 = scmp.ne.s32.totalorder %s97, %s99
      %p103 = scmp.eq.s32.totalorder %s28, 0
      %p104 = por %p102, %p103
      %p105 = scmp.ne.s32.totalorder %s97, %s99
      %p106 = scmp.eq.s32.totalorder %s33, 1
      %p107 = por %p105, %p106
      %p108 = scmp.ne.s32.totalorder %s99, %s100
      %p109 = scmp.eq.s32.totalorder %s33, 0
      %p110 = por %p108, %p109
      %p111 = scmp.ne.s32.totalorder %s99, %s100
      %p112 = scmp.eq.s32.totalorder %s34, 1
      %p113 = por %p111, %p112
      %p115 = scmp.ne.s32.totalorder %s100, %s114
      %p116 = scmp.eq.s32.totalorder %s34, 0
      %p117 = por %p115, %p116
      %s119 = sadd.s32 %s118, 1
      %p122 = scmp.eq.s32.totalorder %s28, 1
      %p123 = scmp.ne.s32.totalorder %s118, %s120
      %p124 = scmp.eq.s32.totalorder %s28, 0
      %p125 = por %p123, %p124
      %p126 = scmp.ne.s32.totalorder %s118, %s120
      %p127 = scmp.eq.s32.totalorder %s33, 1
      %p128 = por %p126, %p127
      %p129 = scmp.ne.s32.totalorder %s120, %s121
      %p130 = scmp.eq.s32.totalorder %s33, 0
      %p131 = por %p129, %p130
      %p132 = scmp.ne.s32.totalorder %s120, %s121
      %p133 = scmp.eq.s32.totalorder %s34, 1
      %p134 = por %p132, %p133
      %p136 = scmp.ne.s32.totalorder %s121, %s135
      %p137 = scmp.eq.s32.totalorder %s34, 0
      %p138 = por %p136, %p137
      %s140 = sadd.s32 %s139, 1
      %p143 = scmp.eq.s32.totalorder %s28, 1
      %p144 = scmp.ne.s32.totalorder %s139, %s141
      %p145 = scmp.eq.s32.totalorder %s28, 0
      %p146 = por %p144, %p145
      %p147 = scmp.ne.s32.totalorder %s139, %s141
      %p148 = scmp.eq.s32.totalorder %s33, 1
      %p149 = por %p147, %p148
      %p150 = scmp.ne.s32.totalorder %s141, %s142
      %p151 = scmp.eq.s32.totalorder %s33, 0
      %p152 = por %p150, %p151
      %p153 = scmp.ne.s32.totalorder %s141, %s142
      %p154 = scmp.eq.s32.totalorder %s34, 1
      %p155 = por %p153, %p154
      %p157 = scmp.ne.s32.totalorder %s142, %s156
      %p158 = scmp.eq.s32.totalorder %s34, 0
      %p159 = por %p157, %p158
      %s161 = sadd.s32 %s160, 1
      %p164 = scmp.eq.s32.totalorder %s28, 1
      %p165 = scmp.ne.s32.totalorder %s160, %s162
      %p166 = scmp.eq.s32.totalorder %s28, 0
      %p167 = por %p165, %p166
      %p168 = scmp.ne.s32.totalorder %s160, %s162
      %p169 = scmp.eq.s32.totalorder %s33, 1
      %p170 = por %p168, %p169
      %p171 = scmp.ne.s32.totalorder %s162, %s163
      %p172 = scmp.eq.s32.totalorder %s33, 0
      %p173 = por %p171, %p172
      %p174 = scmp.ne.s32.totalorder %s162, %s163
      %p175 = scmp.eq.s32.totalorder %s34, 1
      %p176 = por %p174, %p175
      %p178 = scmp.ne.s32.totalorder %s163, %s177
      %p179 = scmp.eq.s32.totalorder %s34, 0
      %p180 = por %p178, %p179
      %s182 = sadd.s32 %s181, 1
      %p185 = scmp.eq.s32.totalorder %s28, 1
      %p186 = scmp.ne.s32.totalorder %s181, %s183
      %p187 = scmp.eq.s32.totalorder %s28, 0
      %p188 = por %p186, %p187
      %p189 = scmp.ne.s32.totalorder %s181, %s183
      %p190 = scmp.eq.s32.totalorder %s33, 1
      %p191 = por %p189, %p190
      %p192 = scmp.ne.s32.totalorder %s183, %s184
      %p193 = scmp.eq.s32.totalorder %s33, 0
      %p194 = por %p192, %p193
      %p195 = scmp.ne.s32.totalorder %s183, %s184
      %p196 = scmp.eq.s32.totalorder %s34, 1
      %p197 = por %p195, %p196
      %p199 = scmp.ne.s32.totalorder %s184, %s198
      %p200 = scmp.eq.s32.totalorder %s34, 0
      %p201 = por %p199, %p200
      %s203 = sadd.s32 %s202, 1
      %p206 = scmp.eq.s32.totalorder %s28, 1
      %p207 = scmp.ne.s32.totalorder %s202, %s204
      %p208 = scmp.eq.s32.totalorder %s28, 0
      %p209 = por %p207, %p208
      %p210 = scmp.ne.s32.totalorder %s202, %s204
      %p211 = scmp.eq.s32.totalorder %s33, 1
      %p212 = por %p210, %p211
      %p213 = scmp.ne.s32.totalorder %s204, %s205
      %p214 = scmp.eq.s32.totalorder %s33, 0
      %p215 = por %p213, %p214
      %p216 = scmp.ne.s32.totalorder %s204, %s205
      %p217 = scmp.eq.s32.totalorder %s34, 1
      %p218 = por %p216, %p217
      %p220 = scmp.ne.s32.totalorder %s205, %s219
      %p221 = scmp.eq.s32.totalorder %s34, 0
      %p222 = por %p220, %p221
      %s224 = sadd.s32 %s223, 1
      %p227 = scmp.eq.s32.totalorder %s28, 1
      %p228 = scmp.ne.s32.totalorder %s223, %s225
      %p229 = scmp.eq.s32.totalorder %s28, 0
      %p230 = por %p228, %p229
      %p231 = scmp.ne.s32.totalorder %s223, %s225
      %p232 = scmp.eq.s32.totalorder %s33, 1
      %p233 = por %p231, %p232
      %p234 = scmp.ne.s32.totalorder %s225, %s226
      %p235 = scmp.eq.s32.totalorder %s33, 0
      %p236 = por %p234, %p235
      %p237 = scmp.ne.s32.totalorder %s225, %s226
      %p238 = scmp.eq.s32.totalorder %s34, 1
      %p239 = por %p237, %p238
      %p241 = scmp.ne.s32.totalorder %s226, %s240
      %p242 = scmp.eq.s32.totalorder %s34, 0
      %p243 = por %p241, %p242
      %s245 = sadd.s32 %s244, 1
      %p248 = scmp.eq.s32.totalorder %s28, 1
      %p249 = scmp.ne.s32.totalorder %s244, %s246
      %p250 = scmp.eq.s32.totalorder %s28, 0
      %p251 = por %p249, %p250
      %p252 = scmp.ne.s32.totalorder %s244, %s246
      %p253 = scmp.eq.s32.totalorder %s33, 1
      %p254 = por %p252, %p253
      %p255 = scmp.ne.s32.totalorder %s246, %s247
      %p256 = scmp.eq.s32.totalorder %s33, 0
      %p257 = por %p255, %p256
      %p258 = scmp.ne.s32.totalorder %s246, %s247
      %p259 = scmp.eq.s32.totalorder %s34, 1
      %p260 = por %p258, %p259
      %p262 = scmp.ne.s32.totalorder %s247, %s261
      %p263 = scmp.eq.s32.totalorder %s34, 0
      %p264 = por %p262, %p263
      %s266 = sadd.s32 %s265, 1
      %p269 = scmp.eq.s32.totalorder %s28, 1
      %p270 = scmp.ne.s32.totalorder %s265, %s267
      %p271 = scmp.eq.s32.totalorder %s28, 0
      %p272 = por %p270, %p271
      %p273 = scmp.ne.s32.totalorder %s265, %s267
      %p274 = scmp.eq.s32.totalorder %s33, 1
      %p275 = por %p273, %p274
      %p276 = scmp.ne.s32.totalorder %s267, %s268
      %p277 = scmp.eq.s32.totalorder %s33, 0
      %p278 = por %p276, %p277
      %p279 = scmp.ne.s32.totalorder %s267, %s268
      %p280 = scmp.eq.s32.totalorder %s34, 1
      %p281 = por %p279, %p280
      %p283 = scmp.ne.s32.totalorder %s268, %s282
      %p284 = scmp.eq.s32.totalorder %s34, 0
      %p285 = por %p283, %p284
      %s287 = sadd.s32 %s286, 1
      %p290 = scmp.eq.s32.totalorder %s28, 1
      %p291 = scmp.ne.s32.totalorder %s286, %s288
      %p292 = scmp.eq.s32.totalorder %s28, 0
      %p293 = por %p291, %p292
      %p294 = scmp.ne.s32.totalorder %s286, %s288
      %p295 = scmp.eq.s32.totalorder %s33, 1
      %p296 = por %p294, %p295
      %p297 = scmp.ne.s32.totalorder %s288, %s289
      %p298 = scmp.eq.s32.totalorder %s33, 0
      %p299 = por %p297, %p298
      %p300 = scmp.ne.s32.totalorder %s288, %s289
      %p301 = scmp.eq.s32.totalorder %s34, 1
      %p302 = por %p300, %p301
      %p304 = scmp.ne.s32.totalorder %s289, %s303
      %p305 = scmp.eq.s32.totalorder %s34, 0
      %p306 = por %p304, %p305
      %s308 = sadd.s32 %s307, 1
      %p311 = scmp.eq.s32.totalorder %s28, 1
      %p312 = scmp.ne.s32.totalorder %s307, %s309
      %p313 = scmp.eq.s32.totalorder %s28, 0
      %p314 = por %p312, %p313
      %p315 = scmp.ne.s32.totalorder %s307, %s309
      %p316 = scmp.eq.s32.totalorder %s33, 1
      %p317 = por %p315, %p316
      %p318 = scmp.ne.s32.totalorder %s309, %s310
      %p319 = scmp.eq.s32.totalorder %s33, 0
      %p320 = por %p318, %p319
      %p321 = scmp.ne.s32.totalorder %s309, %s310
      %p322 = scmp.eq.s32.totalorder %s34, 1
      %p323 = por %p321, %p322
      %p325 = scmp.ne.s32.totalorder %s310, %s324
      %p326 = scmp.eq.s32.totalorder %s34, 0
      %p327 = por %p325, %p326
      %s329 = sadd.s32 %s328, 1
      %p332 = scmp.eq.s32.totalorder %s28, 1
      %p333 = scmp.ne.s32.totalorder %s328, %s330
      %p334 = scmp.eq.s32.totalorder %s28, 0
      %p335 = por %p333, %p334
      %p336 = scmp.ne.s32.totalorder %s328, %s330
      %p337 = scmp.eq.s32.totalorder %s33, 1
      %p338 = por %p336, %p337
      %p339 = scmp.ne.s32.totalorder %s330, %s331
      %p340 = scmp.eq.s32.totalorder %s33, 0
      %p341 = por %p339, %p340
      %p342 = scmp.ne.s32.totalorder %s330, %s331
      %p343 = scmp.eq.s32.totalorder %s34, 1
      %p344 = por %p342, %p343
      %p346 = scmp.ne.s32.totalorder %s331, %s345
      %p347 = scmp.eq.s32.totalorder %s34, 0
      %p348 = por %p346, %p347
      %s350 = sadd.s32 %s349, 1
      %p353 = scmp.eq.s32.totalorder %s28, 1
      %p354 = scmp.ne.s32.totalorder %s349, %s351
      %p355 = scmp.eq.s32.totalorder %s28, 0
      %p356 = por %p354, %p355
      %p357 = scmp.ne.s32.totalorder %s349, %s351
      %p358 = scmp.eq.s32.totalorder %s33, 1
      %p359 = por %p357, %p358
      %p360 = scmp.ne.s32.totalorder %s351, %s352
      %p361 = scmp.eq.s32.totalorder %s33, 0
      %p362 = por %p360, %p361
      %p363 = scmp.ne.s32.totalorder %s351, %s352
      %p364 = scmp.eq.s32.totalorder %s34, 1
      %p365 = por %p363, %p364
      %p367 = scmp.ne.s32.totalorder %s352, %s366
      %p368 = scmp.eq.s32.totalorder %s34, 0
      %p369 = por %p367, %p368
      %s370 = ssub.s32 %s35, %s47
      %s371 = ssub.s32 %s36, %s43
      %s372 = sor.u32 %s370, %s371
      %p373 = scmp.eq.s32.totalorder %s372, 0
      %s375 = sadd.s32 %s374, 1
      %s376 = scalar_select %p373, %s374, %s375
      %p379 = pneg %p373
      %p380 = scmp.eq.s32.totalorder %s28, 1
      %p381 = por %p379, %p380
      %p382 = scmp.ne.s32.totalorder %s374, %s377
      %p383 = scmp.eq.s32.totalorder %s28, 0
      %p384 = por %p382, %p383
      %p385 = scmp.ne.s32.totalorder %s374, %s377
      %p386 = scmp.eq.s32.totalorder %s33, 1
      %p387 = por %p385, %p386
      %p388 = scmp.ne.s32.totalorder %s377, %s378
      %p389 = scmp.eq.s32.totalorder %s33, 0
      %p390 = por %p388, %p389
      %p391 = scmp.ne.s32.totalorder %s377, %s378
      %p392 = scmp.eq.s32.totalorder %s34, 1
      %p393 = por %p391, %p392
      %p395 = scmp.ne.s32.totalorder %s378, %s394
      %p396 = scmp.eq.s32.totalorder %s34, 0
      %p397 = por %p395, %p396
      %p398 = scmp.le.s32.totalorder 1, %s28
      %p399 = scmp.lt.s32.totalorder %s28, 3
      %p400 = pnand %p398, %p399
      %p401 = pneg %p400
      // Predicated region
      $region9: #{tpu_custom_call.1} parent=5 // pred_check
        _
      $region10: #{tpu_custom_call.1} parent=5 // pred_check_branch
        %403 = sbr.rel (%p400) target = $region12
      $region11: #{tpu_custom_call.1} parent=5 // pred_region
        %s404 = ssub.s32 %s28, 1
        // Predicated region
        $region13: #{tpu_custom_call.1} parent=11 // pred_check
          %p405 = pneg %p89
        $region14: #{tpu_custom_call.1} parent=11 // pred_check_branch
          %407 = sbr.rel (%p405) target = $region16
        $region15: #{tpu_custom_call.1} parent=11 // pred_region
          _
        $region16: #{tpu_custom_call.1} parent=11 // pred_fallthru
          _
        // Predicated region
        $region17: #{tpu_custom_call.1} parent=11 // pred_check
          %p408 = pneg %p110
        $region18: #{tpu_custom_call.1} parent=11 // pred_check_branch
          %410 = sbr.rel (%p408) target = $region20
        $region19: #{tpu_custom_call.1} parent=11 // pred_region
          _
        $region20: #{tpu_custom_call.1} parent=11 // pred_fallthru
          _
        // Predicated region
        $region21: #{tpu_custom_call.1} parent=11 // pred_check
          %p411 = pneg %p131
        $region22: #{tpu_custom_call.1} parent=11 // pred_check_branch
          %413 = sbr.rel (%p411) target = $region24
        $region23: #{tpu_custom_call.1} parent=11 // pred_region
          _
        $region24: #{tpu_custom_call.1} parent=11 // pred_fallthru
          _
        // Predicated region
        $region25: #{tpu_custom_call.1} parent=11 // pred_check
          %p414 = pneg %p152
        $region26: #{tpu_custom_call.1} parent=11 // pred_check_branch
          %416 = sbr.rel (%p414) target = $region28
        $region27: #{tpu_custom_call.1} parent=11 // pred_region
          _
        $region28: #{tpu_custom_call.1} parent=11 // pred_fallthru
          _
        // Predicated region
        $region29: #{tpu_custom_call.1} parent=11 // pred_check
          %p417 = pneg %p173
        $region30: #{tpu_custom_call.1} parent=11 // pred_check_branch
          %419 = sbr.rel (%p417) target = $region32
        $region31: #{tpu_custom_call.1} parent=11 // pred_region
          _
        $region32: #{tpu_custom_call.1} parent=11 // pred_fallthru
          _
        // Predicated region
        $region33: #{tpu_custom_call.1} parent=11 // pred_check
          %p420 = pneg %p194
        $region34: #{tpu_custom_call.1} parent=11 // pred_check_branch
          %422 = sbr.rel (%p420) target = $region36
        $region35: #{tpu_custom_call.1} parent=11 // pred_region
          _
        $region36: #{tpu_custom_call.1} parent=11 // pred_fallthru
          _
        // Predicated region
        $region37: #{tpu_custom_call.1} parent=11 // pred_check
          %p423 = pneg %p215
        $region38: #{tpu_custom_call.1} parent=11 // pred_check_branch
          %425 = sbr.rel (%p423) target = $region40
        $region39: #{tpu_custom_call.1} parent=11 // pred_region
          %427 = vsyncadd [#allocation6], 0
          %s428 = sshll.u32 %s7, 4
          %s429 = int_to_ptr.hbm [resolvable:$true] %s428
          %s430 = sshll.u32 [#allocation5], 4
          %s431 = int_to_ptr.vmem [resolvable:$true] %s430
          %436 = dma.hbm_to_vmem [thread:$0]  %s429, 512, %s431, [#allocation6], 128, 128, 8
        $region40: #{tpu_custom_call.1} parent=11 // pred_fallthru
          _
        // Predicated region
        $region41: #{tpu_custom_call.1} parent=11 // pred_check
          %p437 = pneg %p236
        $region42: #{tpu_custom_call.1} parent=11 // pred_check_branch
          %439 = sbr.rel (%p437) target = $region44
        $region43: #{tpu_custom_call.1} parent=11 // pred_region
          _
        $region44: #{tpu_custom_call.1} parent=11 // pred_fallthru
          _
        // Predicated region
        $region45: #{tpu_custom_call.1} parent=11 // pred_check
          %p440 = pneg %p257
        $region46: #{tpu_custom_call.1} parent=11 // pred_check_branch
          %442 = sbr.rel (%p440) target = $region48
        $region47: #{tpu_custom_call.1} parent=11 // pred_region
          _
        $region48: #{tpu_custom_call.1} parent=11 // pred_fallthru
          _
        // Predicated region
        $region49: #{tpu_custom_call.1} parent=11 // pred_check
          %p443 = pneg %p278
        $region50: #{tpu_custom_call.1} parent=11 // pred_check_branch
          %445 = sbr.rel (%p443) target = $region52
        $region51: #{tpu_custom_call.1} parent=11 // pred_region
          _
        $region52: #{tpu_custom_call.1} parent=11 // pred_fallthru
          _
        // Predicated region
        $region53: #{tpu_custom_call.1} parent=11 // pred_check
          %p446 = pneg %p299
        $region54: #{tpu_custom_call.1} parent=11 // pred_check_branch
          %448 = sbr.rel (%p446) target = $region56
        $region55: #{tpu_custom_call.1} parent=11 // pred_region
          _
        $region56: #{tpu_custom_call.1} parent=11 // pred_fallthru
          _
        // Predicated region
        $region57: #{tpu_custom_call.1} parent=11 // pred_check
          %p449 = pneg %p320
        $region58: #{tpu_custom_call.1} parent=11 // pred_check_branch
          %451 = sbr.rel (%p449) target = $region60
        $region59: #{tpu_custom_call.1} parent=11 // pred_region
          _
        $region60: #{tpu_custom_call.1} parent=11 // pred_fallthru
          _
        // Predicated region
        $region61: #{tpu_custom_call.1} parent=11 // pred_check
          %p452 = pneg %p341
        $region62: #{tpu_custom_call.1} parent=11 // pred_check_branch
          %454 = sbr.rel (%p452) target = $region64
        $region63: #{tpu_custom_call.1} parent=11 // pred_region
          _
        $region64: #{tpu_custom_call.1} parent=11 // pred_fallthru
          _
        // Predicated region
        $region65: #{tpu_custom_call.1} parent=11 // pred_check
          %p455 = pneg %p362
        $region66: #{tpu_custom_call.1} parent=11 // pred_check_branch
          %457 = sbr.rel (%p455) target = $region68
        $region67: #{tpu_custom_call.1} parent=11 // pred_region
          _
        $region68: #{tpu_custom_call.1} parent=11 // pred_fallthru
          _
      $region12: #{tpu_custom_call.1} parent=5 // pred_fallthru
        _
      %p458 = scmp.lt.s32.totalorder %s28, 2
      // Predicated region
      $region69: #{tpu_custom_call.1} parent=5 // pred_check
        %p459 = pneg %p458
      $region70: #{tpu_custom_call.1} parent=5 // pred_check_branch
        %461 = sbr.rel (%p459) target = $region72
      $region71: #{tpu_custom_call.1} parent=5 // pred_region
        // Predicated region
        $region73: #{tpu_custom_call.1} parent=71 // pred_check
          %p462 = pneg %p62
        $region74: #{tpu_custom_call.1} parent=71 // pred_check_branch
          %464 = sbr.rel (%p462) target = $region76
        $region75: #{tpu_custom_call.1} parent=71 // pred_region
          %s465 = sand.u32 %s52, 1
          %s466 = scalar_lea.sflag [#allocation3], %s465
          %s467 = sand.u32 %s52, 1
          %s468 = smul.addr %s467, 8
          %s469 = scalar_lea.vmem [#allocation2], %s468
          %471 = vsyncadd %s466, 0
          %s472 = sadd.s32 %s36, %s35
          %s473 = smul.addr %s472, 8
          %s474 = scalar_lea.hbm %s0, %s473
          %s476 = sshll.u32 %s474, 4
          %s477 = int_to_ptr.hbm [resolvable:$true] %s476
          %s478 = sshll.u32 %s469, 4
          %s479 = int_to_ptr.vmem [resolvable:$true] %s478
          %481 = dma.hbm_to_vmem [thread:$0]  %s477, 128, %s479, %s466
        $region76: #{tpu_custom_call.1} parent=71 // pred_fallthru
          _
      $region72: #{tpu_custom_call.1} parent=5 // pred_fallthru
        _
      %p482 = scmp.le.s32.totalorder 1, %s28
      %p483 = scmp.lt.s32.totalorder %s28, 3
      %p484 = pnand %p482, %p483
      %p485 = pneg %p484
      // Predicated region
      $region77: #{tpu_custom_call.1} parent=5 // pred_check
        _
      $region78: #{tpu_custom_call.1} parent=5 // pred_check_branch
        %487 = sbr.rel (%p484) target = $region80
      $region79: #{tpu_custom_call.1} parent=5 // pred_region
        %s488 = ssub.s32 %s28, 1
        %s489 = sand.u32 %s55, 1
        %s490 = scalar_lea.sflag [#allocation3], %s489
        %s491 = sand.u32 %s55, 1
        %s492 = smul.addr %s491, 8
        %s493 = scalar_lea.vmem [#allocation2], %s492
        // Predicated region
        $region81: #{tpu_custom_call.1} parent=79 // pred_check
          %p494 = pneg %p68
        $region82: #{tpu_custom_call.1} parent=79 // pred_check_branch
          %496 = sbr.rel (%p494) target = $region84
        $region83: #{tpu_custom_call.1} parent=79 // pred_region
          %498 = dma.done %s490, 128
        $region84: #{tpu_custom_call.1} parent=79 // pred_fallthru
          _
        // Predicated region
        $region85: #{tpu_custom_call.1} parent=79 // pred_check
          %p499 = pneg %p215
        $region86: #{tpu_custom_call.1} parent=79 // pred_check_branch
          %501 = sbr.rel (%p499) target = $region88
        $region87: #{tpu_custom_call.1} parent=79 // pred_region
          %503 = dma.done [#allocation6], 512
        $region88: #{tpu_custom_call.1} parent=79 // pred_fallthru
          _
        %s504 = sand.u32 %s55, 1
        %s505 = scalar_lea.sflag [#allocation3], %s504
        %s506 = sand.u32 %s55, 1
        %s507 = smul.addr %s506, 8
        %s508 = scalar_lea.vmem [#allocation2], %s507
        %p509 = pneg %p68
        %p510 = pneg %p65
        %p511 = pneg %p89
        %p512 = pneg %p86
        %p513 = pneg %p110
        %p514 = pneg %p107
        %p515 = pneg %p131
        %p516 = pneg %p128
        %p517 = pneg %p152
        %p518 = pneg %p149
        %p519 = pneg %p173
        %p520 = pneg %p170
        %p521 = pneg %p194
        %p522 = pneg %p191
        %p523 = pneg %p215
        %p524 = pneg %p212
        %p525 = pneg %p236
        %p526 = pneg %p233
        %p527 = pneg %p257
        %p528 = pneg %p254
        %p529 = pneg %p278
        %p530 = pneg %p275
        %p531 = pneg %p299
        %p532 = pneg %p296
        %p533 = pneg %p320
        %p534 = pneg %p317
        %p535 = pneg %p341
        %p536 = pneg %p338
        %p537 = pneg %p362
        %p538 = pneg %p359
        %p539 = pneg %p390
        %p540 = pneg %p387
        %s541 = sand.u32 %s377, 1
        %s542 = scalar_lea.sflag [#allocation4], %s541
        %s543 = sand.u32 %s377, 1
        %s544 = smul.addr %s543, 8
        %s545 = scalar_lea.vmem [#allocation7], %s544
        %v546 = vld [vmem:[%s493] sm:$0xff]
        %v547 = vld [vmem:[%s1] sm:$0xff]
        %v548 = vld [vmem:[%s1 + $0x8] sm:$0xff]
        %v549 = vld [vmem:[%s1 + $0x10] sm:$0xff]
        %v550 = vld [vmem:[%s1 + $0x18] sm:$0xff]
        %v551 = vld [vmem:[%s2] sm:$0x1]
        %v553 = vperm.slane %v551, 0
        %vm555 = vcmask 261120
        %v557 = vsel %vm555, %v546, 0
        %559 = vmatpush.msra.mxu0 0.0
        %560 = vmatpush.msra.mxu0 0.0
        %561 = vmatpush.msra.mxu0 0.0
        %562 = vmatpush.msra.mxu0 0.0
        %563 = vmatpush.msra.mxu0 0.0
        %564 = vmatpush.msra.mxu0 0.0
        %565 = vmatpush.msra.mxu0 0.0
        %566 = vmatpush.msra.mxu0 0.0
        %567 = vmatpush.msra.mxu0 0.0
        %568 = vmatpush.msra.mxu0 0.0
        %569 = vmatpush.msra.mxu0 0.0
        %570 = vmatpush.msra.mxu0 0.0
        %571 = vmatpush.msra.mxu0 %v550
        %572 = vmatpush.msra.mxu0 %v549
        %573 = vmatpush.msra.mxu0 %v548
        %574 = vmatpush.msra.mxu0 %v547
        %575 = vmatmul.f32.gmra.mxu0 %v557
        %v576 = vpop.f32.mrf.mxu0
        %v577 = vadd.f32 %v553, %v576
        %578 = vdwg.mxu0
        %v579 = vld [vmem:[%s3] sm:$0xff]
        %v580 = vld [vmem:[%s3 + $0x8] sm:$0xff]
        %v581 = vld [vmem:[%s3 + $0x10] sm:$0xff]
        %v582 = vld [vmem:[%s3 + $0x18] sm:$0xff]
        %v583 = vld [vmem:[%s4] sm:$0x1]
        %v585 = vperm.slane %v583, 0
        %587 = vmatpush.msra.mxu0 0.0
        %588 = vmatpush.msra.mxu0 0.0
        %589 = vmatpush.msra.mxu0 0.0
        %590 = vmatpush.msra.mxu0 0.0
        %591 = vmatpush.msra.mxu0 0.0
        %592 = vmatpush.msra.mxu0 0.0
        %593 = vmatpush.msra.mxu0 0.0
        %594 = vmatpush.msra.mxu0 0.0
        %595 = vmatpush.msra.mxu0 0.0
        %596 = vmatpush.msra.mxu0 0.0
        %597 = vmatpush.msra.mxu0 0.0
        %598 = vmatpush.msra.mxu0 0.0
        %599 = vmatpush.msra.mxu0 %v582
        %600 = vmatpush.msra.mxu0 %v581
        %601 = vmatpush.msra.mxu0 %v580
        %602 = vmatpush.msra.mxu0 %v579
        %603 = vmatmul.f32.gmra.mxu0 %v557
        %v604 = vpop.f32.mrf.mxu0
        %v605 = vadd.f32 %v585, %v604
        %606 = vdwg.mxu0
        %608 = vrot.lane.b32.xlu0 %v577, 120
        %v609 = vpop.permute.xlu0 %608
        %610 = vrot.lane.b32.xlu0 %v577, 112
        %v611 = vpop.permute.xlu0 %610
        %612 = vrot.lane.b32.xlu0 %v577, 104
        %v613 = vpop.permute.xlu0 %612
        %615 = vrot.lane.b32.xlu0 %v605, 120
        %v616 = vpop.permute.xlu0 %615
        %618 = vrot.lane.b32.xlu0 %v605, 112
        %v619 = vpop.permute.xlu0 %618
        %621 = vrot.lane.b32.xlu0 %v605, 104
        %v622 = vpop.permute.xlu0 %621
        %624 = vxpose.xlu0.b32.start [1/16] %v605, 128
        %625 = vxpose.xlu0.b32.cont [2/16] 0.0, 128
        %626 = vxpose.xlu0.b32.cont [3/16] 0.0, 128
        %627 = vxpose.xlu0.b32.cont [4/16] 0.0, 128
        %628 = vxpose.xlu0.b32.cont [5/16] 0.0, 128
        %629 = vxpose.xlu0.b32.cont [6/16] 0.0, 128
        %630 = vxpose.xlu0.b32.cont [7/16] 0.0, 128
        %631 = vxpose.xlu0.b32.cont [8/16] 0.0, 128
        %632 = vxpose.xlu0.b32.cont [9/16] 0.0, 128
        %633 = vxpose.xlu0.b32.cont [10/16] 0.0, 128
        %634 = vxpose.xlu0.b32.cont [11/16] 0.0, 128
        %635 = vxpose.xlu0.b32.cont [12/16] 0.0, 128
        %636 = vxpose.xlu0.b32.cont [13/16] 0.0, 128
        %637 = vxpose.xlu0.b32.cont [14/16] 0.0, 128
        %638 = vxpose.xlu0.b32.cont [15/16] 0.0, 128
        %639 = vxpose.xlu0.b32.end [16/16] 0.0, 128
        %v640 = vpop.trf.xlu0
        %v641 = vpop.trf.xlu0
        %v642 = vpop.trf.xlu0
        %v643 = vpop.trf.xlu0
        %v644 = vpop.trf.xlu0
        %v645 = vpop.trf.xlu0
        %v646 = vpop.trf.xlu0
        %v647 = vpop.trf.xlu0
        %v648 = vpop.trf.xlu0
        %v649 = vpop.trf.xlu0
        %v650 = vpop.trf.xlu0
        %v651 = vpop.trf.xlu0
        %v652 = vpop.trf.xlu0
        %v653 = vpop.trf.xlu0
        %v654 = vpop.trf.xlu0
        %v655 = vpop.trf.xlu0
        %656 = vxpose.xlu0.b32.start [1/16] %v616, 128
        %657 = vxpose.xlu0.b32.cont [2/16] 0.0, 128
        %658 = vxpose.xlu0.b32.cont [3/16] 0.0, 128
        %659 = vxpose.xlu0.b32.cont [4/16] 0.0, 128
        %660 = vxpose.xlu0.b32.cont [5/16] 0.0, 128
        %661 = vxpose.xlu0.b32.cont [6/16] 0.0, 128
        %662 = vxpose.xlu0.b32.cont [7/16] 0.0, 128
        %663 = vxpose.xlu0.b32.cont [8/16] 0.0, 128
        %664 = vxpose.xlu0.b32.cont [9/16] 0.0, 128
        %665 = vxpose.xlu0.b32.cont [10/16] 0.0, 128
        %666 = vxpose.xlu0.b32.cont [11/16] 0.0, 128
        %667 = vxpose.xlu0.b32.cont [12/16] 0.0, 128
        %668 = vxpose.xlu0.b32.cont [13/16] 0.0, 128
        %669 = vxpose.xlu0.b32.cont [14/16] 0.0, 128
        %670 = vxpose.xlu0.b32.cont [15/16] 0.0, 128
        %671 = vxpose.xlu0.b32.end [16/16] 0.0, 128
        %v672 = vpop.trf.xlu0
        %v673 = vpop.trf.xlu0
        %v674 = vpop.trf.xlu0
        %v675 = vpop.trf.xlu0
        %v676 = vpop.trf.xlu0
        %v677 = vpop.trf.xlu0
        %v678 = vpop.trf.xlu0
        %v679 = vpop.trf.xlu0
        %v680 = vpop.trf.xlu0
        %v681 = vpop.trf.xlu0
        %v682 = vpop.trf.xlu0
        %v683 = vpop.trf.xlu0
        %v684 = vpop.trf.xlu0
        %v685 = vpop.trf.xlu0
        %v686 = vpop.trf.xlu0
        %v687 = vpop.trf.xlu0
        %688 = vxpose.xlu0.b32.start [1/16] %v619, 128
        %689 = vxpose.xlu0.b32.cont [2/16] 0.0, 128
        %690 = vxpose.xlu0.b32.cont [3/16] 0.0, 128
        %691 = vxpose.xlu0.b32.cont [4/16] 0.0, 128
        %692 = vxpose.xlu0.b32.cont [5/16] 0.0, 128
        %693 = vxpose.xlu0.b32.cont [6/16] 0.0, 128
        %694 = vxpose.xlu0.b32.cont [7/16] 0.0, 128
        %695 = vxpose.xlu0.b32.cont [8/16] 0.0, 128
        %696 = vxpose.xlu0.b32.cont [9/16] 0.0, 128
        %697 = vxpose.xlu0.b32.cont [10/16] 0.0, 128
        %698 = vxpose.xlu0.b32.cont [11/16] 0.0, 128
        %699 = vxpose.xlu0.b32.cont [12/16] 0.0, 128
        %700 = vxpose.xlu0.b32.cont [13/16] 0.0, 128
        %701 = vxpose.xlu0.b32.cont [14/16] 0.0, 128
        %702 = vxpose.xlu0.b32.cont [15/16] 0.0, 128
        %703 = vxpose.xlu0.b32.end [16/16] 0.0, 128
        %v704 = vpop.trf.xlu0
        %v705 = vpop.trf.xlu0
        %v706 = vpop.trf.xlu0
        %v707 = vpop.trf.xlu0
        %v708 = vpop.trf.xlu0
        %v709 = vpop.trf.xlu0
        %v710 = vpop.trf.xlu0
        %v711 = vpop.trf.xlu0
        %v712 = vpop.trf.xlu0
        %v713 = vpop.trf.xlu0
        %v714 = vpop.trf.xlu0
        %v715 = vpop.trf.xlu0
        %v716 = vpop.trf.xlu0
        %v717 = vpop.trf.xlu0
        %v718 = vpop.trf.xlu0
        %v719 = vpop.trf.xlu0
        %720 = vxpose.xlu0.b32.start [1/16] %v622, 128
        %721 = vxpose.xlu0.b32.cont [2/16] 0.0, 128
        %722 = vxpose.xlu0.b32.cont [3/16] 0.0, 128
        %723 = vxpose.xlu0.b32.cont [4/16] 0.0, 128
        %724 = vxpose.xlu0.b32.cont [5/16] 0.0, 128
        %725 = vxpose.xlu0.b32.cont [6/16] 0.0, 128
        %726 = vxpose.xlu0.b32.cont [7/16] 0.0, 128
        %727 = vxpose.xlu0.b32.cont [8/16] 0.0, 128
        %728 = vxpose.xlu0.b32.cont [9/16] 0.0, 128
        %729 = vxpose.xlu0.b32.cont [10/16] 0.0, 128
        %730 = vxpose.xlu0.b32.cont [11/16] 0.0, 128
        %731 = vxpose.xlu0.b32.cont [12/16] 0.0, 128
        %732 = vxpose.xlu0.b32.cont [13/16] 0.0, 128
        %733 = vxpose.xlu0.b32.cont [14/16] 0.0, 128
        %734 = vxpose.xlu0.b32.cont [15/16] 0.0, 128
        %735 = vxpose.xlu0.b32.end [16/16] 0.0, 128
        %v736 = vpop.trf.xlu0
        %v737 = vpop.trf.xlu0
        %v738 = vpop.trf.xlu0
        %v739 = vpop.trf.xlu0
        %v740 = vpop.trf.xlu0
        %v741 = vpop.trf.xlu0
        %v742 = vpop.trf.xlu0
        %v743 = vpop.trf.xlu0
        %v744 = vpop.trf.xlu0
        %v745 = vpop.trf.xlu0
        %v746 = vpop.trf.xlu0
        %v747 = vpop.trf.xlu0
        %v748 = vpop.trf.xlu0
        %v749 = vpop.trf.xlu0
        %v750 = vpop.trf.xlu0
        %v751 = vpop.trf.xlu0
        %vm752 = vcmask 64512
        %v753 = vsel %vm752, %v577, 0
        %755 = vmatpush.msra.mxu0 0.0
        %756 = vmatpush.msra.mxu0 0.0
        %757 = vmatpush.msra.mxu0 0.0
        %758 = vmatpush.msra.mxu0 0.0
        %759 = vmatpush.msra.mxu0 0.0
        %760 = vmatpush.msra.mxu0 0.0
        %761 = vmatpush.msra.mxu0 0.0
        %762 = vmatpush.msra.mxu0 0.0
        %763 = vmatpush.msra.mxu0 0.0
        %764 = vmatpush.msra.mxu0 0.0
        %765 = vmatpush.msra.mxu0 0.0
        %766 = vmatpush.msra.mxu0 0.0
        %767 = vmatpush.msra.mxu0 0.0
        %768 = vmatpush.msra.mxu0 0.0
        %769 = vmatpush.msra.mxu0 0.0
        %770 = vmatpush.msra.mxu0 %v640
        %771 = vmatmul.f32.gmra.mxu0 %v753
        %v772 = vpop.f32.mrf.mxu0
        %v773 = vadd.f32 0.0, %v772
        %774 = vdwg.mxu0
        %v775 = vsel %vm752, %v609, 0
        %777 = vmatpush.msra.mxu0 0.0
        %778 = vmatpush.msra.mxu0 0.0
        %779 = vmatpush.msra.mxu0 0.0
        %780 = vmatpush.msra.mxu0 0.0
        %781 = vmatpush.msra.mxu0 0.0
        %782 = vmatpush.msra.mxu0 0.0
        %783 = vmatpush.msra.mxu0 0.0
        %784 = vmatpush.msra.mxu0 0.0
        %785 = vmatpush.msra.mxu0 0.0
        %786 = vmatpush.msra.mxu0 0.0
        %787 = vmatpush.msra.mxu0 0.0
        %788 = vmatpush.msra.mxu0 0.0
        %789 = vmatpush.msra.mxu0 0.0
        %790 = vmatpush.msra.mxu0 0.0
        %791 = vmatpush.msra.mxu0 0.0
        %792 = vmatpush.msra.mxu0 %v672
        %793 = vmatmul.f32.gmra.mxu0 %v775
        %v794 = vpop.f32.mrf.mxu0
        %v795 = vadd.f32 0.0, %v794
        %796 = vdwg.mxu0
        %v797 = vsel %vm752, %v611, 0
        %799 = vmatpush.msra.mxu0 0.0
        %800 = vmatpush.msra.mxu0 0.0
        %801 = vmatpush.msra.mxu0 0.0
        %802 = vmatpush.msra.mxu0 0.0
        %803 = vmatpush.msra.mxu0 0.0
        %804 = vmatpush.msra.mxu0 0.0
        %805 = vmatpush.msra.mxu0 0.0
        %806 = vmatpush.msra.mxu0 0.0
        %807 = vmatpush.msra.mxu0 0.0
        %808 = vmatpush.msra.mxu0 0.0
        %809 = vmatpush.msra.mxu0 0.0
        %810 = vmatpush.msra.mxu0 0.0
        %811 = vmatpush.msra.mxu0 0.0
        %812 = vmatpush.msra.mxu0 0.0
        %813 = vmatpush.msra.mxu0 0.0
        %814 = vmatpush.msra.mxu0 %v704
        %815 = vmatmul.f32.gmra.mxu0 %v797
        %v816 = vpop.f32.mrf.mxu0
        %v817 = vadd.f32 0.0, %v816
        %818 = vdwg.mxu0
        %v819 = vsel %vm752, %v613, 0
        %821 = vmatpush.msra.mxu0 0.0
        %822 = vmatpush.msra.mxu0 0.0
        %823 = vmatpush.msra.mxu0 0.0
        %824 = vmatpush.msra.mxu0 0.0
        %825 = vmatpush.msra.mxu0 0.0
        %826 = vmatpush.msra.mxu0 0.0
        %827 = vmatpush.msra.mxu0 0.0
        %828 = vmatpush.msra.mxu0 0.0
        %829 = vmatpush.msra.mxu0 0.0
        %830 = vmatpush.msra.mxu0 0.0
        %831 = vmatpush.msra.mxu0 0.0
        %832 = vmatpush.msra.mxu0 0.0
        %833 = vmatpush.msra.mxu0 0.0
        %834 = vmatpush.msra.mxu0 0.0
        %835 = vmatpush.msra.mxu0 0.0
        %836 = vmatpush.msra.mxu0 %v736
        %837 = vmatmul.f32.gmra.mxu0 %v819
        %v838 = vpop.f32.mrf.mxu0
        %v839 = vadd.f32 0.0, %v838
        %840 = vdwg.mxu0
        %v841 = vmul.f32 %v773, 0.35355338
        %v842 = vmul.f32 %v795, 0.35355338
        %v843 = vmul.f32 %v817, 0.35355338
        %v844 = vmul.f32 %v839, 0.35355338
        %v845 = vsel %vm752, %v841, -inf
        %846 = vmax.xlane.f32.xlu0 %v845
        %v847 = vpop.xlane.xlu0 %846
        %v848 = vsel %vm752, %v842, -inf
        %849 = vmax.xlane.f32.xlu0 %v848
        %v850 = vpop.xlane.xlu0 %849
        %v851 = vsel %vm752, %v843, -inf
        %852 = vmax.xlane.f32.xlu0 %v851
        %v853 = vpop.xlane.xlu0 %852
        %v854 = vsel %vm752, %v844, -inf
        %855 = vmax.xlane.f32.xlu0 %v854
        %v856 = vpop.xlane.xlu0 %855
        %v857 = vsub.f32 %v841, %v847
        %v858 = vsub.f32 %v842, %v850
        %v859 = vsub.f32 %v843, %v853
        %v860 = vsub.f32 %v844, %v856
        %v861 = vmul.f32 %v857, 1.442695
        %v862 = vpow.pop %v861
        %v863 = vmul.f32 %v858, 1.442695
        %v864 = vpow.pop %v863
        %v865 = vmul.f32 %v859, 1.442695
        %v866 = vpow.pop %v865
        %v867 = vmul.f32 %v860, 1.442695
        %v868 = vpow.pop %v867
        %v869 = vsel %vm752, %v862, 0.0
        %870 = vadd.xlane.f32.xlu0 %v869
        %v871 = vpop.xlane.xlu0 %870
        %v872 = vsel %vm752, %v864, 0.0
        %873 = vadd.xlane.f32.xlu0 %v872
        %v874 = vpop.xlane.xlu0 %873
        %v875 = vsel %vm752, %v866, 0.0
        %876 = vadd.xlane.f32.xlu0 %v875
        %v877 = vpop.xlane.xlu0 %876
        %v878 = vsel %vm752, %v868, 0.0
        %879 = vadd.xlane.f32.xlu0 %v878
        %v880 = vpop.xlane.xlu0 %879
        %v881 = vrcp.pop %v871
        %v882 = vrcp.pop %v874
        %v883 = vrcp.pop %v877
        %v884 = vrcp.pop %v880
        %v885 = vmul.f32 %v862, %v881
        %v886 = vmul.f32 %v864, %v882
        %v887 = vmul.f32 %v866, %v883
        %v888 = vmul.f32 %v868, %v884
        %889 = vrot.lane.b32.xlu0 %v605, 96
        %v890 = vpop.permute.xlu0 %889
        %891 = vrot.lane.b32.xlu0 %v616, 96
        %v892 = vpop.permute.xlu0 %891
        %893 = vrot.lane.b32.xlu0 %v619, 96
        %v894 = vpop.permute.xlu0 %893
        %895 = vrot.lane.b32.xlu0 %v622, 96
        %v896 = vpop.permute.xlu0 %895
        %901 = vxpose.xlu0.b32.start [1/16] %v890, 128
        %902 = vxpose.xlu0.b32.cont [2/16] 0.0, 128
        %903 = vxpose.xlu0.b32.cont [3/16] 0.0, 128
        %904 = vxpose.xlu0.b32.cont [4/16] 0.0, 128
        %905 = vxpose.xlu0.b32.cont [5/16] 0.0, 128
        %906 = vxpose.xlu0.b32.cont [6/16] 0.0, 128
        %907 = vxpose.xlu0.b32.cont [7/16] 0.0, 128
        %908 = vxpose.xlu0.b32.cont [8/16] 0.0, 128
        %909 = vxpose.xlu0.b32.cont [9/16] 0.0, 128
        %910 = vxpose.xlu0.b32.cont [10/16] 0.0, 128
        %911 = vxpose.xlu0.b32.cont [11/16] 0.0, 128
        %912 = vxpose.xlu0.b32.cont [12/16] 0.0, 128
        %913 = vxpose.xlu0.b32.cont [13/16] 0.0, 128
        %914 = vxpose.xlu0.b32.cont [14/16] 0.0, 128
        %915 = vxpose.xlu0.b32.cont [15/16] 0.0, 128
        %916 = vxpose.xlu0.b32.end [16/16] 0.0, 128
        %v917 = vpop.trf.xlu0
        %v918 = vpop.trf.xlu0
        %v919 = vpop.trf.xlu0
        %v920 = vpop.trf.xlu0
        %v921 = vpop.trf.xlu0
        %v922 = vpop.trf.xlu0
        %v923 = vpop.trf.xlu0
        %v924 = vpop.trf.xlu0
        %v925 = vpop.trf.xlu0
        %v926 = vpop.trf.xlu0
        %v927 = vpop.trf.xlu0
        %v928 = vpop.trf.xlu0
        %v929 = vpop.trf.xlu0
        %v930 = vpop.trf.xlu0
        %v931 = vpop.trf.xlu0
        %v932 = vpop.trf.xlu0
        %933 = vxpose.xlu0.b32.start [1/16] %v892, 128
        %934 = vxpose.xlu0.b32.cont [2/16] 0.0, 128
        %935 = vxpose.xlu0.b32.cont [3/16] 0.0, 128
        %936 = vxpose.xlu0.b32.cont [4/16] 0.0, 128
        %937 = vxpose.xlu0.b32.cont [5/16] 0.0, 128
        %938 = vxpose.xlu0.b32.cont [6/16] 0.0, 128
        %939 = vxpose.xlu0.b32.cont [7/16] 0.0, 128
        %940 = vxpose.xlu0.b32.cont [8/16] 0.0, 128
        %941 = vxpose.xlu0.b32.cont [9/16] 0.0, 128
        %942 = vxpose.xlu0.b32.cont [10/16] 0.0, 128
        %943 = vxpose.xlu0.b32.cont [11/16] 0.0, 128
        %944 = vxpose.xlu0.b32.cont [12/16] 0.0, 128
        %945 = vxpose.xlu0.b32.cont [13/16] 0.0, 128
        %946 = vxpose.xlu0.b32.cont [14/16] 0.0, 128
        %947 = vxpose.xlu0.b32.cont [15/16] 0.0, 128
        %948 = vxpose.xlu0.b32.end [16/16] 0.0, 128
        %v949 = vpop.trf.xlu0
        %v950 = vpop.trf.xlu0
        %v951 = vpop.trf.xlu0
        %v952 = vpop.trf.xlu0
        %v953 = vpop.trf.xlu0
        %v954 = vpop.trf.xlu0
        %v955 = vpop.trf.xlu0
        %v956 = vpop.trf.xlu0
        %v957 = vpop.trf.xlu0
        %v958 = vpop.trf.xlu0
        %v959 = vpop.trf.xlu0
        %v960 = vpop.trf.xlu0
        %v961 = vpop.trf.xlu0
        %v962 = vpop.trf.xlu0
        %v963 = vpop.trf.xlu0
        %v964 = vpop.trf.xlu0
        %965 = vxpose.xlu0.b32.start [1/16] %v894, 128
        %966 = vxpose.xlu0.b32.cont [2/16] 0.0, 128
        %967 = vxpose.xlu0.b32.cont [3/16] 0.0, 128
        %968 = vxpose.xlu0.b32.cont [4/16] 0.0, 128
        %969 = vxpose.xlu0.b32.cont [5/16] 0.0, 128
        %970 = vxpose.xlu0.b32.cont [6/16] 0.0, 128
        %971 = vxpose.xlu0.b32.cont [7/16] 0.0, 128
        %972 = vxpose.xlu0.b32.cont [8/16] 0.0, 128
        %973 = vxpose.xlu0.b32.cont [9/16] 0.0, 128
        %974 = vxpose.xlu0.b32.cont [10/16] 0.0, 128
        %975 = vxpose.xlu0.b32.cont [11/16] 0.0, 128
        %976 = vxpose.xlu0.b32.cont [12/16] 0.0, 128
        %977 = vxpose.xlu0.b32.cont [13/16] 0.0, 128
        %978 = vxpose.xlu0.b32.cont [14/16] 0.0, 128
        %979 = vxpose.xlu0.b32.cont [15/16] 0.0, 128
        %980 = vxpose.xlu0.b32.end [16/16] 0.0, 128
        %v981 = vpop.trf.xlu0
        %v982 = vpop.trf.xlu0
        %v983 = vpop.trf.xlu0
        %v984 = vpop.trf.xlu0
        %v985 = vpop.trf.xlu0
        %v986 = vpop.trf.xlu0
        %v987 = vpop.trf.xlu0
        %v988 = vpop.trf.xlu0
        %v989 = vpop.trf.xlu0
        %v990 = vpop.trf.xlu0
        %v991 = vpop.trf.xlu0
        %v992 = vpop.trf.xlu0
        %v993 = vpop.trf.xlu0
        %v994 = vpop.trf.xlu0
        %v995 = vpop.trf.xlu0
        %v996 = vpop.trf.xlu0
        %997 = vxpose.xlu0.b32.start [1/16] %v896, 128
        %998 = vxpose.xlu0.b32.cont [2/16] 0.0, 128
        %999 = vxpose.xlu0.b32.cont [3/16] 0.0, 128
        %1000 = vxpose.xlu0.b32.cont [4/16] 0.0, 128
        %1001 = vxpose.xlu0.b32.cont [5/16] 0.0, 128
        %1002 = vxpose.xlu0.b32.cont [6/16] 0.0, 128
        %1003 = vxpose.xlu0.b32.cont [7/16] 0.0, 128
        %1004 = vxpose.xlu0.b32.cont [8/16] 0.0, 128
        %1005 = vxpose.xlu0.b32.cont [9/16] 0.0, 128
        %1006 = vxpose.xlu0.b32.cont [10/16] 0.0, 128
        %1007 = vxpose.xlu0.b32.cont [11/16] 0.0, 128
        %1008 = vxpose.xlu0.b32.cont [12/16] 0.0, 128
        %1009 = vxpose.xlu0.b32.cont [13/16] 0.0, 128
        %1010 = vxpose.xlu0.b32.cont [14/16] 0.0, 128
        %1011 = vxpose.xlu0.b32.cont [15/16] 0.0, 128
        %1012 = vxpose.xlu0.b32.end [16/16] 0.0, 128
        %v1013 = vpop.trf.xlu0
        %v1014 = vpop.trf.xlu0
        %v1015 = vpop.trf.xlu0
        %v1016 = vpop.trf.xlu0
        %v1017 = vpop.trf.xlu0
        %v1018 = vpop.trf.xlu0
        %v1019 = vpop.trf.xlu0
        %v1020 = vpop.trf.xlu0
        %v1021 = vpop.trf.xlu0
        %v1022 = vpop.trf.xlu0
        %v1023 = vpop.trf.xlu0
        %v1024 = vpop.trf.xlu0
        %v1025 = vpop.trf.xlu0
        %v1026 = vpop.trf.xlu0
        %v1027 = vpop.trf.xlu0
        %v1028 = vpop.trf.xlu0
        %v1030 = vsel %vm752, %v917, 0
        %v1033 = vsel %vm752, %v885, 0
        %1035 = vmatpush.xpose.msra.mxu0 0.0
        %1036 = vmatpush.xpose.msra.mxu0 0.0
        %1037 = vmatpush.xpose.msra.mxu0 0.0
        %1038 = vmatpush.xpose.msra.mxu0 0.0
        %1039 = vmatpush.xpose.msra.mxu0 0.0
        %1040 = vmatpush.xpose.msra.mxu0 0.0
        %1041 = vmatpush.xpose.msra.mxu0 0.0
        %1042 = vmatpush.xpose.msra.mxu0 0.0
        %1043 = vmatpush.xpose.msra.mxu0 0.0
        %1044 = vmatpush.xpose.msra.mxu0 0.0
        %1045 = vmatpush.xpose.msra.mxu0 0.0
        %1046 = vmatpush.xpose.msra.mxu0 0.0
        %1047 = vmatpush.xpose.msra.mxu0 0.0
        %1048 = vmatpush.xpose.msra.mxu0 0.0
        %1049 = vmatpush.xpose.msra.mxu0 0.0
        %1050 = vmatpush.xpose.msra.mxu0 %v1033
        %1051 = vmatmul.f32.gmra.mxu0 %v1030
        %v1052 = vpop.f32.mrf.mxu0
        %v1053 = vadd.f32 0.0, %v1052
        %1054 = vdwg.mxu0
        %v1056 = vsel %vm752, %v949, 0
        %v1059 = vsel %vm752, %v886, 0
        %1061 = vmatpush.xpose.msra.mxu0 0.0
        %1062 = vmatpush.xpose.msra.mxu0 0.0
        %1063 = vmatpush.xpose.msra.mxu0 0.0
        %1064 = vmatpush.xpose.msra.mxu0 0.0
        %1065 = vmatpush.xpose.msra.mxu0 0.0
        %1066 = vmatpush.xpose.msra.mxu0 0.0
        %1067 = vmatpush.xpose.msra.mxu0 0.0
        %1068 = vmatpush.xpose.msra.mxu0 0.0
        %1069 = vmatpush.xpose.msra.mxu0 0.0
        %1070 = vmatpush.xpose.msra.mxu0 0.0
        %1071 = vmatpush.xpose.msra.mxu0 0.0
        %1072 = vmatpush.xpose.msra.mxu0 0.0
        %1073 = vmatpush.xpose.msra.mxu0 0.0
        %1074 = vmatpush.xpose.msra.mxu0 0.0
        %1075 = vmatpush.xpose.msra.mxu0 0.0
        %1076 = vmatpush.xpose.msra.mxu0 %v1059
        %1077 = vmatmul.f32.gmra.mxu0 %v1056
        %v1078 = vpop.f32.mrf.mxu0
        %v1079 = vadd.f32 0.0, %v1078
        %1080 = vdwg.mxu0
        %v1082 = vsel %vm752, %v981, 0
        %v1085 = vsel %vm752, %v887, 0
        %1087 = vmatpush.xpose.msra.mxu0 0.0
        %1088 = vmatpush.xpose.msra.mxu0 0.0
        %1089 = vmatpush.xpose.msra.mxu0 0.0
        %1090 = vmatpush.xpose.msra.mxu0 0.0
        %1091 = vmatpush.xpose.msra.mxu0 0.0
        %1092 = vmatpush.xpose.msra.mxu0 0.0
        %1093 = vmatpush.xpose.msra.mxu0 0.0
        %1094 = vmatpush.xpose.msra.mxu0 0.0
        %1095 = vmatpush.xpose.msra.mxu0 0.0
        %1096 = vmatpush.xpose.msra.mxu0 0.0
        %1097 = vmatpush.xpose.msra.mxu0 0.0
        %1098 = vmatpush.xpose.msra.mxu0 0.0
        %1099 = vmatpush.xpose.msra.mxu0 0.0
        %1100 = vmatpush.xpose.msra.mxu0 0.0
        %1101 = vmatpush.xpose.msra.mxu0 0.0
        %1102 = vmatpush.xpose.msra.mxu0 %v1085
        %1103 = vmatmul.f32.gmra.mxu0 %v1082
        %v1104 = vpop.f32.mrf.mxu0
        %v1105 = vadd.f32 0.0, %v1104
        %1106 = vdwg.mxu0
        %v1108 = vsel %vm752, %v1013, 0
        %v1111 = vsel %vm752, %v888, 0
        %1113 = vmatpush.xpose.msra.mxu0 0.0
        %1114 = vmatpush.xpose.msra.mxu0 0.0
        %1115 = vmatpush.xpose.msra.mxu0 0.0
        %1116 = vmatpush.xpose.msra.mxu0 0.0
        %1117 = vmatpush.xpose.msra.mxu0 0.0
        %1118 = vmatpush.xpose.msra.mxu0 0.0
        %1119 = vmatpush.xpose.msra.mxu0 0.0
        %1120 = vmatpush.xpose.msra.mxu0 0.0
        %1121 = vmatpush.xpose.msra.mxu0 0.0
        %1122 = vmatpush.xpose.msra.mxu0 0.0
        %1123 = vmatpush.xpose.msra.mxu0 0.0
        %1124 = vmatpush.xpose.msra.mxu0 0.0
        %1125 = vmatpush.xpose.msra.mxu0 0.0
        %1126 = vmatpush.xpose.msra.mxu0 0.0
        %1127 = vmatpush.xpose.msra.mxu0 0.0
        %1128 = vmatpush.xpose.msra.mxu0 %v1111
        %1129 = vmatmul.f32.gmra.mxu0 %v1108
        %v1130 = vpop.f32.mrf.mxu0
        %v1131 = vadd.f32 0.0, %v1130
        %1132 = vdwg.mxu0
        %1133 = vxpose.xlu0.b32.start [1/16] %v1053, 128
        %1134 = vxpose.xlu0.b32.cont [2/16] 0.0, 128
        %1135 = vxpose.xlu0.b32.cont [3/16] 0.0, 128
        %1136 = vxpose.xlu0.b32.cont [4/16] 0.0, 128
        %1137 = vxpose.xlu0.b32.cont [5/16] 0.0, 128
        %1138 = vxpose.xlu0.b32.cont [6/16] 0.0, 128
        %1139 = vxpose.xlu0.b32.cont [7/16] 0.0, 128
        %1140 = vxpose.xlu0.b32.cont [8/16] 0.0, 128
        %1141 = vxpose.xlu0.b32.cont [9/16] 0.0, 128
        %1142 = vxpose.xlu0.b32.cont [10/16] 0.0, 128
        %1143 = vxpose.xlu0.b32.cont [11/16] 0.0, 128
        %1144 = vxpose.xlu0.b32.cont [12/16] 0.0, 128
        %1145 = vxpose.xlu0.b32.cont [13/16] 0.0, 128
        %1146 = vxpose.xlu0.b32.cont [14/16] 0.0, 128
        %1147 = vxpose.xlu0.b32.cont [15/16] 0.0, 128
        %1148 = vxpose.xlu0.b32.end [16/16] 0.0, 128
        %v1149 = vpop.trf.xlu0
        %v1150 = vpop.trf.xlu0
        %v1151 = vpop.trf.xlu0
        %v1152 = vpop.trf.xlu0
        %v1153 = vpop.trf.xlu0
        %v1154 = vpop.trf.xlu0
        %v1155 = vpop.trf.xlu0
        %v1156 = vpop.trf.xlu0
        %v1157 = vpop.trf.xlu0
        %v1158 = vpop.trf.xlu0
        %v1159 = vpop.trf.xlu0
        %v1160 = vpop.trf.xlu0
        %v1161 = vpop.trf.xlu0
        %v1162 = vpop.trf.xlu0
        %v1163 = vpop.trf.xlu0
        %v1164 = vpop.trf.xlu0
        %1165 = vxpose.xlu0.b32.start [1/16] %v1079, 128
        %1166 = vxpose.xlu0.b32.cont [2/16] 0.0, 128
        %1167 = vxpose.xlu0.b32.cont [3/16] 0.0, 128
        %1168 = vxpose.xlu0.b32.cont [4/16] 0.0, 128
        %1169 = vxpose.xlu0.b32.cont [5/16] 0.0, 128
        %1170 = vxpose.xlu0.b32.cont [6/16] 0.0, 128
        %1171 = vxpose.xlu0.b32.cont [7/16] 0.0, 128
        %1172 = vxpose.xlu0.b32.cont [8/16] 0.0, 128
        %1173 = vxpose.xlu0.b32.cont [9/16] 0.0, 128
        %1174 = vxpose.xlu0.b32.cont [10/16] 0.0, 128
        %1175 = vxpose.xlu0.b32.cont [11/16] 0.0, 128
        %1176 = vxpose.xlu0.b32.cont [12/16] 0.0, 128
        %1177 = vxpose.xlu0.b32.cont [13/16] 0.0, 128
        %1178 = vxpose.xlu0.b32.cont [14/16] 0.0, 128
        %1179 = vxpose.xlu0.b32.cont [15/16] 0.0, 128
        %1180 = vxpose.xlu0.b32.end [16/16] 0.0, 128
        %v1181 = vpop.trf.xlu0
        %v1182 = vpop.trf.xlu0
        %v1183 = vpop.trf.xlu0
        %v1184 = vpop.trf.xlu0
        %v1185 = vpop.trf.xlu0
        %v1186 = vpop.trf.xlu0
        %v1187 = vpop.trf.xlu0
        %v1188 = vpop.trf.xlu0
        %v1189 = vpop.trf.xlu0
        %v1190 = vpop.trf.xlu0
        %v1191 = vpop.trf.xlu0
        %v1192 = vpop.trf.xlu0
        %v1193 = vpop.trf.xlu0
        %v1194 = vpop.trf.xlu0
        %v1195 = vpop.trf.xlu0
        %v1196 = vpop.trf.xlu0
        %1197 = vxpose.xlu0.b32.start [1/16] %v1105, 128
        %1198 = vxpose.xlu0.b32.cont [2/16] 0.0, 128
        %1199 = vxpose.xlu0.b32.cont [3/16] 0.0, 128
        %1200 = vxpose.xlu0.b32.cont [4/16] 0.0, 128
        %1201 = vxpose.xlu0.b32.cont [5/16] 0.0, 128
        %1202 = vxpose.xlu0.b32.cont [6/16] 0.0, 128
        %1203 = vxpose.xlu0.b32.cont [7/16] 0.0, 128
        %1204 = vxpose.xlu0.b32.cont [8/16] 0.0, 128
        %1205 = vxpose.xlu0.b32.cont [9/16] 0.0, 128
        %1206 = vxpose.xlu0.b32.cont [10/16] 0.0, 128
        %1207 = vxpose.xlu0.b32.cont [11/16] 0.0, 128
        %1208 = vxpose.xlu0.b32.cont [12/16] 0.0, 128
        %1209 = vxpose.xlu0.b32.cont [13/16] 0.0, 128
        %1210 = vxpose.xlu0.b32.cont [14/16] 0.0, 128
        %1211 = vxpose.xlu0.b32.cont [15/16] 0.0, 128
        %1212 = vxpose.xlu0.b32.end [16/16] 0.0, 128
        %v1213 = vpop.trf.xlu0
        %v1214 = vpop.trf.xlu0
        %v1215 = vpop.trf.xlu0
        %v1216 = vpop.trf.xlu0
        %v1217 = vpop.trf.xlu0
        %v1218 = vpop.trf.xlu0
        %v1219 = vpop.trf.xlu0
        %v1220 = vpop.trf.xlu0
        %v1221 = vpop.trf.xlu0
        %v1222 = vpop.trf.xlu0
        %v1223 = vpop.trf.xlu0
        %v1224 = vpop.trf.xlu0
        %v1225 = vpop.trf.xlu0
        %v1226 = vpop.trf.xlu0
        %v1227 = vpop.trf.xlu0
        %v1228 = vpop.trf.xlu0
        %1229 = vxpose.xlu0.b32.start [1/16] %v1131, 128
        %1230 = vxpose.xlu0.b32.cont [2/16] 0.0, 128
        %1231 = vxpose.xlu0.b32.cont [3/16] 0.0, 128
        %1232 = vxpose.xlu0.b32.cont [4/16] 0.0, 128
        %1233 = vxpose.xlu0.b32.cont [5/16] 0.0, 128
        %1234 = vxpose.xlu0.b32.cont [6/16] 0.0, 128
        %1235 = vxpose.xlu0.b32.cont [7/16] 0.0, 128
        %1236 = vxpose.xlu0.b32.cont [8/16] 0.0, 128
        %1237 = vxpose.xlu0.b32.cont [9/16] 0.0, 128
        %1238 = vxpose.xlu0.b32.cont [10/16] 0.0, 128
        %1239 = vxpose.xlu0.b32.cont [11/16] 0.0, 128
        %1240 = vxpose.xlu0.b32.cont [12/16] 0.0, 128
        %1241 = vxpose.xlu0.b32.cont [13/16] 0.0, 128
        %1242 = vxpose.xlu0.b32.cont [14/16] 0.0, 128
        %1243 = vxpose.xlu0.b32.cont [15/16] 0.0, 128
        %1244 = vxpose.xlu0.b32.end [16/16] 0.0, 128
        %v1245 = vpop.trf.xlu0
        %v1246 = vpop.trf.xlu0
        %v1247 = vpop.trf.xlu0
        %v1248 = vpop.trf.xlu0
        %v1249 = vpop.trf.xlu0
        %v1250 = vpop.trf.xlu0
        %v1251 = vpop.trf.xlu0
        %v1252 = vpop.trf.xlu0
        %v1253 = vpop.trf.xlu0
        %v1254 = vpop.trf.xlu0
        %v1255 = vpop.trf.xlu0
        %v1256 = vpop.trf.xlu0
        %v1257 = vpop.trf.xlu0
        %v1258 = vpop.trf.xlu0
        %v1259 = vpop.trf.xlu0
        %v1260 = vpop.trf.xlu0
        %v1261 = vrot.slane %v1213, 4
        %vm1262 = vcmask 1047556
        %v1263 = vsel %vm1262, %v1261, %v1149
        %v1264 = vrot.slane %v1149, 4
        %v1265 = vsel %vm1262, %v1213, %v1264
        %v1267 = vunpack.c.l.s4 1983009808
        %v1268 = vunpack.c.0.s8 %v1267
        %v1269 = vperm.slane %v1263, %v1268
        %v1271 = vunpack.c.l.s4 1983009808
        %v1272 = vunpack.c.0.s8 %v1271
        %v1273 = vperm.slane %v1265, %v1272
        %v1274 = vrot.slane %v1245, 4
        %v1275 = vsel %vm1262, %v1274, %v1181
        %v1276 = vrot.slane %v1181, 4
        %v1277 = vsel %vm1262, %v1245, %v1276
        %v1279 = vunpack.c.l.s4 1983009808
        %v1280 = vunpack.c.0.s8 %v1279
        %v1281 = vperm.slane %v1275, %v1280
        %v1283 = vunpack.c.l.s4 1983009808
        %v1284 = vunpack.c.0.s8 %v1283
        %v1285 = vperm.slane %v1277, %v1284
        %v1286 = vrot.slane %v1281, 4
        %v1287 = vsel %vm1262, %v1286, %v1269
        %v1288 = vrot.slane %v1269, 4
        %v1289 = vsel %vm1262, %v1281, %v1288
        %v1291 = vunpack.c.l.s4 1934713408
        %v1292 = vunpack.c.0.s8 %v1291
        %v1293 = vperm.slane %v1287, %v1292
        %v1295 = vunpack.c.l.s4 1934713408
        %v1296 = vunpack.c.0.s8 %v1295
        %v1297 = vperm.slane %v1289, %v1296
        %v1298 = vrot.slane %v1285, 4
        %v1299 = vsel %vm1262, %v1298, %v1273
        %v1300 = vrot.slane %v1273, 4
        %v1301 = vsel %vm1262, %v1285, %v1300
        %v1303 = vunpack.c.l.s4 1934713408
        %v1304 = vunpack.c.0.s8 %v1303
        %v1305 = vperm.slane %v1299, %v1304
        %v1307 = vunpack.c.l.s4 1934713408
        %v1308 = vunpack.c.0.s8 %v1307
        %v1309 = vperm.slane %v1301, %v1308
        %v1310 = vrot.slane %v1293, 4
        %v1311 = vsel %vm1262, 0.0, %v1310
        %v1312 = vrot.slane %v1297, 4
        %v1313 = vsel %vm1262, 0.0, %v1312
        %v1314 = vrot.slane %v1305, 4
        %v1315 = vsel %vm1262, 0.0, %v1314
        %v1316 = vrot.slane %v1309, 4
        %v1317 = vsel %vm1262, 0.0, %v1316
        %v1318 = vsel %vm1262, %v1312, %v1293
        %v1320 = vunpack.c.l.s4 1983009808
        %v1321 = vunpack.c.0.s8 %v1320
        %v1322 = vperm.slane %v1318, %v1321
        %v1323 = vrot.slane %v1313, 4
        %v1324 = vsel %vm1262, %v1323, %v1311
        %v1326 = vunpack.c.l.s4 1983009808
        %v1327 = vunpack.c.0.s8 %v1326
        %v1328 = vperm.slane %v1324, %v1327
        %v1329 = vsel %vm1262, %v1316, %v1305
        %v1331 = vunpack.c.l.s4 1983009808
        %v1332 = vunpack.c.0.s8 %v1331
        %v1333 = vperm.slane %v1329, %v1332
        %v1334 = vrot.slane %v1317, 4
        %v1335 = vsel %vm1262, %v1334, %v1315
        %v1337 = vunpack.c.l.s4 1983009808
        %v1338 = vunpack.c.0.s8 %v1337
        %v1339 = vperm.slane %v1335, %v1338
        %v1340 = vrot.slane %v1328, 4
        %v1341 = vsel %vm1262, %v1340, %v1322
        %v1342 = vrot.slane %v1322, 4
        %v1343 = vsel %vm1262, %v1328, %v1342
        %v1345 = vunpack.c.l.s4 1934713408
        %v1346 = vunpack.c.0.s8 %v1345
        %v1347 = vperm.slane %v1341, %v1346
        %v1349 = vunpack.c.l.s4 1934713408
        %v1350 = vunpack.c.0.s8 %v1349
        %v1351 = vperm.slane %v1343, %v1350
        %v1352 = vrot.slane %v1339, 4
        %v1353 = vsel %vm1262, %v1352, %v1333
        %v1354 = vrot.slane %v1333, 4
        %v1355 = vsel %vm1262, %v1339, %v1354
        %v1357 = vunpack.c.l.s4 1934713408
        %v1358 = vunpack.c.0.s8 %v1357
        %v1359 = vperm.slane %v1353, %v1358
        %v1361 = vunpack.c.l.s4 1934713408
        %v1362 = vunpack.c.0.s8 %v1361
        %v1363 = vperm.slane %v1355, %v1362
        %v1364 = vrot.slane %v1359, 4
        %v1365 = vsel %vm1262, %v1364, %v1347
        %v1366 = vrot.slane %v1347, 4
        %v1367 = vsel %vm1262, %v1359, %v1366
        %v1368 = vrot.slane %v1363, 4
        %v1369 = vsel %vm1262, %v1368, %v1351
        %v1370 = vrot.slane %v1351, 4
        %v1371 = vsel %vm1262, %v1363, %v1370
        %1373 = vrot.lane.b32.xlu0 %v1367, 8
        %v1374 = vpop.permute.xlu0 %1373
        %1377 = vrot.lane.b32.xlu0 %v1369, 16
        %v1378 = vpop.permute.xlu0 %1377
        %1381 = vrot.lane.b32.xlu0 %v1371, 24
        %v1382 = vpop.permute.xlu0 %1381
        %v1384 = vsel %vm752, %v1365, %v1374
        %vm1385 = vcmask 130048
        %v1386 = vsel %vm1385, %v1384, %v1378
        %vm1387 = vcmask 195584
        %v1388 = vsel %vm1387, %v1386, %v1382
        %v1389 = vld [vmem:[%s5] sm:$0xff]
        %v1390 = vld [vmem:[%s5 + $0x8] sm:$0xff]
        %v1391 = vld [vmem:[%s5 + $0x10] sm:$0xff]
        %v1392 = vld [vmem:[%s5 + $0x18] sm:$0xff]
        %v1393 = vld [vmem:[%s6] sm:$0x1]
        %v1395 = vperm.slane %v1393, 0
        %v1398 = vsel %vm555, %v1388, 0
        %1400 = vmatpush.msra.mxu0 0.0
        %1401 = vmatpush.msra.mxu0 0.0
        %1402 = vmatpush.msra.mxu0 0.0
        %1403 = vmatpush.msra.mxu0 0.0
        %1404 = vmatpush.msra.mxu0 0.0
        %1405 = vmatpush.msra.mxu0 0.0
        %1406 = vmatpush.msra.mxu0 0.0
        %1407 = vmatpush.msra.mxu0 0.0
        %1408 = vmatpush.msra.mxu0 0.0
        %1409 = vmatpush.msra.mxu0 0.0
        %1410 = vmatpush.msra.mxu0 0.0
        %1411 = vmatpush.msra.mxu0 0.0
        %1412 = vmatpush.msra.mxu0 %v1392
        %1413 = vmatpush.msra.mxu0 %v1391
        %1414 = vmatpush.msra.mxu0 %v1390
        %1415 = vmatpush.msra.mxu0 %v1389
        %1416 = vmatmul.f32.gmra.mxu0 %v1398
        %v1417 = vpop.f32.mrf.mxu0
        %v1418 = vadd.f32 %v1395, %v1417
        %1419 = vdwg.mxu0
        %v1420 = vadd.f32 %v546, %v1418
        %v1421 = vsel %vm555, %v1420, 0.0
        %1422 = vadd.xlane.f32.xlu0 %v1421
        %v1423 = vpop.xlane.xlu0 %1422
        %v1424 = vrcp.pop 32.0
        %v1425 = vmul.f32 32.0, %v1424
        %v1426 = vsub.f32 1.0, %v1425
        %v1427 = vmul.f32 %v1424, %v1426
        %v1428 = vadd.f32 %v1424, %v1427
        %vm1429 = vweird.f32 %v1424
        %v1430 = vsel %vm1429, %v1424, %v1428
        %v1431 = vmul.f32 %v1423, %v1430
        %v1432 = vsub.f32 %v1420, %v1431
        %v1433 = vmul.f32 %v1432, %v1432
        %v1434 = vsel %vm555, %v1433, 0.0
        %1435 = vadd.xlane.f32.xlu0 %v1434
        %v1436 = vpop.xlane.xlu0 %1435
        %v1437 = vmul.f32 %v1436, %v1430
        %v1438 = vadd.f32 %v1437, 1e-05
        %v1439 = vrsqrt.pop %v1438
        %v1440 = vmul.f32 %v1439, %v1438
        %v1441 = vmul.f32 %v1440, %v1439
        %v1442 = vmul.f32 0.5, %v1441
        %v1443 = vsub.f32 1.5, %v1442
        %v1444 = vmul.f32 %v1439, %v1443
        %vm1445 = vweird.f32 %v1438
        %vm1446 = vweird.f32 %v1439
        %vm1447 = vmor %vm1445, %vm1446
        %v1448 = vsel %vm1447, %v1439, %v1444
        %v1449 = vmul.f32 %v1432, %v1448
        %v1450 = vld [vmem:[%s11] sm:$0x1]
        %v1452 = vperm.slane %v1450, 0
        %v1454 = vmul.f32 %v1449, %v1452
        %v1455 = vld [vmem:[%s12] sm:$0x1]
        %v1457 = vperm.slane %v1455, 0
        %v1459 = vadd.f32 %v1454, %v1457
        %v1460 = vld [vmem:[#allocation5] sm:$0xff]
        %v1461 = vld [vmem:[#allocation5 + $0x8] sm:$0xff]
        %v1462 = vld [vmem:[#allocation5 + $0x10] sm:$0xff]
        %v1463 = vld [vmem:[#allocation5 + $0x18] sm:$0xff]
        %v1464 = vld [vmem:[%s8] sm:$0x1]
        %v1466 = vperm.slane %v1464, 0
        %v1469 = vsel %vm555, %v1459, 0
        %1471 = vmatpush.msra.mxu0 0.0
        %1472 = vmatpush.msra.mxu0 0.0
        %1473 = vmatpush.msra.mxu0 0.0
        %1474 = vmatpush.msra.mxu0 0.0
        %1475 = vmatpush.msra.mxu0 0.0
        %1476 = vmatpush.msra.mxu0 0.0
        %1477 = vmatpush.msra.mxu0 0.0
        %1478 = vmatpush.msra.mxu0 0.0
        %1479 = vmatpush.msra.mxu0 0.0
        %1480 = vmatpush.msra.mxu0 0.0
        %1481 = vmatpush.msra.mxu0 0.0
        %1482 = vmatpush.msra.mxu0 0.0
        %1483 = vmatpush.msra.mxu0 %v1463
        %1484 = vmatpush.msra.mxu0 %v1462
        %1485 = vmatpush.msra.mxu0 %v1461
        %1486 = vmatpush.msra.mxu0 %v1460
        %1487 = vmatmul.f32.gmra.mxu0 %v1469
        %v1488 = vpop.f32.mrf.mxu0
        %v1489 = vadd.f32 %v1466, %v1488
        %1490 = vdwg.mxu0
        %v1491 = vmax.f32 %v1489, 0.0
        %v1492 = vld [vmem:[%s9] sm:$0xff]
        %v1493 = vld [vmem:[%s9 + $0x8] sm:$0xff]
        %v1494 = vld [vmem:[%s9 + $0x10] sm:$0xff]
        %v1495 = vld [vmem:[%s9 + $0x18] sm:$0xff]
        %v1496 = vld [vmem:[%s9 + $0x20] sm:$0xff]
        %v1497 = vld [vmem:[%s9 + $0x28] sm:$0xff]
        %v1498 = vld [vmem:[%s9 + $0x30] sm:$0xff]
        %v1499 = vld [vmem:[%s9 + $0x38] sm:$0xff]
        %v1500 = vld [vmem:[%s10] sm:$0x1]
        %v1502 = vperm.slane %v1500, 0
        %vm1504 = vcmask 523264
        %v1506 = vsel %vm1504, %v1491, 0
        %1508 = vmatpush.msra.mxu0 0.0
        %1509 = vmatpush.msra.mxu0 0.0
        %1510 = vmatpush.msra.mxu0 0.0
        %1511 = vmatpush.msra.mxu0 0.0
        %1512 = vmatpush.msra.mxu0 0.0
        %1513 = vmatpush.msra.mxu0 0.0
        %1514 = vmatpush.msra.mxu0 0.0
        %1515 = vmatpush.msra.mxu0 0.0
        %1516 = vmatpush.msra.mxu0 %v1499
        %1517 = vmatpush.msra.mxu0 %v1498
        %1518 = vmatpush.msra.mxu0 %v1497
        %1519 = vmatpush.msra.mxu0 %v1496
        %1520 = vmatpush.msra.mxu0 %v1495
        %1521 = vmatpush.msra.mxu0 %v1494
        %1522 = vmatpush.msra.mxu0 %v1493
        %1523 = vmatpush.msra.mxu0 %v1492
        %1524 = vmatmul.f32.gmra.mxu0 %v1506
        %v1525 = vpop.f32.mrf.mxu0
        %v1526 = vadd.f32 %v1502, %v1525
        %1527 = vdwg.mxu0
        %v1528 = vadd.f32 %v1459, %v1526
        %v1529 = vsel %vm555, %v1528, 0.0
        %1530 = vadd.xlane.f32.xlu0 %v1529
        %v1531 = vpop.xlane.xlu0 %1530
        %v1532 = vmul.f32 %v1531, %v1430
        %v1533 = vsub.f32 %v1528, %v1532
        %v1534 = vmul.f32 %v1533, %v1533
        %v1535 = vsel %vm555, %v1534, 0.0
        %1536 = vadd.xlane.f32.xlu0 %v1535
        %v1537 = vpop.xlane.xlu0 %1536
        %v1538 = vmul.f32 %v1537, %v1430
        %v1539 = vadd.f32 %v1538, 1e-05
        %v1540 = vrsqrt.pop %v1539
        %v1541 = vmul.f32 %v1540, %v1539
        %v1542 = vmul.f32 %v1541, %v1540
        %v1543 = vmul.f32 0.5, %v1542
        %v1544 = vsub.f32 1.5, %v1543
        %v1545 = vmul.f32 %v1540, %v1544
        %vm1546 = vweird.f32 %v1539
        %vm1547 = vweird.f32 %v1540
        %vm1548 = vmor %vm1546, %vm1547
        %v1549 = vsel %vm1548, %v1540, %v1545
        %v1550 = vmul.f32 %v1533, %v1549
        %v1551 = vld [vmem:[%s13] sm:$0x1]
        %v1553 = vperm.slane %v1551, 0
        %v1555 = vmul.f32 %v1550, %v1553
        %v1556 = vld [vmem:[%s14] sm:$0x1]
        %v1558 = vperm.slane %v1556, 0
        %v1560 = vadd.f32 %v1555, %v1558
        %1561 = vst.msk [vmem:[%s545] sm:$0xff] %vm555, %v1560
        %s1562 = sand.u32 %s377, 1
        %s1563 = scalar_lea.sflag [#allocation4], %s1562
        %s1564 = sand.u32 %s377, 1
        %s1565 = smul.addr %s1564, 8
        %s1566 = scalar_lea.vmem [#allocation7], %s1565
        // Predicated region
        $region89: #{tpu_custom_call.1} parent=79 // pred_check
          %p1567 = pneg %p387
        $region90: #{tpu_custom_call.1} parent=79 // pred_check_branch
          %1569 = sbr.rel (%p1567) target = $region92
        $region91: #{tpu_custom_call.1} parent=79 // pred_region
          %1571 = vsyncadd %s1563, 0
          %s1572 = sadd.s32 %s38, %s37
          %s1573 = smul.addr %s1572, 8
          %s1574 = scalar_lea.hbm %s15, %s1573
          %s1576 = sshll.u32 %s1566, 4
          %s1577 = int_to_ptr.vmem [resolvable:$true] %s1576
          %s1578 = sshll.u32 %s1574, 4
          %s1579 = int_to_ptr.hbm [resolvable:$true] %s1578
          %1581 = dma.vmem_to_hbm [thread:$0]  %s1577, 128, %s1579, %s1563
        $region92: #{tpu_custom_call.1} parent=79 // pred_fallthru
          _
      $region80: #{tpu_custom_call.1} parent=5 // pred_fallthru
        _
      %p1582 = scmp.le.s32.totalorder 2, %s28
      // Predicated region
      $region93: #{tpu_custom_call.1} parent=5 // pred_check
        %p1583 = pneg %p1582
      $region94: #{tpu_custom_call.1} parent=5 // pred_check_branch
        %1585 = sbr.rel (%p1583) target = $region96
      $region95: #{tpu_custom_call.1} parent=5 // pred_region
        %s1586 = ssub.s32 %s28, 2
        // Predicated region
        $region97: #{tpu_custom_call.1} parent=95 // pred_check
          %p1587 = pneg %p393
        $region98: #{tpu_custom_call.1} parent=95 // pred_check_branch
          %1589 = sbr.rel (%p1587) target = $region100
        $region99: #{tpu_custom_call.1} parent=95 // pred_region
          %s1590 = sand.u32 %s378, 1
          %s1591 = scalar_lea.sflag [#allocation4], %s1590
          %s1592 = sand.u32 %s378, 1
          %s1593 = smul.addr %s1592, 8
          %s1594 = scalar_lea.vmem [#allocation7], %s1593
          %1596 = dma.done %s1591, 128
        $region100: #{tpu_custom_call.1} parent=95 // pred_fallthru
          _
      $region96: #{tpu_custom_call.1} parent=5 // pred_fallthru
        _
    $region6: #{tpu_custom_call.1} parent=1 // loop_footer
      %s32 = sadd.s32 1, %s28
    $region7: #{tpu_custom_call.1} parent=1 // loop_footer_branch
      %27 = sbr.rel target = $region3
    $region8: #{tpu_custom_call.1} parent=1 // loop_exit
      _
    %1597 = vsyncpa [#allocation3], 1
    %s1598 = scalar_lea.sflag [#allocation3], 1
    %1599 = vsyncpa %s1598, 1
    %1600 = vsyncpa [#allocation6], 1
    %1601 = vsyncpa [#allocation4], 1
    %s1602 = scalar_lea.sflag [#allocation4], 1
    %1603 = vsyncpa %s1602, 1

// kernel: tpu_custom_call.1
$region0: #{tpu_custom_call.1}
  #allocation0 [shape = 'u32[]', space=smem, size = 0x4, offset = 0x4, fixed_abs, tag = 'smem constant byte address 0x4 - core index']
  #allocation1 [shape = 'u32[72,128]{1,0:T(1,128)}', space=vmem, size = 0x9000, scoped, tag = 'internal scratch']
  %s0 = inlined_call_operand.hbm [shape: f32[2,8,32], index: 0, kind: input, shape index: {}]
  %s1 = inlined_call_operand.vmem [shape: f32[32,32], index: 1, kind: input, shape index: {}]
  %s2 = inlined_call_operand.vmem [shape: f32[1,32], index: 2, kind: input, shape index: {}]
  %s3 = inlined_call_operand.vmem [shape: f32[32,64], index: 3, kind: input, shape index: {}]
  %s4 = inlined_call_operand.vmem [shape: f32[1,64], index: 4, kind: input, shape index: {}]
  %s5 = inlined_call_operand.vmem [shape: f32[32,32], index: 5, kind: input, shape index: {}]
  %s6 = inlined_call_operand.vmem [shape: f32[1,32], index: 6, kind: input, shape index: {}]
  %s7 = inlined_call_operand.hbm [shape: f32[32,64], index: 7, kind: input, shape index: {}]
  %s8 = inlined_call_operand.vmem [shape: f32[1,64], index: 8, kind: input, shape index: {}]
  %s9 = inlined_call_operand.vmem [shape: f32[64,32], index: 9, kind: input, shape index: {}]
  %s10 = inlined_call_operand.vmem [shape: f32[1,32], index: 10, kind: input, shape index: {}]
  %s11 = inlined_call_operand.vmem [shape: f32[1,32], index: 11, kind: input, shape index: {}]
  %s12 = inlined_call_operand.vmem [shape: f32[1,32], index: 12, kind: input, shape index: {}]
  %s13 = inlined_call_operand.vmem [shape: f32[1,32], index: 13, kind: input, shape index: {}]
  %s14 = inlined_call_operand.vmem [shape: f32[1,32], index: 14, kind: input, shape index: {}]
  %s15 = inlined_call_operand.hbm [shape: f32[2,8,32], index: 15, kind: output, shape index: {}]
  %s16 = sld [smem:[#allocation0]]
  $region101: #{tpu_custom_call.1} parent=0
    _
  %s18 = ssub.s32 1, %s16
  %s19 = scalar_select 0, %s18, %s16
  $region1: #{tpu_custom_call.1} parent=0
    #allocation2 [shape = 'u8[8192]{0}', space=vmem, size = 0x2000, scoped, tag = 'input window, operand 0']
    #allocation3 [shape = 's32[2]{0}', space=sflag, size = 0x8, scoped, tag = 'scoped memory for tpu_custom_call.1']
    #allocation4 [shape = 's32[2]{0}', space=sflag, size = 0x8, scoped, tag = 'scoped memory for tpu_custom_call.1']
    #allocation5 [shape = 'u8[16384]{0}', space=vmem, size = 0x4000, scoped, tag = 'input window, operand 7, single buffered']
    #allocation6 [shape = 's32[1]{0}', space=sflag, size = 0x4, scoped, tag = 'scoped memory for tpu_custom_call.1']
    #allocation7 [shape = 'u8[8192]{0}', space=vmem, size = 0x2000, scoped, tag = 'output window, operand 0']
    %20 = vsyncpa [#allocation3], 0
    %s21 = scalar_lea.sflag [#allocation3], 1
    %22 = vsyncpa %s21, 0
    %23 = vsyncpa [#allocation6], 0
    %24 = vsyncpa [#allocation4], 0
    %s25 = scalar_lea.sflag [#allocation4], 1
    %26 = vsyncpa %s25, 0
    loop: start=0, step=1, limit=4
    $region2: #{tpu_custom_call.1} parent=1 // loop_pre_header
      _
    $region3: #{tpu_custom_call.1} parent=1 // loop_header
      %s28 = sphi 0, %s32
      %p29 = scmp.ge.s32.totalorder %s28, 4
      %s35 = sphi 0, %s47
      %s36 = sphi 0, %s43
      %s37 = sphi 0, %s35
      %s38 = sphi 0, %s36
      %s39 = sphi 0, %s37
      %s40 = sphi 0, %s38
      %s52 = sphi 0, %s54
      %s55 = sphi 0, %s52
      %s56 = sphi 0, %s55
      %s72 = sphi 0, %s56
      %s76 = sphi 0, %s76
      %s78 = sphi 0, %s76
      %s79 = sphi 0, %s78
      %s93 = sphi 0, %s79
      %s97 = sphi 0, %s97
      %s99 = sphi 0, %s97
      %s100 = sphi 0, %s99
      %s114 = sphi 0, %s100
      %s118 = sphi 0, %s118
      %s120 = sphi 0, %s118
      %s121 = sphi 0, %s120
      %s135 = sphi 0, %s121
      %s139 = sphi 0, %s139
      %s141 = sphi 0, %s139
      %s142 = sphi 0, %s141
      %s156 = sphi 0, %s142
      %s160 = sphi 0, %s160
      %s162 = sphi 0, %s160
      %s163 = sphi 0, %s162
      %s177 = sphi 0, %s163
      %s181 = sphi 0, %s181
      %s183 = sphi 0, %s181
      %s184 = sphi 0, %s183
      %s198 = sphi 0, %s184
      %s202 = sphi 0, %s202
      %s204 = sphi 0, %s202
      %s205 = sphi 0, %s204
      %s219 = sphi 0, %s205
      %s223 = sphi 0, %s223
      %s225 = sphi 0, %s223
      %s226 = sphi 0, %s225
      %s240 = sphi 0, %s226
      %s244 = sphi 0, %s244
      %s246 = sphi 0, %s244
      %s247 = sphi 0, %s246
      %s261 = sphi 0, %s247
      %s265 = sphi 0, %s265
      %s267 = sphi 0, %s265
      %s268 = sphi 0, %s267
      %s282 = sphi 0, %s268
      %s286 = sphi 0, %s286
      %s288 = sphi 0, %s286
      %s289 = sphi 0, %s288
      %s303 = sphi 0, %s289
      %s307 = sphi 0, %s307
      %s309 = sphi 0, %s307
      %s310 = sphi 0, %s309
      %s324 = sphi 0, %s310
      %s328 = sphi 0, %s328
      %s330 = sphi 0, %s328
      %s331 = sphi 0, %s330
      %s345 = sphi 0, %s331
      %s349 = sphi 0, %s349
      %s351 = sphi 0, %s349
      %s352 = sphi 0, %s351
      %s366 = sphi 0, %s352
      %s374 = sphi 0, %s376
      %s377 = sphi 0, %s374
      %s378 = sphi 0, %s377
      %s394 = sphi 0, %s378
    $region4: #{tpu_custom_call.1} parent=1 // loop_header_branch
      %31 = sbr.rel (%p29) target = $region8
    $region5: #{tpu_custom_call.1} parent=1 // loop_body
      %s33 = ssub.s32 %s28, 1
      %s34 = ssub.s32 %s28, 2
      %s41 = sadd.s32 1, %s36
      %p42 = scmp.ge.s32.totalorder %s41, 1
      %s43 = scalar_select %p42, 0, %s41
      %s44 = sadd.s32 1, %s35
      %s45 = scalar_select %p42, %s44, %s35
      %p46 = scmp.ge.s32.totalorder %s45, 2
      %s47 = scalar_select %p46, 0, %s45
      %s48 = ssub.s32 %s35, %s47
      %s49 = ssub.s32 %s36, %s43
      %s50 = sor.u32 %s48, %s49
      %p51 = scmp.eq.s32.totalorder %s50, 0
      %s53 = sadd.s32 %s52, 1
      %s54 = scalar_select %p51, %s52, %s53
      %p57 = pneg %p51
      %p58 = scmp.eq.s32.totalorder %s28, 1
      %p59 = por %p57, %p58
      %p60 = scmp.ne.s32.totalorder %s52, %s55
      %p61 = scmp.eq.s32.totalorder %s28, 0
      %p62 = por %p60, %p61
      %p63 = scmp.ne.s32.totalorder %s52, %s55
      %p64 = scmp.eq.s32.totalorder %s33, 1
      %p65 = por %p63, %p64
      %p66 = scmp.ne.s32.totalorder %s55, %s56
      %p67 = scmp.eq.s32.totalorder %s33, 0
      %p68 = por %p66, %p67
      %p69 = scmp.ne.s32.totalorder %s55, %s56
      %p70 = scmp.eq.s32.totalorder %s34, 1
      %p71 = por %p69, %p70
      %p73 = scmp.ne.s32.totalorder %s56, %s72
      %p74 = scmp.eq.s32.totalorder %s34, 0
      %p75 = por %p73, %p74
      %s77 = sadd.s32 %s76, 1
      %p80 = scmp.eq.s32.totalorder %s28, 1
      %p81 = scmp.ne.s32.totalorder %s76, %s78
      %p82 = scmp.eq.s32.totalorder %s28, 0
      %p83 = por %p81, %p82
      %p84 = scmp.ne.s32.totalorder %s76, %s78
      %p85 = scmp.eq.s32.totalorder %s33, 1
      %p86 = por %p84, %p85
      %p87 = scmp.ne.s32.totalorder %s78, %s79
      %p88 = scmp.eq.s32.totalorder %s33, 0
      %p89 = por %p87, %p88
      %p90 = scmp.ne.s32.totalorder %s78, %s79
      %p91 = scmp.eq.s32.totalorder %s34, 1
      %p92 = por %p90, %p91
      %p94 = scmp.ne.s32.totalorder %s79, %s93
      %p95 = scmp.eq.s32.totalorder %s34, 0
      %p96 = por %p94, %p95
      %s98 = sadd.s32 %s97, 1
      %p101 = scmp.eq.s32.totalorder %s28, 1
      %p102 = scmp.ne.s32.totalorder %s97, %s99
      %p103 = scmp.eq.s32.totalorder %s28, 0
      %p104 = por %p102, %p103
      %p105 = scmp.ne.s32.totalorder %s97, %s99
      %p106 = scmp.eq.s32.totalorder %s33, 1
      %p107 = por %p105, %p106
      %p108 = scmp.ne.s32.totalorder %s99, %s100
      %p109 = scmp.eq.s32.totalorder %s33, 0
      %p110 = por %p108, %p109
      %p111 = scmp.ne.s32.totalorder %s99, %s100
      %p112 = scmp.eq.s32.totalorder %s34, 1
      %p113 = por %p111, %p112
      %p115 = scmp.ne.s32.totalorder %s100, %s114
      %p116 = scmp.eq.s32.totalorder %s34, 0
      %p117 = por %p115, %p116
      %s119 = sadd.s32 %s118, 1
      %p122 = scmp.eq.s32.totalorder %s28, 1
      %p123 = scmp.ne.s32.totalorder %s118, %s120
      %p124 = scmp.eq.s32.totalorder %s28, 0
      %p125 = por %p123, %p124
      %p126 = scmp.ne.s32.totalorder %s118, %s120
      %p127 = scmp.eq.s32.totalorder %s33, 1
      %p128 = por %p126, %p127
      %p129 = scmp.ne.s32.totalorder %s120, %s121
      %p130 = scmp.eq.s32.totalorder %s33, 0
      %p131 = por %p129, %p130
      %p132 = scmp.ne.s32.totalorder %s120, %s121
      %p133 = scmp.eq.s32.totalorder %s34, 1
      %p134 = por %p132, %p133
      %p136 = scmp.ne.s32.totalorder %s121, %s135
      %p137 = scmp.eq.s32.totalorder %s34, 0
      %p138 = por %p136, %p137
      %s140 = sadd.s32 %s139, 1
      %p143 = scmp.eq.s32.totalorder %s28, 1
      %p144 = scmp.ne.s32.totalorder %s139, %s141
      %p145 = scmp.eq.s32.totalorder %s28, 0
      %p146 = por %p144, %p145
      %p147 = scmp.ne.s32.totalorder %s139, %s141
      %p148 = scmp.eq.s32.totalorder %s33, 1
      %p149 = por %p147, %p148
      %p150 = scmp.ne.s32.totalorder %s141, %s142
      %p151 = scmp.eq.s32.totalorder %s33, 0
      %p152 = por %p150, %p151
      %p153 = scmp.ne.s32.totalorder %s141, %s142
      %p154 = scmp.eq.s32.totalorder %s34, 1
      %p155 = por %p153, %p154
      %p157 = scmp.ne.s32.totalorder %s142, %s156
      %p158 = scmp.eq.s32.totalorder %s34, 0
      %p159 = por %p157, %p158
      %s161 = sadd.s32 %s160, 1
      %p164 = scmp.eq.s32.totalorder %s28, 1
      %p165 = scmp.ne.s32.totalorder %s160, %s162
      %p166 = scmp.eq.s32.totalorder %s28, 0
      %p167 = por %p165, %p166
      %p168 = scmp.ne.s32.totalorder %s160, %s162
      %p169 = scmp.eq.s32.totalorder %s33, 1
      %p170 = por %p168, %p169
      %p171 = scmp.ne.s32.totalorder %s162, %s163
      %p172 = scmp.eq.s32.totalorder %s33, 0
      %p173 = por %p171, %p172
      %p174 = scmp.ne.s32.totalorder %s162, %s163
      %p175 = scmp.eq.s32.totalorder %s34, 1
      %p176 = por %p174, %p175
      %p178 = scmp.ne.s32.totalorder %s163, %s177
      %p179 = scmp.eq.s32.totalorder %s34, 0
      %p180 = por %p178, %p179
      %s182 = sadd.s32 %s181, 1
      %p185 = scmp.eq.s32.totalorder %s28, 1
      %p186 = scmp.ne.s32.totalorder %s181, %s183
      %p187 = scmp.eq.s32.totalorder %s28, 0
      %p188 = por %p186, %p187
      %p189 = scmp.ne.s32.totalorder %s181, %s183
      %p190 = scmp.eq.s32.totalorder %s33, 1
      %p191 = por %p189, %p190
      %p192 = scmp.ne.s32.totalorder %s183, %s184
      %p193 = scmp.eq.s32.totalorder %s33, 0
      %p194 = por %p192, %p193
      %p195 = scmp.ne.s32.totalorder %s183, %s184
      %p196 = scmp.eq.s32.totalorder %s34, 1
      %p197 = por %p195, %p196
      %p199 = scmp.ne.s32.totalorder %s184, %s198
      %p200 = scmp.eq.s32.totalorder %s34, 0
      %p201 = por %p199, %p200
      %s203 = sadd.s32 %s202, 1
      %p206 = scmp.eq.s32.totalorder %s28, 1
      %p207 = scmp.ne.s32.totalorder %s202, %s204
      %p208 = scmp.eq.s32.totalorder %s28, 0
      %p209 = por %p207, %p208
      %p210 = scmp.ne.s32.totalorder %s202, %s204
      %p211 = scmp.eq.s32.totalorder %s33, 1
      %p212 = por %p210, %p211
      %p213 = scmp.ne.s32.totalorder %s204, %s205
      %p214 = scmp.eq.s32.totalorder %s33, 0
      %p215 = por %p213, %p214
      %p216 = scmp.ne.s32.totalorder %s204, %s205
      %p217 = scmp.eq.s32.totalorder %s34, 1
      %p218 = por %p216, %p217
      %p220 = scmp.ne.s32.totalorder %s205, %s219
      %p221 = scmp.eq.s32.totalorder %s34, 0
      %p222 = por %p220, %p221
      %s224 = sadd.s32 %s223, 1
      %p227 = scmp.eq.s32.totalorder %s28, 1
      %p228 = scmp.ne.s32.totalorder %s223, %s225
      %p229 = scmp.eq.s32.totalorder %s28, 0
      %p230 = por %p228, %p229
      %p231 = scmp.ne.s32.totalorder %s223, %s225
      %p232 = scmp.eq.s32.totalorder %s33, 1
      %p233 = por %p231, %p232
      %p234 = scmp.ne.s32.totalorder %s225, %s226
      %p235 = scmp.eq.s32.totalorder %s33, 0
      %p236 = por %p234, %p235
      %p237 = scmp.ne.s32.totalorder %s225, %s226
      %p238 = scmp.eq.s32.totalorder %s34, 1
      %p239 = por %p237, %p238
      %p241 = scmp.ne.s32.totalorder %s226, %s240
      %p242 = scmp.eq.s32.totalorder %s34, 0
      %p243 = por %p241, %p242
      %s245 = sadd.s32 %s244, 1
      %p248 = scmp.eq.s32.totalorder %s28, 1
      %p249 = scmp.ne.s32.totalorder %s244, %s246
      %p250 = scmp.eq.s32.totalorder %s28, 0
      %p251 = por %p249, %p250
      %p252 = scmp.ne.s32.totalorder %s244, %s246
      %p253 = scmp.eq.s32.totalorder %s33, 1
      %p254 = por %p252, %p253
      %p255 = scmp.ne.s32.totalorder %s246, %s247
      %p256 = scmp.eq.s32.totalorder %s33, 0
      %p257 = por %p255, %p256
      %p258 = scmp.ne.s32.totalorder %s246, %s247
      %p259 = scmp.eq.s32.totalorder %s34, 1
      %p260 = por %p258, %p259
      %p262 = scmp.ne.s32.totalorder %s247, %s261
      %p263 = scmp.eq.s32.totalorder %s34, 0
      %p264 = por %p262, %p263
      %s266 = sadd.s32 %s265, 1
      %p269 = scmp.eq.s32.totalorder %s28, 1
      %p270 = scmp.ne.s32.totalorder %s265, %s267
      %p271 = scmp.eq.s32.totalorder %s28, 0
      %p272 = por %p270, %p271
      %p273 = scmp.ne.s32.totalorder %s265, %s267
      %p274 = scmp.eq.s32.totalorder %s33, 1
      %p275 = por %p273, %p274
      %p276 = scmp.ne.s32.totalorder %s267, %s268
      %p277 = scmp.eq.s32.totalorder %s33, 0
      %p278 = por %p276, %p277
      %p279 = scmp.ne.s32.totalorder %s267, %s268
      %p280 = scmp.eq.s32.totalorder %s34, 1
      %p281 = por %p279, %p280
      %p283 = scmp.ne.s32.totalorder %s268, %s282
      %p284 = scmp.eq.s32.totalorder %s34, 0
      %p285 = por %p283, %p284
      %s287 = sadd.s32 %s286, 1
      %p290 = scmp.eq.s32.totalorder %s28, 1
      %p291 = scmp.ne.s32.totalorder %s286, %s288
      %p292 = scmp.eq.s32.totalorder %s28, 0
      %p293 = por %p291, %p292
      %p294 = scmp.ne.s32.totalorder %s286, %s288
      %p295 = scmp.eq.s32.totalorder %s33, 1
      %p296 = por %p294, %p295
      %p297 = scmp.ne.s32.totalorder %s288, %s289
      %p298 = scmp.eq.s32.totalorder %s33, 0
      %p299 = por %p297, %p298
      %p300 = scmp.ne.s32.totalorder %s288, %s289
      %p301 = scmp.eq.s32.totalorder %s34, 1
      %p302 = por %p300, %p301
      %p304 = scmp.ne.s32.totalorder %s289, %s303
      %p305 = scmp.eq.s32.totalorder %s34, 0
      %p306 = por %p304, %p305
      %s308 = sadd.s32 %s307, 1
      %p311 = scmp.eq.s32.totalorder %s28, 1
      %p312 = scmp.ne.s32.totalorder %s307, %s309
      %p313 = scmp.eq.s32.totalorder %s28, 0
      %p314 = por %p312, %p313
      %p315 = scmp.ne.s32.totalorder %s307, %s309
      %p316 = scmp.eq.s32.totalorder %s33, 1
      %p317 = por %p315, %p316
      %p318 = scmp.ne.s32.totalorder %s309, %s310
      %p319 = scmp.eq.s32.totalorder %s33, 0
      %p320 = por %p318, %p319
      %p321 = scmp.ne.s32.totalorder %s309, %s310
      %p322 = scmp.eq.s32.totalorder %s34, 1
      %p323 = por %p321, %p322
      %p325 = scmp.ne.s32.totalorder %s310, %s324
      %p326 = scmp.eq.s32.totalorder %s34, 0
      %p327 = por %p325, %p326
      %s329 = sadd.s32 %s328, 1
      %p332 = scmp.eq.s32.totalorder %s28, 1
      %p333 = scmp.ne.s32.totalorder %s328, %s330
      %p334 = scmp.eq.s32.totalorder %s28, 0
      %p335 = por %p333, %p334
      %p336 = scmp.ne.s32.totalorder %s328, %s330
      %p337 = scmp.eq.s32.totalorder %s33, 1
      %p338 = por %p336, %p337
      %p339 = scmp.ne.s32.totalorder %s330, %s331
      %p340 = scmp.eq.s32.totalorder %s33, 0
      %p341 = por %p339, %p340
      %p342 = scmp.ne.s32.totalorder %s330, %s331
      %p343 = scmp.eq.s32.totalorder %s34, 1
      %p344 = por %p342, %p343
      %p346 = scmp.ne.s32.totalorder %s331, %s345
      %p347 = scmp.eq.s32.totalorder %s34, 0
      %p348 = por %p346, %p347
      %s350 = sadd.s32 %s349, 1
      %p353 = scmp.eq.s32.totalorder %s28, 1
      %p354 = scmp.ne.s32.totalorder %s349, %s351
      %p355 = scmp.eq.s32.totalorder %s28, 0
      %p356 = por %p354, %p355
      %p357 = scmp.ne.s32.totalorder %s349, %s351
      %p358 = scmp.eq.s32.totalorder %s33, 1
      %p359 = por %p357, %p358
      %p360 = scmp.ne.s32.totalorder %s351, %s352
      %p361 = scmp.eq.s32.totalorder %s33, 0
      %p362 = por %p360, %p361
      %p363 = scmp.ne.s32.totalorder %s351, %s352
      %p364 = scmp.eq.s32.totalorder %s34, 1
      %p365 = por %p363, %p364
      %p367 = scmp.ne.s32.totalorder %s352, %s366
      %p368 = scmp.eq.s32.totalorder %s34, 0
      %p369 = por %p367, %p368
      %s370 = ssub.s32 %s35, %s47
      %s371 = ssub.s32 %s36, %s43
      %s372 = sor.u32 %s370, %s371
      %p373 = scmp.eq.s32.totalorder %s372, 0
      %s375 = sadd.s32 %s374, 1
      %s376 = scalar_select %p373, %s374, %s375
      %p379 = pneg %p373
      %p380 = scmp.eq.s32.totalorder %s28, 1
      %p381 = por %p379, %p380
      %p382 = scmp.ne.s32.totalorder %s374, %s377
      %p383 = scmp.eq.s32.totalorder %s28, 0
      %p384 = por %p382, %p383
      %p385 = scmp.ne.s32.totalorder %s374, %s377
      %p386 = scmp.eq.s32.totalorder %s33, 1
      %p387 = por %p385, %p386
      %p388 = scmp.ne.s32.totalorder %s377, %s378
      %p389 = scmp.eq.s32.totalorder %s33, 0
      %p390 = por %p388, %p389
      %p391 = scmp.ne.s32.totalorder %s377, %s378
      %p392 = scmp.eq.s32.totalorder %s34, 1
      %p393 = por %p391, %p392
      %p395 = scmp.ne.s32.totalorder %s378, %s394
      %p396 = scmp.eq.s32.totalorder %s34, 0
      %p397 = por %p395, %p396
      %p398 = scmp.le.s32.totalorder 1, %s28
      %p399 = scmp.lt.s32.totalorder %s28, 3
      %p400 = pnand %p398, %p399
      %p401 = pneg %p400
      // Predicated region
      $region9: #{tpu_custom_call.1} parent=5 // pred_check
        _
      $region10: #{tpu_custom_call.1} parent=5 // pred_check_branch
        %403 = sbr.rel (%p400) target = $region12
      $region11: #{tpu_custom_call.1} parent=5 // pred_region
        %s404 = ssub.s32 %s28, 1
        // Predicated region
        $region13: #{tpu_custom_call.1} parent=11 // pred_check
          %p405 = pneg %p89
        $region14: #{tpu_custom_call.1} parent=11 // pred_check_branch
          %407 = sbr.rel (%p405) target = $region16
        $region15: #{tpu_custom_call.1} parent=11 // pred_region
          _
        $region16: #{tpu_custom_call.1} parent=11 // pred_fallthru
          _
        // Predicated region
        $region17: #{tpu_custom_call.1} parent=11 // pred_check
          %p408 = pneg %p110
        $region18: #{tpu_custom_call.1} parent=11 // pred_check_branch
          %410 = sbr.rel (%p408) target = $region20
        $region19: #{tpu_custom_call.1} parent=11 // pred_region
          _
        $region20: #{tpu_custom_call.1} parent=11 // pred_fallthru
          _
        // Predicated region
        $region21: #{tpu_custom_call.1} parent=11 // pred_check
          %p411 = pneg %p131
        $region22: #{tpu_custom_call.1} parent=11 // pred_check_branch
          %413 = sbr.rel (%p411) target = $region24
        $region23: #{tpu_custom_call.1} parent=11 // pred_region
          _
        $region24: #{tpu_custom_call.1} parent=11 // pred_fallthru
          _
        // Predicated region
        $region25: #{tpu_custom_call.1} parent=11 // pred_check
          %p414 = pneg %p152
        $region26: #{tpu_custom_call.1} parent=11 // pred_check_branch
          %416 = sbr.rel (%p414) target = $region28
        $region27: #{tpu_custom_call.1} parent=11 // pred_region
          _
        $region28: #{tpu_custom_call.1} parent=11 // pred_fallthru
          _
        // Predicated region
        $region29: #{tpu_custom_call.1} parent=11 // pred_check
          %p417 = pneg %p173
        $region30: #{tpu_custom_call.1} parent=11 // pred_check_branch
          %419 = sbr.rel (%p417) target = $region32
        $region31: #{tpu_custom_call.1} parent=11 // pred_region
          _
        $region32: #{tpu_custom_call.1} parent=11 // pred_fallthru
          _
        // Predicated region
        $region33: #{tpu_custom_call.1} parent=11 // pred_check
          %p420 = pneg %p194
        $region34: #{tpu_custom_call.1} parent=11 // pred_check_branch
          %422 = sbr.rel (%p420) target = $region36
        $region35: #{tpu_custom_call.1} parent=11 // pred_region
          _
        $region36: #{tpu_custom_call.1} parent=11 // pred_fallthru
          _
        // Predicated region
        $region37: #{tpu_custom_call.1} parent=11 // pred_check
          %p423 = pneg %p215
        $region38: #{tpu_custom_call.1} parent=11 // pred_check_branch
          %425 = sbr.rel (%p423) target = $region40
        $region39: #{tpu_custom_call.1} parent=11 // pred_region
          %427 = vsyncadd [#allocation6], 0
          %s428 = sshll.u32 %s7, 4
          %s429 = int_to_ptr.hbm [resolvable:$true] %s428
          %s430 = sshll.u32 [#allocation5], 4
          %s431 = int_to_ptr.vmem [resolvable:$true] %s430
          %436 = dma.hbm_to_vmem [thread:$0]  %s429, 512, %s431, [#allocation6], 128, 128, 8
        $region40: #{tpu_custom_call.1} parent=11 // pred_fallthru
          _
        // Predicated region
        $region41: #{tpu_custom_call.1} parent=11 // pred_check
          %p437 = pneg %p236
        $region42: #{tpu_custom_call.1} parent=11 // pred_check_branch
          %439 = sbr.rel (%p437) target = $region44
        $region43: #{tpu_custom_call.1} parent=11 // pred_region
          _
        $region44: #{tpu_custom_call.1} parent=11 // pred_fallthru
          _
        // Predicated region
        $region45: #{tpu_custom_call.1} parent=11 // pred_check
          %p440 = pneg %p257
        $region46: #{tpu_custom_call.1} parent=11 // pred_check_branch
          %442 = sbr.rel (%p440) target = $region48
        $region47: #{tpu_custom_call.1} parent=11 // pred_region
          _
        $region48: #{tpu_custom_call.1} parent=11 // pred_fallthru
          _
        // Predicated region
        $region49: #{tpu_custom_call.1} parent=11 // pred_check
          %p443 = pneg %p278
        $region50: #{tpu_custom_call.1} parent=11 // pred_check_branch
          %445 = sbr.rel (%p443) target = $region52
        $region51: #{tpu_custom_call.1} parent=11 // pred_region
          _
        $region52: #{tpu_custom_call.1} parent=11 // pred_fallthru
          _
        // Predicated region
        $region53: #{tpu_custom_call.1} parent=11 // pred_check
          %p446 = pneg %p299
        $region54: #{tpu_custom_call.1} parent=11 // pred_check_branch
          %448 = sbr.rel (%p446) target = $region56
        $region55: #{tpu_custom_call.1} parent=11 // pred_region
          _
        $region56: #{tpu_custom_call.1} parent=11 // pred_fallthru
          _
        // Predicated region
        $region57: #{tpu_custom_call.1} parent=11 // pred_check
          %p449 = pneg %p320
        $region58: #{tpu_custom_call.1} parent=11 // pred_check_branch
          %451 = sbr.rel (%p449) target = $region60
        $region59: #{tpu_custom_call.1} parent=11 // pred_region
          _
        $region60: #{tpu_custom_call.1} parent=11 // pred_fallthru
          _
        // Predicated region
        $region61: #{tpu_custom_call.1} parent=11 // pred_check
          %p452 = pneg %p341
        $region62: #{tpu_custom_call.1} parent=11 // pred_check_branch
          %454 = sbr.rel (%p452) target = $region64
        $region63: #{tpu_custom_call.1} parent=11 // pred_region
          _
        $region64: #{tpu_custom_call.1} parent=11 // pred_fallthru
          _
        // Predicated region
        $region65: #{tpu_custom_call.1} parent=11 // pred_check
          %p455 = pneg %p362
        $region66: #{tpu_custom_call.1} parent=11 // pred_check_branch
          %457 = sbr.rel (%p455) target = $region68
        $region67: #{tpu_custom_call.1} parent=11 // pred_region
          _
        $region68: #{tpu_custom_call.1} parent=11 // pred_fallthru
          _
      $region12: #{tpu_custom_call.1} parent=5 // pred_fallthru
        _
      %p458 = scmp.lt.s32.totalorder %s28, 2
      // Predicated region
      $region69: #{tpu_custom_call.1} parent=5 // pred_check
        %p459 = pneg %p458
      $region70: #{tpu_custom_call.1} parent=5 // pred_check_branch
        %461 = sbr.rel (%p459) target = $region72
      $region71: #{tpu_custom_call.1} parent=5 // pred_region
        // Predicated region
        $region73: #{tpu_custom_call.1} parent=71 // pred_check
          %p462 = pneg %p62
        $region74: #{tpu_custom_call.1} parent=71 // pred_check_branch
          %464 = sbr.rel (%p462) target = $region76
        $region75: #{tpu_custom_call.1} parent=71 // pred_region
          %s465 = sand.u32 %s52, 1
          %s466 = scalar_lea.sflag [#allocation3], %s465
          %s467 = sand.u32 %s52, 1
          %s468 = smul.addr %s467, 8
          %s469 = scalar_lea.vmem [#allocation2], %s468
          %471 = vsyncadd %s466, 0
          %s472 = sadd.s32 %s36, %s35
          %s473 = smul.addr %s472, 8
          %s474 = scalar_lea.hbm %s0, %s473
          %s476 = sshll.u32 %s474, 4
          %s477 = int_to_ptr.hbm [resolvable:$true] %s476
          %s478 = sshll.u32 %s469, 4
          %s479 = int_to_ptr.vmem [resolvable:$true] %s478
          %481 = dma.hbm_to_vmem [thread:$0]  %s477, 128, %s479, %s466
        $region76: #{tpu_custom_call.1} parent=71 // pred_fallthru
          _
      $region72: #{tpu_custom_call.1} parent=5 // pred_fallthru
        _
      %p482 = scmp.le.s32.totalorder 1, %s28
      %p483 = scmp.lt.s32.totalorder %s28, 3
      %p484 = pnand %p482, %p483
      %p485 = pneg %p484
      // Predicated region
      $region77: #{tpu_custom_call.1} parent=5 // pred_check
        _
      $region78: #{tpu_custom_call.1} parent=5 // pred_check_branch
        %487 = sbr.rel (%p484) target = $region80
      $region79: #{tpu_custom_call.1} parent=5 // pred_region
        %s488 = ssub.s32 %s28, 1
        %s489 = sand.u32 %s55, 1
        %s490 = scalar_lea.sflag [#allocation3], %s489
        %s491 = sand.u32 %s55, 1
        %s492 = smul.addr %s491, 8
        %s493 = scalar_lea.vmem [#allocation2], %s492
        // Predicated region
        $region81: #{tpu_custom_call.1} parent=79 // pred_check
          %p494 = pneg %p68
        $region82: #{tpu_custom_call.1} parent=79 // pred_check_branch
          %496 = sbr.rel (%p494) target = $region84
        $region83: #{tpu_custom_call.1} parent=79 // pred_region
          %498 = dma.done %s490, 128
        $region84: #{tpu_custom_call.1} parent=79 // pred_fallthru
          _
        // Predicated region
        $region85: #{tpu_custom_call.1} parent=79 // pred_check
          %p499 = pneg %p215
        $region86: #{tpu_custom_call.1} parent=79 // pred_check_branch
          %501 = sbr.rel (%p499) target = $region88
        $region87: #{tpu_custom_call.1} parent=79 // pred_region
          %503 = dma.done [#allocation6], 512
        $region88: #{tpu_custom_call.1} parent=79 // pred_fallthru
          _
        %s504 = sand.u32 %s55, 1
        %s505 = scalar_lea.sflag [#allocation3], %s504
        %s506 = sand.u32 %s55, 1
        %s507 = smul.addr %s506, 8
        %s508 = scalar_lea.vmem [#allocation2], %s507
        %p509 = pneg %p68
        %p510 = pneg %p65
        %p511 = pneg %p89
        %p512 = pneg %p86
        %p513 = pneg %p110
        %p514 = pneg %p107
        %p515 = pneg %p131
        %p516 = pneg %p128
        %p517 = pneg %p152
        %p518 = pneg %p149
        %p519 = pneg %p173
        %p520 = pneg %p170
        %p521 = pneg %p194
        %p522 = pneg %p191
        %p523 = pneg %p215
        %p524 = pneg %p212
        %p525 = pneg %p236
        %p526 = pneg %p233
        %p527 = pneg %p257
        %p528 = pneg %p254
        %p529 = pneg %p278
        %p530 = pneg %p275
        %p531 = pneg %p299
        %p532 = pneg %p296
        %p533 = pneg %p320
        %p534 = pneg %p317
        %p535 = pneg %p341
        %p536 = pneg %p338
        %p537 = pneg %p362
        %p538 = pneg %p359
        %p539 = pneg %p390
        %p540 = pneg %p387
        %s541 = sand.u32 %s377, 1
        %s542 = scalar_lea.sflag [#allocation4], %s541
        %s543 = sand.u32 %s377, 1
        %s544 = smul.addr %s543, 8
        %s545 = scalar_lea.vmem [#allocation7], %s544
        %v546 = vld [vmem:[%s493] sm:$0xff]
        %v547 = vld [vmem:[%s1] sm:$0xff]
        %v548 = vld [vmem:[%s1 + $0x8] sm:$0xff]
        %v549 = vld [vmem:[%s1 + $0x10] sm:$0xff]
        %v550 = vld [vmem:[%s1 + $0x18] sm:$0xff]
        %v551 = vld [vmem:[%s2] sm:$0x1]
        %v553 = vperm.slane %v551, 0
        %vm555 = vcmask 261120
        %v557 = vsel %vm555, %v546, 0
        %559 = vmatpush.msra.mxu0 0.0
        %560 = vmatpush.msra.mxu0 0.0
        %561 = vmatpush.msra.mxu0 0.0
        %562 = vmatpush.msra.mxu0 0.0
        %563 = vmatpush.msra.mxu0 0.0
        %564 = vmatpush.msra.mxu0 0.0
        %565 = vmatpush.msra.mxu0 0.0
        %566 = vmatpush.msra.mxu0 0.0
        %567 = vmatpush.msra.mxu0 0.0
        %568 = vmatpush.msra.mxu0 0.0
        %569 = vmatpush.msra.mxu0 0.0
        %570 = vmatpush.msra.mxu0 0.0
        %571 = vmatpush.msra.mxu0 %v550
        %572 = vmatpush.msra.mxu0 %v549
        %573 = vmatpush.msra.mxu0 %v548
        %574 = vmatpush.msra.mxu0 %v547
        %575 = vmatmul.f32.gmra.mxu0 %v557
        %v576 = vpop.f32.mrf.mxu0
        %v577 = vadd.f32 %v553, %v576
        %578 = vdwg.mxu0
        %v579 = vld [vmem:[%s3] sm:$0xff]
        %v580 = vld [vmem:[%s3 + $0x8] sm:$0xff]
        %v581 = vld [vmem:[%s3 + $0x10] sm:$0xff]
        %v582 = vld [vmem:[%s3 + $0x18] sm:$0xff]
        %v583 = vld [vmem:[%s4] sm:$0x1]
        %v585 = vperm.slane %v583, 0
        %587 = vmatpush.msra.mxu0 0.0
        %588 = vmatpush.msra.mxu0 0.0
        %589 = vmatpush.msra.mxu0 0.0
        %590 = vmatpush.msra.mxu0 0.0
        %591 = vmatpush.msra.mxu0 0.0
        %592 = vmatpush.msra.mxu0 0.0
        %593 = vmatpush.msra.mxu0 0.0
        %594 = vmatpush.msra.mxu0 0.0
        %595 = vmatpush.msra.mxu0 0.0
        %596 = vmatpush.msra.mxu0 0.0
        %597 = vmatpush.msra.mxu0 0.0
        %598 = vmatpush.msra.mxu0 0.0
        %599 = vmatpush.msra.mxu0 %v582
        %600 = vmatpush.msra.mxu0 %v581
        %601 = vmatpush.msra.mxu0 %v580
        %602 = vmatpush.msra.mxu0 %v579
        %603 = vmatmul.f32.gmra.mxu0 %v557
        %v604 = vpop.f32.mrf.mxu0
        %v605 = vadd.f32 %v585, %v604
        %606 = vdwg.mxu0
        %608 = vrot.lane.b32.xlu0 %v577, 120
        %v609 = vpop.permute.xlu0 %608
        %610 = vrot.lane.b32.xlu0 %v577, 112
        %v611 = vpop.permute.xlu0 %610
        %612 = vrot.lane.b32.xlu0 %v577, 104
        %v613 = vpop.permute.xlu0 %612
        %615 = vrot.lane.b32.xlu0 %v605, 120
        %v616 = vpop.permute.xlu0 %615
        %618 = vrot.lane.b32.xlu0 %v605, 112
        %v619 = vpop.permute.xlu0 %618
        %621 = vrot.lane.b32.xlu0 %v605, 104
        %v622 = vpop.permute.xlu0 %621
        %624 = vxpose.xlu0.b32.start [1/16] %v605, 128
        %625 = vxpose.xlu0.b32.cont [2/16] 0.0, 128
        %626 = vxpose.xlu0.b32.cont [3/16] 0.0, 128
        %627 = vxpose.xlu0.b32.cont [4/16] 0.0, 128
        %628 = vxpose.xlu0.b32.cont [5/16] 0.0, 128
        %629 = vxpose.xlu0.b32.cont [6/16] 0.0, 128
        %630 = vxpose.xlu0.b32.cont [7/16] 0.0, 128
        %631 = vxpose.xlu0.b32.cont [8/16] 0.0, 128
        %632 = vxpose.xlu0.b32.cont [9/16] 0.0, 128
        %633 = vxpose.xlu0.b32.cont [10/16] 0.0, 128
        %634 = vxpose.xlu0.b32.cont [11/16] 0.0, 128
        %635 = vxpose.xlu0.b32.cont [12/16] 0.0, 128
        %636 = vxpose.xlu0.b32.cont [13/16] 0.0, 128
        %637 = vxpose.xlu0.b32.cont [14/16] 0.0, 128
        %638 = vxpose.xlu0.b32.cont [15/16] 0.0, 128
        %639 = vxpose.xlu0.b32.end [16/16] 0.0, 128
        %v640 = vpop.trf.xlu0
        %v641 = vpop.trf.xlu0
        %v642 = vpop.trf.xlu0
        %v643 = vpop.trf.xlu0
        %v644 = vpop.trf.xlu0
        %v645 = vpop.trf.xlu0
        %v646 = vpop.trf.xlu0
        %v647 = vpop.trf.xlu0
        %v648 = vpop.trf.xlu0
        %v649 = vpop.trf.xlu0
        %v650 = vpop.trf.xlu0
        %v651 = vpop.trf.xlu0
        %v652 = vpop.trf.xlu0
        %v653 = vpop.trf.xlu0
        %v654 = vpop.trf.xlu0
        %v655 = vpop.trf.xlu0
        %656 = vxpose.xlu0.b32.start [1/16] %v616, 128
        %657 = vxpose.xlu0.b32.cont [2/16] 0.0, 128
        %658 = vxpose.xlu0.b32.cont [3/16] 0.0, 128
        %659 = vxpose.xlu0.b32.cont [4/16] 0.0, 128
        %660 = vxpose.xlu0.b32.cont [5/16] 0.0, 128
        %661 = vxpose.xlu0.b32.cont [6/16] 0.0, 128
        %662 = vxpose.xlu0.b32.cont [7/16] 0.0, 128
        %663 = vxpose.xlu0.b32.cont [8/16] 0.0, 128
        %664 = vxpose.xlu0.b32.cont [9/16] 0.0, 128
        %665 = vxpose.xlu0.b32.cont [10/16] 0.0, 128
        %666 = vxpose.xlu0.b32.cont [11/16] 0.0, 128
        %667 = vxpose.xlu0.b32.cont [12/16] 0.0, 128
        %668 = vxpose.xlu0.b32.cont [13/16] 0.0, 128
        %669 = vxpose.xlu0.b32.cont [14/16] 0.0, 128
        %670 = vxpose.xlu0.b32.cont [15/16] 0.0, 128
        %671 = vxpose.xlu0.b32.end [16/16] 0.0, 128
        %v672 = vpop.trf.xlu0
        %v673 = vpop.trf.xlu0
        %v674 = vpop.trf.xlu0
        %v675 = vpop.trf.xlu0
        %v676 = vpop.trf.xlu0
        %v677 = vpop.trf.xlu0
        %v678 = vpop.trf.xlu0
        %v679 = vpop.trf.xlu0
        %v680 = vpop.trf.xlu0
        %v681 = vpop.trf.xlu0
        %v682 = vpop.trf.xlu0
        %v683 = vpop.trf.xlu0
        %v684 = vpop.trf.xlu0
        %v685 = vpop.trf.xlu0
        %v686 = vpop.trf.xlu0
        %v687 = vpop.trf.xlu0
        %688 = vxpose.xlu0.b32.start [1/16] %v619, 128
        %689 = vxpose.xlu0.b32.cont [2/16] 0.0, 128
        %690 = vxpose.xlu0.b32.cont [3/16] 0.0, 128
        %691 = vxpose.xlu0.b32.cont [4/16] 0.0, 128
        %692 = vxpose.xlu0.b32.cont [5/16] 0.0, 128
        %693 = vxpose.xlu0.b32.cont [6/16] 0.0, 128
        %694 = vxpose.xlu0.b32.cont [7/16] 0.0, 128
        %695 = vxpose.xlu0.b32.cont [8/16] 0.0, 128
        %696 = vxpose.xlu0.b32.cont [9/16] 0.0, 128
        %697 = vxpose.xlu0.b32.cont [10/16] 0.0, 128
        %698 = vxpose.xlu0.b32.cont [11/16] 0.0, 128
        %699 = vxpose.xlu0.b32.cont [12/16] 0.0, 128
        %700 = vxpose.xlu0.b32.cont [13/16] 0.0, 128
        %701 = vxpose.xlu0.b32.cont [14/16] 0.0, 128
        %702 = vxpose.xlu0.b32.cont [15/16] 0.0, 128
        %703 = vxpose.xlu0.b32.end [16/16] 0.0, 128
        %v704 = vpop.trf.xlu0
        %v705 = vpop.trf.xlu0
        %v706 = vpop.trf.xlu0
        %v707 = vpop.trf.xlu0
        %v708 = vpop.trf.xlu0
        %v709 = vpop.trf.xlu0
        %v710 = vpop.trf.xlu0
        %v711 = vpop.trf.xlu0
        %v712 = vpop.trf.xlu0
        %v713 = vpop.trf.xlu0
        %v714 = vpop.trf.xlu0
        %v715 = vpop.trf.xlu0
        %v716 = vpop.trf.xlu0
        %v717 = vpop.trf.xlu0
        %v718 = vpop.trf.xlu0
        %v719 = vpop.trf.xlu0
        %720 = vxpose.xlu0.b32.start [1/16] %v622, 128
        %721 = vxpose.xlu0.b32.cont [2/16] 0.0, 128
        %722 = vxpose.xlu0.b32.cont [3/16] 0.0, 128
        %723 = vxpose.xlu0.b32.cont [4/16] 0.0, 128
        %724 = vxpose.xlu0.b32.cont [5/16] 0.0, 128
        %725 = vxpose.xlu0.b32.cont [6/16] 0.0, 128
        %726 = vxpose.xlu0.b32.cont [7/16] 0.0, 128
        %727 = vxpose.xlu0.b32.cont [8/16] 0.0, 128
        %728 = vxpose.xlu0.b32.cont [9/16] 0.0, 128
        %729 = vxpose.xlu0.b32.cont [10/16] 0.0, 128
        %730 = vxpose.xlu0.b32.cont [11/16] 0.0, 128
        %731 = vxpose.xlu0.b32.cont [12/16] 0.0, 128
        %732 = vxpose.xlu0.b32.cont [13/16] 0.0, 128
        %733 = vxpose.xlu0.b32.cont [14/16] 0.0, 128
        %734 = vxpose.xlu0.b32.cont [15/16] 0.0, 128
        %735 = vxpose.xlu0.b32.end [16/16] 0.0, 128
        %v736 = vpop.trf.xlu0
        %v737 = vpop.trf.xlu0
        %v738 = vpop.trf.xlu0
        %v739 = vpop.trf.xlu0
        %v740 = vpop.trf.xlu0
        %v741 = vpop.trf.xlu0
        %v742 = vpop.trf.xlu0
        %v743 = vpop.trf.xlu0
        %v744 = vpop.trf.xlu0
        %v745 = vpop.trf.xlu0
        %v746 = vpop.trf.xlu0
        %v747 = vpop.trf.xlu0
        %v748 = vpop.trf.xlu0
        %v749 = vpop.trf.xlu0
        %v750 = vpop.trf.xlu0
        %v751 = vpop.trf.xlu0
        %vm752 = vcmask 64512
        %v753 = vsel %vm752, %v577, 0
        %755 = vmatpush.msra.mxu0 0.0
        %756 = vmatpush.msra.mxu0 0.0
        %757 = vmatpush.msra.mxu0 0.0
        %758 = vmatpush.msra.mxu0 0.0
        %759 = vmatpush.msra.mxu0 0.0
        %760 = vmatpush.msra.mxu0 0.0
        %761 = vmatpush.msra.mxu0 0.0
        %762 = vmatpush.msra.mxu0 0.0
        %763 = vmatpush.msra.mxu0 0.0
        %764 = vmatpush.msra.mxu0 0.0
        %765 = vmatpush.msra.mxu0 0.0
        %766 = vmatpush.msra.mxu0 0.0
        %767 = vmatpush.msra.mxu0 0.0
        %768 = vmatpush.msra.mxu0 0.0
        %769 = vmatpush.msra.mxu0 0.0
        %770 = vmatpush.msra.mxu0 %v640
        %771 = vmatmul.f32.gmra.mxu0 %v753
        %v772 = vpop.f32.mrf.mxu0
        %v773 = vadd.f32 0.0, %v772
        %774 = vdwg.mxu0
        %v775 = vsel %vm752, %v609, 0
        %777 = vmatpush.msra.mxu0 0.0
        %778 = vmatpush.msra.mxu0 0.0
        %779 = vmatpush.msra.mxu0 0.0
        %780 = vmatpush.msra.mxu0 0.0
        %781 = vmatpush.msra.mxu0 0.0
        %782 = vmatpush.msra.mxu0 0.0
        %783 = vmatpush.msra.mxu0 0.0
        %784 = vmatpush.msra.mxu0 0.0
        %785 = vmatpush.msra.mxu0 0.0
        %786 = vmatpush.msra.mxu0 0.0
        %787 = vmatpush.msra.mxu0 0.0
        %788 = vmatpush.msra.mxu0 0.0
        %789 = vmatpush.msra.mxu0 0.0
        %790 = vmatpush.msra.mxu0 0.0
        %791 = vmatpush.msra.mxu0 0.0
        %792 = vmatpush.msra.mxu0 %v672
        %793 = vmatmul.f32.gmra.mxu0 %v775
        %v794 = vpop.f32.mrf.mxu0
        %v795 = vadd.f32 0.0, %v794
        %796 = vdwg.mxu0
        %v797 = vsel %vm752, %v611, 0
        %799 = vmatpush.msra.mxu0 0.0
        %800 = vmatpush.msra.mxu0 0.0
        %801 = vmatpush.msra.mxu0 0.0
        %802 = vmatpush.msra.mxu0 0.0
        %803 = vmatpush.msra.mxu0 0.0
        %804 = vmatpush.msra.mxu0 0.0
        %805 = vmatpush.msra.mxu0 0.0
        %806 = vmatpush.msra.mxu0 0.0
        %807 = vmatpush.msra.mxu0 0.0
        %808 = vmatpush.msra.mxu0 0.0
        %809 = vmatpush.msra.mxu0 0.0
        %810 = vmatpush.msra.mxu0 0.0
        %811 = vmatpush.msra.mxu0 0.0
        %812 = vmatpush.msra.mxu0 0.0
        %813 = vmatpush.msra.mxu0 0.0
        %814 = vmatpush.msra.mxu0 %v704
        %815 = vmatmul.f32.gmra.mxu0 %v797
        %v816 = vpop.f32.mrf.mxu0
        %v817 = vadd.f32 0.0, %v816
        %818 = vdwg.mxu0
        %v819 = vsel %vm752, %v613, 0
        %821 = vmatpush.msra.mxu0 0.0
        %822 = vmatpush.msra.mxu0 0.0
        %823 = vmatpush.msra.mxu0 0.0
        %824 = vmatpush.msra.mxu0 0.0
        %825 = vmatpush.msra.mxu0 0.0
        %826 = vmatpush.msra.mxu0 0.0
        %827 = vmatpush.msra.mxu0 0.0
        %828 = vmatpush.msra.mxu0 0.0
        %829 = vmatpush.msra.mxu0 0.0
        %830 = vmatpush.msra.mxu0 0.0
        %831 = vmatpush.msra.mxu0 0.0
        %832 = vmatpush.msra.mxu0 0.0
        %833 = vmatpush.msra.mxu0 0.0
        %834 = vmatpush.msra.mxu0 0.0
        %835 = vmatpush.msra.mxu0 0.0
        %836 = vmatpush.msra.mxu0 %v736
        %837 = vmatmul.f32.gmra.mxu0 %v819
        %v838 = vpop.f32.mrf.mxu0
        %v839 = vadd.f32 0.0, %v838
        %840 = vdwg.mxu0
        %v841 = vmul.f32 %v773, 0.35355338
        %v842 = vmul.f32 %v795, 0.35355338
        %v843 = vmul.f32 %v817, 0.35355338
        %v844 = vmul.f32 %v839, 0.35355338
        %v845 = vsel %vm752, %v841, -inf
        %846 = vmax.xlane.f32.xlu0 %v845
        %v847 = vpop.xlane.xlu0 %846
        %v848 = vsel %vm752, %v842, -inf
        %849 = vmax.xlane.f32.xlu0 %v848
        %v850 = vpop.xlane.xlu0 %849
        %v851 = vsel %vm752, %v843, -inf
        %852 = vmax.xlane.f32.xlu0 %v851
        %v853 = vpop.xlane.xlu0 %852
        %v854 = vsel %vm752, %v844, -inf
        %855 = vmax.xlane.f32.xlu0 %v854
        %v856 = vpop.xlane.xlu0 %855
        %v857 = vsub.f32 %v841, %v847
        %v858 = vsub.f32 %v842, %v850
        %v859 = vsub.f32 %v843, %v853
        %v860 = vsub.f32 %v844, %v856
        %v861 = vmul.f32 %v857, 1.442695
        %v862 = vpow.pop %v861
        %v863 = vmul.f32 %v858, 1.442695
        %v864 = vpow.pop %v863
        %v865 = vmul.f32 %v859, 1.442695
        %v866 = vpow.pop %v865
        %v867 = vmul.f32 %v860, 1.442695
        %v868 = vpow.pop %v867
        %v869 = vsel %vm752, %v862, 0.0
        %870 = vadd.xlane.f32.xlu0 %v869
        %v871 = vpop.xlane.xlu0 %870
        %v872 = vsel %vm752, %v864, 0.0
        %873 = vadd.xlane.f32.xlu0 %v872
        %v874 = vpop.xlane.xlu0 %873
        %v875 = vsel %vm752, %v866, 0.0
        %876 = vadd.xlane.f32.xlu0 %v875
        %v877 = vpop.xlane.xlu0 %876
        %v878 = vsel %vm752, %v868, 0.0
        %879 = vadd.xlane.f32.xlu0 %v878
        %v880 = vpop.xlane.xlu0 %879
        %v881 = vrcp.pop %v871
        %v882 = vrcp.pop %v874
        %v883 = vrcp.pop %v877
        %v884 = vrcp.pop %v880
        %v885 = vmul.f32 %v862, %v881
        %v886 = vmul.f32 %v864, %v882
        %v887 = vmul.f32 %v866, %v883
        %v888 = vmul.f32 %v868, %v884
        %889 = vrot.lane.b32.xlu0 %v605, 96
        %v890 = vpop.permute.xlu0 %889
        %891 = vrot.lane.b32.xlu0 %v616, 96
        %v892 = vpop.permute.xlu0 %891
        %893 = vrot.lane.b32.xlu0 %v619, 96
        %v894 = vpop.permute.xlu0 %893
        %895 = vrot.lane.b32.xlu0 %v622, 96
        %v896 = vpop.permute.xlu0 %895
        %901 = vxpose.xlu0.b32.start [1/16] %v890, 128
        %902 = vxpose.xlu0.b32.cont [2/16] 0.0, 128
        %903 = vxpose.xlu0.b32.cont [3/16] 0.0, 128
        %904 = vxpose.xlu0.b32.cont [4/16] 0.0, 128
        %905 = vxpose.xlu0.b32.cont [5/16] 0.0, 128
        %906 = vxpose.xlu0.b32.cont [6/16] 0.0, 128
        %907 = vxpose.xlu0.b32.cont [7/16] 0.0, 128
        %908 = vxpose.xlu0.b32.cont [8/16] 0.0, 128
        %909 = vxpose.xlu0.b32.cont [9/16] 0.0, 128
        %910 = vxpose.xlu0.b32.cont [10/16] 0.0, 128
        %911 = vxpose.xlu0.b32.cont [11/16] 0.0, 128
        %912 = vxpose.xlu0.b32.cont [12/16] 0.0, 128
        %913 = vxpose.xlu0.b32.cont [13/16] 0.0, 128
        %914 = vxpose.xlu0.b32.cont [14/16] 0.0, 128
        %915 = vxpose.xlu0.b32.cont [15/16] 0.0, 128
        %916 = vxpose.xlu0.b32.end [16/16] 0.0, 128
        %v917 = vpop.trf.xlu0
        %v918 = vpop.trf.xlu0
        %v919 = vpop.trf.xlu0
        %v920 = vpop.trf.xlu0
        %v921 = vpop.trf.xlu0
        %v922 = vpop.trf.xlu0
        %v923 = vpop.trf.xlu0
        %v924 = vpop.trf.xlu0
        %v925 = vpop.trf.xlu0
        %v926 = vpop.trf.xlu0
        %v927 = vpop.trf.xlu0
        %v928 = vpop.trf.xlu0
        %v929 = vpop.trf.xlu0
        %v930 = vpop.trf.xlu0
        %v931 = vpop.trf.xlu0
        %v932 = vpop.trf.xlu0
        %933 = vxpose.xlu0.b32.start [1/16] %v892, 128
        %934 = vxpose.xlu0.b32.cont [2/16] 0.0, 128
        %935 = vxpose.xlu0.b32.cont [3/16] 0.0, 128
        %936 = vxpose.xlu0.b32.cont [4/16] 0.0, 128
        %937 = vxpose.xlu0.b32.cont [5/16] 0.0, 128
        %938 = vxpose.xlu0.b32.cont [6/16] 0.0, 128
        %939 = vxpose.xlu0.b32.cont [7/16] 0.0, 128
        %940 = vxpose.xlu0.b32.cont [8/16] 0.0, 128
        %941 = vxpose.xlu0.b32.cont [9/16] 0.0, 128
        %942 = vxpose.xlu0.b32.cont [10/16] 0.0, 128
        %943 = vxpose.xlu0.b32.cont [11/16] 0.0, 128
        %944 = vxpose.xlu0.b32.cont [12/16] 0.0, 128
        %945 = vxpose.xlu0.b32.cont [13/16] 0.0, 128
        %946 = vxpose.xlu0.b32.cont [14/16] 0.0, 128
        %947 = vxpose.xlu0.b32.cont [15/16] 0.0, 128
        %948 = vxpose.xlu0.b32.end [16/16] 0.0, 128
        %v949 = vpop.trf.xlu0
        %v950 = vpop.trf.xlu0
        %v951 = vpop.trf.xlu0
        %v952 = vpop.trf.xlu0
        %v953 = vpop.trf.xlu0
        %v954 = vpop.trf.xlu0
        %v955 = vpop.trf.xlu0
        %v956 = vpop.trf.xlu0
        %v957 = vpop.trf.xlu0
        %v958 = vpop.trf.xlu0
        %v959 = vpop.trf.xlu0
        %v960 = vpop.trf.xlu0
        %v961 = vpop.trf.xlu0
        %v962 = vpop.trf.xlu0
        %v963 = vpop.trf.xlu0
        %v964 = vpop.trf.xlu0
        %965 = vxpose.xlu0.b32.start [1/16] %v894, 128
        %966 = vxpose.xlu0.b32.cont [2/16] 0.0, 128
        %967 = vxpose.xlu0.b32.cont [3/16] 0.0, 128
        %968 = vxpose.xlu0.b32.cont [4/16] 0.0, 128
        %969 = vxpose.xlu0.b32.cont [5/16] 0.0, 128
        %970 = vxpose.xlu0.b32.cont [6/16] 0.0, 128
        %971 = vxpose.xlu0.b32.cont [7/16] 0.0, 128
        %972 = vxpose.xlu0.b32.cont [8/16] 0.0, 128
        %973 = vxpose.xlu0.b32.cont [9/16] 0.0, 128
        %974 = vxpose.xlu0.b32.cont [10/16] 0.0, 128
        %975 = vxpose.xlu0.b32.cont [11/16] 0.0, 128
        %976 = vxpose.xlu0.b32.cont [12/16] 0.0, 128
        %977 = vxpose.xlu0.b32.cont [13/16] 0.0, 128
        %978 = vxpose.xlu0.b32.cont [14/16] 0.0, 128
        %979 = vxpose.xlu0.b32.cont [15/16] 0.0, 128
        %980 = vxpose.xlu0.b32.end [16/16] 0.0, 128
        %v981 = vpop.trf.xlu0
        %v982 = vpop.trf.xlu0
        %v983 = vpop.trf.xlu0
        %v984 = vpop.trf.xlu0
        %v985 = vpop.trf.xlu0
        %v986 = vpop.trf.xlu0
        %v987 = vpop.trf.xlu0
        %v988 = vpop.trf.xlu0
        %v989 = vpop.trf.xlu0
        %v990 = vpop.trf.xlu0
        %v991 = vpop.trf.xlu0
        %v992 = vpop.trf.xlu0
        %v993 = vpop.trf.xlu0
        %v994 = vpop.trf.xlu0
        %v995 = vpop.trf.xlu0
        %v996 = vpop.trf.xlu0
        %997 = vxpose.xlu0.b32.start [1/16] %v896, 128
        %998 = vxpose.xlu0.b32.cont [2/16] 0.0, 128
        %999 = vxpose.xlu0.b32.cont [3/16] 0.0, 128
        %1000 = vxpose.xlu0.b32.cont [4/16] 0.0, 128
        %1001 = vxpose.xlu0.b32.cont [5/16] 0.0, 128
        %1002 = vxpose.xlu0.b32.cont [6/16] 0.0, 128
        %1003 = vxpose.xlu0.b32.cont [7/16] 0.0, 128
        %1004 = vxpose.xlu0.b32.cont [8/16] 0.0, 128
        %1005 = vxpose.xlu0.b32.cont [9/16] 0.0, 128
        %1006 = vxpose.xlu0.b32.cont [10/16] 0.0, 128
        %1007 = vxpose.xlu0.b32.cont [11/16] 0.0, 128
        %1008 = vxpose.xlu0.b32.cont [12/16] 0.0, 128
        %1009 = vxpose.xlu0.b32.cont [13/16] 0.0, 128
        %1010 = vxpose.xlu0.b32.cont [14/16] 0.0, 128
        %1011 = vxpose.xlu0.b32.cont [15/16] 0.0, 128
        %1012 = vxpose.xlu0.b32.end [16/16] 0.0, 128
        %v1013 = vpop.trf.xlu0
        %v1014 = vpop.trf.xlu0
        %v1015 = vpop.trf.xlu0
        %v1016 = vpop.trf.xlu0
        %v1017 = vpop.trf.xlu0
        %v1018 = vpop.trf.xlu0
        %v1019 = vpop.trf.xlu0
        %v1020 = vpop.trf.xlu0
        %v1021 = vpop.trf.xlu0
        %v1022 = vpop.trf.xlu0
        %v1023 = vpop.trf.xlu0
        %v1024 = vpop.trf.xlu0
        %v1025 = vpop.trf.xlu0
        %v1026 = vpop.trf.xlu0
        %v1027 = vpop.trf.xlu0
        %v1028 = vpop.trf.xlu0
        %v1030 = vsel %vm752, %v917, 0
        %v1033 = vsel %vm752, %v885, 0
        %1035 = vmatpush.xpose.msra.mxu0 0.0
        %1036 = vmatpush.xpose.msra.mxu0 0.0
        %1037 = vmatpush.xpose.msra.mxu0 0.0
        %1038 = vmatpush.xpose.msra.mxu0 0.0
        %1039 = vmatpush.xpose.msra.mxu0 0.0
        %1040 = vmatpush.xpose.msra.mxu0 0.0
        %1041 = vmatpush.xpose.msra.mxu0 0.0
        %1042 = vmatpush.xpose.msra.mxu0 0.0
        %1043 = vmatpush.xpose.msra.mxu0 0.0
        %1044 = vmatpush.xpose.msra.mxu0 0.0
        %1045 = vmatpush.xpose.msra.mxu0 0.0
        %1046 = vmatpush.xpose.msra.mxu0 0.0
        %1047 = vmatpush.xpose.msra.mxu0 0.0
        %1048 = vmatpush.xpose.msra.mxu0 0.0
        %1049 = vmatpush.xpose.msra.mxu0 0.0
        %1050 = vmatpush.xpose.msra.mxu0 %v1033
        %1051 = vmatmul.f32.gmra.mxu0 %v1030
        %v1052 = vpop.f32.mrf.mxu0
        %v1053 = vadd.f32 0.0, %v1052
        %1054 = vdwg.mxu0
        %v1056 = vsel %vm752, %v949, 0
        %v1059 = vsel %vm752, %v886, 0
        %1061 = vmatpush.xpose.msra.mxu0 0.0
        %1062 = vmatpush.xpose.msra.mxu0 0.0
        %1063 = vmatpush.xpose.msra.mxu0 0.0
        %1064 = vmatpush.xpose.msra.mxu0 0.0
        %1065 = vmatpush.xpose.msra.mxu0 0.0
        %1066 = vmatpush.xpose.msra.mxu0 0.0
        %1067 = vmatpush.xpose.msra.mxu0 0.0
        %1068 = vmatpush.xpose.msra.mxu0 0.0
        %1069 = vmatpush.xpose.msra.mxu0 0.0
        %1070 = vmatpush.xpose.msra.mxu0 0.0
        %1071 = vmatpush.xpose.msra.mxu0 0.0
        %1072 = vmatpush.xpose.msra.mxu0 0.0
        %1073 = vmatpush.xpose.msra.mxu0 0.0
        %1074 = vmatpush.xpose.msra.mxu0 0.0
        %1075 = vmatpush.xpose.msra.mxu0 0.0
        %1076 = vmatpush.xpose.msra.mxu0 %v1059
        %1077 = vmatmul.f32.gmra.mxu0 %v1056
        %v1078 = vpop.f32.mrf.mxu0
        %v1079 = vadd.f32 0.0, %v1078
        %1080 = vdwg.mxu0
        %v1082 = vsel %vm752, %v981, 0
        %v1085 = vsel %vm752, %v887, 0
        %1087 = vmatpush.xpose.msra.mxu0 0.0
        %1088 = vmatpush.xpose.msra.mxu0 0.0
        %1089 = vmatpush.xpose.msra.mxu0 0.0
        %1090 = vmatpush.xpose.msra.mxu0 0.0
        %1091 = vmatpush.xpose.msra.mxu0 0.0
        %1092 = vmatpush.xpose.msra.mxu0 0.0
        %1093 = vmatpush.xpose.msra.mxu0 0.0
        %1094 = vmatpush.xpose.msra.mxu0 0.0
        %1095 = vmatpush.xpose.msra.mxu0 0.0
        %1096 = vmatpush.xpose.msra.mxu0 0.0
        %1097 = vmatpush.xpose.msra.mxu0 0.0
        %1098 = vmatpush.xpose.msra.mxu0 0.0
        %1099 = vmatpush.xpose.msra.mxu0 0.0
        %1100 = vmatpush.xpose.msra.mxu0 0.0
        %1101 = vmatpush.xpose.msra.mxu0 0.0
        %1102 = vmatpush.xpose.msra.mxu0 %v1085
        %1103 = vmatmul.f32.gmra.mxu0 %v1082
        %v1104 = vpop.f32.mrf.mxu0
        %v1105 = vadd.f32 0.0, %v1104
        %1106 = vdwg.mxu0
        %v1108 = vsel %vm752, %v1013, 0
        %v1111 = vsel %vm752, %v888, 0
        %1113 = vmatpush.xpose.msra.mxu0 0.0
        %1114 = vmatpush.xpose.msra.mxu0 0.0
        %1115 = vmatpush.xpose.msra.mxu0 0.0
        %1116 = vmatpush.xpose.msra.mxu0 0.0
        %1117 = vmatpush.xpose.msra.mxu0 0.0
        %1118 = vmatpush.xpose.msra.mxu0 0.0
        %1119 = vmatpush.xpose.msra.mxu0 0.0
        %1120 = vmatpush.xpose.msra.mxu0 0.0
        %1121 = vmatpush.xpose.msra.mxu0 0.0
        %1122 = vmatpush.xpose.msra.mxu0 0.0
        %1123 = vmatpush.xpose.msra.mxu0 0.0
        %1124 = vmatpush.xpose.msra.mxu0 0.0
        %1125 = vmatpush.xpose.msra.mxu0 0.0
        %1126 = vmatpush.xpose.msra.mxu0 0.0
        %1127 = vmatpush.xpose.msra.mxu0 0.0
        %1128 = vmatpush.xpose.msra.mxu0 %v1111
        %1129 = vmatmul.f32.gmra.mxu0 %v1108
        %v1130 = vpop.f32.mrf.mxu0
        %v1131 = vadd.f32 0.0, %v1130
        %1132 = vdwg.mxu0
        %1133 = vxpose.xlu0.b32.start [1/16] %v1053, 128
        %1134 = vxpose.xlu0.b32.cont [2/16] 0.0, 128
        %1135 = vxpose.xlu0.b32.cont [3/16] 0.0, 128
        %1136 = vxpose.xlu0.b32.cont [4/16] 0.0, 128
        %1137 = vxpose.xlu0.b32.cont [5/16] 0.0, 128
        %1138 = vxpose.xlu0.b32.cont [6/16] 0.0, 128
        %1139 = vxpose.xlu0.b32.cont [7/16] 0.0, 128
        %1140 = vxpose.xlu0.b32.cont [8/16] 0.0, 128
        %1141 = vxpose.xlu0.b32.cont [9/16] 0.0, 128
        %1142 = vxpose.xlu0.b32.cont [10/16] 0.0, 128
        %1143 = vxpose.xlu0.b32.cont [11/16] 0.0, 128
        %1144 = vxpose.xlu0.b32.cont [12/16] 0.0, 128
        %1145 = vxpose.xlu0.b32.cont [13/16] 0.0, 128
        %1146 = vxpose.xlu0.b32.cont [14/16] 0.0, 128
        %1147 = vxpose.xlu0.b32.cont [15/16] 0.0, 128
        %1148 = vxpose.xlu0.b32.end [16/16] 0.0, 128
        %v1149 = vpop.trf.xlu0
        %v1150 = vpop.trf.xlu0
        %v1151 = vpop.trf.xlu0
        %v1152 = vpop.trf.xlu0
        %v1153 = vpop.trf.xlu0
        %v1154 = vpop.trf.xlu0
        %v1155 = vpop.trf.xlu0
        %v1156 = vpop.trf.xlu0
        %v1157 = vpop.trf.xlu0
        %v1158 = vpop.trf.xlu0
        %v1159 = vpop.trf.xlu0
        %v1160 = vpop.trf.xlu0
        %v1161 = vpop.trf.xlu0
        %v1162 = vpop.trf.xlu0
        %v1163 = vpop.trf.xlu0
        %v1164 = vpop.trf.xlu0
        %1165 = vxpose.xlu0.b32.start [1/16] %v1079, 128
        %1166 = vxpose.xlu0.b32.cont [2/16] 0.0, 128
        %1167 = vxpose.xlu0.b32.cont [3/16] 0.0, 128
        %1168 = vxpose.xlu0.b32.cont [4/16] 0.0, 128
        %1169 = vxpose.xlu0.b32.cont [5/16] 0.0, 128
        %1170 = vxpose.xlu0.b32.cont [6/16] 0.0, 128
        %1171 = vxpose.xlu0.b32.cont [7/16] 0.0, 128
        %1172 = vxpose.xlu0.b32.cont [8/16] 0.0, 128
        %1173 = vxpose.xlu0.b32.cont [9/16] 0.0, 128
        %1174 = vxpose.xlu0.b32.cont [10/16] 0.0, 128
        %1175 = vxpose.xlu0.b32.cont [11/16] 0.0, 128
        %1176 = vxpose.xlu0.b32.cont [12/16] 0.0, 128
        %1177 = vxpose.xlu0.b32.cont [13/16] 0.0, 128
        %1178 = vxpose.xlu0.b32.cont [14/16] 0.0, 128
        %1179 = vxpose.xlu0.b32.cont [15/16] 0.0, 128
        %1180 = vxpose.xlu0.b32.end [16/16] 0.0, 128
        %v1181 = vpop.trf.xlu0
        %v1182 = vpop.trf.xlu0
        %v1183 = vpop.trf.xlu0
        %v1184 = vpop.trf.xlu0
        %v1185 = vpop.trf.xlu0
        %v1186 = vpop.trf.xlu0
        %v1187 = vpop.trf.xlu0
        %v1188 = vpop.trf.xlu0
        %v1189 = vpop.trf.xlu0
        %v1190 = vpop.trf.xlu0
        %v1191 = vpop.trf.xlu0
        %v1192 = vpop.trf.xlu0
        %v1193 = vpop.trf.xlu0
        %v1194 = vpop.trf.xlu0
        %v1195 = vpop.trf.xlu0
        %v1196 = vpop.trf.xlu0
        %1197 = vxpose.xlu0.b32.start [1/16] %v1105, 128
        %1198 = vxpose.xlu0.b32.cont [2/16] 0.0, 128
        %1199 = vxpose.xlu0.b32.cont [3/16] 0.0, 128
        %1200 = vxpose.xlu0.b32.cont [4/16] 0.0, 128
        %1201 = vxpose.xlu0.b32.cont [5/16] 0.0, 128
        %1202 = vxpose.xlu0.b32.cont [6/16] 0.0, 128
        %1203 = vxpose.xlu0.b32.cont [7/16] 0.0, 128
        %1204 = vxpose.xlu0.b32.cont [8/16] 0.0, 128
        %1205 = vxpose.xlu0.b32.cont [9/16] 0.0, 128
        %1206 = vxpose.xlu0.b32.cont [10/16] 0.0, 128
        %1207 = vxpose.xlu0.b32.cont [11/16] 0.0, 128
        %1208 = vxpose.xlu0.b32.cont [12/16] 0.0, 128
        %1209 = vxpose.xlu0.b32.cont [13/16] 0.0, 128
        %1210 = vxpose.xlu0.b32.cont [14/16] 0.0, 128
        %1211 = vxpose.xlu0.b32.cont [15/16] 0.0, 128
        %1212 = vxpose.xlu0.b32.end [16/16] 0.0, 128
        %v1213 = vpop.trf.xlu0
        %v1214 = vpop.trf.xlu0
        %v1215 = vpop.trf.xlu0
        %v1216 = vpop.trf.xlu0
        %v1217 = vpop.trf.xlu0
        %v1218 = vpop.trf.xlu0
        %v1219 = vpop.trf.xlu0
        %v1220 = vpop.trf.xlu0
        %v1221 = vpop.trf.xlu0
        %v1222 = vpop.trf.xlu0
        %v1223 = vpop.trf.xlu0
        %v1224 = vpop.trf.xlu0
        %v1225 = vpop.trf.xlu0
        %v1226 = vpop.trf.xlu0
        %v1227 = vpop.trf.xlu0
        %v1228 = vpop.trf.xlu0
        %1229 = vxpose.xlu0.b32.start [1/16] %v1131, 128
        %1230 = vxpose.xlu0.b32.cont [2/16] 0.0, 128
        %1231 = vxpose.xlu0.b32.cont [3/16] 0.0, 128
        %1232 = vxpose.xlu0.b32.cont [4/16] 0.0, 128
        %1233 = vxpose.xlu0.b32.cont [5/16] 0.0, 128
        %1234 = vxpose.xlu0.b32.cont [6/16] 0.0, 128
        %1235 = vxpose.xlu0.b32.cont [7/16] 0.0, 128
        %1236 = vxpose.xlu0.b32.cont [8/16] 0.0, 128
        %1237 = vxpose.xlu0.b32.cont [9/16] 0.0, 128
        %1238 = vxpose.xlu0.b32.cont [10/16] 0.0, 128
        %1239 = vxpose.xlu0.b32.cont [11/16] 0.0, 128
        %1240 = vxpose.xlu0.b32.cont [12/16] 0.0, 128
        %1241 = vxpose.xlu0.b32.cont [13/16] 0.0, 128
        %1242 = vxpose.xlu0.b32.cont [14/16] 0.0, 128
        %1243 = vxpose.xlu0.b32.cont [15/16] 0.0, 128
        %1244 = vxpose.xlu0.b32.end [16/16] 0.0, 128
        %v1245 = vpop.trf.xlu0
        %v1246 = vpop.trf.xlu0
        %v1247 = vpop.trf.xlu0
        %v1248 = vpop.trf.xlu0
        %v1249 = vpop.trf.xlu0
        %v1250 = vpop.trf.xlu0
        %v1251 = vpop.trf.xlu0
        %v1252 = vpop.trf.xlu0
        %v1253 = vpop.trf.xlu0
        %v1254 = vpop.trf.xlu0
        %v1255 = vpop.trf.xlu0
        %v1256 = vpop.trf.xlu0
        %v1257 = vpop.trf.xlu0
        %v1258 = vpop.trf.xlu0
        %v1259 = vpop.trf.xlu0
        %v1260 = vpop.trf.xlu0
        %v1261 = vrot.slane %v1213, 4
        %vm1262 = vcmask 1047556
        %v1263 = vsel %vm1262, %v1261, %v1149
        %v1264 = vrot.slane %v1149, 4
        %v1265 = vsel %vm1262, %v1213, %v1264
        %v1267 = vunpack.c.l.s4 1983009808
        %v1268 = vunpack.c.0.s8 %v1267
        %v1269 = vperm.slane %v1263, %v1268
        %v1271 = vunpack.c.l.s4 1983009808
        %v1272 = vunpack.c.0.s8 %v1271
        %v1273 = vperm.slane %v1265, %v1272
        %v1274 = vrot.slane %v1245, 4
        %v1275 = vsel %vm1262, %v1274, %v1181
        %v1276 = vrot.slane %v1181, 4
        %v1277 = vsel %vm1262, %v1245, %v1276
        %v1279 = vunpack.c.l.s4 1983009808
        %v1280 = vunpack.c.0.s8 %v1279
        %v1281 = vperm.slane %v1275, %v1280
        %v1283 = vunpack.c.l.s4 1983009808
        %v1284 = vunpack.c.0.s8 %v1283
        %v1285 = vperm.slane %v1277, %v1284
        %v1286 = vrot.slane %v1281, 4
        %v1287 = vsel %vm1262, %v1286, %v1269
        %v1288 = vrot.slane %v1269, 4
        %v1289 = vsel %vm1262, %v1281, %v1288
        %v1291 = vunpack.c.l.s4 1934713408
        %v1292 = vunpack.c.0.s8 %v1291
        %v1293 = vperm.slane %v1287, %v1292
        %v1295 = vunpack.c.l.s4 1934713408
        %v1296 = vunpack.c.0.s8 %v1295
        %v1297 = vperm.slane %v1289, %v1296
        %v1298 = vrot.slane %v1285, 4
        %v1299 = vsel %vm1262, %v1298, %v1273
        %v1300 = vrot.slane %v1273, 4
        %v1301 = vsel %vm1262, %v1285, %v1300
        %v1303 = vunpack.c.l.s4 1934713408
        %v1304 = vunpack.c.0.s8 %v1303
        %v1305 = vperm.slane %v1299, %v1304
        %v1307 = vunpack.c.l.s4 1934713408
        %v1308 = vunpack.c.0.s8 %v1307
        %v1309 = vperm.slane %v1301, %v1308
        %v1310 = vrot.slane %v1293, 4
        %v1311 = vsel %vm1262, 0.0, %v1310
        %v1312 = vrot.slane %v1297, 4
        %v1313 = vsel %vm1262, 0.0, %v1312
        %v1314 = vrot.slane %v1305, 4
        %v1315 = vsel %vm1262, 0.0, %v1314
        %v1316 = vrot.slane %v1309, 4
        %v1317 = vsel %vm1262, 0.0, %v1316
        %v1318 = vsel %vm1262, %v1312, %v1293
        %v1320 = vunpack.c.l.s4 1983009808
        %v1321 = vunpack.c.0.s8 %v1320
        %v1322 = vperm.slane %v1318, %v1321
        %v1323 = vrot.slane %v1313, 4
        %v1324 = vsel %vm1262, %v1323, %v1311
        %v1326 = vunpack.c.l.s4 1983009808
        %v1327 = vunpack.c.0.s8 %v1326
        %v1328 = vperm.slane %v1324, %v1327
        %v1329 = vsel %vm1262, %v1316, %v1305
        %v1331 = vunpack.c.l.s4 1983009808
        %v1332 = vunpack.c.0.s8 %v1331
        %v1333 = vperm.slane %v1329, %v1332
        %v1334 = vrot.slane %v1317, 4
        %v1335 = vsel %vm1262, %v1334, %v1315
        %v1337 = vunpack.c.l.s4 1983009808
        %v1338 = vunpack.c.0.s8 %v1337
        %v1339 = vperm.slane %v1335, %v1338
        %v1340 = vrot.slane %v1328, 4
        %v1341 = vsel %vm1262, %v1340, %v1322
        %v1342 = vrot.slane %v1322, 4
        %v1343 = vsel %vm1262, %v1328, %v1342
        %v1345 = vunpack.c.l.s4 1934713408
        %v1346 = vunpack.c.0.s8 %v1345
        %v1347 = vperm.slane %v1341, %v1346
        %v1349 = vunpack.c.l.s4 1934713408
        %v1350 = vunpack.c.0.s8 %v1349
        %v1351 = vperm.slane %v1343, %v1350
        %v1352 = vrot.slane %v1339, 4
        %v1353 = vsel %vm1262, %v1352, %v1333
        %v1354 = vrot.slane %v1333, 4
        %v1355 = vsel %vm1262, %v1339, %v1354
        %v1357 = vunpack.c.l.s4 1934713408
        %v1358 = vunpack.c.0.s8 %v1357
        %v1359 = vperm.slane %v1353, %v1358
        %v1361 = vunpack.c.l.s4 1934713408
        %v1362 = vunpack.c.0.s8 %v1361
        %v1363 = vperm.slane %v1355, %v1362
        %v1364 = vrot.slane %v1359, 4
        %v1365 = vsel %vm1262, %v1364, %v1347
        %v1366 = vrot.slane %v1347, 4
        %v1367 = vsel %vm1262, %v1359, %v1366
        %v1368 = vrot.slane %v1363, 4
        %v1369 = vsel %vm1262, %v1368, %v1351
        %v1370 = vrot.slane %v1351, 4
        %v1371 = vsel %vm1262, %v1363, %v1370
        %1373 = vrot.lane.b32.xlu0 %v1367, 8
        %v1374 = vpop.permute.xlu0 %1373
        %1377 = vrot.lane.b32.xlu0 %v1369, 16
        %v1378 = vpop.permute.xlu0 %1377
        %1381 = vrot.lane.b32.xlu0 %v1371, 24
        %v1382 = vpop.permute.xlu0 %1381
        %v1384 = vsel %vm752, %v1365, %v1374
        %vm1385 = vcmask 130048
        %v1386 = vsel %vm1385, %v1384, %v1378
        %vm1387 = vcmask 195584
        %v1388 = vsel %vm1387, %v1386, %v1382
        %v1389 = vld [vmem:[%s5] sm:$0xff]
        %v1390 = vld [vmem:[%s5 + $0x8] sm:$0xff]
        %v1391 = vld [vmem:[%s5 + $0x10] sm:$0xff]
        %v1392 = vld [vmem:[%s5 + $0x18] sm:$0xff]
        %v1393 = vld [vmem:[%s6] sm:$0x1]
        %v1395 = vperm.slane %v1393, 0
        %v1398 = vsel %vm555, %v1388, 0
        %1400 = vmatpush.msra.mxu0 0.0
        %1401 = vmatpush.msra.mxu0 0.0
        %1402 = vmatpush.msra.mxu0 0.0
        %1403 = vmatpush.msra.mxu0 0.0
        %1404 = vmatpush.msra.mxu0 0.0
        %1405 = vmatpush.msra.mxu0 0.0
        %1406 = vmatpush.msra.mxu0 0.0
        %1407 = vmatpush.msra.mxu0 0.0
        %1408 = vmatpush.msra.mxu0 0.0
        %1409 = vmatpush.msra.mxu0 0.0
        %1410 = vmatpush.msra.mxu0 0.0
        %1411 = vmatpush.msra.mxu0 0.0
        %1412 = vmatpush.msra.mxu0 %v1392
        %1413 = vmatpush.msra.mxu0 %v1391
        %1414 = vmatpush.msra.mxu0 %v1390
        %1415 = vmatpush.msra.mxu0 %v1389
        %1416 = vmatmul.f32.gmra.mxu0 %v1398
        %v1417 = vpop.f32.mrf.mxu0
        %v1418 = vadd.f32 %v1395, %v1417
        %1419 = vdwg.mxu0
        %v1420 = vadd.f32 %v546, %v1418
        %v1421 = vsel %vm555, %v1420, 0.0
        %1422 = vadd.xlane.f32.xlu0 %v1421
        %v1423 = vpop.xlane.xlu0 %1422
        %v1424 = vrcp.pop 32.0
        %v1425 = vmul.f32 32.0, %v1424
        %v1426 = vsub.f32 1.0, %v1425
        %v1427 = vmul.f32 %v1424, %v1426
        %v1428 = vadd.f32 %v1424, %v1427
        %vm1429 = vweird.f32 %v1424
        %v1430 = vsel %vm1429, %v1424, %v1428
        %v1431 = vmul.f32 %v1423, %v1430
        %v1432 = vsub.f32 %v1420, %v1431
        %v1433 = vmul.f32 %v1432, %v1432
        %v1434 = vsel %vm555, %v1433, 0.0
        %1435 = vadd.xlane.f32.xlu0 %v1434
        %v1436 = vpop.xlane.xlu0 %1435
        %v1437 = vmul.f32 %v1436, %v1430
        %v1438 = vadd.f32 %v1437, 1e-05
        %v1439 = vrsqrt.pop %v1438
        %v1440 = vmul.f32 %v1439, %v1438
        %v1441 = vmul.f32 %v1440, %v1439
        %v1442 = vmul.f32 0.5, %v1441
        %v1443 = vsub.f32 1.5, %v1442
        %v1444 = vmul.f32 %v1439, %v1443
        %vm1445 = vweird.f32 %v1438
        %vm1446 = vweird.f32 %v1439
        %vm1447 = vmor %vm1445, %vm1446
        %v1448 = vsel %vm1447, %v1439, %v1444
        %v1449 = vmul.f32 %v1432, %v1448
        %v1450 = vld [vmem:[%s11] sm:$0x1]
        %v1452 = vperm.slane %v1450, 0
        %v1454 = vmul.f32 %v1449, %v1452
        %v1455 = vld [vmem:[%s12] sm:$0x1]
        %v1457 = vperm.slane %v1455, 0
        %v1459 = vadd.f32 %v1454, %v1457
        %v1460 = vld [vmem:[#allocation5] sm:$0xff]
        %v1461 = vld [vmem:[#allocation5 + $0x8] sm:$0xff]
        %v1462 = vld [vmem:[#allocation5 + $0x10] sm:$0xff]
        %v1463 = vld [vmem:[#allocation5 + $0x18] sm:$0xff]
        %v1464 = vld [vmem:[%s8] sm:$0x1]
        %v1466 = vperm.slane %v1464, 0
        %v1469 = vsel %vm555, %v1459, 0
        %1471 = vmatpush.msra.mxu0 0.0
        %1472 = vmatpush.msra.mxu0 0.0
        %1473 = vmatpush.msra.mxu0 0.0
        %1474 = vmatpush.msra.mxu0 0.0
        %1475 = vmatpush.msra.mxu0 0.0
        %1476 = vmatpush.msra.mxu0 0.0
        %1477 = vmatpush.msra.mxu0 0.0
        %1478 = vmatpush.msra.mxu0 0.0
        %1479 = vmatpush.msra.mxu0 0.0
        %1480 = vmatpush.msra.mxu0 0.0
        %1481 = vmatpush.msra.mxu0 0.0
        %1482 = vmatpush.msra.mxu0 0.0
        %1483 = vmatpush.msra.mxu0 %v1463
        %1484 = vmatpush.msra.mxu0 %v1462
        %1485 = vmatpush.msra.mxu0 %v1461
        %1486 = vmatpush.msra.mxu0 %v1460
        %1487 = vmatmul.f32.gmra.mxu0 %v1469
        %v1488 = vpop.f32.mrf.mxu0
        %v1489 = vadd.f32 %v1466, %v1488
        %1490 = vdwg.mxu0
        %v1491 = vmax.f32 %v1489, 0.0
        %v1492 = vld [vmem:[%s9] sm:$0xff]
        %v1493 = vld [vmem:[%s9 + $0x8] sm:$0xff]
        %v1494 = vld [vmem:[%s9 + $0x10] sm:$0xff]
        %v1495 = vld [vmem:[%s9 + $0x18] sm:$0xff]
        %v1496 = vld [vmem:[%s9 + $0x20] sm:$0xff]
        %v1497 = vld [vmem:[%s9 + $0x28] sm:$0xff]
        %v1498 = vld [vmem:[%s9 + $0x30] sm:$0xff]
        %v1499 = vld [vmem:[%s9 + $0x38] sm:$0xff]
        %v1500 = vld [vmem:[%s10] sm:$0x1]
        %v1502 = vperm.slane %v1500, 0
        %vm1504 = vcmask 523264
        %v1506 = vsel %vm1504, %v1491, 0
        %1508 = vmatpush.msra.mxu0 0.0
        %1509 = vmatpush.msra.mxu0 0.0
        %1510 = vmatpush.msra.mxu0 0.0
        %1511 = vmatpush.msra.mxu0 0.0
        %1512 = vmatpush.msra.mxu0 0.0
        %1513 = vmatpush.msra.mxu0 0.0
        %1514 = vmatpush.msra.mxu0 0.0
        %1515 = vmatpush.msra.mxu0 0.0
        %1516 = vmatpush.msra.mxu0 %v1499
        %1517 = vmatpush.msra.mxu0 %v1498
        %1518 = vmatpush.msra.mxu0 %v1497
        %1519 = vmatpush.msra.mxu0 %v1496
        %1520 = vmatpush.msra.mxu0 %v1495
        %1521 = vmatpush.msra.mxu0 %v1494
        %1522 = vmatpush.msra.mxu0 %v1493
        %1523 = vmatpush.msra.mxu0 %v1492
        %1524 = vmatmul.f32.gmra.mxu0 %v1506
        %v1525 = vpop.f32.mrf.mxu0
        %v1526 = vadd.f32 %v1502, %v1525
        %1527 = vdwg.mxu0
        %v1528 = vadd.f32 %v1459, %v1526
        %v1529 = vsel %vm555, %v1528, 0.0
        %1530 = vadd.xlane.f32.xlu0 %v1529
        %v1531 = vpop.xlane.xlu0 %1530
        %v1532 = vmul.f32 %v1531, %v1430
        %v1533 = vsub.f32 %v1528, %v1532
        %v1534 = vmul.f32 %v1533, %v1533
        %v1535 = vsel %vm555, %v1534, 0.0
        %1536 = vadd.xlane.f32.xlu0 %v1535
        %v1537 = vpop.xlane.xlu0 %1536
        %v1538 = vmul.f32 %v1537, %v1430
        %v1539 = vadd.f32 %v1538, 1e-05
        %v1540 = vrsqrt.pop %v1539
        %v1541 = vmul.f32 %v1540, %v1539
        %v1542 = vmul.f32 %v1541, %v1540
        %v1543 = vmul.f32 0.5, %v1542
        %v1544 = vsub.f32 1.5, %v1543
        %v1545 = vmul.f32 %v1540, %v1544
        %vm1546 = vweird.f32 %v1539
        %vm1547 = vweird.f32 %v1540
        %vm1548 = vmor %vm1546, %vm1547
        %v1549 = vsel %vm1548, %v1540, %v1545
        %v1550 = vmul.f32 %v1533, %v1549
        %v1551 = vld [vmem:[%s13] sm:$0x1]
        %v1553 = vperm.slane %v1551, 0
        %v1555 = vmul.f32 %v1550, %v1553
        %v1556 = vld [vmem:[%s14] sm:$0x1]
        %v1558 = vperm.slane %v1556, 0
        %v1560 = vadd.f32 %v1555, %v1558
        %1561 = vst.msk [vmem:[%s545] sm:$0xff] %vm555, %v1560
        %s1562 = sand.u32 %s377, 1
        %s1563 = scalar_lea.sflag [#allocation4], %s1562
        %s1564 = sand.u32 %s377, 1
        %s1565 = smul.addr %s1564, 8
        %s1566 = scalar_lea.vmem [#allocation7], %s1565
        // Predicated region
        $region89: #{tpu_custom_call.1} parent=79 // pred_check
          %p1567 = pneg %p387
        $region90: #{tpu_custom_call.1} parent=79 // pred_check_branch
          %1569 = sbr.rel (%p1567) target = $region92
        $region91: #{tpu_custom_call.1} parent=79 // pred_region
          %1571 = vsyncadd %s1563, 0
          %s1572 = sadd.s32 %s38, %s37
          %s1573 = smul.addr %s1572, 8
          %s1574 = scalar_lea.hbm %s15, %s1573
          %s1576 = sshll.u32 %s1566, 4
          %s1577 = int_to_ptr.vmem [resolvable:$true] %s1576
          %s1578 = sshll.u32 %s1574, 4
          %s1579 = int_to_ptr.hbm [resolvable:$true] %s1578
          %1581 = dma.vmem_to_hbm [thread:$0]  %s1577, 128, %s1579, %s1563
        $region92: #{tpu_custom_call.1} parent=79 // pred_fallthru
          _
      $region80: #{tpu_custom_call.1} parent=5 // pred_fallthru
        _
      %p1582 = scmp.le.s32.totalorder 2, %s28
      // Predicated region
      $region93: #{tpu_custom_call.1} parent=5 // pred_check
        %p1583 = pneg %p1582
      $region94: #{tpu_custom_call.1} parent=5 // pred_check_branch
        %1585 = sbr.rel (%p1583) target = $region96
      $region95: #{tpu_custom_call.1} parent=5 // pred_region
        %s1586 = ssub.s32 %s28, 2
        // Predicated region
        $region97: #{tpu_custom_call.1} parent=95 // pred_check
          %p1587 = pneg %p393
        $region98: #{tpu_custom_call.1} parent=95 // pred_check_branch
          %1589 = sbr.rel (%p1587) target = $region100
        $region99: #{tpu_custom_call.1} parent=95 // pred_region
          %s1590 = sand.u32 %s378, 1
          %s1591 = scalar_lea.sflag [#allocation4], %s1590
          %s1592 = sand.u32 %s378, 1
          %s1593 = smul.addr %s1592, 8
          %s1594 = scalar_lea.vmem [#allocation7], %s1593
          %1596 = dma.done %s1591, 128
        $region100: #{tpu_custom_call.1} parent=95 // pred_fallthru
          _
      $region96: #{tpu_custom_call.1} parent=5 // pred_fallthru
        _
    $region6: #{tpu_custom_call.1} parent=1 // loop_footer
      %s32 = sadd.s32 1, %s28
    $region7: #{tpu_custom_call.1} parent=1 // loop_footer_branch
      %27 = sbr.rel target = $region3
    $region8: #{tpu_custom_call.1} parent=1 // loop_exit
      _
    %1597 = vsyncpa [#allocation3], 1
    %s1598 = scalar_lea.sflag [#allocation3], 1
    %1599 = vsyncpa %s1598, 1
    %1600 = vsyncpa [#allocation6], 1
    %1601 = vsyncpa [#allocation4], 1
    %s1602 = scalar_lea.sflag [#allocation4], 1
    %1603 = vsyncpa %s1602, 1

// kernel: tpu_custom_call.1
$region0: #{tpu_custom_call.1}
  #allocation0 [shape = 'u32[]', space=smem, size = 0x4, offset = 0x4, fixed_abs, tag = 'smem constant byte address 0x4 - core index']
  #allocation1 [shape = 'u32[72,128]{1,0:T(1,128)}', space=vmem, size = 0x9000, scoped, tag = 'internal scratch']
  %s0 = inlined_call_operand.hbm [shape: f32[2,8,32], index: 0, kind: input, shape index: {}]
  %s1 = inlined_call_operand.vmem [shape: f32[32,32], index: 1, kind: input, shape index: {}]
  %s2 = inlined_call_operand.vmem [shape: f32[1,32], index: 2, kind: input, shape index: {}]
  %s3 = inlined_call_operand.vmem [shape: f32[32,64], index: 3, kind: input, shape index: {}]
  %s4 = inlined_call_operand.vmem [shape: f32[1,64], index: 4, kind: input, shape index: {}]
  %s5 = inlined_call_operand.vmem [shape: f32[32,32], index: 5, kind: input, shape index: {}]
  %s6 = inlined_call_operand.vmem [shape: f32[1,32], index: 6, kind: input, shape index: {}]
  %s7 = inlined_call_operand.hbm [shape: f32[32,64], index: 7, kind: input, shape index: {}]
  %s8 = inlined_call_operand.vmem [shape: f32[1,64], index: 8, kind: input, shape index: {}]
  %s9 = inlined_call_operand.vmem [shape: f32[64,32], index: 9, kind: input, shape index: {}]
  %s10 = inlined_call_operand.vmem [shape: f32[1,32], index: 10, kind: input, shape index: {}]
  %s11 = inlined_call_operand.vmem [shape: f32[1,32], index: 11, kind: input, shape index: {}]
  %s12 = inlined_call_operand.vmem [shape: f32[1,32], index: 12, kind: input, shape index: {}]
  %s13 = inlined_call_operand.vmem [shape: f32[1,32], index: 13, kind: input, shape index: {}]
  %s14 = inlined_call_operand.vmem [shape: f32[1,32], index: 14, kind: input, shape index: {}]
  %s15 = inlined_call_operand.hbm [shape: f32[2,8,32], index: 15, kind: output, shape index: {}]
  %s16 = sld [smem:[#allocation0]]
  $region101: #{tpu_custom_call.1} parent=0
    _
  %s18 = ssub.s32 1, %s16
  %s19 = scalar_select 0, %s18, %s16
  $region1: #{tpu_custom_call.1} parent=0
    #allocation2 [shape = 'u8[8192]{0}', space=vmem, size = 0x2000, scoped, tag = 'input window, operand 0']
    #allocation3 [shape = 's32[2]{0}', space=sflag, size = 0x8, scoped, tag = 'scoped memory for tpu_custom_call.1']
    #allocation4 [shape = 's32[2]{0}', space=sflag, size = 0x8, scoped, tag = 'scoped memory for tpu_custom_call.1']
    #allocation5 [shape = 'u8[16384]{0}', space=vmem, size = 0x4000, scoped, tag = 'input window, operand 7, single buffered']
    #allocation6 [shape = 's32[1]{0}', space=sflag, size = 0x4, scoped, tag = 'scoped memory for tpu_custom_call.1']
    #allocation7 [shape = 'u8[8192]{0}', space=vmem, size = 0x2000, scoped, tag = 'output window, operand 0']
    %20 = vsyncpa [#allocation3], 0
    %s21 = scalar_lea.sflag [#allocation3], 1
    %22 = vsyncpa %s21, 0
    %23 = vsyncpa [#allocation6], 0
    %24 = vsyncpa [#allocation4], 0
    %s25 = scalar_lea.sflag [#allocation4], 1
    %26 = vsyncpa %s25, 0
    loop: start=0, step=1, limit=4
    $region2: #{tpu_custom_call.1} parent=1 // loop_pre_header
      _
    $region3: #{tpu_custom_call.1} parent=1 // loop_header
      %s28 = sphi 0, %s32
      %p29 = scmp.ge.s32.totalorder %s28, 4
      %s35 = sphi 0, %s47
      %s36 = sphi 0, %s43
      %s37 = sphi 0, %s35
      %s38 = sphi 0, %s36
      %s39 = sphi 0, %s37
      %s40 = sphi 0, %s38
      %s52 = sphi 0, %s54
      %s55 = sphi 0, %s52
      %s56 = sphi 0, %s55
      %s72 = sphi 0, %s56
      %s76 = sphi 0, %s76
      %s78 = sphi 0, %s76
      %s79 = sphi 0, %s78
      %s93 = sphi 0, %s79
      %s97 = sphi 0, %s97
      %s99 = sphi 0, %s97
      %s100 = sphi 0, %s99
      %s114 = sphi 0, %s100
      %s118 = sphi 0, %s118
      %s120 = sphi 0, %s118
      %s121 = sphi 0, %s120
      %s135 = sphi 0, %s121
      %s139 = sphi 0, %s139
      %s141 = sphi 0, %s139
      %s142 = sphi 0, %s141
      %s156 = sphi 0, %s142
      %s160 = sphi 0, %s160
      %s162 = sphi 0, %s160
      %s163 = sphi 0, %s162
      %s177 = sphi 0, %s163
      %s181 = sphi 0, %s181
      %s183 = sphi 0, %s181
      %s184 = sphi 0, %s183
      %s198 = sphi 0, %s184
      %s202 = sphi 0, %s202
      %s204 = sphi 0, %s202
      %s205 = sphi 0, %s204
      %s219 = sphi 0, %s205
      %s223 = sphi 0, %s223
      %s225 = sphi 0, %s223
      %s226 = sphi 0, %s225
      %s240 = sphi 0, %s226
      %s244 = sphi 0, %s244
      %s246 = sphi 0, %s244
      %s247 = sphi 0, %s246
      %s261 = sphi 0, %s247
      %s265 = sphi 0, %s265
      %s267 = sphi 0, %s265
      %s268 = sphi 0, %s267
      %s282 = sphi 0, %s268
      %s286 = sphi 0, %s286
      %s288 = sphi 0, %s286
      %s289 = sphi 0, %s288
      %s303 = sphi 0, %s289
      %s307 = sphi 0, %s307
      %s309 = sphi 0, %s307
      %s310 = sphi 0, %s309
      %s324 = sphi 0, %s310
      %s328 = sphi 0, %s328
      %s330 = sphi 0, %s328
      %s331 = sphi 0, %s330
      %s345 = sphi 0, %s331
      %s349 = sphi 0, %s349
      %s351 = sphi 0, %s349
      %s352 = sphi 0, %s351
      %s366 = sphi 0, %s352
      %s374 = sphi 0, %s376
      %s377 = sphi 0, %s374
      %s378 = sphi 0, %s377
      %s394 = sphi 0, %s378
    $region4: #{tpu_custom_call.1} parent=1 // loop_header_branch
      %31 = sbr.rel (%p29) target = $region8
    $region5: #{tpu_custom_call.1} parent=1 // loop_body
      %s33 = ssub.s32 %s28, 1
      %s34 = ssub.s32 %s28, 2
      %s41 = sadd.s32 1, %s36
      %p42 = scmp.ge.s32.totalorder %s41, 1
      %s43 = scalar_select %p42, 0, %s41
      %s44 = sadd.s32 1, %s35
      %s45 = scalar_select %p42, %s44, %s35
      %p46 = scmp.ge.s32.totalorder %s45, 2
      %s47 = scalar_select %p46, 0, %s45
      %s48 = ssub.s32 %s35, %s47
      %s49 = ssub.s32 %s36, %s43
      %s50 = sor.u32 %s48, %s49
      %p51 = scmp.eq.s32.totalorder %s50, 0
      %s53 = sadd.s32 %s52, 1
      %s54 = scalar_select %p51, %s52, %s53
      %p57 = pneg %p51
      %p58 = scmp.eq.s32.totalorder %s28, 1
      %p59 = por %p57, %p58
      %p60 = scmp.ne.s32.totalorder %s52, %s55
      %p61 = scmp.eq.s32.totalorder %s28, 0
      %p62 = por %p60, %p61
      %p63 = scmp.ne.s32.totalorder %s52, %s55
      %p64 = scmp.eq.s32.totalorder %s33, 1
      %p65 = por %p63, %p64
      %p66 = scmp.ne.s32.totalorder %s55, %s56
      %p67 = scmp.eq.s32.totalorder %s33, 0
      %p68 = por %p66, %p67
      %p69 = scmp.ne.s32.totalorder %s55, %s56
      %p70 = scmp.eq.s32.totalorder %s34, 1
      %p71 = por %p69, %p70
      %p73 = scmp.ne.s32.totalorder %s56, %s72
      %p74 = scmp.eq.s32.totalorder %s34, 0
      %p75 = por %p73, %p74
      %s77 = sadd.s32 %s76, 1
      %p80 = scmp.eq.s32.totalorder %s28, 1
      %p81 = scmp.ne.s32.totalorder %s76, %s78
      %p82 = scmp.eq.s32.totalorder %s28, 0
      %p83 = por %p81, %p82
      %p84 = scmp.ne.s32.totalorder %s76, %s78
      %p85 = scmp.eq.s32.totalorder %s33, 1
      %p86 = por %p84, %p85
      %p87 = scmp.ne.s32.totalorder %s78, %s79
      %p88 = scmp.eq.s32.totalorder %s33, 0
      %p89 = por %p87, %p88
      %p90 = scmp.ne.s32.totalorder %s78, %s79
      %p91 = scmp.eq.s32.totalorder %s34, 1
      %p92 = por %p90, %p91
      %p94 = scmp.ne.s32.totalorder %s79, %s93
      %p95 = scmp.eq.s32.totalorder %s34, 0
      %p96 = por %p94, %p95
      %s98 = sadd.s32 %s97, 1
      %p101 = scmp.eq.s32.totalorder %s28, 1
      %p102 = scmp.ne.s32.totalorder %s97, %s99
      %p103 = scmp.eq.s32.totalorder %s28, 0
      %p104 = por %p102, %p103
      %p105 = scmp.ne.s32.totalorder %s97, %s99
      %p106 = scmp.eq.s32.totalorder %s33, 1
      %p107 = por %p105, %p106
      %p108 = scmp.ne.s32.totalorder %s99, %s100
      %p109 = scmp.eq.s32.totalorder %s33, 0
      %p110 = por %p108, %p109
      %p111 = scmp.ne.s32.totalorder %s99, %s100
      %p112 = scmp.eq.s32.totalorder %s34, 1
      %p113 = por %p111, %p112
      %p115 = scmp.ne.s32.totalorder %s100, %s114
      %p116 = scmp.eq.s32.totalorder %s34, 0
      %p117 = por %p115, %p116
      %s119 = sadd.s32 %s118, 1
      %p122 = scmp.eq.s32.totalorder %s28, 1
      %p123 = scmp.ne.s32.totalorder %s118, %s120
      %p124 = scmp.eq.s32.totalorder %s28, 0
      %p125 = por %p123, %p124
      %p126 = scmp.ne.s32.totalorder %s118, %s120
      %p127 = scmp.eq.s32.totalorder %s33, 1
      %p128 = por %p126, %p127
      %p129 = scmp.ne.s32.totalorder %s120, %s121
      %p130 = scmp.eq.s32.totalorder %s33, 0
      %p131 = por %p129, %p130
      %p132 = scmp.ne.s32.totalorder %s120, %s121
      %p133 = scmp.eq.s32.totalorder %s34, 1
      %p134 = por %p132, %p133
      %p136 = scmp.ne.s32.totalorder %s121, %s135
      %p137 = scmp.eq.s32.totalorder %s34, 0
      %p138 = por %p136, %p137
      %s140 = sadd.s32 %s139, 1
      %p143 = scmp.eq.s32.totalorder %s28, 1
      %p144 = scmp.ne.s32.totalorder %s139, %s141
      %p145 = scmp.eq.s32.totalorder %s28, 0
      %p146 = por %p144, %p145
      %p147 = scmp.ne.s32.totalorder %s139, %s141
      %p148 = scmp.eq.s32.totalorder %s33, 1
      %p149 = por %p147, %p148
      %p150 = scmp.ne.s32.totalorder %s141, %s142
      %p151 = scmp.eq.s32.totalorder %s33, 0
      %p152 = por %p150, %p151
      %p153 = scmp.ne.s32.totalorder %s141, %s142
      %p154 = scmp.eq.s32.totalorder %s34, 1
      %p155 = por %p153, %p154
      %p157 = scmp.ne.s32.totalorder %s142, %s156
      %p158 = scmp.eq.s32.totalorder %s34, 0
      %p159 = por %p157, %p158
      %s161 = sadd.s32 %s160, 1
      %p164 = scmp.eq.s32.totalorder %s28, 1
      %p165 = scmp.ne.s32.totalorder %s160, %s162
      %p166 = scmp.eq.s32.totalorder %s28, 0
      %p167 = por %p165, %p166
      %p168 = scmp.ne.s32.totalorder %s160, %s162
      %p169 = scmp.eq.s32.totalorder %s33, 1
      %p170 = por %p168, %p169
      %p171 = scmp.ne.s32.totalorder %s162, %s163
      %p172 = scmp.eq.s32.totalorder %s33, 0
      %p173 = por %p171, %p172
      %p174 = scmp.ne.s32.totalorder %s162, %s163
      %p175 = scmp.eq.s32.totalorder %s34, 1
      %p176 = por %p174, %p175
      %p178 = scmp.ne.s32.totalorder %s163, %s177
      %p179 = scmp.eq.s32.totalorder %s34, 0
      %p180 = por %p178, %p179
      %s182 = sadd.s32 %s181, 1
      %p185 = scmp.eq.s32.totalorder %s28, 1
      %p186 = scmp.ne.s32.totalorder %s181, %s183
      %p187 = scmp.eq.s32.totalorder %s28, 0
      %p188 = por %p186, %p187
      %p189 = scmp.ne.s32.totalorder %s181, %s183
      %p190 = scmp.eq.s32.totalorder %s33, 1
      %p191 = por %p189, %p190
      %p192 = scmp.ne.s32.totalorder %s183, %s184
      %p193 = scmp.eq.s32.totalorder %s33, 0
      %p194 = por %p192, %p193
      %p195 = scmp.ne.s32.totalorder %s183, %s184
      %p196 = scmp.eq.s32.totalorder %s34, 1
      %p197 = por %p195, %p196
      %p199 = scmp.ne.s32.totalorder %s184, %s198
      %p200 = scmp.eq.s32.totalorder %s34, 0
      %p201 = por %p199, %p200
      %s203 = sadd.s32 %s202, 1
      %p206 = scmp.eq.s32.totalorder %s28, 1
      %p207 = scmp.ne.s32.totalorder %s202, %s204
      %p208 = scmp.eq.s32.totalorder %s28, 0
      %p209 = por %p207, %p208
      %p210 = scmp.ne.s32.totalorder %s202, %s204
      %p211 = scmp.eq.s32.totalorder %s33, 1
      %p212 = por %p210, %p211
      %p213 = scmp.ne.s32.totalorder %s204, %s205
      %p214 = scmp.eq.s32.totalorder %s33, 0
      %p215 = por %p213, %p214
      %p216 = scmp.ne.s32.totalorder %s204, %s205
      %p217 = scmp.eq.s32.totalorder %s34, 1
      %p218 = por %p216, %p217
      %p220 = scmp.ne.s32.totalorder %s205, %s219
      %p221 = scmp.eq.s32.totalorder %s34, 0
      %p222 = por %p220, %p221
      %s224 = sadd.s32 %s223, 1
      %p227 = scmp.eq.s32.totalorder %s28, 1
      %p228 = scmp.ne.s32.totalorder %s223, %s225
      %p229 = scmp.eq.s32.totalorder %s28, 0
      %p230 = por %p228, %p229
      %p231 = scmp.ne.s32.totalorder %s223, %s225
      %p232 = scmp.eq.s32.totalorder %s33, 1
      %p233 = por %p231, %p232
      %p234 = scmp.ne.s32.totalorder %s225, %s226
      %p235 = scmp.eq.s32.totalorder %s33, 0
      %p236 = por %p234, %p235
      %p237 = scmp.ne.s32.totalorder %s225, %s226
      %p238 = scmp.eq.s32.totalorder %s34, 1
      %p239 = por %p237, %p238
      %p241 = scmp.ne.s32.totalorder %s226, %s240
      %p242 = scmp.eq.s32.totalorder %s34, 0
      %p243 = por %p241, %p242
      %s245 = sadd.s32 %s244, 1
      %p248 = scmp.eq.s32.totalorder %s28, 1
      %p249 = scmp.ne.s32.totalorder %s244, %s246
      %p250 = scmp.eq.s32.totalorder %s28, 0
      %p251 = por %p249, %p250
      %p252 = scmp.ne.s32.totalorder %s244, %s246
      %p253 = scmp.eq.s32.totalorder %s33, 1
      %p254 = por %p252, %p253
      %p255 = scmp.ne.s32.totalorder %s246, %s247
      %p256 = scmp.eq.s32.totalorder %s33, 0
      %p257 = por %p255, %p256
      %p258 = scmp.ne.s32.totalorder %s246, %s247
      %p259 = scmp.eq.s32.totalorder %s34, 1
      %p260 = por %p258, %p259
      %p262 = scmp.ne.s32.totalorder %s247, %s261
      %p263 = scmp.eq.s32.totalorder %s34, 0
      %p264 = por %p262, %p263
      %s266 = sadd.s32 %s265, 1
      %p269 = scmp.eq.s32.totalorder %s28, 1
      %p270 = scmp.ne.s32.totalorder %s265, %s267
      %p271 = scmp.eq.s32.totalorder %s28, 0
      %p272 = por %p270, %p271
      %p273 = scmp.ne.s32.totalorder %s265, %s267
      %p274 = scmp.eq.s32.totalorder %s33, 1
      %p275 = por %p273, %p274
      %p276 = scmp.ne.s32.totalorder %s267, %s268
      %p277 = scmp.eq.s32.totalorder %s33, 0
      %p278 = por %p276, %p277
      %p279 = scmp.ne.s32.totalorder %s267, %s268
      %p280 = scmp.eq.s32.totalorder %s34, 1
      %p281 = por %p279, %p280
      %p283 = scmp.ne.s32.totalorder %s268, %s282
      %p284 = scmp.eq.s32.totalorder %s34, 0
      %p285 = por %p283, %p284
      %s287 = sadd.s32 %s286, 1
      %p290 = scmp.eq.s32.totalorder %s28, 1
      %p291 = scmp.ne.s32.totalorder %s286, %s288
      %p292 = scmp.eq.s32.totalorder %s28, 0
      %p293 = por %p291, %p292
      %p294 = scmp.ne.s32.totalorder %s286, %s288
      %p295 = scmp.eq.s32.totalorder %s33, 1
      %p296 = por %p294, %p295
      %p297 = scmp.ne.s32.totalorder %s288, %s289
      %p298 = scmp.eq.s32.totalorder %s33, 0
      %p299 = por %p297, %p298
      %p300 = scmp.ne.s32.totalorder %s288, %s289
      %p301 = scmp.eq.s32.totalorder %s34, 1
      %p302 = por %p300, %p301
      %p304 = scmp.ne.s32.totalorder %s289, %s303
      %p305 = scmp.eq.s32.totalorder %s34, 0
      %p306 = por %p304, %p305
      %s308 = sadd.s32 %s307, 1
      %p311 = scmp.eq.s32.totalorder %s28, 1
      %p312 = scmp.ne.s32.totalorder %s307, %s309
      %p313 = scmp.eq.s32.totalorder %s28, 0
      %p314 = por %p312, %p313
      %p315 = scmp.ne.s32.totalorder %s307, %s309
      %p316 = scmp.eq.s32.totalorder %s33, 1
      %p317 = por %p315, %p316
      %p318 = scmp.ne.s32.totalorder %s309, %s310
      %p319 = scmp.eq.s32.totalorder %s33, 0
      %p320 = por %p318, %p319
      %p321 = scmp.ne.s32.totalorder %s309, %s310
      %p322 = scmp.eq.s32.totalorder %s34, 1
      %p323 = por %p321, %p322
      %p325 = scmp.ne.s32.totalorder %s310, %s324
      %p326 = scmp.eq.s32.totalorder %s34, 0
      %p327 = por %p325, %p326
      %s329 = sadd.s32 %s328, 1
      %p332 = scmp.eq.s32.totalorder %s28, 1
      %p333 = scmp.ne.s32.totalorder %s328, %s330
      %p334 = scmp.eq.s32.totalorder %s28, 0
      %p335 = por %p333, %p334
      %p336 = scmp.ne.s32.totalorder %s328, %s330
      %p337 = scmp.eq.s32.totalorder %s33, 1
      %p338 = por %p336, %p337
      %p339 = scmp.ne.s32.totalorder %s330, %s331
      %p340 = scmp.eq.s32.totalorder %s33, 0
      %p341 = por %p339, %p340
      %p342 = scmp.ne.s32.totalorder %s330, %s331
      %p343 = scmp.eq.s32.totalorder %s34, 1
      %p344 = por %p342, %p343
      %p346 = scmp.ne.s32.totalorder %s331, %s345
      %p347 = scmp.eq.s32.totalorder %s34, 0
      %p348 = por %p346, %p347
      %s350 = sadd.s32 %s349, 1
      %p353 = scmp.eq.s32.totalorder %s28, 1
      %p354 = scmp.ne.s32.totalorder %s349, %s351
      %p355 = scmp.eq.s32.totalorder %s28, 0
      %p356 = por %p354, %p355
      %p357 = scmp.ne.s32.totalorder %s349, %s351
      %p358 = scmp.eq.s32.totalorder %s33, 1
      %p359 = por %p357, %p358
      %p360 = scmp.ne.s32.totalorder %s351, %s352
      %p361 = scmp.eq.s32.totalorder %s33, 0
      %p362 = por %p360, %p361
      %p363 = scmp.ne.s32.totalorder %s351, %s352
      %p364 = scmp.eq.s32.totalorder %s34, 1
      %p365 = por %p363, %p364
      %p367 = scmp.ne.s32.totalorder %s352, %s366
      %p368 = scmp.eq.s32.totalorder %s34, 0
      %p369 = por %p367, %p368
      %s370 = ssub.s32 %s35, %s47
      %s371 = ssub.s32 %s36, %s43
      %s372 = sor.u32 %s370, %s371
      %p373 = scmp.eq.s32.totalorder %s372, 0
      %s375 = sadd.s32 %s374, 1
      %s376 = scalar_select %p373, %s374, %s375
      %p379 = pneg %p373
      %p380 = scmp.eq.s32.totalorder %s28, 1
      %p381 = por %p379, %p380
      %p382 = scmp.ne.s32.totalorder %s374, %s377
      %p383 = scmp.eq.s32.totalorder %s28, 0
      %p384 = por %p382, %p383
      %p385 = scmp.ne.s32.totalorder %s374, %s377
      %p386 = scmp.eq.s32.totalorder %s33, 1
      %p387 = por %p385, %p386
      %p388 = scmp.ne.s32.totalorder %s377, %s378
      %p389 = scmp.eq.s32.totalorder %s33, 0
      %p390 = por %p388, %p389
      %p391 = scmp.ne.s32.totalorder %s377, %s378
      %p392 = scmp.eq.s32.totalorder %s34, 1
      %p393 = por %p391, %p392
      %p395 = scmp.ne.s32.totalorder %s378, %s394
      %p396 = scmp.eq.s32.totalorder %s34, 0
      %p397 = por %p395, %p396
      %p398 = scmp.le.s32.totalorder 1, %s28
      %p399 = scmp.lt.s32.totalorder %s28, 3
      %p400 = pnand %p398, %p399
      %p401 = pneg %p400
      // Predicated region
      $region9: #{tpu_custom_call.1} parent=5 // pred_check
        _
      $region10: #{tpu_custom_call.1} parent=5 // pred_check_branch
        %403 = sbr.rel (%p400) target = $region12
      $region11: #{tpu_custom_call.1} parent=5 // pred_region
        %s404 = ssub.s32 %s28, 1
        // Predicated region
        $region13: #{tpu_custom_call.1} parent=11 // pred_check
          %p405 = pneg %p89
        $region14: #{tpu_custom_call.1} parent=11 // pred_check_branch
          %407 = sbr.rel (%p405) target = $region16
        $region15: #{tpu_custom_call.1} parent=11 // pred_region
          _
        $region16: #{tpu_custom_call.1} parent=11 // pred_fallthru
          _
        // Predicated region
        $region17: #{tpu_custom_call.1} parent=11 // pred_check
          %p408 = pneg %p110
        $region18: #{tpu_custom_call.1} parent=11 // pred_check_branch
          %410 = sbr.rel (%p408) target = $region20
        $region19: #{tpu_custom_call.1} parent=11 // pred_region
          _
        $region20: #{tpu_custom_call.1} parent=11 // pred_fallthru
          _
        // Predicated region
        $region21: #{tpu_custom_call.1} parent=11 // pred_check
          %p411 = pneg %p131
        $region22: #{tpu_custom_call.1} parent=11 // pred_check_branch
          %413 = sbr.rel (%p411) target = $region24
        $region23: #{tpu_custom_call.1} parent=11 // pred_region
          _
        $region24: #{tpu_custom_call.1} parent=11 // pred_fallthru
          _
        // Predicated region
        $region25: #{tpu_custom_call.1} parent=11 // pred_check
          %p414 = pneg %p152
        $region26: #{tpu_custom_call.1} parent=11 // pred_check_branch
          %416 = sbr.rel (%p414) target = $region28
        $region27: #{tpu_custom_call.1} parent=11 // pred_region
          _
        $region28: #{tpu_custom_call.1} parent=11 // pred_fallthru
          _
        // Predicated region
        $region29: #{tpu_custom_call.1} parent=11 // pred_check
          %p417 = pneg %p173
        $region30: #{tpu_custom_call.1} parent=11 // pred_check_branch
          %419 = sbr.rel (%p417) target = $region32
        $region31: #{tpu_custom_call.1} parent=11 // pred_region
          _
        $region32: #{tpu_custom_call.1} parent=11 // pred_fallthru
          _
        // Predicated region
        $region33: #{tpu_custom_call.1} parent=11 // pred_check
          %p420 = pneg %p194
        $region34: #{tpu_custom_call.1} parent=11 // pred_check_branch
          %422 = sbr.rel (%p420) target = $region36
        $region35: #{tpu_custom_call.1} parent=11 // pred_region
          _
        $region36: #{tpu_custom_call.1} parent=11 // pred_fallthru
          _
        // Predicated region
        $region37: #{tpu_custom_call.1} parent=11 // pred_check
          %p423 = pneg %p215
        $region38: #{tpu_custom_call.1} parent=11 // pred_check_branch
          %425 = sbr.rel (%p423) target = $region40
        $region39: #{tpu_custom_call.1} parent=11 // pred_region
          %427 = vsyncadd [#allocation6], 0
          %s428 = sshll.u32 %s7, 4
          %s429 = int_to_ptr.hbm [resolvable:$true] %s428
          %s430 = sshll.u32 [#allocation5], 4
          %s431 = int_to_ptr.vmem [resolvable:$true] %s430
          %436 = dma.hbm_to_vmem [thread:$0]  %s429, 512, %s431, [#allocation6], 128, 128, 8
        $region40: #{tpu_custom_call.1} parent=11 // pred_fallthru
          _
        // Predicated region
        $region41: #{tpu_custom_call.1} parent=11 // pred_check
          %p437 = pneg %p236
        $region42: #{tpu_custom_call.1} parent=11 // pred_check_branch
          %439 = sbr.rel (%p437) target = $region44
        $region43: #{tpu_custom_call.1} parent=11 // pred_region
          _
        $region44: #{tpu_custom_call.1} parent=11 // pred_fallthru
          _
        // Predicated region
        $region45: #{tpu_custom_call.1} parent=11 // pred_check
          %p440 = pneg %p257
        $region46: #{tpu_custom_call.1} parent=11 // pred_check_branch
          %442 = sbr.rel (%p440) target = $region48
        $region47: #{tpu_custom_call.1} parent=11 // pred_region
          _
        $region48: #{tpu_custom_call.1} parent=11 // pred_fallthru
          _
        // Predicated region
        $region49: #{tpu_custom_call.1} parent=11 // pred_check
          %p443 = pneg %p278
        $region50: #{tpu_custom_call.1} parent=11 // pred_check_branch
          %445 = sbr.rel (%p443) target = $region52
        $region51: #{tpu_custom_call.1} parent=11 // pred_region
          _
        $region52: #{tpu_custom_call.1} parent=11 // pred_fallthru
          _
        // Predicated region
        $region53: #{tpu_custom_call.1} parent=11 // pred_check
          %p446 = pneg %p299
        $region54: #{tpu_custom_call.1} parent=11 // pred_check_branch
          %448 = sbr.rel (%p446) target = $region56
        $region55: #{tpu_custom_call.1} parent=11 // pred_region
          _
        $region56: #{tpu_custom_call.1} parent=11 // pred_fallthru
          _
        // Predicated region
        $region57: #{tpu_custom_call.1} parent=11 // pred_check
          %p449 = pneg %p320
        $region58: #{tpu_custom_call.1} parent=11 // pred_check_branch
          %451 = sbr.rel (%p449) target = $region60
        $region59: #{tpu_custom_call.1} parent=11 // pred_region
          _
        $region60: #{tpu_custom_call.1} parent=11 // pred_fallthru
          _
        // Predicated region
        $region61: #{tpu_custom_call.1} parent=11 // pred_check
          %p452 = pneg %p341
        $region62: #{tpu_custom_call.1} parent=11 // pred_check_branch
          %454 = sbr.rel (%p452) target = $region64
        $region63: #{tpu_custom_call.1} parent=11 // pred_region
          _
        $region64: #{tpu_custom_call.1} parent=11 // pred_fallthru
          _
        // Predicated region
        $region65: #{tpu_custom_call.1} parent=11 // pred_check
          %p455 = pneg %p362
        $region66: #{tpu_custom_call.1} parent=11 // pred_check_branch
          %457 = sbr.rel (%p455) target = $region68
        $region67: #{tpu_custom_call.1} parent=11 // pred_region
          _
        $region68: #{tpu_custom_call.1} parent=11 // pred_fallthru
          _
      $region12: #{tpu_custom_call.1} parent=5 // pred_fallthru
        _
      %p458 = scmp.lt.s32.totalorder %s28, 2
      // Predicated region
      $region69: #{tpu_custom_call.1} parent=5 // pred_check
        %p459 = pneg %p458
      $region70: #{tpu_custom_call.1} parent=5 // pred_check_branch
        %461 = sbr.rel (%p459) target = $region72
      $region71: #{tpu_custom_call.1} parent=5 // pred_region
        // Predicated region
        $region73: #{tpu_custom_call.1} parent=71 // pred_check
          %p462 = pneg %p62
        $region74: #{tpu_custom_call.1} parent=71 // pred_check_branch
          %464 = sbr.rel (%p462) target = $region76
        $region75: #{tpu_custom_call.1} parent=71 // pred_region
          %s465 = sand.u32 %s52, 1
          %s466 = scalar_lea.sflag [#allocation3], %s465
          %s467 = sand.u32 %s52, 1
          %s468 = smul.addr %s467, 8
          %s469 = scalar_lea.vmem [#allocation2], %s468
          %471 = vsyncadd %s466, 0
          %s472 = sadd.s32 %s36, %s35
          %s473 = smul.addr %s472, 8
          %s474 = scalar_lea.hbm %s0, %s473
          %s476 = sshll.u32 %s474, 4
          %s477 = int_to_ptr.hbm [resolvable:$true] %s476
          %s478 = sshll.u32 %s469, 4
          %s479 = int_to_ptr.vmem [resolvable:$true] %s478
          %481 = dma.hbm_to_vmem [thread:$0]  %s477, 128, %s479, %s466
        $region76: #{tpu_custom_call.1} parent=71 // pred_fallthru
          _
      $region72: #{tpu_custom_call.1} parent=5 // pred_fallthru
        _
      %p482 = scmp.le.s32.totalorder 1, %s28
      %p483 = scmp.lt.s32.totalorder %s28, 3
      %p484 = pnand %p482, %p483
      %p485 = pneg %p484
      // Predicated region
      $region77: #{tpu_custom_call.1} parent=5 // pred_check
        _
      $region78: #{tpu_custom_call.1} parent=5 // pred_check_branch
        %487 = sbr.rel (%p484) target = $region80
      $region79: #{tpu_custom_call.1} parent=5 // pred_region
        %s488 = ssub.s32 %s28, 1
        %s489 = sand.u32 %s55, 1
        %s490 = scalar_lea.sflag [#allocation3], %s489
        %s491 = sand.u32 %s55, 1
        %s492 = smul.addr %s491, 8
        %s493 = scalar_lea.vmem [#allocation2], %s492
        // Predicated region
        $region81: #{tpu_custom_call.1} parent=79 // pred_check
          %p494 = pneg %p68
        $region82: #{tpu_custom_call.1} parent=79 // pred_check_branch
          %496 = sbr.rel (%p494) target = $region84
        $region83: #{tpu_custom_call.1} parent=79 // pred_region
          %498 = dma.done %s490, 128
        $region84: #{tpu_custom_call.1} parent=79 // pred_fallthru
          _
        // Predicated region
        $region85: #{tpu_custom_call.1} parent=79 // pred_check
          %p499 = pneg %p215
        $region86: #{tpu_custom_call.1} parent=79 // pred_check_branch
          %501 = sbr.rel (%p499) target = $region88
        $region87: #{tpu_custom_call.1} parent=79 // pred_region
          %503 = dma.done [#allocation6], 512
        $region88: #{tpu_custom_call.1} parent=79 // pred_fallthru
          _
        %s504 = sand.u32 %s55, 1
        %s505 = scalar_lea.sflag [#allocation3], %s504
        %s506 = sand.u32 %s55, 1
        %s507 = smul.addr %s506, 8
        %s508 = scalar_lea.vmem [#allocation2], %s507
        %p509 = pneg %p68
        %p510 = pneg %p65
        %p511 = pneg %p89
        %p512 = pneg %p86
        %p513 = pneg %p110
        %p514 = pneg %p107
        %p515 = pneg %p131
        %p516 = pneg %p128
        %p517 = pneg %p152
        %p518 = pneg %p149
        %p519 = pneg %p173
        %p520 = pneg %p170
        %p521 = pneg %p194
        %p522 = pneg %p191
        %p523 = pneg %p215
        %p524 = pneg %p212
        %p525 = pneg %p236
        %p526 = pneg %p233
        %p527 = pneg %p257
        %p528 = pneg %p254
        %p529 = pneg %p278
        %p530 = pneg %p275
        %p531 = pneg %p299
        %p532 = pneg %p296
        %p533 = pneg %p320
        %p534 = pneg %p317
        %p535 = pneg %p341
        %p536 = pneg %p338
        %p537 = pneg %p362
        %p538 = pneg %p359
        %p539 = pneg %p390
        %p540 = pneg %p387
        %s541 = sand.u32 %s377, 1
        %s542 = scalar_lea.sflag [#allocation4], %s541
        %s543 = sand.u32 %s377, 1
        %s544 = smul.addr %s543, 8
        %s545 = scalar_lea.vmem [#allocation7], %s544
        %v546 = vld [vmem:[%s493] sm:$0xff]
        %v547 = vld [vmem:[%s1] sm:$0xff]
        %v548 = vld [vmem:[%s1 + $0x8] sm:$0xff]
        %v549 = vld [vmem:[%s1 + $0x10] sm:$0xff]
        %v550 = vld [vmem:[%s1 + $0x18] sm:$0xff]
        %v551 = vld [vmem:[%s2] sm:$0x1]
        %v553 = vperm.slane %v551, 0
        %vm555 = vcmask 261120
        %v557 = vsel %vm555, %v546, 0
        %559 = vmatpush.msra.mxu0 0.0
        %560 = vmatpush.msra.mxu0 0.0
        %561 = vmatpush.msra.mxu0 0.0
        %562 = vmatpush.msra.mxu0 0.0
        %563 = vmatpush.msra.mxu0 0.0
        %564 = vmatpush.msra.mxu0 0.0
        %565 = vmatpush.msra.mxu0 0.0
        %566 = vmatpush.msra.mxu0 0.0
        %567 = vmatpush.msra.mxu0 0.0
        %568 = vmatpush.msra.mxu0 0.0
        %569 = vmatpush.msra.mxu0 0.0
        %570 = vmatpush.msra.mxu0 0.0
        %571 = vmatpush.msra.mxu0 %v550
        %572 = vmatpush.msra.mxu0 %v549
        %573 = vmatpush.msra.mxu0 %v548
        %574 = vmatpush.msra.mxu0 %v547
        %575 = vmatmul.f32.gmra.mxu0 %v557
        %v576 = vpop.f32.mrf.mxu0
        %v577 = vadd.f32 %v553, %v576
        %578 = vdwg.mxu0
        %v579 = vld [vmem:[%s3] sm:$0xff]
        %v580 = vld [vmem:[%s3 + $0x8] sm:$0xff]
        %v581 = vld [vmem:[%s3 + $0x10] sm:$0xff]
        %v582 = vld [vmem:[%s3 + $0x18] sm:$0xff]
        %v583 = vld [vmem:[%s4] sm:$0x1]
        %v585 = vperm.slane %v583, 0
        %587 = vmatpush.msra.mxu0 0.0
        %588 = vmatpush.msra.mxu0 0.0
        %589 = vmatpush.msra.mxu0 0.0
        %590 = vmatpush.msra.mxu0 0.0
        %591 = vmatpush.msra.mxu0 0.0
        %592 = vmatpush.msra.mxu0 0.0
        %593 = vmatpush.msra.mxu0 0.0
        %594 = vmatpush.msra.mxu0 0.0
        %595 = vmatpush.msra.mxu0 0.0
        %596 = vmatpush.msra.mxu0 0.0
        %597 = vmatpush.msra.mxu0 0.0
        %598 = vmatpush.msra.mxu0 0.0
        %599 = vmatpush.msra.mxu0 %v582
        %600 = vmatpush.msra.mxu0 %v581
        %601 = vmatpush.msra.mxu0 %v580
        %602 = vmatpush.msra.mxu0 %v579
        %603 = vmatmul.f32.gmra.mxu0 %v557
        %v604 = vpop.f32.mrf.mxu0
        %v605 = vadd.f32 %v585, %v604
        %606 = vdwg.mxu0
        %608 = vrot.lane.b32.xlu0 %v577, 120
        %v609 = vpop.permute.xlu0 %608
        %611 = vrot.lane.b32.xlu0 %v577, 112
        %v612 = vpop.permute.xlu0 %611
        %614 = vrot.lane.b32.xlu0 %v577, 104
        %v615 = vpop.permute.xlu0 %614
        %v617 = vrot.slane %v612, 4
        %vm618 = vcmask 1047556
        %v619 = vsel %vm618, %v617, %v577
        %v620 = vrot.slane %v577, 4
        %v621 = vsel %vm618, %v612, %v620
        %v623 = vunpack.c.l.s4 1983009808
        %v624 = vunpack.c.0.s8 %v623
        %v625 = vperm.slane %v619, %v624
        %v627 = vunpack.c.l.s4 1983009808
        %v628 = vunpack.c.0.s8 %v627
        %v629 = vperm.slane %v621, %v628
        %v630 = vrot.slane %v615, 4
        %v631 = vsel %vm618, %v630, %v609
        %v632 = vrot.slane %v609, 4
        %v633 = vsel %vm618, %v615, %v632
        %v635 = vunpack.c.l.s4 1983009808
        %v636 = vunpack.c.0.s8 %v635
        %v637 = vperm.slane %v631, %v636
        %v639 = vunpack.c.l.s4 1983009808
        %v640 = vunpack.c.0.s8 %v639
        %v641 = vperm.slane %v633, %v640
        %v642 = vrot.slane %v637, 4
        %v643 = vsel %vm618, %v642, %v625
        %v644 = vrot.slane %v625, 4
        %v645 = vsel %vm618, %v637, %v644
        %v647 = vunpack.c.l.s4 1934713408
        %v648 = vunpack.c.0.s8 %v647
        %v649 = vperm.slane %v643, %v648
        %v651 = vunpack.c.l.s4 1934713408
        %v652 = vunpack.c.0.s8 %v651
        %v653 = vperm.slane %v645, %v652
        %v654 = vrot.slane %v641, 4
        %v655 = vsel %vm618, %v654, %v629
        %v656 = vrot.slane %v629, 4
        %v657 = vsel %vm618, %v641, %v656
        %v659 = vunpack.c.l.s4 1934713408
        %v660 = vunpack.c.0.s8 %v659
        %v661 = vperm.slane %v655, %v660
        %v663 = vunpack.c.l.s4 1934713408
        %v664 = vunpack.c.0.s8 %v663
        %v665 = vperm.slane %v657, %v664
        %v666 = vrot.slane %v649, 4
        %v667 = vsel %vm618, 0.0, %v666
        %v668 = vrot.slane %v653, 4
        %v669 = vsel %vm618, 0.0, %v668
        %v670 = vrot.slane %v661, 4
        %v671 = vsel %vm618, 0.0, %v670
        %v672 = vrot.slane %v665, 4
        %v673 = vsel %vm618, 0.0, %v672
        %675 = vrot.lane.b32.xlu0 %v605, 120
        %v676 = vpop.permute.xlu0 %675
        %678 = vrot.lane.b32.xlu0 %v605, 112
        %v679 = vpop.permute.xlu0 %678
        %681 = vrot.lane.b32.xlu0 %v605, 104
        %v682 = vpop.permute.xlu0 %681
        %v684 = vrot.slane %v679, 4
        %v685 = vsel %vm618, %v684, %v605
        %v686 = vrot.slane %v605, 4
        %v687 = vsel %vm618, %v679, %v686
        %v689 = vunpack.c.l.s4 1983009808
        %v690 = vunpack.c.0.s8 %v689
        %v691 = vperm.slane %v685, %v690
        %v693 = vunpack.c.l.s4 1983009808
        %v694 = vunpack.c.0.s8 %v693
        %v695 = vperm.slane %v687, %v694
        %v696 = vrot.slane %v682, 4
        %v697 = vsel %vm618, %v696, %v676
        %v698 = vrot.slane %v676, 4
        %v699 = vsel %vm618, %v682, %v698
        %v701 = vunpack.c.l.s4 1983009808
        %v702 = vunpack.c.0.s8 %v701
        %v703 = vperm.slane %v697, %v702
        %v705 = vunpack.c.l.s4 1983009808
        %v706 = vunpack.c.0.s8 %v705
        %v707 = vperm.slane %v699, %v706
        %v708 = vrot.slane %v703, 4
        %v709 = vsel %vm618, %v708, %v691
        %v710 = vrot.slane %v691, 4
        %v711 = vsel %vm618, %v703, %v710
        %v713 = vunpack.c.l.s4 1934713408
        %v714 = vunpack.c.0.s8 %v713
        %v715 = vperm.slane %v709, %v714
        %v717 = vunpack.c.l.s4 1934713408
        %v718 = vunpack.c.0.s8 %v717
        %v719 = vperm.slane %v711, %v718
        %v720 = vrot.slane %v707, 4
        %v721 = vsel %vm618, %v720, %v695
        %v722 = vrot.slane %v695, 4
        %v723 = vsel %vm618, %v707, %v722
        %v725 = vunpack.c.l.s4 1934713408
        %v726 = vunpack.c.0.s8 %v725
        %v727 = vperm.slane %v721, %v726
        %v729 = vunpack.c.l.s4 1934713408
        %v730 = vunpack.c.0.s8 %v729
        %v731 = vperm.slane %v723, %v730
        %v732 = vrot.slane %v715, 4
        %v733 = vsel %vm618, 0.0, %v732
        %v734 = vrot.slane %v719, 4
        %v735 = vsel %vm618, 0.0, %v734
        %v736 = vrot.slane %v727, 4
        %v737 = vsel %vm618, 0.0, %v736
        %v738 = vrot.slane %v731, 4
        %v739 = vsel %vm618, 0.0, %v738
        %740 = vrot.lane.b32.xlu0 %v605, 96
        %v741 = vpop.permute.xlu0 %740
        %742 = vrot.lane.b32.xlu0 %v676, 96
        %v743 = vpop.permute.xlu0 %742
        %744 = vrot.lane.b32.xlu0 %v679, 96
        %v745 = vpop.permute.xlu0 %744
        %746 = vrot.lane.b32.xlu0 %v682, 96
        %v747 = vpop.permute.xlu0 %746
        %v752 = vrot.slane %v745, 4
        %v753 = vsel %vm618, %v752, %v741
        %v754 = vrot.slane %v741, 4
        %v755 = vsel %vm618, %v745, %v754
        %v757 = vunpack.c.l.s4 1983009808
        %v758 = vunpack.c.0.s8 %v757
        %v759 = vperm.slane %v753, %v758
        %v761 = vunpack.c.l.s4 1983009808
        %v762 = vunpack.c.0.s8 %v761
        %v763 = vperm.slane %v755, %v762
        %v764 = vrot.slane %v747, 4
        %v765 = vsel %vm618, %v764, %v743
        %v766 = vrot.slane %v743, 4
        %v767 = vsel %vm618, %v747, %v766
        %v769 = vunpack.c.l.s4 1983009808
        %v770 = vunpack.c.0.s8 %v769
        %v771 = vperm.slane %v765, %v770
        %v773 = vunpack.c.l.s4 1983009808
        %v774 = vunpack.c.0.s8 %v773
        %v775 = vperm.slane %v767, %v774
        %v776 = vrot.slane %v771, 4
        %v777 = vsel %vm618, %v776, %v759
        %v778 = vrot.slane %v759, 4
        %v779 = vsel %vm618, %v771, %v778
        %v781 = vunpack.c.l.s4 1934713408
        %v782 = vunpack.c.0.s8 %v781
        %v783 = vperm.slane %v777, %v782
        %v785 = vunpack.c.l.s4 1934713408
        %v786 = vunpack.c.0.s8 %v785
        %v787 = vperm.slane %v779, %v786
        %v788 = vrot.slane %v775, 4
        %v789 = vsel %vm618, %v788, %v763
        %v790 = vrot.slane %v763, 4
        %v791 = vsel %vm618, %v775, %v790
        %v793 = vunpack.c.l.s4 1934713408
        %v794 = vunpack.c.0.s8 %v793
        %v795 = vperm.slane %v789, %v794
        %v797 = vunpack.c.l.s4 1934713408
        %v798 = vunpack.c.0.s8 %v797
        %v799 = vperm.slane %v791, %v798
        %v800 = vrot.slane %v783, 4
        %v801 = vsel %vm618, 0.0, %v800
        %v802 = vrot.slane %v787, 4
        %v803 = vsel %vm618, 0.0, %v802
        %v804 = vrot.slane %v795, 4
        %v805 = vsel %vm618, 0.0, %v804
        %v806 = vrot.slane %v799, 4
        %v807 = vsel %vm618, 0.0, %v806
        %v808 = vsel %vm618, %v668, %v649
        %v810 = vunpack.c.l.s4 1983009808
        %v811 = vunpack.c.0.s8 %v810
        %v812 = vperm.slane %v808, %v811
        %v813 = vrot.slane %v669, 4
        %v814 = vsel %vm618, %v813, %v667
        %v816 = vunpack.c.l.s4 1983009808
        %v817 = vunpack.c.0.s8 %v816
        %v818 = vperm.slane %v814, %v817
        %v819 = vsel %vm618, %v672, %v661
        %v821 = vunpack.c.l.s4 1983009808
        %v822 = vunpack.c.0.s8 %v821
        %v823 = vperm.slane %v819, %v822
        %v824 = vrot.slane %v673, 4
        %v825 = vsel %vm618, %v824, %v671
        %v827 = vunpack.c.l.s4 1983009808
        %v828 = vunpack.c.0.s8 %v827
        %v829 = vperm.slane %v825, %v828
        %v830 = vrot.slane %v818, 4
        %v831 = vsel %vm618, %v830, %v812
        %v832 = vrot.slane %v812, 4
        %v833 = vsel %vm618, %v818, %v832
        %v835 = vunpack.c.l.s4 1934713408
        %v836 = vunpack.c.0.s8 %v835
        %v837 = vperm.slane %v831, %v836
        %v839 = vunpack.c.l.s4 1934713408
        %v840 = vunpack.c.0.s8 %v839
        %v841 = vperm.slane %v833, %v840
        %v842 = vrot.slane %v829, 4
        %v843 = vsel %vm618, %v842, %v823
        %v844 = vrot.slane %v823, 4
        %v845 = vsel %vm618, %v829, %v844
        %v847 = vunpack.c.l.s4 1934713408
        %v848 = vunpack.c.0.s8 %v847
        %v849 = vperm.slane %v843, %v848
        %v851 = vunpack.c.l.s4 1934713408
        %v852 = vunpack.c.0.s8 %v851
        %v853 = vperm.slane %v845, %v852
        %v854 = vrot.slane %v849, 4
        %v855 = vsel %vm618, %v854, %v837
        %v856 = vrot.slane %v837, 4
        %v857 = vsel %vm618, %v849, %v856
        %v858 = vrot.slane %v853, 4
        %v859 = vsel %vm618, %v858, %v841
        %v860 = vrot.slane %v841, 4
        %v861 = vsel %vm618, %v853, %v860
        %v862 = vsel %vm618, %v734, %v715
        %v864 = vunpack.c.l.s4 1983009808
        %v865 = vunpack.c.0.s8 %v864
        %v866 = vperm.slane %v862, %v865
        %v867 = vrot.slane %v735, 4
        %v868 = vsel %vm618, %v867, %v733
        %v870 = vunpack.c.l.s4 1983009808
        %v871 = vunpack.c.0.s8 %v870
        %v872 = vperm.slane %v868, %v871
        %v873 = vsel %vm618, %v738, %v727
        %v875 = vunpack.c.l.s4 1983009808
        %v876 = vunpack.c.0.s8 %v875
        %v877 = vperm.slane %v873, %v876
        %v878 = vrot.slane %v739, 4
        %v879 = vsel %vm618, %v878, %v737
        %v881 = vunpack.c.l.s4 1983009808
        %v882 = vunpack.c.0.s8 %v881
        %v883 = vperm.slane %v879, %v882
        %v884 = vrot.slane %v872, 4
        %v885 = vsel %vm618, %v884, %v866
        %v886 = vrot.slane %v866, 4
        %v887 = vsel %vm618, %v872, %v886
        %v889 = vunpack.c.l.s4 1934713408
        %v890 = vunpack.c.0.s8 %v889
        %v891 = vperm.slane %v885, %v890
        %v893 = vunpack.c.l.s4 1934713408
        %v894 = vunpack.c.0.s8 %v893
        %v895 = vperm.slane %v887, %v894
        %v896 = vrot.slane %v883, 4
        %v897 = vsel %vm618, %v896, %v877
        %v898 = vrot.slane %v877, 4
        %v899 = vsel %vm618, %v883, %v898
        %v901 = vunpack.c.l.s4 1934713408
        %v902 = vunpack.c.0.s8 %v901
        %v903 = vperm.slane %v897, %v902
        %v905 = vunpack.c.l.s4 1934713408
        %v906 = vunpack.c.0.s8 %v905
        %v907 = vperm.slane %v899, %v906
        %v908 = vrot.slane %v903, 4
        %v909 = vsel %vm618, %v908, %v891
        %v910 = vrot.slane %v891, 4
        %v911 = vsel %vm618, %v903, %v910
        %v912 = vrot.slane %v907, 4
        %v913 = vsel %vm618, %v912, %v895
        %v914 = vrot.slane %v895, 4
        %v915 = vsel %vm618, %v907, %v914
        %v916 = vsel %vm618, %v802, %v783
        %v918 = vunpack.c.l.s4 1983009808
        %v919 = vunpack.c.0.s8 %v918
        %v920 = vperm.slane %v916, %v919
        %v921 = vrot.slane %v803, 4
        %v922 = vsel %vm618, %v921, %v801
        %v924 = vunpack.c.l.s4 1983009808
        %v925 = vunpack.c.0.s8 %v924
        %v926 = vperm.slane %v922, %v925
        %v927 = vsel %vm618, %v806, %v795
        %v929 = vunpack.c.l.s4 1983009808
        %v930 = vunpack.c.0.s8 %v929
        %v931 = vperm.slane %v927, %v930
        %v932 = vrot.slane %v807, 4
        %v933 = vsel %vm618, %v932, %v805
        %v935 = vunpack.c.l.s4 1983009808
        %v936 = vunpack.c.0.s8 %v935
        %v937 = vperm.slane %v933, %v936
        %v938 = vrot.slane %v926, 4
        %v939 = vsel %vm618, %v938, %v920
        %v940 = vrot.slane %v920, 4
        %v941 = vsel %vm618, %v926, %v940
        %v943 = vunpack.c.l.s4 1934713408
        %v944 = vunpack.c.0.s8 %v943
        %v945 = vperm.slane %v939, %v944
        %v947 = vunpack.c.l.s4 1934713408
        %v948 = vunpack.c.0.s8 %v947
        %v949 = vperm.slane %v941, %v948
        %v950 = vrot.slane %v937, 4
        %v951 = vsel %vm618, %v950, %v931
        %v952 = vrot.slane %v931, 4
        %v953 = vsel %vm618, %v937, %v952
        %v955 = vunpack.c.l.s4 1934713408
        %v956 = vunpack.c.0.s8 %v955
        %v957 = vperm.slane %v951, %v956
        %v959 = vunpack.c.l.s4 1934713408
        %v960 = vunpack.c.0.s8 %v959
        %v961 = vperm.slane %v953, %v960
        %v962 = vrot.slane %v957, 4
        %v963 = vsel %vm618, %v962, %v945
        %v964 = vrot.slane %v945, 4
        %v965 = vsel %vm618, %v957, %v964
        %v966 = vrot.slane %v961, 4
        %v967 = vsel %vm618, %v966, %v949
        %v968 = vrot.slane %v949, 4
        %v969 = vsel %vm618, %v961, %v968
        %vm970 = vcmask 64512
        %v972 = vsel %vm970, %v855, 0
        %v975 = vsel %vm970, %v909, 0
        %977 = vmatpush.xpose.msra.mxu0 0.0
        %978 = vmatpush.xpose.msra.mxu0 0.0
        %979 = vmatpush.xpose.msra.mxu0 0.0
        %980 = vmatpush.xpose.msra.mxu0 0.0
        %981 = vmatpush.xpose.msra.mxu0 0.0
        %982 = vmatpush.xpose.msra.mxu0 0.0
        %983 = vmatpush.xpose.msra.mxu0 0.0
        %984 = vmatpush.xpose.msra.mxu0 0.0
        %985 = vmatpush.xpose.msra.mxu0 0.0
        %986 = vmatpush.xpose.msra.mxu0 0.0
        %987 = vmatpush.xpose.msra.mxu0 0.0
        %988 = vmatpush.xpose.msra.mxu0 0.0
        %989 = vmatpush.xpose.msra.mxu0 0.0
        %990 = vmatpush.xpose.msra.mxu0 0.0
        %991 = vmatpush.xpose.msra.mxu0 0.0
        %992 = vmatpush.xpose.msra.mxu0 %v975
        %993 = vmatmul.f32.gmra.mxu0 %v972
        %v994 = vpop.f32.mrf.mxu0
        %v995 = vadd.f32 0.0, %v994
        %996 = vdwg.mxu0
        %v998 = vsel %vm970, %v857, 0
        %v1001 = vsel %vm970, %v911, 0
        %1003 = vmatpush.xpose.msra.mxu0 0.0
        %1004 = vmatpush.xpose.msra.mxu0 0.0
        %1005 = vmatpush.xpose.msra.mxu0 0.0
        %1006 = vmatpush.xpose.msra.mxu0 0.0
        %1007 = vmatpush.xpose.msra.mxu0 0.0
        %1008 = vmatpush.xpose.msra.mxu0 0.0
        %1009 = vmatpush.xpose.msra.mxu0 0.0
        %1010 = vmatpush.xpose.msra.mxu0 0.0
        %1011 = vmatpush.xpose.msra.mxu0 0.0
        %1012 = vmatpush.xpose.msra.mxu0 0.0
        %1013 = vmatpush.xpose.msra.mxu0 0.0
        %1014 = vmatpush.xpose.msra.mxu0 0.0
        %1015 = vmatpush.xpose.msra.mxu0 0.0
        %1016 = vmatpush.xpose.msra.mxu0 0.0
        %1017 = vmatpush.xpose.msra.mxu0 0.0
        %1018 = vmatpush.xpose.msra.mxu0 %v1001
        %1019 = vmatmul.f32.gmra.mxu0 %v998
        %v1020 = vpop.f32.mrf.mxu0
        %v1021 = vadd.f32 0.0, %v1020
        %1022 = vdwg.mxu0
        %v1024 = vsel %vm970, %v859, 0
        %v1027 = vsel %vm970, %v913, 0
        %1029 = vmatpush.xpose.msra.mxu0 0.0
        %1030 = vmatpush.xpose.msra.mxu0 0.0
        %1031 = vmatpush.xpose.msra.mxu0 0.0
        %1032 = vmatpush.xpose.msra.mxu0 0.0
        %1033 = vmatpush.xpose.msra.mxu0 0.0
        %1034 = vmatpush.xpose.msra.mxu0 0.0
        %1035 = vmatpush.xpose.msra.mxu0 0.0
        %1036 = vmatpush.xpose.msra.mxu0 0.0
        %1037 = vmatpush.xpose.msra.mxu0 0.0
        %1038 = vmatpush.xpose.msra.mxu0 0.0
        %1039 = vmatpush.xpose.msra.mxu0 0.0
        %1040 = vmatpush.xpose.msra.mxu0 0.0
        %1041 = vmatpush.xpose.msra.mxu0 0.0
        %1042 = vmatpush.xpose.msra.mxu0 0.0
        %1043 = vmatpush.xpose.msra.mxu0 0.0
        %1044 = vmatpush.xpose.msra.mxu0 %v1027
        %1045 = vmatmul.f32.gmra.mxu0 %v1024
        %v1046 = vpop.f32.mrf.mxu0
        %v1047 = vadd.f32 0.0, %v1046
        %1048 = vdwg.mxu0
        %v1050 = vsel %vm970, %v861, 0
        %v1053 = vsel %vm970, %v915, 0
        %1055 = vmatpush.xpose.msra.mxu0 0.0
        %1056 = vmatpush.xpose.msra.mxu0 0.0
        %1057 = vmatpush.xpose.msra.mxu0 0.0
        %1058 = vmatpush.xpose.msra.mxu0 0.0
        %1059 = vmatpush.xpose.msra.mxu0 0.0
        %1060 = vmatpush.xpose.msra.mxu0 0.0
        %1061 = vmatpush.xpose.msra.mxu0 0.0
        %1062 = vmatpush.xpose.msra.mxu0 0.0
        %1063 = vmatpush.xpose.msra.mxu0 0.0
        %1064 = vmatpush.xpose.msra.mxu0 0.0
        %1065 = vmatpush.xpose.msra.mxu0 0.0
        %1066 = vmatpush.xpose.msra.mxu0 0.0
        %1067 = vmatpush.xpose.msra.mxu0 0.0
        %1068 = vmatpush.xpose.msra.mxu0 0.0
        %1069 = vmatpush.xpose.msra.mxu0 0.0
        %1070 = vmatpush.xpose.msra.mxu0 %v1053
        %1071 = vmatmul.f32.gmra.mxu0 %v1050
        %v1072 = vpop.f32.mrf.mxu0
        %v1073 = vadd.f32 0.0, %v1072
        %1074 = vdwg.mxu0
        %v1075 = vmul.f32 %v995, 0.35355338
        %v1076 = vmul.f32 %v1021, 0.35355338
        %v1077 = vmul.f32 %v1047, 0.35355338
        %v1078 = vmul.f32 %v1073, 0.35355338
        %v1079 = vsel %vm970, %v1075, -inf
        %1080 = vmax.xlane.f32.xlu0 %v1079
        %v1081 = vpop.xlane.xlu0 %1080
        %v1082 = vsel %vm970, %v1076, -inf
        %1083 = vmax.xlane.f32.xlu0 %v1082
        %v1084 = vpop.xlane.xlu0 %1083
        %v1085 = vsel %vm970, %v1077, -inf
        %1086 = vmax.xlane.f32.xlu0 %v1085
        %v1087 = vpop.xlane.xlu0 %1086
        %v1088 = vsel %vm970, %v1078, -inf
        %1089 = vmax.xlane.f32.xlu0 %v1088
        %v1090 = vpop.xlane.xlu0 %1089
        %v1091 = vsub.f32 %v1075, %v1081
        %v1092 = vsub.f32 %v1076, %v1084
        %v1093 = vsub.f32 %v1077, %v1087
        %v1094 = vsub.f32 %v1078, %v1090
        %v1095 = vmul.f32 %v1091, 1.442695
        %v1096 = vpow.pop %v1095
        %v1097 = vmul.f32 %v1092, 1.442695
        %v1098 = vpow.pop %v1097
        %v1099 = vmul.f32 %v1093, 1.442695
        %v1100 = vpow.pop %v1099
        %v1101 = vmul.f32 %v1094, 1.442695
        %v1102 = vpow.pop %v1101
        %v1103 = vsel %vm970, %v1096, 0.0
        %1104 = vadd.xlane.f32.xlu0 %v1103
        %v1105 = vpop.xlane.xlu0 %1104
        %v1106 = vsel %vm970, %v1098, 0.0
        %1107 = vadd.xlane.f32.xlu0 %v1106
        %v1108 = vpop.xlane.xlu0 %1107
        %v1109 = vsel %vm970, %v1100, 0.0
        %1110 = vadd.xlane.f32.xlu0 %v1109
        %v1111 = vpop.xlane.xlu0 %1110
        %v1112 = vsel %vm970, %v1102, 0.0
        %1113 = vadd.xlane.f32.xlu0 %v1112
        %v1114 = vpop.xlane.xlu0 %1113
        %v1115 = vrcp.pop %v1105
        %v1116 = vrcp.pop %v1108
        %v1117 = vrcp.pop %v1111
        %v1118 = vrcp.pop %v1114
        %v1119 = vmul.f32 %v1096, %v1115
        %v1120 = vmul.f32 %v1098, %v1116
        %v1121 = vmul.f32 %v1100, %v1117
        %v1122 = vmul.f32 %v1102, %v1118
        %v1124 = vsel %vm970, %v1119, 0
        %1126 = vmatpush.msra.mxu0 0.0
        %1127 = vmatpush.msra.mxu0 0.0
        %1128 = vmatpush.msra.mxu0 0.0
        %1129 = vmatpush.msra.mxu0 0.0
        %1130 = vmatpush.msra.mxu0 0.0
        %1131 = vmatpush.msra.mxu0 0.0
        %1132 = vmatpush.msra.mxu0 0.0
        %1133 = vmatpush.msra.mxu0 0.0
        %1134 = vmatpush.msra.mxu0 0.0
        %1135 = vmatpush.msra.mxu0 0.0
        %1136 = vmatpush.msra.mxu0 0.0
        %1137 = vmatpush.msra.mxu0 0.0
        %1138 = vmatpush.msra.mxu0 0.0
        %1139 = vmatpush.msra.mxu0 0.0
        %1140 = vmatpush.msra.mxu0 0.0
        %1141 = vmatpush.msra.mxu0 %v963
        %1142 = vmatmul.f32.gmra.mxu0 %v1124
        %v1143 = vpop.f32.mrf.mxu0
        %v1144 = vadd.f32 0.0, %v1143
        %1145 = vdwg.mxu0
        %v1147 = vsel %vm970, %v1120, 0
        %1149 = vmatpush.msra.mxu0 0.0
        %1150 = vmatpush.msra.mxu0 0.0
        %1151 = vmatpush.msra.mxu0 0.0
        %1152 = vmatpush.msra.mxu0 0.0
        %1153 = vmatpush.msra.mxu0 0.0
        %1154 = vmatpush.msra.mxu0 0.0
        %1155 = vmatpush.msra.mxu0 0.0
        %1156 = vmatpush.msra.mxu0 0.0
        %1157 = vmatpush.msra.mxu0 0.0
        %1158 = vmatpush.msra.mxu0 0.0
        %1159 = vmatpush.msra.mxu0 0.0
        %1160 = vmatpush.msra.mxu0 0.0
        %1161 = vmatpush.msra.mxu0 0.0
        %1162 = vmatpush.msra.mxu0 0.0
        %1163 = vmatpush.msra.mxu0 0.0
        %1164 = vmatpush.msra.mxu0 %v965
        %1165 = vmatmul.f32.gmra.mxu0 %v1147
        %v1166 = vpop.f32.mrf.mxu0
        %v1167 = vadd.f32 0.0, %v1166
        %1168 = vdwg.mxu0
        %v1170 = vsel %vm970, %v1121, 0
        %1172 = vmatpush.msra.mxu0 0.0
        %1173 = vmatpush.msra.mxu0 0.0
        %1174 = vmatpush.msra.mxu0 0.0
        %1175 = vmatpush.msra.mxu0 0.0
        %1176 = vmatpush.msra.mxu0 0.0
        %1177 = vmatpush.msra.mxu0 0.0
        %1178 = vmatpush.msra.mxu0 0.0
        %1179 = vmatpush.msra.mxu0 0.0
        %1180 = vmatpush.msra.mxu0 0.0
        %1181 = vmatpush.msra.mxu0 0.0
        %1182 = vmatpush.msra.mxu0 0.0
        %1183 = vmatpush.msra.mxu0 0.0
        %1184 = vmatpush.msra.mxu0 0.0
        %1185 = vmatpush.msra.mxu0 0.0
        %1186 = vmatpush.msra.mxu0 0.0
        %1187 = vmatpush.msra.mxu0 %v967
        %1188 = vmatmul.f32.gmra.mxu0 %v1170
        %v1189 = vpop.f32.mrf.mxu0
        %v1190 = vadd.f32 0.0, %v1189
        %1191 = vdwg.mxu0
        %v1193 = vsel %vm970, %v1122, 0
        %1195 = vmatpush.msra.mxu0 0.0
        %1196 = vmatpush.msra.mxu0 0.0
        %1197 = vmatpush.msra.mxu0 0.0
        %1198 = vmatpush.msra.mxu0 0.0
        %1199 = vmatpush.msra.mxu0 0.0
        %1200 = vmatpush.msra.mxu0 0.0
        %1201 = vmatpush.msra.mxu0 0.0
        %1202 = vmatpush.msra.mxu0 0.0
        %1203 = vmatpush.msra.mxu0 0.0
        %1204 = vmatpush.msra.mxu0 0.0
        %1205 = vmatpush.msra.mxu0 0.0
        %1206 = vmatpush.msra.mxu0 0.0
        %1207 = vmatpush.msra.mxu0 0.0
        %1208 = vmatpush.msra.mxu0 0.0
        %1209 = vmatpush.msra.mxu0 0.0
        %1210 = vmatpush.msra.mxu0 %v969
        %1211 = vmatmul.f32.gmra.mxu0 %v1193
        %v1212 = vpop.f32.mrf.mxu0
        %v1213 = vadd.f32 0.0, %v1212
        %1214 = vdwg.mxu0
        %v1215 = vrot.slane %v1190, 4
        %v1216 = vsel %vm618, %v1215, %v1144
        %v1217 = vrot.slane %v1144, 4
        %v1218 = vsel %vm618, %v1190, %v1217
        %v1220 = vunpack.c.l.s4 1983009808
        %v1221 = vunpack.c.0.s8 %v1220
        %v1222 = vperm.slane %v1216, %v1221
        %v1224 = vunpack.c.l.s4 1983009808
        %v1225 = vunpack.c.0.s8 %v1224
        %v1226 = vperm.slane %v1218, %v1225
        %v1227 = vrot.slane %v1213, 4
        %v1228 = vsel %vm618, %v1227, %v1167
        %v1229 = vrot.slane %v1167, 4
        %v1230 = vsel %vm618, %v1213, %v1229
        %v1232 = vunpack.c.l.s4 1983009808
        %v1233 = vunpack.c.0.s8 %v1232
        %v1234 = vperm.slane %v1228, %v1233
        %v1236 = vunpack.c.l.s4 1983009808
        %v1237 = vunpack.c.0.s8 %v1236
        %v1238 = vperm.slane %v1230, %v1237
        %v1239 = vrot.slane %v1234, 4
        %v1240 = vsel %vm618, %v1239, %v1222
        %v1241 = vrot.slane %v1222, 4
        %v1242 = vsel %vm618, %v1234, %v1241
        %v1244 = vunpack.c.l.s4 1934713408
        %v1245 = vunpack.c.0.s8 %v1244
        %v1246 = vperm.slane %v1240, %v1245
        %v1248 = vunpack.c.l.s4 1934713408
        %v1249 = vunpack.c.0.s8 %v1248
        %v1250 = vperm.slane %v1242, %v1249
        %v1251 = vrot.slane %v1238, 4
        %v1252 = vsel %vm618, %v1251, %v1226
        %v1253 = vrot.slane %v1226, 4
        %v1254 = vsel %vm618, %v1238, %v1253
        %v1256 = vunpack.c.l.s4 1934713408
        %v1257 = vunpack.c.0.s8 %v1256
        %v1258 = vperm.slane %v1252, %v1257
        %v1260 = vunpack.c.l.s4 1934713408
        %v1261 = vunpack.c.0.s8 %v1260
        %v1262 = vperm.slane %v1254, %v1261
        %v1263 = vrot.slane %v1246, 4
        %v1264 = vsel %vm618, 0.0, %v1263
        %v1265 = vrot.slane %v1250, 4
        %v1266 = vsel %vm618, 0.0, %v1265
        %v1267 = vrot.slane %v1258, 4
        %v1268 = vsel %vm618, 0.0, %v1267
        %v1269 = vrot.slane %v1262, 4
        %v1270 = vsel %vm618, 0.0, %v1269
        %v1271 = vsel %vm618, %v1265, %v1246
        %v1273 = vunpack.c.l.s4 1983009808
        %v1274 = vunpack.c.0.s8 %v1273
        %v1275 = vperm.slane %v1271, %v1274
        %v1276 = vrot.slane %v1266, 4
        %v1277 = vsel %vm618, %v1276, %v1264
        %v1279 = vunpack.c.l.s4 1983009808
        %v1280 = vunpack.c.0.s8 %v1279
        %v1281 = vperm.slane %v1277, %v1280
        %v1282 = vsel %vm618, %v1269, %v1258
        %v1284 = vunpack.c.l.s4 1983009808
        %v1285 = vunpack.c.0.s8 %v1284
        %v1286 = vperm.slane %v1282, %v1285
        %v1287 = vrot.slane %v1270, 4
        %v1288 = vsel %vm618, %v1287, %v1268
        %v1290 = vunpack.c.l.s4 1983009808
        %v1291 = vunpack.c.0.s8 %v1290
        %v1292 = vperm.slane %v1288, %v1291
        %v1293 = vrot.slane %v1281, 4
        %v1294 = vsel %vm618, %v1293, %v1275
        %v1295 = vrot.slane %v1275, 4
        %v1296 = vsel %vm618, %v1281, %v1295
        %v1298 = vunpack.c.l.s4 1934713408
        %v1299 = vunpack.c.0.s8 %v1298
        %v1300 = vperm.slane %v1294, %v1299
        %v1302 = vunpack.c.l.s4 1934713408
        %v1303 = vunpack.c.0.s8 %v1302
        %v1304 = vperm.slane %v1296, %v1303
        %v1305 = vrot.slane %v1292, 4
        %v1306 = vsel %vm618, %v1305, %v1286
        %v1307 = vrot.slane %v1286, 4
        %v1308 = vsel %vm618, %v1292, %v1307
        %v1310 = vunpack.c.l.s4 1934713408
        %v1311 = vunpack.c.0.s8 %v1310
        %v1312 = vperm.slane %v1306, %v1311
        %v1314 = vunpack.c.l.s4 1934713408
        %v1315 = vunpack.c.0.s8 %v1314
        %v1316 = vperm.slane %v1308, %v1315
        %v1317 = vrot.slane %v1312, 4
        %v1318 = vsel %vm618, %v1317, %v1300
        %v1319 = vrot.slane %v1300, 4
        %v1320 = vsel %vm618, %v1312, %v1319
        %v1321 = vrot.slane %v1316, 4
        %v1322 = vsel %vm618, %v1321, %v1304
        %v1323 = vrot.slane %v1304, 4
        %v1324 = vsel %vm618, %v1316, %v1323
        %1326 = vrot.lane.b32.xlu0 %v1320, 8
        %v1327 = vpop.permute.xlu0 %1326
        %1330 = vrot.lane.b32.xlu0 %v1322, 16
        %v1331 = vpop.permute.xlu0 %1330
        %1334 = vrot.lane.b32.xlu0 %v1324, 24
        %v1335 = vpop.permute.xlu0 %1334
        %v1337 = vsel %vm970, %v1318, %v1327
        %vm1338 = vcmask 130048
        %v1339 = vsel %vm1338, %v1337, %v1331
        %vm1340 = vcmask 195584
        %v1341 = vsel %vm1340, %v1339, %v1335
        %v1342 = vld [vmem:[%s5] sm:$0xff]
        %v1343 = vld [vmem:[%s5 + $0x8] sm:$0xff]
        %v1344 = vld [vmem:[%s5 + $0x10] sm:$0xff]
        %v1345 = vld [vmem:[%s5 + $0x18] sm:$0xff]
        %v1346 = vld [vmem:[%s6] sm:$0x1]
        %v1348 = vperm.slane %v1346, 0
        %v1351 = vsel %vm555, %v1341, 0
        %1353 = vmatpush.msra.mxu0 0.0
        %1354 = vmatpush.msra.mxu0 0.0
        %1355 = vmatpush.msra.mxu0 0.0
        %1356 = vmatpush.msra.mxu0 0.0
        %1357 = vmatpush.msra.mxu0 0.0
        %1358 = vmatpush.msra.mxu0 0.0
        %1359 = vmatpush.msra.mxu0 0.0
        %1360 = vmatpush.msra.mxu0 0.0
        %1361 = vmatpush.msra.mxu0 0.0
        %1362 = vmatpush.msra.mxu0 0.0
        %1363 = vmatpush.msra.mxu0 0.0
        %1364 = vmatpush.msra.mxu0 0.0
        %1365 = vmatpush.msra.mxu0 %v1345
        %1366 = vmatpush.msra.mxu0 %v1344
        %1367 = vmatpush.msra.mxu0 %v1343
        %1368 = vmatpush.msra.mxu0 %v1342
        %1369 = vmatmul.f32.gmra.mxu0 %v1351
        %v1370 = vpop.f32.mrf.mxu0
        %v1371 = vadd.f32 %v1348, %v1370
        %1372 = vdwg.mxu0
        %v1373 = vadd.f32 %v546, %v1371
        %v1374 = vsel %vm555, %v1373, 0.0
        %1375 = vadd.xlane.f32.xlu0 %v1374
        %v1376 = vpop.xlane.xlu0 %1375
        %v1377 = vrcp.pop 32.0
        %v1378 = vmul.f32 32.0, %v1377
        %v1379 = vsub.f32 1.0, %v1378
        %v1380 = vmul.f32 %v1377, %v1379
        %v1381 = vadd.f32 %v1377, %v1380
        %vm1382 = vweird.f32 %v1377
        %v1383 = vsel %vm1382, %v1377, %v1381
        %v1384 = vmul.f32 %v1376, %v1383
        %v1385 = vsub.f32 %v1373, %v1384
        %v1386 = vmul.f32 %v1385, %v1385
        %v1387 = vsel %vm555, %v1386, 0.0
        %1388 = vadd.xlane.f32.xlu0 %v1387
        %v1389 = vpop.xlane.xlu0 %1388
        %v1390 = vmul.f32 %v1389, %v1383
        %v1391 = vadd.f32 %v1390, 1e-05
        %v1392 = vrsqrt.pop %v1391
        %v1393 = vmul.f32 %v1392, %v1391
        %v1394 = vmul.f32 %v1393, %v1392
        %v1395 = vmul.f32 0.5, %v1394
        %v1396 = vsub.f32 1.5, %v1395
        %v1397 = vmul.f32 %v1392, %v1396
        %vm1398 = vweird.f32 %v1391
        %vm1399 = vweird.f32 %v1392
        %vm1400 = vmor %vm1398, %vm1399
        %v1401 = vsel %vm1400, %v1392, %v1397
        %v1402 = vmul.f32 %v1385, %v1401
        %v1403 = vld [vmem:[%s11] sm:$0x1]
        %v1405 = vperm.slane %v1403, 0
        %v1407 = vmul.f32 %v1402, %v1405
        %v1408 = vld [vmem:[%s12] sm:$0x1]
        %v1410 = vperm.slane %v1408, 0
        %v1412 = vadd.f32 %v1407, %v1410
        %v1413 = vld [vmem:[#allocation5] sm:$0xff]
        %v1414 = vld [vmem:[#allocation5 + $0x8] sm:$0xff]
        %v1415 = vld [vmem:[#allocation5 + $0x10] sm:$0xff]
        %v1416 = vld [vmem:[#allocation5 + $0x18] sm:$0xff]
        %v1417 = vld [vmem:[%s8] sm:$0x1]
        %v1419 = vperm.slane %v1417, 0
        %v1422 = vsel %vm555, %v1412, 0
        %1424 = vmatpush.msra.mxu0 0.0
        %1425 = vmatpush.msra.mxu0 0.0
        %1426 = vmatpush.msra.mxu0 0.0
        %1427 = vmatpush.msra.mxu0 0.0
        %1428 = vmatpush.msra.mxu0 0.0
        %1429 = vmatpush.msra.mxu0 0.0
        %1430 = vmatpush.msra.mxu0 0.0
        %1431 = vmatpush.msra.mxu0 0.0
        %1432 = vmatpush.msra.mxu0 0.0
        %1433 = vmatpush.msra.mxu0 0.0
        %1434 = vmatpush.msra.mxu0 0.0
        %1435 = vmatpush.msra.mxu0 0.0
        %1436 = vmatpush.msra.mxu0 %v1416
        %1437 = vmatpush.msra.mxu0 %v1415
        %1438 = vmatpush.msra.mxu0 %v1414
        %1439 = vmatpush.msra.mxu0 %v1413
        %1440 = vmatmul.f32.gmra.mxu0 %v1422
        %v1441 = vpop.f32.mrf.mxu0
        %v1442 = vadd.f32 %v1419, %v1441
        %1443 = vdwg.mxu0
        %v1444 = vmax.f32 %v1442, 0.0
        %v1445 = vld [vmem:[%s9] sm:$0xff]
        %v1446 = vld [vmem:[%s9 + $0x8] sm:$0xff]
        %v1447 = vld [vmem:[%s9 + $0x10] sm:$0xff]
        %v1448 = vld [vmem:[%s9 + $0x18] sm:$0xff]
        %v1449 = vld [vmem:[%s9 + $0x20] sm:$0xff]
        %v1450 = vld [vmem:[%s9 + $0x28] sm:$0xff]
        %v1451 = vld [vmem:[%s9 + $0x30] sm:$0xff]
        %v1452 = vld [vmem:[%s9 + $0x38] sm:$0xff]
        %v1453 = vld [vmem:[%s10] sm:$0x1]
        %v1455 = vperm.slane %v1453, 0
        %vm1457 = vcmask 523264
        %v1459 = vsel %vm1457, %v1444, 0
        %1461 = vmatpush.msra.mxu0 0.0
        %1462 = vmatpush.msra.mxu0 0.0
        %1463 = vmatpush.msra.mxu0 0.0
        %1464 = vmatpush.msra.mxu0 0.0
        %1465 = vmatpush.msra.mxu0 0.0
        %1466 = vmatpush.msra.mxu0 0.0
        %1467 = vmatpush.msra.mxu0 0.0
        %1468 = vmatpush.msra.mxu0 0.0
        %1469 = vmatpush.msra.mxu0 %v1452
        %1470 = vmatpush.msra.mxu0 %v1451
        %1471 = vmatpush.msra.mxu0 %v1450
        %1472 = vmatpush.msra.mxu0 %v1449
        %1473 = vmatpush.msra.mxu0 %v1448
        %1474 = vmatpush.msra.mxu0 %v1447
        %1475 = vmatpush.msra.mxu0 %v1446
        %1476 = vmatpush.msra.mxu0 %v1445
        %1477 = vmatmul.f32.gmra.mxu0 %v1459
        %v1478 = vpop.f32.mrf.mxu0
        %v1479 = vadd.f32 %v1455, %v1478
        %1480 = vdwg.mxu0
        %v1481 = vadd.f32 %v1412, %v1479
        %v1482 = vsel %vm555, %v1481, 0.0
        %1483 = vadd.xlane.f32.xlu0 %v1482
        %v1484 = vpop.xlane.xlu0 %1483
        %v1485 = vmul.f32 %v1484, %v1383
        %v1486 = vsub.f32 %v1481, %v1485
        %v1487 = vmul.f32 %v1486, %v1486
        %v1488 = vsel %vm555, %v1487, 0.0
        %1489 = vadd.xlane.f32.xlu0 %v1488
        %v1490 = vpop.xlane.xlu0 %1489
        %v1491 = vmul.f32 %v1490, %v1383
        %v1492 = vadd.f32 %v1491, 1e-05
        %v1493 = vrsqrt.pop %v1492
        %v1494 = vmul.f32 %v1493, %v1492
        %v1495 = vmul.f32 %v1494, %v1493
        %v1496 = vmul.f32 0.5, %v1495
        %v1497 = vsub.f32 1.5, %v1496
        %v1498 = vmul.f32 %v1493, %v1497
        %vm1499 = vweird.f32 %v1492
        %vm1500 = vweird.f32 %v1493
        %vm1501 = vmor %vm1499, %vm1500
        %v1502 = vsel %vm1501, %v1493, %v1498
        %v1503 = vmul.f32 %v1486, %v1502
        %v1504 = vld [vmem:[%s13] sm:$0x1]
        %v1506 = vperm.slane %v1504, 0
        %v1508 = vmul.f32 %v1503, %v1506
        %v1509 = vld [vmem:[%s14] sm:$0x1]
        %v1511 = vperm.slane %v1509, 0
        %v1513 = vadd.f32 %v1508, %v1511
        %1514 = vst.msk [vmem:[%s545] sm:$0xff] %vm555, %v1513
        %s1515 = sand.u32 %s377, 1
        %s1516 = scalar_lea.sflag [#allocation4], %s1515
        %s1517 = sand.u32 %s377, 1
        %s1518 = smul.addr %s1517, 8
        %s1519 = scalar_lea.vmem [#allocation7], %s1518
        // Predicated region
        $region89: #{tpu_custom_call.1} parent=79 // pred_check
          %p1520 = pneg %p387
        $region90: #{tpu_custom_call.1} parent=79 // pred_check_branch
          %1522 = sbr.rel (%p1520) target = $region92
        $region91: #{tpu_custom_call.1} parent=79 // pred_region
          %1524 = vsyncadd %s1516, 0
          %s1525 = sadd.s32 %s38, %s37
          %s1526 = smul.addr %s1525, 8
          %s1527 = scalar_lea.hbm %s15, %s1526
          %s1529 = sshll.u32 %s1519, 4
          %s1530 = int_to_ptr.vmem [resolvable:$true] %s1529
          %s1531 = sshll.u32 %s1527, 4
          %s1532 = int_to_ptr.hbm [resolvable:$true] %s1531
          %1534 = dma.vmem_to_hbm [thread:$0]  %s1530, 128, %s1532, %s1516
        $region92: #{tpu_custom_call.1} parent=79 // pred_fallthru
          _
      $region80: #{tpu_custom_call.1} parent=5 // pred_fallthru
        _
      %p1535 = scmp.le.s32.totalorder 2, %s28
      // Predicated region
      $region93: #{tpu_custom_call.1} parent=5 // pred_check
        %p1536 = pneg %p1535
      $region94: #{tpu_custom_call.1} parent=5 // pred_check_branch
        %1538 = sbr.rel (%p1536) target = $region96
      $region95: #{tpu_custom_call.1} parent=5 // pred_region
        %s1539 = ssub.s32 %s28, 2
        // Predicated region
        $region97: #{tpu_custom_call.1} parent=95 // pred_check
          %p1540 = pneg %p393
        $region98: #{tpu_custom_call.1} parent=95 // pred_check_branch
          %1542 = sbr.rel (%p1540) target = $region100
        $region99: #{tpu_custom_call.1} parent=95 // pred_region
          %s1543 = sand.u32 %s378, 1
          %s1544 = scalar_lea.sflag [#allocation4], %s1543
          %s1545 = sand.u32 %s378, 1
          %s1546 = smul.addr %s1545, 8
          %s1547 = scalar_lea.vmem [#allocation7], %s1546
          %1549 = dma.done %s1544, 128
        $region100: #{tpu_custom_call.1} parent=95 // pred_fallthru
          _
      $region96: #{tpu_custom_call.1} parent=5 // pred_fallthru
        _
    $region6: #{tpu_custom_call.1} parent=1 // loop_footer
      %s32 = sadd.s32 1, %s28
    $region7: #{tpu_custom_call.1} parent=1 // loop_footer_branch
      %27 = sbr.rel target = $region3
    $region8: #{tpu_custom_call.1} parent=1 // loop_exit
      _
    %1550 = vsyncpa [#allocation3], 1
    %s1551 = scalar_lea.sflag [#allocation3], 1
    %1552 = vsyncpa %s1551, 1
    %1553 = vsyncpa [#allocation6], 1
    %1554 = vsyncpa [#allocation4], 1
    %s1555 = scalar_lea.sflag [#allocation4], 1
    %1556 = vsyncpa %s1555, 1

// kernel: tpu_custom_call.1
$region0: #{tpu_custom_call.1}
  #allocation0 [shape = 'u32[]', space=smem, size = 0x4, offset = 0x4, fixed_abs, tag = 'smem constant byte address 0x4 - core index']
  #allocation1 [shape = 'u32[72,128]{1,0:T(1,128)}', space=vmem, size = 0x9000, scoped, tag = 'internal scratch']
  %s0 = inlined_call_operand.hbm [shape: f32[2,8,32], index: 0, kind: input, shape index: {}]
  %s1 = inlined_call_operand.vmem [shape: f32[32,32], index: 1, kind: input, shape index: {}]
  %s2 = inlined_call_operand.vmem [shape: f32[1,32], index: 2, kind: input, shape index: {}]
  %s3 = inlined_call_operand.vmem [shape: f32[32,64], index: 3, kind: input, shape index: {}]
  %s4 = inlined_call_operand.vmem [shape: f32[1,64], index: 4, kind: input, shape index: {}]
  %s5 = inlined_call_operand.vmem [shape: f32[32,32], index: 5, kind: input, shape index: {}]
  %s6 = inlined_call_operand.vmem [shape: f32[1,32], index: 6, kind: input, shape index: {}]
  %s7 = inlined_call_operand.hbm [shape: f32[32,64], index: 7, kind: input, shape index: {}]
  %s8 = inlined_call_operand.vmem [shape: f32[1,64], index: 8, kind: input, shape index: {}]
  %s9 = inlined_call_operand.vmem [shape: f32[64,32], index: 9, kind: input, shape index: {}]
  %s10 = inlined_call_operand.vmem [shape: f32[1,32], index: 10, kind: input, shape index: {}]
  %s11 = inlined_call_operand.vmem [shape: f32[1,32], index: 11, kind: input, shape index: {}]
  %s12 = inlined_call_operand.vmem [shape: f32[1,32], index: 12, kind: input, shape index: {}]
  %s13 = inlined_call_operand.vmem [shape: f32[1,32], index: 13, kind: input, shape index: {}]
  %s14 = inlined_call_operand.vmem [shape: f32[1,32], index: 14, kind: input, shape index: {}]
  %s15 = inlined_call_operand.hbm [shape: f32[2,8,32], index: 15, kind: output, shape index: {}]
  %s16 = sld [smem:[#allocation0]]
  $region101: #{tpu_custom_call.1} parent=0
    _
  %s18 = ssub.s32 1, %s16
  %s19 = scalar_select 0, %s18, %s16
  $region1: #{tpu_custom_call.1} parent=0
    #allocation2 [shape = 'u8[8192]{0}', space=vmem, size = 0x2000, scoped, tag = 'input window, operand 0']
    #allocation3 [shape = 's32[2]{0}', space=sflag, size = 0x8, scoped, tag = 'scoped memory for tpu_custom_call.1']
    #allocation4 [shape = 's32[2]{0}', space=sflag, size = 0x8, scoped, tag = 'scoped memory for tpu_custom_call.1']
    #allocation5 [shape = 'u8[16384]{0}', space=vmem, size = 0x4000, scoped, tag = 'input window, operand 7, single buffered']
    #allocation6 [shape = 's32[1]{0}', space=sflag, size = 0x4, scoped, tag = 'scoped memory for tpu_custom_call.1']
    #allocation7 [shape = 'u8[8192]{0}', space=vmem, size = 0x2000, scoped, tag = 'output window, operand 0']
    %20 = vsyncpa [#allocation3], 0
    %s21 = scalar_lea.sflag [#allocation3], 1
    %22 = vsyncpa %s21, 0
    %23 = vsyncpa [#allocation6], 0
    %24 = vsyncpa [#allocation4], 0
    %s25 = scalar_lea.sflag [#allocation4], 1
    %26 = vsyncpa %s25, 0
    loop: start=0, step=1, limit=4
    $region2: #{tpu_custom_call.1} parent=1 // loop_pre_header
      _
    $region3: #{tpu_custom_call.1} parent=1 // loop_header
      %s28 = sphi 0, %s32
      %p29 = scmp.ge.s32.totalorder %s28, 4
      %s35 = sphi 0, %s47
      %s36 = sphi 0, %s43
      %s37 = sphi 0, %s35
      %s38 = sphi 0, %s36
      %s39 = sphi 0, %s37
      %s40 = sphi 0, %s38
      %s52 = sphi 0, %s54
      %s55 = sphi 0, %s52
      %s56 = sphi 0, %s55
      %s72 = sphi 0, %s56
      %s76 = sphi 0, %s76
      %s78 = sphi 0, %s76
      %s79 = sphi 0, %s78
      %s93 = sphi 0, %s79
      %s97 = sphi 0, %s97
      %s99 = sphi 0, %s97
      %s100 = sphi 0, %s99
      %s114 = sphi 0, %s100
      %s118 = sphi 0, %s118
      %s120 = sphi 0, %s118
      %s121 = sphi 0, %s120
      %s135 = sphi 0, %s121
      %s139 = sphi 0, %s139
      %s141 = sphi 0, %s139
      %s142 = sphi 0, %s141
      %s156 = sphi 0, %s142
      %s160 = sphi 0, %s160
      %s162 = sphi 0, %s160
      %s163 = sphi 0, %s162
      %s177 = sphi 0, %s163
      %s181 = sphi 0, %s181
      %s183 = sphi 0, %s181
      %s184 = sphi 0, %s183
      %s198 = sphi 0, %s184
      %s202 = sphi 0, %s202
      %s204 = sphi 0, %s202
      %s205 = sphi 0, %s204
      %s219 = sphi 0, %s205
      %s223 = sphi 0, %s223
      %s225 = sphi 0, %s223
      %s226 = sphi 0, %s225
      %s240 = sphi 0, %s226
      %s244 = sphi 0, %s244
      %s246 = sphi 0, %s244
      %s247 = sphi 0, %s246
      %s261 = sphi 0, %s247
      %s265 = sphi 0, %s265
      %s267 = sphi 0, %s265
      %s268 = sphi 0, %s267
      %s282 = sphi 0, %s268
      %s286 = sphi 0, %s286
      %s288 = sphi 0, %s286
      %s289 = sphi 0, %s288
      %s303 = sphi 0, %s289
      %s307 = sphi 0, %s307
      %s309 = sphi 0, %s307
      %s310 = sphi 0, %s309
      %s324 = sphi 0, %s310
      %s328 = sphi 0, %s328
      %s330 = sphi 0, %s328
      %s331 = sphi 0, %s330
      %s345 = sphi 0, %s331
      %s349 = sphi 0, %s349
      %s351 = sphi 0, %s349
      %s352 = sphi 0, %s351
      %s366 = sphi 0, %s352
      %s374 = sphi 0, %s376
      %s377 = sphi 0, %s374
      %s378 = sphi 0, %s377
      %s394 = sphi 0, %s378
    $region4: #{tpu_custom_call.1} parent=1 // loop_header_branch
      %31 = sbr.rel (%p29) target = $region8
    $region5: #{tpu_custom_call.1} parent=1 // loop_body
      %s33 = ssub.s32 %s28, 1
      %s34 = ssub.s32 %s28, 2
      %s41 = sadd.s32 1, %s36
      %p42 = scmp.ge.s32.totalorder %s41, 1
      %s43 = scalar_select %p42, 0, %s41
      %s44 = sadd.s32 1, %s35
      %s45 = scalar_select %p42, %s44, %s35
      %p46 = scmp.ge.s32.totalorder %s45, 2
      %s47 = scalar_select %p46, 0, %s45
      %s48 = ssub.s32 %s35, %s47
      %s49 = ssub.s32 %s36, %s43
      %s50 = sor.u32 %s48, %s49
      %p51 = scmp.eq.s32.totalorder %s50, 0
      %s53 = sadd.s32 %s52, 1
      %s54 = scalar_select %p51, %s52, %s53
      %p57 = pneg %p51
      %p58 = scmp.eq.s32.totalorder %s28, 1
      %p59 = por %p57, %p58
      %p60 = scmp.ne.s32.totalorder %s52, %s55
      %p61 = scmp.eq.s32.totalorder %s28, 0
      %p62 = por %p60, %p61
      %p63 = scmp.ne.s32.totalorder %s52, %s55
      %p64 = scmp.eq.s32.totalorder %s33, 1
      %p65 = por %p63, %p64
      %p66 = scmp.ne.s32.totalorder %s55, %s56
      %p67 = scmp.eq.s32.totalorder %s33, 0
      %p68 = por %p66, %p67
      %p69 = scmp.ne.s32.totalorder %s55, %s56
      %p70 = scmp.eq.s32.totalorder %s34, 1
      %p71 = por %p69, %p70
      %p73 = scmp.ne.s32.totalorder %s56, %s72
      %p74 = scmp.eq.s32.totalorder %s34, 0
      %p75 = por %p73, %p74
      %s77 = sadd.s32 %s76, 1
      %p80 = scmp.eq.s32.totalorder %s28, 1
      %p81 = scmp.ne.s32.totalorder %s76, %s78
      %p82 = scmp.eq.s32.totalorder %s28, 0
      %p83 = por %p81, %p82
      %p84 = scmp.ne.s32.totalorder %s76, %s78
      %p85 = scmp.eq.s32.totalorder %s33, 1
      %p86 = por %p84, %p85
      %p87 = scmp.ne.s32.totalorder %s78, %s79
      %p88 = scmp.eq.s32.totalorder %s33, 0
      %p89 = por %p87, %p88
      %p90 = scmp.ne.s32.totalorder %s78, %s79
      %p91 = scmp.eq.s32.totalorder %s34, 1
      %p92 = por %p90, %p91
      %p94 = scmp.ne.s32.totalorder %s79, %s93
      %p95 = scmp.eq.s32.totalorder %s34, 0
      %p96 = por %p94, %p95
      %s98 = sadd.s32 %s97, 1
      %p101 = scmp.eq.s32.totalorder %s28, 1
      %p102 = scmp.ne.s32.totalorder %s97, %s99
      %p103 = scmp.eq.s32.totalorder %s28, 0
      %p104 = por %p102, %p103
      %p105 = scmp.ne.s32.totalorder %s97, %s99
      %p106 = scmp.eq.s32.totalorder %s33, 1
      %p107 = por %p105, %p106
      %p108 = scmp.ne.s32.totalorder %s99, %s100
      %p109 = scmp.eq.s32.totalorder %s33, 0
      %p110 = por %p108, %p109
      %p111 = scmp.ne.s32.totalorder %s99, %s100
      %p112 = scmp.eq.s32.totalorder %s34, 1
      %p113 = por %p111, %p112
      %p115 = scmp.ne.s32.totalorder %s100, %s114
      %p116 = scmp.eq.s32.totalorder %s34, 0
      %p117 = por %p115, %p116
      %s119 = sadd.s32 %s118, 1
      %p122 = scmp.eq.s32.totalorder %s28, 1
      %p123 = scmp.ne.s32.totalorder %s118, %s120
      %p124 = scmp.eq.s32.totalorder %s28, 0
      %p125 = por %p123, %p124
      %p126 = scmp.ne.s32.totalorder %s118, %s120
      %p127 = scmp.eq.s32.totalorder %s33, 1
      %p128 = por %p126, %p127
      %p129 = scmp.ne.s32.totalorder %s120, %s121
      %p130 = scmp.eq.s32.totalorder %s33, 0
      %p131 = por %p129, %p130
      %p132 = scmp.ne.s32.totalorder %s120, %s121
      %p133 = scmp.eq.s32.totalorder %s34, 1
      %p134 = por %p132, %p133
      %p136 = scmp.ne.s32.totalorder %s121, %s135
      %p137 = scmp.eq.s32.totalorder %s34, 0
      %p138 = por %p136, %p137
      %s140 = sadd.s32 %s139, 1
      %p143 = scmp.eq.s32.totalorder %s28, 1
      %p144 = scmp.ne.s32.totalorder %s139, %s141
      %p145 = scmp.eq.s32.totalorder %s28, 0
      %p146 = por %p144, %p145
      %p147 = scmp.ne.s32.totalorder %s139, %s141
      %p148 = scmp.eq.s32.totalorder %s33, 1
      %p149 = por %p147, %p148
      %p150 = scmp.ne.s32.totalorder %s141, %s142
      %p151 = scmp.eq.s32.totalorder %s33, 0
      %p152 = por %p150, %p151
      %p153 = scmp.ne.s32.totalorder %s141, %s142
      %p154 = scmp.eq.s32.totalorder %s34, 1
      %p155 = por %p153, %p154
      %p157 = scmp.ne.s32.totalorder %s142, %s156
      %p158 = scmp.eq.s32.totalorder %s34, 0
      %p159 = por %p157, %p158
      %s161 = sadd.s32 %s160, 1
      %p164 = scmp.eq.s32.totalorder %s28, 1
      %p165 = scmp.ne.s32.totalorder %s160, %s162
      %p166 = scmp.eq.s32.totalorder %s28, 0
      %p167 = por %p165, %p166
      %p168 = scmp.ne.s32.totalorder %s160, %s162
      %p169 = scmp.eq.s32.totalorder %s33, 1
      %p170 = por %p168, %p169
      %p171 = scmp.ne.s32.totalorder %s162, %s163
      %p172 = scmp.eq.s32.totalorder %s33, 0
      %p173 = por %p171, %p172
      %p174 = scmp.ne.s32.totalorder %s162, %s163
      %p175 = scmp.eq.s32.totalorder %s34, 1
      %p176 = por %p174, %p175
      %p178 = scmp.ne.s32.totalorder %s163, %s177
      %p179 = scmp.eq.s32.totalorder %s34, 0
      %p180 = por %p178, %p179
      %s182 = sadd.s32 %s181, 1
      %p185 = scmp.eq.s32.totalorder %s28, 1
      %p186 = scmp.ne.s32.totalorder %s181, %s183
      %p187 = scmp.eq.s32.totalorder %s28, 0
      %p188 = por %p186, %p187
      %p189 = scmp.ne.s32.totalorder %s181, %s183
      %p190 = scmp.eq.s32.totalorder %s33, 1
      %p191 = por %p189, %p190
      %p192 = scmp.ne.s32.totalorder %s183, %s184
      %p193 = scmp.eq.s32.totalorder %s33, 0
      %p194 = por %p192, %p193
      %p195 = scmp.ne.s32.totalorder %s183, %s184
      %p196 = scmp.eq.s32.totalorder %s34, 1
      %p197 = por %p195, %p196
      %p199 = scmp.ne.s32.totalorder %s184, %s198
      %p200 = scmp.eq.s32.totalorder %s34, 0
      %p201 = por %p199, %p200
      %s203 = sadd.s32 %s202, 1
      %p206 = scmp.eq.s32.totalorder %s28, 1
      %p207 = scmp.ne.s32.totalorder %s202, %s204
      %p208 = scmp.eq.s32.totalorder %s28, 0
      %p209 = por %p207, %p208
      %p210 = scmp.ne.s32.totalorder %s202, %s204
      %p211 = scmp.eq.s32.totalorder %s33, 1
      %p212 = por %p210, %p211
      %p213 = scmp.ne.s32.totalorder %s204, %s205
      %p214 = scmp.eq.s32.totalorder %s33, 0
      %p215 = por %p213, %p214
      %p216 = scmp.ne.s32.totalorder %s204, %s205
      %p217 = scmp.eq.s32.totalorder %s34, 1
      %p218 = por %p216, %p217
      %p220 = scmp.ne.s32.totalorder %s205, %s219
      %p221 = scmp.eq.s32.totalorder %s34, 0
      %p222 = por %p220, %p221
      %s224 = sadd.s32 %s223, 1
      %p227 = scmp.eq.s32.totalorder %s28, 1
      %p228 = scmp.ne.s32.totalorder %s223, %s225
      %p229 = scmp.eq.s32.totalorder %s28, 0
      %p230 = por %p228, %p229
      %p231 = scmp.ne.s32.totalorder %s223, %s225
      %p232 = scmp.eq.s32.totalorder %s33, 1
      %p233 = por %p231, %p232
      %p234 = scmp.ne.s32.totalorder %s225, %s226
      %p235 = scmp.eq.s32.totalorder %s33, 0
      %p236 = por %p234, %p235
      %p237 = scmp.ne.s32.totalorder %s225, %s226
      %p238 = scmp.eq.s32.totalorder %s34, 1
      %p239 = por %p237, %p238
      %p241 = scmp.ne.s32.totalorder %s226, %s240
      %p242 = scmp.eq.s32.totalorder %s34, 0
      %p243 = por %p241, %p242
      %s245 = sadd.s32 %s244, 1
      %p248 = scmp.eq.s32.totalorder %s28, 1
      %p249 = scmp.ne.s32.totalorder %s244, %s246
      %p250 = scmp.eq.s32.totalorder %s28, 0
      %p251 = por %p249, %p250
      %p252 = scmp.ne.s32.totalorder %s244, %s246
      %p253 = scmp.eq.s32.totalorder %s33, 1
      %p254 = por %p252, %p253
      %p255 = scmp.ne.s32.totalorder %s246, %s247
      %p256 = scmp.eq.s32.totalorder %s33, 0
      %p257 = por %p255, %p256
      %p258 = scmp.ne.s32.totalorder %s246, %s247
      %p259 = scmp.eq.s32.totalorder %s34, 1
      %p260 = por %p258, %p259
      %p262 = scmp.ne.s32.totalorder %s247, %s261
      %p263 = scmp.eq.s32.totalorder %s34, 0
      %p264 = por %p262, %p263
      %s266 = sadd.s32 %s265, 1
      %p269 = scmp.eq.s32.totalorder %s28, 1
      %p270 = scmp.ne.s32.totalorder %s265, %s267
      %p271 = scmp.eq.s32.totalorder %s28, 0
      %p272 = por %p270, %p271
      %p273 = scmp.ne.s32.totalorder %s265, %s267
      %p274 = scmp.eq.s32.totalorder %s33, 1
      %p275 = por %p273, %p274
      %p276 = scmp.ne.s32.totalorder %s267, %s268
      %p277 = scmp.eq.s32.totalorder %s33, 0
      %p278 = por %p276, %p277
      %p279 = scmp.ne.s32.totalorder %s267, %s268
      %p280 = scmp.eq.s32.totalorder %s34, 1
      %p281 = por %p279, %p280
      %p283 = scmp.ne.s32.totalorder %s268, %s282
      %p284 = scmp.eq.s32.totalorder %s34, 0
      %p285 = por %p283, %p284
      %s287 = sadd.s32 %s286, 1
      %p290 = scmp.eq.s32.totalorder %s28, 1
      %p291 = scmp.ne.s32.totalorder %s286, %s288
      %p292 = scmp.eq.s32.totalorder %s28, 0
      %p293 = por %p291, %p292
      %p294 = scmp.ne.s32.totalorder %s286, %s288
      %p295 = scmp.eq.s32.totalorder %s33, 1
      %p296 = por %p294, %p295
      %p297 = scmp.ne.s32.totalorder %s288, %s289
      %p298 = scmp.eq.s32.totalorder %s33, 0
      %p299 = por %p297, %p298
      %p300 = scmp.ne.s32.totalorder %s288, %s289
      %p301 = scmp.eq.s32.totalorder %s34, 1
      %p302 = por %p300, %p301
      %p304 = scmp.ne.s32.totalorder %s289, %s303
      %p305 = scmp.eq.s32.totalorder %s34, 0
      %p306 = por %p304, %p305
      %s308 = sadd.s32 %s307, 1
      %p311 = scmp.eq.s32.totalorder %s28, 1
      %p312 = scmp.ne.s32.totalorder %s307, %s309
      %p313 = scmp.eq.s32.totalorder %s28, 0
      %p314 = por %p312, %p313
      %p315 = scmp.ne.s32.totalorder %s307, %s309
      %p316 = scmp.eq.s32.totalorder %s33, 1
      %p317 = por %p315, %p316
      %p318 = scmp.ne.s32.totalorder %s309, %s310
      %p319 = scmp.eq.s32.totalorder %s33, 0
      %p320 = por %p318, %p319
      %p321 = scmp.ne.s32.totalorder %s309, %s310
      %p322 = scmp.eq.s32.totalorder %s34, 1
      %p323 = por %p321, %p322
      %p325 = scmp.ne.s32.totalorder %s310, %s324
      %p326 = scmp.eq.s32.totalorder %s34, 0
      %p327 = por %p325, %p326
      %s329 = sadd.s32 %s328, 1
      %p332 = scmp.eq.s32.totalorder %s28, 1
      %p333 = scmp.ne.s32.totalorder %s328, %s330
      %p334 = scmp.eq.s32.totalorder %s28, 0
      %p335 = por %p333, %p334
      %p336 = scmp.ne.s32.totalorder %s328, %s330
      %p337 = scmp.eq.s32.totalorder %s33, 1
      %p338 = por %p336, %p337
      %p339 = scmp.ne.s32.totalorder %s330, %s331
      %p340 = scmp.eq.s32.totalorder %s33, 0
      %p341 = por %p339, %p340
      %p342 = scmp.ne.s32.totalorder %s330, %s331
      %p343 = scmp.eq.s32.totalorder %s34, 1
      %p344 = por %p342, %p343
      %p346 = scmp.ne.s32.totalorder %s331, %s345
      %p347 = scmp.eq.s32.totalorder %s34, 0
      %p348 = por %p346, %p347
      %s350 = sadd.s32 %s349, 1
      %p353 = scmp.eq.s32.totalorder %s28, 1
      %p354 = scmp.ne.s32.totalorder %s349, %s351
      %p355 = scmp.eq.s32.totalorder %s28, 0
      %p356 = por %p354, %p355
      %p357 = scmp.ne.s32.totalorder %s349, %s351
      %p358 = scmp.eq.s32.totalorder %s33, 1
      %p359 = por %p357, %p358
      %p360 = scmp.ne.s32.totalorder %s351, %s352
      %p361 = scmp.eq.s32.totalorder %s33, 0
      %p362 = por %p360, %p361
      %p363 = scmp.ne.s32.totalorder %s351, %s352
      %p364 = scmp.eq.s32.totalorder %s34, 1
      %p365 = por %p363, %p364
      %p367 = scmp.ne.s32.totalorder %s352, %s366
      %p368 = scmp.eq.s32.totalorder %s34, 0
      %p369 = por %p367, %p368
      %s370 = ssub.s32 %s35, %s47
      %s371 = ssub.s32 %s36, %s43
      %s372 = sor.u32 %s370, %s371
      %p373 = scmp.eq.s32.totalorder %s372, 0
      %s375 = sadd.s32 %s374, 1
      %s376 = scalar_select %p373, %s374, %s375
      %p379 = pneg %p373
      %p380 = scmp.eq.s32.totalorder %s28, 1
      %p381 = por %p379, %p380
      %p382 = scmp.ne.s32.totalorder %s374, %s377
      %p383 = scmp.eq.s32.totalorder %s28, 0
      %p384 = por %p382, %p383
      %p385 = scmp.ne.s32.totalorder %s374, %s377
      %p386 = scmp.eq.s32.totalorder %s33, 1
      %p387 = por %p385, %p386
      %p388 = scmp.ne.s32.totalorder %s377, %s378
      %p389 = scmp.eq.s32.totalorder %s33, 0
      %p390 = por %p388, %p389
      %p391 = scmp.ne.s32.totalorder %s377, %s378
      %p392 = scmp.eq.s32.totalorder %s34, 1
      %p393 = por %p391, %p392
      %p395 = scmp.ne.s32.totalorder %s378, %s394
      %p396 = scmp.eq.s32.totalorder %s34, 0
      %p397 = por %p395, %p396
      %p398 = scmp.le.s32.totalorder 1, %s28
      %p399 = scmp.lt.s32.totalorder %s28, 3
      %p400 = pnand %p398, %p399
      %p401 = pneg %p400
      // Predicated region
      $region9: #{tpu_custom_call.1} parent=5 // pred_check
        _
      $region10: #{tpu_custom_call.1} parent=5 // pred_check_branch
        %403 = sbr.rel (%p400) target = $region12
      $region11: #{tpu_custom_call.1} parent=5 // pred_region
        %s404 = ssub.s32 %s28, 1
        // Predicated region
        $region13: #{tpu_custom_call.1} parent=11 // pred_check
          %p405 = pneg %p89
        $region14: #{tpu_custom_call.1} parent=11 // pred_check_branch
          %407 = sbr.rel (%p405) target = $region16
        $region15: #{tpu_custom_call.1} parent=11 // pred_region
          _
        $region16: #{tpu_custom_call.1} parent=11 // pred_fallthru
          _
        // Predicated region
        $region17: #{tpu_custom_call.1} parent=11 // pred_check
          %p408 = pneg %p110
        $region18: #{tpu_custom_call.1} parent=11 // pred_check_branch
          %410 = sbr.rel (%p408) target = $region20
        $region19: #{tpu_custom_call.1} parent=11 // pred_region
          _
        $region20: #{tpu_custom_call.1} parent=11 // pred_fallthru
          _
        // Predicated region
        $region21: #{tpu_custom_call.1} parent=11 // pred_check
          %p411 = pneg %p131
        $region22: #{tpu_custom_call.1} parent=11 // pred_check_branch
          %413 = sbr.rel (%p411) target = $region24
        $region23: #{tpu_custom_call.1} parent=11 // pred_region
          _
        $region24: #{tpu_custom_call.1} parent=11 // pred_fallthru
          _
        // Predicated region
        $region25: #{tpu_custom_call.1} parent=11 // pred_check
          %p414 = pneg %p152
        $region26: #{tpu_custom_call.1} parent=11 // pred_check_branch
          %416 = sbr.rel (%p414) target = $region28
        $region27: #{tpu_custom_call.1} parent=11 // pred_region
          _
        $region28: #{tpu_custom_call.1} parent=11 // pred_fallthru
          _
        // Predicated region
        $region29: #{tpu_custom_call.1} parent=11 // pred_check
          %p417 = pneg %p173
        $region30: #{tpu_custom_call.1} parent=11 // pred_check_branch
          %419 = sbr.rel (%p417) target = $region32
        $region31: #{tpu_custom_call.1} parent=11 // pred_region
          _
        $region32: #{tpu_custom_call.1} parent=11 // pred_fallthru
          _
        // Predicated region
        $region33: #{tpu_custom_call.1} parent=11 // pred_check
          %p420 = pneg %p194
        $region34: #{tpu_custom_call.1} parent=11 // pred_check_branch
          %422 = sbr.rel (%p420) target = $region36
        $region35: #{tpu_custom_call.1} parent=11 // pred_region
          _
        $region36: #{tpu_custom_call.1} parent=11 // pred_fallthru
          _
        // Predicated region
        $region37: #{tpu_custom_call.1} parent=11 // pred_check
          %p423 = pneg %p215
        $region38: #{tpu_custom_call.1} parent=11 // pred_check_branch
          %425 = sbr.rel (%p423) target = $region40
        $region39: #{tpu_custom_call.1} parent=11 // pred_region
          %427 = vsyncadd [#allocation6], 0
          %s428 = sshll.u32 %s7, 4
          %s429 = int_to_ptr.hbm [resolvable:$true] %s428
          %s430 = sshll.u32 [#allocation5], 4
          %s431 = int_to_ptr.vmem [resolvable:$true] %s430
          %436 = dma.hbm_to_vmem [thread:$0]  %s429, 512, %s431, [#allocation6], 128, 128, 8
        $region40: #{tpu_custom_call.1} parent=11 // pred_fallthru
          _
        // Predicated region
        $region41: #{tpu_custom_call.1} parent=11 // pred_check
          %p437 = pneg %p236
        $region42: #{tpu_custom_call.1} parent=11 // pred_check_branch
          %439 = sbr.rel (%p437) target = $region44
        $region43: #{tpu_custom_call.1} parent=11 // pred_region
          _
        $region44: #{tpu_custom_call.1} parent=11 // pred_fallthru
          _
        // Predicated region
        $region45: #{tpu_custom_call.1} parent=11 // pred_check
          %p440 = pneg %p257
        $region46: #{tpu_custom_call.1} parent=11 // pred_check_branch
          %442 = sbr.rel (%p440) target = $region48
        $region47: #{tpu_custom_call.1} parent=11 // pred_region
          _
        $region48: #{tpu_custom_call.1} parent=11 // pred_fallthru
          _
        // Predicated region
        $region49: #{tpu_custom_call.1} parent=11 // pred_check
          %p443 = pneg %p278
        $region50: #{tpu_custom_call.1} parent=11 // pred_check_branch
          %445 = sbr.rel (%p443) target = $region52
        $region51: #{tpu_custom_call.1} parent=11 // pred_region
          _
        $region52: #{tpu_custom_call.1} parent=11 // pred_fallthru
          _
        // Predicated region
        $region53: #{tpu_custom_call.1} parent=11 // pred_check
          %p446 = pneg %p299
        $region54: #{tpu_custom_call.1} parent=11 // pred_check_branch
          %448 = sbr.rel (%p446) target = $region56
        $region55: #{tpu_custom_call.1} parent=11 // pred_region
          _
        $region56: #{tpu_custom_call.1} parent=11 // pred_fallthru
          _
        // Predicated region
        $region57: #{tpu_custom_call.1} parent=11 // pred_check
          %p449 = pneg %p320
        $region58: #{tpu_custom_call.1} parent=11 // pred_check_branch
          %451 = sbr.rel (%p449) target = $region60
        $region59: #{tpu_custom_call.1} parent=11 // pred_region
          _
        $region60: #{tpu_custom_call.1} parent=11 // pred_fallthru
          _
        // Predicated region
        $region61: #{tpu_custom_call.1} parent=11 // pred_check
          %p452 = pneg %p341
        $region62: #{tpu_custom_call.1} parent=11 // pred_check_branch
          %454 = sbr.rel (%p452) target = $region64
        $region63: #{tpu_custom_call.1} parent=11 // pred_region
          _
        $region64: #{tpu_custom_call.1} parent=11 // pred_fallthru
          _
        // Predicated region
        $region65: #{tpu_custom_call.1} parent=11 // pred_check
          %p455 = pneg %p362
        $region66: #{tpu_custom_call.1} parent=11 // pred_check_branch
          %457 = sbr.rel (%p455) target = $region68
        $region67: #{tpu_custom_call.1} parent=11 // pred_region
          _
        $region68: #{tpu_custom_call.1} parent=11 // pred_fallthru
          _
      $region12: #{tpu_custom_call.1} parent=5 // pred_fallthru
        _
      %p458 = scmp.lt.s32.totalorder %s28, 2
      // Predicated region
      $region69: #{tpu_custom_call.1} parent=5 // pred_check
        %p459 = pneg %p458
      $region70: #{tpu_custom_call.1} parent=5 // pred_check_branch
        %461 = sbr.rel (%p459) target = $region72
      $region71: #{tpu_custom_call.1} parent=5 // pred_region
        // Predicated region
        $region73: #{tpu_custom_call.1} parent=71 // pred_check
          %p462 = pneg %p62
        $region74: #{tpu_custom_call.1} parent=71 // pred_check_branch
          %464 = sbr.rel (%p462) target = $region76
        $region75: #{tpu_custom_call.1} parent=71 // pred_region
          %s465 = sand.u32 %s52, 1
          %s466 = scalar_lea.sflag [#allocation3], %s465
          %s467 = sand.u32 %s52, 1
          %s468 = smul.addr %s467, 8
          %s469 = scalar_lea.vmem [#allocation2], %s468
          %471 = vsyncadd %s466, 0
          %s472 = sadd.s32 %s36, %s35
          %s473 = smul.addr %s472, 8
          %s474 = scalar_lea.hbm %s0, %s473
          %s476 = sshll.u32 %s474, 4
          %s477 = int_to_ptr.hbm [resolvable:$true] %s476
          %s478 = sshll.u32 %s469, 4
          %s479 = int_to_ptr.vmem [resolvable:$true] %s478
          %481 = dma.hbm_to_vmem [thread:$0]  %s477, 128, %s479, %s466
        $region76: #{tpu_custom_call.1} parent=71 // pred_fallthru
          _
      $region72: #{tpu_custom_call.1} parent=5 // pred_fallthru
        _
      %p482 = scmp.le.s32.totalorder 1, %s28
      %p483 = scmp.lt.s32.totalorder %s28, 3
      %p484 = pnand %p482, %p483
      %p485 = pneg %p484
      // Predicated region
      $region77: #{tpu_custom_call.1} parent=5 // pred_check
        _
      $region78: #{tpu_custom_call.1} parent=5 // pred_check_branch
        %487 = sbr.rel (%p484) target = $region80
      $region79: #{tpu_custom_call.1} parent=5 // pred_region
        %s488 = ssub.s32 %s28, 1
        %s489 = sand.u32 %s55, 1
        %s490 = scalar_lea.sflag [#allocation3], %s489
        %s491 = sand.u32 %s55, 1
        %s492 = smul.addr %s491, 8
        %s493 = scalar_lea.vmem [#allocation2], %s492
        // Predicated region
        $region81: #{tpu_custom_call.1} parent=79 // pred_check
          %p494 = pneg %p68
        $region82: #{tpu_custom_call.1} parent=79 // pred_check_branch
          %496 = sbr.rel (%p494) target = $region84
        $region83: #{tpu_custom_call.1} parent=79 // pred_region
          %498 = dma.done %s490, 128
        $region84: #{tpu_custom_call.1} parent=79 // pred_fallthru
          _
        // Predicated region
        $region85: #{tpu_custom_call.1} parent=79 // pred_check
          %p499 = pneg %p215
        $region86: #{tpu_custom_call.1} parent=79 // pred_check_branch
          %501 = sbr.rel (%p499) target = $region88
        $region87: #{tpu_custom_call.1} parent=79 // pred_region
          %503 = dma.done [#allocation6], 512
        $region88: #{tpu_custom_call.1} parent=79 // pred_fallthru
          _
        %s504 = sand.u32 %s55, 1
        %s505 = scalar_lea.sflag [#allocation3], %s504
        %s506 = sand.u32 %s55, 1
        %s507 = smul.addr %s506, 8
        %s508 = scalar_lea.vmem [#allocation2], %s507
        %p509 = pneg %p68
        %p510 = pneg %p65
        %p511 = pneg %p89
        %p512 = pneg %p86
        %p513 = pneg %p110
        %p514 = pneg %p107
        %p515 = pneg %p131
        %p516 = pneg %p128
        %p517 = pneg %p152
        %p518 = pneg %p149
        %p519 = pneg %p173
        %p520 = pneg %p170
        %p521 = pneg %p194
        %p522 = pneg %p191
        %p523 = pneg %p215
        %p524 = pneg %p212
        %p525 = pneg %p236
        %p526 = pneg %p233
        %p527 = pneg %p257
        %p528 = pneg %p254
        %p529 = pneg %p278
        %p530 = pneg %p275
        %p531 = pneg %p299
        %p532 = pneg %p296
        %p533 = pneg %p320
        %p534 = pneg %p317
        %p535 = pneg %p341
        %p536 = pneg %p338
        %p537 = pneg %p362
        %p538 = pneg %p359
        %p539 = pneg %p390
        %p540 = pneg %p387
        %s541 = sand.u32 %s377, 1
        %s542 = scalar_lea.sflag [#allocation4], %s541
        %s543 = sand.u32 %s377, 1
        %s544 = smul.addr %s543, 8
        %s545 = scalar_lea.vmem [#allocation7], %s544
        %v546 = vld [vmem:[%s493] sm:$0xff]
        %v547 = vld [vmem:[%s1] sm:$0xff]
        %v548 = vld [vmem:[%s1 + $0x8] sm:$0xff]
        %v549 = vld [vmem:[%s1 + $0x10] sm:$0xff]
        %v550 = vld [vmem:[%s1 + $0x18] sm:$0xff]
        %v551 = vld [vmem:[%s2] sm:$0x1]
        %v553 = vperm.slane %v551, 0
        %vm555 = vcmask 261120
        %v557 = vsel %vm555, %v546, 0
        %559 = vmatpush.msra.mxu0 0.0
        %560 = vmatpush.msra.mxu0 0.0
        %561 = vmatpush.msra.mxu0 0.0
        %562 = vmatpush.msra.mxu0 0.0
        %563 = vmatpush.msra.mxu0 0.0
        %564 = vmatpush.msra.mxu0 0.0
        %565 = vmatpush.msra.mxu0 0.0
        %566 = vmatpush.msra.mxu0 0.0
        %567 = vmatpush.msra.mxu0 0.0
        %568 = vmatpush.msra.mxu0 0.0
        %569 = vmatpush.msra.mxu0 0.0
        %570 = vmatpush.msra.mxu0 0.0
        %571 = vmatpush.msra.mxu0 %v550
        %572 = vmatpush.msra.mxu0 %v549
        %573 = vmatpush.msra.mxu0 %v548
        %574 = vmatpush.msra.mxu0 %v547
        %575 = vmatmul.f32.gmra.mxu0 %v557
        %v576 = vpop.f32.mrf.mxu0
        %v577 = vadd.f32 %v553, %v576
        %578 = vdwg.mxu0
        %v579 = vld [vmem:[%s3] sm:$0xff]
        %v580 = vld [vmem:[%s3 + $0x8] sm:$0xff]
        %v581 = vld [vmem:[%s3 + $0x10] sm:$0xff]
        %v582 = vld [vmem:[%s3 + $0x18] sm:$0xff]
        %v583 = vld [vmem:[%s4] sm:$0x1]
        %v585 = vperm.slane %v583, 0
        %587 = vmatpush.msra.mxu0 0.0
        %588 = vmatpush.msra.mxu0 0.0
        %589 = vmatpush.msra.mxu0 0.0
        %590 = vmatpush.msra.mxu0 0.0
        %591 = vmatpush.msra.mxu0 0.0
        %592 = vmatpush.msra.mxu0 0.0
        %593 = vmatpush.msra.mxu0 0.0
        %594 = vmatpush.msra.mxu0 0.0
        %595 = vmatpush.msra.mxu0 0.0
        %596 = vmatpush.msra.mxu0 0.0
        %597 = vmatpush.msra.mxu0 0.0
        %598 = vmatpush.msra.mxu0 0.0
        %599 = vmatpush.msra.mxu0 %v582
        %600 = vmatpush.msra.mxu0 %v581
        %601 = vmatpush.msra.mxu0 %v580
        %602 = vmatpush.msra.mxu0 %v579
        %603 = vmatmul.f32.gmra.mxu0 %v557
        %v604 = vpop.f32.mrf.mxu0
        %v605 = vadd.f32 %v585, %v604
        %606 = vdwg.mxu0
        %608 = vrot.lane.b32.xlu0 %v577, 120
        %v609 = vpop.permute.xlu0 %608
        %611 = vrot.lane.b32.xlu0 %v577, 112
        %v612 = vpop.permute.xlu0 %611
        %614 = vrot.lane.b32.xlu0 %v577, 104
        %v615 = vpop.permute.xlu0 %614
        %v617 = vrot.slane %v612, 4
        %vm618 = vcmask 1047556
        %v619 = vsel %vm618, %v617, %v577
        %v620 = vrot.slane %v577, 4
        %v621 = vsel %vm618, %v612, %v620
        %v623 = vunpack.c.l.s4 1983009808
        %v624 = vunpack.c.0.s8 %v623
        %v625 = vperm.slane %v619, %v624
        %v627 = vunpack.c.l.s4 1983009808
        %v628 = vunpack.c.0.s8 %v627
        %v629 = vperm.slane %v621, %v628
        %v630 = vrot.slane %v615, 4
        %v631 = vsel %vm618, %v630, %v609
        %v632 = vrot.slane %v609, 4
        %v633 = vsel %vm618, %v615, %v632
        %v635 = vunpack.c.l.s4 1983009808
        %v636 = vunpack.c.0.s8 %v635
        %v637 = vperm.slane %v631, %v636
        %v639 = vunpack.c.l.s4 1983009808
        %v640 = vunpack.c.0.s8 %v639
        %v641 = vperm.slane %v633, %v640
        %v642 = vrot.slane %v637, 4
        %v643 = vsel %vm618, %v642, %v625
        %v644 = vrot.slane %v625, 4
        %v645 = vsel %vm618, %v637, %v644
        %v647 = vunpack.c.l.s4 1934713408
        %v648 = vunpack.c.0.s8 %v647
        %v649 = vperm.slane %v643, %v648
        %v651 = vunpack.c.l.s4 1934713408
        %v652 = vunpack.c.0.s8 %v651
        %v653 = vperm.slane %v645, %v652
        %v654 = vrot.slane %v641, 4
        %v655 = vsel %vm618, %v654, %v629
        %v656 = vrot.slane %v629, 4
        %v657 = vsel %vm618, %v641, %v656
        %v659 = vunpack.c.l.s4 1934713408
        %v660 = vunpack.c.0.s8 %v659
        %v661 = vperm.slane %v655, %v660
        %v663 = vunpack.c.l.s4 1934713408
        %v664 = vunpack.c.0.s8 %v663
        %v665 = vperm.slane %v657, %v664
        %v666 = vrot.slane %v649, 4
        %v667 = vsel %vm618, 0.0, %v666
        %v668 = vrot.slane %v653, 4
        %v669 = vsel %vm618, 0.0, %v668
        %v670 = vrot.slane %v661, 4
        %v671 = vsel %vm618, 0.0, %v670
        %v672 = vrot.slane %v665, 4
        %v673 = vsel %vm618, 0.0, %v672
        %675 = vrot.lane.b32.xlu0 %v605, 120
        %v676 = vpop.permute.xlu0 %675
        %678 = vrot.lane.b32.xlu0 %v605, 112
        %v679 = vpop.permute.xlu0 %678
        %681 = vrot.lane.b32.xlu0 %v605, 104
        %v682 = vpop.permute.xlu0 %681
        %v684 = vrot.slane %v679, 4
        %v685 = vsel %vm618, %v684, %v605
        %v686 = vrot.slane %v605, 4
        %v687 = vsel %vm618, %v679, %v686
        %v689 = vunpack.c.l.s4 1983009808
        %v690 = vunpack.c.0.s8 %v689
        %v691 = vperm.slane %v685, %v690
        %v693 = vunpack.c.l.s4 1983009808
        %v694 = vunpack.c.0.s8 %v693
        %v695 = vperm.slane %v687, %v694
        %v696 = vrot.slane %v682, 4
        %v697 = vsel %vm618, %v696, %v676
        %v698 = vrot.slane %v676, 4
        %v699 = vsel %vm618, %v682, %v698
        %v701 = vunpack.c.l.s4 1983009808
        %v702 = vunpack.c.0.s8 %v701
        %v703 = vperm.slane %v697, %v702
        %v705 = vunpack.c.l.s4 1983009808
        %v706 = vunpack.c.0.s8 %v705
        %v707 = vperm.slane %v699, %v706
        %v708 = vrot.slane %v703, 4
        %v709 = vsel %vm618, %v708, %v691
        %v710 = vrot.slane %v691, 4
        %v711 = vsel %vm618, %v703, %v710
        %v713 = vunpack.c.l.s4 1934713408
        %v714 = vunpack.c.0.s8 %v713
        %v715 = vperm.slane %v709, %v714
        %v717 = vunpack.c.l.s4 1934713408
        %v718 = vunpack.c.0.s8 %v717
        %v719 = vperm.slane %v711, %v718
        %v720 = vrot.slane %v707, 4
        %v721 = vsel %vm618, %v720, %v695
        %v722 = vrot.slane %v695, 4
        %v723 = vsel %vm618, %v707, %v722
        %v725 = vunpack.c.l.s4 1934713408
        %v726 = vunpack.c.0.s8 %v725
        %v727 = vperm.slane %v721, %v726
        %v729 = vunpack.c.l.s4 1934713408
        %v730 = vunpack.c.0.s8 %v729
        %v731 = vperm.slane %v723, %v730
        %v732 = vrot.slane %v715, 4
        %v733 = vsel %vm618, 0.0, %v732
        %v734 = vrot.slane %v719, 4
        %v735 = vsel %vm618, 0.0, %v734
        %v736 = vrot.slane %v727, 4
        %v737 = vsel %vm618, 0.0, %v736
        %v738 = vrot.slane %v731, 4
        %v739 = vsel %vm618, 0.0, %v738
        %740 = vrot.lane.b32.xlu0 %v605, 96
        %v741 = vpop.permute.xlu0 %740
        %742 = vrot.lane.b32.xlu0 %v676, 96
        %v743 = vpop.permute.xlu0 %742
        %744 = vrot.lane.b32.xlu0 %v679, 96
        %v745 = vpop.permute.xlu0 %744
        %746 = vrot.lane.b32.xlu0 %v682, 96
        %v747 = vpop.permute.xlu0 %746
        %v752 = vrot.slane %v745, 4
        %v753 = vsel %vm618, %v752, %v741
        %v754 = vrot.slane %v741, 4
        %v755 = vsel %vm618, %v745, %v754
        %v757 = vunpack.c.l.s4 1983009808
        %v758 = vunpack.c.0.s8 %v757
        %v759 = vperm.slane %v753, %v758
        %v761 = vunpack.c.l.s4 1983009808
        %v762 = vunpack.c.0.s8 %v761
        %v763 = vperm.slane %v755, %v762
        %v764 = vrot.slane %v747, 4
        %v765 = vsel %vm618, %v764, %v743
        %v766 = vrot.slane %v743, 4
        %v767 = vsel %vm618, %v747, %v766
        %v769 = vunpack.c.l.s4 1983009808
        %v770 = vunpack.c.0.s8 %v769
        %v771 = vperm.slane %v765, %v770
        %v773 = vunpack.c.l.s4 1983009808
        %v774 = vunpack.c.0.s8 %v773
        %v775 = vperm.slane %v767, %v774
        %v776 = vrot.slane %v771, 4
        %v777 = vsel %vm618, %v776, %v759
        %v778 = vrot.slane %v759, 4
        %v779 = vsel %vm618, %v771, %v778
        %v781 = vunpack.c.l.s4 1934713408
        %v782 = vunpack.c.0.s8 %v781
        %v783 = vperm.slane %v777, %v782
        %v785 = vunpack.c.l.s4 1934713408
        %v786 = vunpack.c.0.s8 %v785
        %v787 = vperm.slane %v779, %v786
        %v788 = vrot.slane %v775, 4
        %v789 = vsel %vm618, %v788, %v763
        %v790 = vrot.slane %v763, 4
        %v791 = vsel %vm618, %v775, %v790
        %v793 = vunpack.c.l.s4 1934713408
        %v794 = vunpack.c.0.s8 %v793
        %v795 = vperm.slane %v789, %v794
        %v797 = vunpack.c.l.s4 1934713408
        %v798 = vunpack.c.0.s8 %v797
        %v799 = vperm.slane %v791, %v798
        %v800 = vrot.slane %v783, 4
        %v801 = vsel %vm618, 0.0, %v800
        %v802 = vrot.slane %v787, 4
        %v803 = vsel %vm618, 0.0, %v802
        %v804 = vrot.slane %v795, 4
        %v805 = vsel %vm618, 0.0, %v804
        %v806 = vrot.slane %v799, 4
        %v807 = vsel %vm618, 0.0, %v806
        %v808 = vsel %vm618, %v668, %v649
        %v810 = vunpack.c.l.s4 1983009808
        %v811 = vunpack.c.0.s8 %v810
        %v812 = vperm.slane %v808, %v811
        %v813 = vrot.slane %v669, 4
        %v814 = vsel %vm618, %v813, %v667
        %v816 = vunpack.c.l.s4 1983009808
        %v817 = vunpack.c.0.s8 %v816
        %v818 = vperm.slane %v814, %v817
        %v819 = vsel %vm618, %v672, %v661
        %v821 = vunpack.c.l.s4 1983009808
        %v822 = vunpack.c.0.s8 %v821
        %v823 = vperm.slane %v819, %v822
        %v824 = vrot.slane %v673, 4
        %v825 = vsel %vm618, %v824, %v671
        %v827 = vunpack.c.l.s4 1983009808
        %v828 = vunpack.c.0.s8 %v827
        %v829 = vperm.slane %v825, %v828
        %v830 = vrot.slane %v818, 4
        %v831 = vsel %vm618, %v830, %v812
        %v832 = vrot.slane %v812, 4
        %v833 = vsel %vm618, %v818, %v832
        %v835 = vunpack.c.l.s4 1934713408
        %v836 = vunpack.c.0.s8 %v835
        %v837 = vperm.slane %v831, %v836
        %v839 = vunpack.c.l.s4 1934713408
        %v840 = vunpack.c.0.s8 %v839
        %v841 = vperm.slane %v833, %v840
        %v842 = vrot.slane %v829, 4
        %v843 = vsel %vm618, %v842, %v823
        %v844 = vrot.slane %v823, 4
        %v845 = vsel %vm618, %v829, %v844
        %v847 = vunpack.c.l.s4 1934713408
        %v848 = vunpack.c.0.s8 %v847
        %v849 = vperm.slane %v843, %v848
        %v851 = vunpack.c.l.s4 1934713408
        %v852 = vunpack.c.0.s8 %v851
        %v853 = vperm.slane %v845, %v852
        %v854 = vrot.slane %v849, 4
        %v855 = vsel %vm618, %v854, %v837
        %v856 = vrot.slane %v837, 4
        %v857 = vsel %vm618, %v849, %v856
        %v858 = vrot.slane %v853, 4
        %v859 = vsel %vm618, %v858, %v841
        %v860 = vrot.slane %v841, 4
        %v861 = vsel %vm618, %v853, %v860
        %v862 = vsel %vm618, %v734, %v715
        %v864 = vunpack.c.l.s4 1983009808
        %v865 = vunpack.c.0.s8 %v864
        %v866 = vperm.slane %v862, %v865
        %v867 = vrot.slane %v735, 4
        %v868 = vsel %vm618, %v867, %v733
        %v870 = vunpack.c.l.s4 1983009808
        %v871 = vunpack.c.0.s8 %v870
        %v872 = vperm.slane %v868, %v871
        %v873 = vsel %vm618, %v738, %v727
        %v875 = vunpack.c.l.s4 1983009808
        %v876 = vunpack.c.0.s8 %v875
        %v877 = vperm.slane %v873, %v876
        %v878 = vrot.slane %v739, 4
        %v879 = vsel %vm618, %v878, %v737
        %v881 = vunpack.c.l.s4 1983009808
        %v882 = vunpack.c.0.s8 %v881
        %v883 = vperm.slane %v879, %v882
        %v884 = vrot.slane %v872, 4
        %v885 = vsel %vm618, %v884, %v866
        %v886 = vrot.slane %v866, 4
        %v887 = vsel %vm618, %v872, %v886
        %v889 = vunpack.c.l.s4 1934713408
        %v890 = vunpack.c.0.s8 %v889
        %v891 = vperm.slane %v885, %v890
        %v893 = vunpack.c.l.s4 1934713408
        %v894 = vunpack.c.0.s8 %v893
        %v895 = vperm.slane %v887, %v894
        %v896 = vrot.slane %v883, 4
        %v897 = vsel %vm618, %v896, %v877
        %v898 = vrot.slane %v877, 4
        %v899 = vsel %vm618, %v883, %v898
        %v901 = vunpack.c.l.s4 1934713408
        %v902 = vunpack.c.0.s8 %v901
        %v903 = vperm.slane %v897, %v902
        %v905 = vunpack.c.l.s4 1934713408
        %v906 = vunpack.c.0.s8 %v905
        %v907 = vperm.slane %v899, %v906
        %v908 = vrot.slane %v903, 4
        %v909 = vsel %vm618, %v908, %v891
        %v910 = vrot.slane %v891, 4
        %v911 = vsel %vm618, %v903, %v910
        %v912 = vrot.slane %v907, 4
        %v913 = vsel %vm618, %v912, %v895
        %v914 = vrot.slane %v895, 4
        %v915 = vsel %vm618, %v907, %v914
        %v916 = vsel %vm618, %v802, %v783
        %v918 = vunpack.c.l.s4 1983009808
        %v919 = vunpack.c.0.s8 %v918
        %v920 = vperm.slane %v916, %v919
        %v921 = vrot.slane %v803, 4
        %v922 = vsel %vm618, %v921, %v801
        %v924 = vunpack.c.l.s4 1983009808
        %v925 = vunpack.c.0.s8 %v924
        %v926 = vperm.slane %v922, %v925
        %v927 = vsel %vm618, %v806, %v795
        %v929 = vunpack.c.l.s4 1983009808
        %v930 = vunpack.c.0.s8 %v929
        %v931 = vperm.slane %v927, %v930
        %v932 = vrot.slane %v807, 4
        %v933 = vsel %vm618, %v932, %v805
        %v935 = vunpack.c.l.s4 1983009808
        %v936 = vunpack.c.0.s8 %v935
        %v937 = vperm.slane %v933, %v936
        %v938 = vrot.slane %v926, 4
        %v939 = vsel %vm618, %v938, %v920
        %v940 = vrot.slane %v920, 4
        %v941 = vsel %vm618, %v926, %v940
        %v943 = vunpack.c.l.s4 1934713408
        %v944 = vunpack.c.0.s8 %v943
        %v945 = vperm.slane %v939, %v944
        %v947 = vunpack.c.l.s4 1934713408
        %v948 = vunpack.c.0.s8 %v947
        %v949 = vperm.slane %v941, %v948
        %v950 = vrot.slane %v937, 4
        %v951 = vsel %vm618, %v950, %v931
        %v952 = vrot.slane %v931, 4
        %v953 = vsel %vm618, %v937, %v952
        %v955 = vunpack.c.l.s4 1934713408
        %v956 = vunpack.c.0.s8 %v955
        %v957 = vperm.slane %v951, %v956
        %v959 = vunpack.c.l.s4 1934713408
        %v960 = vunpack.c.0.s8 %v959
        %v961 = vperm.slane %v953, %v960
        %v962 = vrot.slane %v957, 4
        %v963 = vsel %vm618, %v962, %v945
        %v964 = vrot.slane %v945, 4
        %v965 = vsel %vm618, %v957, %v964
        %v966 = vrot.slane %v961, 4
        %v967 = vsel %vm618, %v966, %v949
        %v968 = vrot.slane %v949, 4
        %v969 = vsel %vm618, %v961, %v968
        %vm970 = vcmask 64512
        %v972 = vsel %vm970, %v855, 0
        %v975 = vsel %vm970, %v909, 0
        %977 = vmatpush.xpose.msra.mxu0 0.0
        %978 = vmatpush.xpose.msra.mxu0 0.0
        %979 = vmatpush.xpose.msra.mxu0 0.0
        %980 = vmatpush.xpose.msra.mxu0 0.0
        %981 = vmatpush.xpose.msra.mxu0 0.0
        %982 = vmatpush.xpose.msra.mxu0 0.0
        %983 = vmatpush.xpose.msra.mxu0 0.0
        %984 = vmatpush.xpose.msra.mxu0 0.0
        %985 = vmatpush.xpose.msra.mxu0 0.0
        %986 = vmatpush.xpose.msra.mxu0 0.0
        %987 = vmatpush.xpose.msra.mxu0 0.0
        %988 = vmatpush.xpose.msra.mxu0 0.0
        %989 = vmatpush.xpose.msra.mxu0 0.0
        %990 = vmatpush.xpose.msra.mxu0 0.0
        %991 = vmatpush.xpose.msra.mxu0 0.0
        %992 = vmatpush.xpose.msra.mxu0 %v975
        %993 = vmatmul.f32.gmra.mxu0 %v972
        %v994 = vpop.f32.mrf.mxu0
        %v995 = vadd.f32 0.0, %v994
        %996 = vdwg.mxu0
        %v998 = vsel %vm970, %v857, 0
        %v1001 = vsel %vm970, %v911, 0
        %1003 = vmatpush.xpose.msra.mxu0 0.0
        %1004 = vmatpush.xpose.msra.mxu0 0.0
        %1005 = vmatpush.xpose.msra.mxu0 0.0
        %1006 = vmatpush.xpose.msra.mxu0 0.0
        %1007 = vmatpush.xpose.msra.mxu0 0.0
        %1008 = vmatpush.xpose.msra.mxu0 0.0
        %1009 = vmatpush.xpose.msra.mxu0 0.0
        %1010 = vmatpush.xpose.msra.mxu0 0.0
        %1011 = vmatpush.xpose.msra.mxu0 0.0
        %1012 = vmatpush.xpose.msra.mxu0 0.0
        %1013 = vmatpush.xpose.msra.mxu0 0.0
        %1014 = vmatpush.xpose.msra.mxu0 0.0
        %1015 = vmatpush.xpose.msra.mxu0 0.0
        %1016 = vmatpush.xpose.msra.mxu0 0.0
        %1017 = vmatpush.xpose.msra.mxu0 0.0
        %1018 = vmatpush.xpose.msra.mxu0 %v1001
        %1019 = vmatmul.f32.gmra.mxu0 %v998
        %v1020 = vpop.f32.mrf.mxu0
        %v1021 = vadd.f32 0.0, %v1020
        %1022 = vdwg.mxu0
        %v1024 = vsel %vm970, %v859, 0
        %v1027 = vsel %vm970, %v913, 0
        %1029 = vmatpush.xpose.msra.mxu0 0.0
        %1030 = vmatpush.xpose.msra.mxu0 0.0
        %1031 = vmatpush.xpose.msra.mxu0 0.0
        %1032 = vmatpush.xpose.msra.mxu0 0.0
        %1033 = vmatpush.xpose.msra.mxu0 0.0
        %1034 = vmatpush.xpose.msra.mxu0 0.0
        %1035 = vmatpush.xpose.msra.mxu0 0.0
        %1036 = vmatpush.xpose.msra.mxu0 0.0
        %1037 = vmatpush.xpose.msra.mxu0 0.0
        %1038 = vmatpush.xpose.msra.mxu0 0.0
        %1039 = vmatpush.xpose.msra.mxu0 0.0
        %1040 = vmatpush.xpose.msra.mxu0 0.0
        %1041 = vmatpush.xpose.msra.mxu0 0.0
        %1042 = vmatpush.xpose.msra.mxu0 0.0
        %1043 = vmatpush.xpose.msra.mxu0 0.0
        %1044 = vmatpush.xpose.msra.mxu0 %v1027
        %1045 = vmatmul.f32.gmra.mxu0 %v1024
        %v1046 = vpop.f32.mrf.mxu0
        %v1047 = vadd.f32 0.0, %v1046
        %1048 = vdwg.mxu0
        %v1050 = vsel %vm970, %v861, 0
        %v1053 = vsel %vm970, %v915, 0
        %1055 = vmatpush.xpose.msra.mxu0 0.0
        %1056 = vmatpush.xpose.msra.mxu0 0.0
        %1057 = vmatpush.xpose.msra.mxu0 0.0
        %1058 = vmatpush.xpose.msra.mxu0 0.0
        %1059 = vmatpush.xpose.msra.mxu0 0.0
        %1060 = vmatpush.xpose.msra.mxu0 0.0
        %1061 = vmatpush.xpose.msra.mxu0 0.0
        %1062 = vmatpush.xpose.msra.mxu0 0.0
        %1063 = vmatpush.xpose.msra.mxu0 0.0
        %1064 = vmatpush.xpose.msra.mxu0 0.0
        %1065 = vmatpush.xpose.msra.mxu0 0.0
        %1066 = vmatpush.xpose.msra.mxu0 0.0
        %1067 = vmatpush.xpose.msra.mxu0 0.0
        %1068 = vmatpush.xpose.msra.mxu0 0.0
        %1069 = vmatpush.xpose.msra.mxu0 0.0
        %1070 = vmatpush.xpose.msra.mxu0 %v1053
        %1071 = vmatmul.f32.gmra.mxu0 %v1050
        %v1072 = vpop.f32.mrf.mxu0
        %v1073 = vadd.f32 0.0, %v1072
        %1074 = vdwg.mxu0
        %v1075 = vmul.f32 %v995, 0.35355338
        %v1076 = vmul.f32 %v1021, 0.35355338
        %v1077 = vmul.f32 %v1047, 0.35355338
        %v1078 = vmul.f32 %v1073, 0.35355338
        %v1079 = vsel %vm970, %v1075, -inf
        %1080 = vmax.xlane.f32.xlu0 %v1079
        %v1081 = vpop.xlane.xlu0 %1080
        %v1082 = vsel %vm970, %v1076, -inf
        %1083 = vmax.xlane.f32.xlu0 %v1082
        %v1084 = vpop.xlane.xlu0 %1083
        %v1085 = vsel %vm970, %v1077, -inf
        %1086 = vmax.xlane.f32.xlu0 %v1085
        %v1087 = vpop.xlane.xlu0 %1086
        %v1088 = vsel %vm970, %v1078, -inf
        %1089 = vmax.xlane.f32.xlu0 %v1088
        %v1090 = vpop.xlane.xlu0 %1089
        %v1091 = vsub.f32 %v1075, %v1081
        %v1092 = vsub.f32 %v1076, %v1084
        %v1093 = vsub.f32 %v1077, %v1087
        %v1094 = vsub.f32 %v1078, %v1090
        %v1095 = vmul.f32 %v1091, 1.442695
        %v1096 = vpow.pop %v1095
        %v1097 = vmul.f32 %v1092, 1.442695
        %v1098 = vpow.pop %v1097
        %v1099 = vmul.f32 %v1093, 1.442695
        %v1100 = vpow.pop %v1099
        %v1101 = vmul.f32 %v1094, 1.442695
        %v1102 = vpow.pop %v1101
        %v1103 = vsel %vm970, %v1096, 0.0
        %1104 = vadd.xlane.f32.xlu0 %v1103
        %v1105 = vpop.xlane.xlu0 %1104
        %v1106 = vsel %vm970, %v1098, 0.0
        %1107 = vadd.xlane.f32.xlu0 %v1106
        %v1108 = vpop.xlane.xlu0 %1107
        %v1109 = vsel %vm970, %v1100, 0.0
        %1110 = vadd.xlane.f32.xlu0 %v1109
        %v1111 = vpop.xlane.xlu0 %1110
        %v1112 = vsel %vm970, %v1102, 0.0
        %1113 = vadd.xlane.f32.xlu0 %v1112
        %v1114 = vpop.xlane.xlu0 %1113
        %v1115 = vrcp.pop %v1105
        %v1116 = vrcp.pop %v1108
        %v1117 = vrcp.pop %v1111
        %v1118 = vrcp.pop %v1114
        %v1119 = vmul.f32 %v1096, %v1115
        %v1120 = vmul.f32 %v1098, %v1116
        %v1121 = vmul.f32 %v1100, %v1117
        %v1122 = vmul.f32 %v1102, %v1118
        %v1124 = vsel %vm970, %v1119, 0
        %1126 = vmatpush.msra.mxu0 0.0
        %1127 = vmatpush.msra.mxu0 0.0
        %1128 = vmatpush.msra.mxu0 0.0
        %1129 = vmatpush.msra.mxu0 0.0
        %1130 = vmatpush.msra.mxu0 0.0
        %1131 = vmatpush.msra.mxu0 0.0
        %1132 = vmatpush.msra.mxu0 0.0
        %1133 = vmatpush.msra.mxu0 0.0
        %1134 = vmatpush.msra.mxu0 0.0
        %1135 = vmatpush.msra.mxu0 0.0
        %1136 = vmatpush.msra.mxu0 0.0
        %1137 = vmatpush.msra.mxu0 0.0
        %1138 = vmatpush.msra.mxu0 0.0
        %1139 = vmatpush.msra.mxu0 0.0
        %1140 = vmatpush.msra.mxu0 0.0
        %1141 = vmatpush.msra.mxu0 %v963
        %1142 = vmatmul.f32.gmra.mxu0 %v1124
        %v1143 = vpop.f32.mrf.mxu0
        %v1144 = vadd.f32 0.0, %v1143
        %1145 = vdwg.mxu0
        %v1147 = vsel %vm970, %v1120, 0
        %1149 = vmatpush.msra.mxu0 0.0
        %1150 = vmatpush.msra.mxu0 0.0
        %1151 = vmatpush.msra.mxu0 0.0
        %1152 = vmatpush.msra.mxu0 0.0
        %1153 = vmatpush.msra.mxu0 0.0
        %1154 = vmatpush.msra.mxu0 0.0
        %1155 = vmatpush.msra.mxu0 0.0
        %1156 = vmatpush.msra.mxu0 0.0
        %1157 = vmatpush.msra.mxu0 0.0
        %1158 = vmatpush.msra.mxu0 0.0
        %1159 = vmatpush.msra.mxu0 0.0
        %1160 = vmatpush.msra.mxu0 0.0
        %1161 = vmatpush.msra.mxu0 0.0
        %1162 = vmatpush.msra.mxu0 0.0
        %1163 = vmatpush.msra.mxu0 0.0
        %1164 = vmatpush.msra.mxu0 %v965
        %1165 = vmatmul.f32.gmra.mxu0 %v1147
        %v1166 = vpop.f32.mrf.mxu0
        %v1167 = vadd.f32 0.0, %v1166
        %1168 = vdwg.mxu0
        %v1170 = vsel %vm970, %v1121, 0
        %1172 = vmatpush.msra.mxu0 0.0
        %1173 = vmatpush.msra.mxu0 0.0
        %1174 = vmatpush.msra.mxu0 0.0
        %1175 = vmatpush.msra.mxu0 0.0
        %1176 = vmatpush.msra.mxu0 0.0
        %1177 = vmatpush.msra.mxu0 0.0
        %1178 = vmatpush.msra.mxu0 0.0
        %1179 = vmatpush.msra.mxu0 0.0
        %1180 = vmatpush.msra.mxu0 0.0
        %1181 = vmatpush.msra.mxu0 0.0
        %1182 = vmatpush.msra.mxu0 0.0
        %1183 = vmatpush.msra.mxu0 0.0
        %1184 = vmatpush.msra.mxu0 0.0
        %1185 = vmatpush.msra.mxu0 0.0
        %1186 = vmatpush.msra.mxu0 0.0
        %1187 = vmatpush.msra.mxu0 %v967
        %1188 = vmatmul.f32.gmra.mxu0 %v1170
        %v1189 = vpop.f32.mrf.mxu0
        %v1190 = vadd.f32 0.0, %v1189
        %1191 = vdwg.mxu0
        %v1193 = vsel %vm970, %v1122, 0
        %1195 = vmatpush.msra.mxu0 0.0
        %1196 = vmatpush.msra.mxu0 0.0
        %1197 = vmatpush.msra.mxu0 0.0
        %1198 = vmatpush.msra.mxu0 0.0
        %1199 = vmatpush.msra.mxu0 0.0
        %1200 = vmatpush.msra.mxu0 0.0
        %1201 = vmatpush.msra.mxu0 0.0
        %1202 = vmatpush.msra.mxu0 0.0
        %1203 = vmatpush.msra.mxu0 0.0
        %1204 = vmatpush.msra.mxu0 0.0
        %1205 = vmatpush.msra.mxu0 0.0
        %1206 = vmatpush.msra.mxu0 0.0
        %1207 = vmatpush.msra.mxu0 0.0
        %1208 = vmatpush.msra.mxu0 0.0
        %1209 = vmatpush.msra.mxu0 0.0
        %1210 = vmatpush.msra.mxu0 %v969
        %1211 = vmatmul.f32.gmra.mxu0 %v1193
        %v1212 = vpop.f32.mrf.mxu0
        %v1213 = vadd.f32 0.0, %v1212
        %1214 = vdwg.mxu0
        %v1215 = vrot.slane %v1190, 4
        %v1216 = vsel %vm618, %v1215, %v1144
        %v1217 = vrot.slane %v1144, 4
        %v1218 = vsel %vm618, %v1190, %v1217
        %v1220 = vunpack.c.l.s4 1983009808
        %v1221 = vunpack.c.0.s8 %v1220
        %v1222 = vperm.slane %v1216, %v1221
        %v1224 = vunpack.c.l.s4 1983009808
        %v1225 = vunpack.c.0.s8 %v1224
        %v1226 = vperm.slane %v1218, %v1225
        %v1227 = vrot.slane %v1213, 4
        %v1228 = vsel %vm618, %v1227, %v1167
        %v1229 = vrot.slane %v1167, 4
        %v1230 = vsel %vm618, %v1213, %v1229
        %v1232 = vunpack.c.l.s4 1983009808
        %v1233 = vunpack.c.0.s8 %v1232
        %v1234 = vperm.slane %v1228, %v1233
        %v1236 = vunpack.c.l.s4 1983009808
        %v1237 = vunpack.c.0.s8 %v1236
        %v1238 = vperm.slane %v1230, %v1237
        %v1239 = vrot.slane %v1234, 4
        %v1240 = vsel %vm618, %v1239, %v1222
        %v1241 = vrot.slane %v1222, 4
        %v1242 = vsel %vm618, %v1234, %v1241
        %v1244 = vunpack.c.l.s4 1934713408
        %v1245 = vunpack.c.0.s8 %v1244
        %v1246 = vperm.slane %v1240, %v1245
        %v1248 = vunpack.c.l.s4 1934713408
        %v1249 = vunpack.c.0.s8 %v1248
        %v1250 = vperm.slane %v1242, %v1249
        %v1251 = vrot.slane %v1238, 4
        %v1252 = vsel %vm618, %v1251, %v1226
        %v1253 = vrot.slane %v1226, 4
        %v1254 = vsel %vm618, %v1238, %v1253
        %v1256 = vunpack.c.l.s4 1934713408
        %v1257 = vunpack.c.0.s8 %v1256
        %v1258 = vperm.slane %v1252, %v1257
        %v1260 = vunpack.c.l.s4 1934713408
        %v1261 = vunpack.c.0.s8 %v1260
        %v1262 = vperm.slane %v1254, %v1261
        %v1263 = vrot.slane %v1246, 4
        %v1264 = vsel %vm618, 0.0, %v1263
        %v1265 = vrot.slane %v1250, 4
        %v1266 = vsel %vm618, 0.0, %v1265
        %v1267 = vrot.slane %v1258, 4
        %v1268 = vsel %vm618, 0.0, %v1267
        %v1269 = vrot.slane %v1262, 4
        %v1270 = vsel %vm618, 0.0, %v1269
        %v1271 = vsel %vm618, %v1265, %v1246
        %v1273 = vunpack.c.l.s4 1983009808
        %v1274 = vunpack.c.0.s8 %v1273
        %v1275 = vperm.slane %v1271, %v1274
        %v1276 = vrot.slane %v1266, 4
        %v1277 = vsel %vm618, %v1276, %v1264
        %v1279 = vunpack.c.l.s4 1983009808
        %v1280 = vunpack.c.0.s8 %v1279
        %v1281 = vperm.slane %v1277, %v1280
        %v1282 = vsel %vm618, %v1269, %v1258
        %v1284 = vunpack.c.l.s4 1983009808
        %v1285 = vunpack.c.0.s8 %v1284
        %v1286 = vperm.slane %v1282, %v1285
        %v1287 = vrot.slane %v1270, 4
        %v1288 = vsel %vm618, %v1287, %v1268
        %v1290 = vunpack.c.l.s4 1983009808
        %v1291 = vunpack.c.0.s8 %v1290
        %v1292 = vperm.slane %v1288, %v1291
        %v1293 = vrot.slane %v1281, 4
        %v1294 = vsel %vm618, %v1293, %v1275
        %v1295 = vrot.slane %v1275, 4
        %v1296 = vsel %vm618, %v1281, %v1295
        %v1298 = vunpack.c.l.s4 1934713408
        %v1299 = vunpack.c.0.s8 %v1298
        %v1300 = vperm.slane %v1294, %v1299
        %v1302 = vunpack.c.l.s4 1934713408
        %v1303 = vunpack.c.0.s8 %v1302
        %v1304 = vperm.slane %v1296, %v1303
        %v1305 = vrot.slane %v1292, 4
        %v1306 = vsel %vm618, %v1305, %v1286
        %v1307 = vrot.slane %v1286, 4
        %v1308 = vsel %vm618, %v1292, %v1307
        %v1310 = vunpack.c.l.s4 1934713408
        %v1311 = vunpack.c.0.s8 %v1310
        %v1312 = vperm.slane %v1306, %v1311
        %v1314 = vunpack.c.l.s4 1934713408
        %v1315 = vunpack.c.0.s8 %v1314
        %v1316 = vperm.slane %v1308, %v1315
        %v1317 = vrot.slane %v1312, 4
        %v1318 = vsel %vm618, %v1317, %v1300
        %v1319 = vrot.slane %v1300, 4
        %v1320 = vsel %vm618, %v1312, %v1319
        %v1321 = vrot.slane %v1316, 4
        %v1322 = vsel %vm618, %v1321, %v1304
        %v1323 = vrot.slane %v1304, 4
        %v1324 = vsel %vm618, %v1316, %v1323
        %1326 = vrot.lane.b32.xlu0 %v1320, 8
        %v1327 = vpop.permute.xlu0 %1326
        %1330 = vrot.lane.b32.xlu0 %v1322, 16
        %v1331 = vpop.permute.xlu0 %1330
        %1334 = vrot.lane.b32.xlu0 %v1324, 24
        %v1335 = vpop.permute.xlu0 %1334
        %v1337 = vsel %vm970, %v1318, %v1327
        %vm1338 = vcmask 130048
        %v1339 = vsel %vm1338, %v1337, %v1331
        %vm1340 = vcmask 195584
        %v1341 = vsel %vm1340, %v1339, %v1335
        %v1342 = vld [vmem:[%s5] sm:$0xff]
        %v1343 = vld [vmem:[%s5 + $0x8] sm:$0xff]
        %v1344 = vld [vmem:[%s5 + $0x10] sm:$0xff]
        %v1345 = vld [vmem:[%s5 + $0x18] sm:$0xff]
        %v1346 = vld [vmem:[%s6] sm:$0x1]
        %v1348 = vperm.slane %v1346, 0
        %v1351 = vsel %vm555, %v1341, 0
        %1353 = vmatpush.msra.mxu0 0.0
        %1354 = vmatpush.msra.mxu0 0.0
        %1355 = vmatpush.msra.mxu0 0.0
        %1356 = vmatpush.msra.mxu0 0.0
        %1357 = vmatpush.msra.mxu0 0.0
        %1358 = vmatpush.msra.mxu0 0.0
        %1359 = vmatpush.msra.mxu0 0.0
        %1360 = vmatpush.msra.mxu0 0.0
        %1361 = vmatpush.msra.mxu0 0.0
        %1362 = vmatpush.msra.mxu0 0.0
        %1363 = vmatpush.msra.mxu0 0.0
        %1364 = vmatpush.msra.mxu0 0.0
        %1365 = vmatpush.msra.mxu0 %v1345
        %1366 = vmatpush.msra.mxu0 %v1344
        %1367 = vmatpush.msra.mxu0 %v1343
        %1368 = vmatpush.msra.mxu0 %v1342
        %1369 = vmatmul.f32.gmra.mxu0 %v1351
        %v1370 = vpop.f32.mrf.mxu0
        %v1371 = vadd.f32 %v1348, %v1370
        %1372 = vdwg.mxu0
        %v1373 = vadd.f32 %v546, %v1371
        %v1374 = vsel %vm555, %v1373, 0.0
        %1375 = vadd.xlane.f32.xlu0 %v1374
        %v1376 = vpop.xlane.xlu0 %1375
        %v1377 = vrcp.pop 32.0
        %v1378 = vmul.f32 32.0, %v1377
        %v1379 = vsub.f32 1.0, %v1378
        %v1380 = vmul.f32 %v1377, %v1379
        %v1381 = vadd.f32 %v1377, %v1380
        %vm1382 = vweird.f32 %v1377
        %v1383 = vsel %vm1382, %v1377, %v1381
        %v1384 = vmul.f32 %v1376, %v1383
        %v1385 = vsub.f32 %v1373, %v1384
        %v1386 = vmul.f32 %v1385, %v1385
        %v1387 = vsel %vm555, %v1386, 0.0
        %1388 = vadd.xlane.f32.xlu0 %v1387
        %v1389 = vpop.xlane.xlu0 %1388
        %v1390 = vmul.f32 %v1389, %v1383
        %v1391 = vadd.f32 %v1390, 1e-05
        %v1392 = vrsqrt.pop %v1391
        %v1393 = vmul.f32 %v1392, %v1391
        %v1394 = vmul.f32 %v1393, %v1392
        %v1395 = vmul.f32 0.5, %v1394
        %v1396 = vsub.f32 1.5, %v1395
        %v1397 = vmul.f32 %v1392, %v1396
        %vm1398 = vweird.f32 %v1391
        %vm1399 = vweird.f32 %v1392
        %vm1400 = vmor %vm1398, %vm1399
        %v1401 = vsel %vm1400, %v1392, %v1397
        %v1402 = vmul.f32 %v1385, %v1401
        %v1403 = vld [vmem:[%s11] sm:$0x1]
        %v1405 = vperm.slane %v1403, 0
        %v1407 = vmul.f32 %v1402, %v1405
        %v1408 = vld [vmem:[%s12] sm:$0x1]
        %v1410 = vperm.slane %v1408, 0
        %v1412 = vadd.f32 %v1407, %v1410
        %v1413 = vld [vmem:[#allocation5] sm:$0xff]
        %v1414 = vld [vmem:[#allocation5 + $0x8] sm:$0xff]
        %v1415 = vld [vmem:[#allocation5 + $0x10] sm:$0xff]
        %v1416 = vld [vmem:[#allocation5 + $0x18] sm:$0xff]
        %v1417 = vld [vmem:[%s8] sm:$0x1]
        %v1419 = vperm.slane %v1417, 0
        %v1422 = vsel %vm555, %v1412, 0
        %1424 = vmatpush.msra.mxu0 0.0
        %1425 = vmatpush.msra.mxu0 0.0
        %1426 = vmatpush.msra.mxu0 0.0
        %1427 = vmatpush.msra.mxu0 0.0
        %1428 = vmatpush.msra.mxu0 0.0
        %1429 = vmatpush.msra.mxu0 0.0
        %1430 = vmatpush.msra.mxu0 0.0
        %1431 = vmatpush.msra.mxu0 0.0
        %1432 = vmatpush.msra.mxu0 0.0
        %1433 = vmatpush.msra.mxu0 0.0
        %1434 = vmatpush.msra.mxu0 0.0
        %1435 = vmatpush.msra.mxu0 0.0
        %1436 = vmatpush.msra.mxu0 %v1416
        %1437 = vmatpush.msra.mxu0 %v1415
        %1438 = vmatpush.msra.mxu0 %v1414
        %1439 = vmatpush.msra.mxu0 %v1413
        %1440 = vmatmul.f32.gmra.mxu0 %v1422
        %v1441 = vpop.f32.mrf.mxu0
        %v1442 = vadd.f32 %v1419, %v1441
        %1443 = vdwg.mxu0
        %v1444 = vmax.f32 %v1442, 0.0
        %v1445 = vld [vmem:[%s9] sm:$0xff]
        %v1446 = vld [vmem:[%s9 + $0x8] sm:$0xff]
        %v1447 = vld [vmem:[%s9 + $0x10] sm:$0xff]
        %v1448 = vld [vmem:[%s9 + $0x18] sm:$0xff]
        %v1449 = vld [vmem:[%s9 + $0x20] sm:$0xff]
        %v1450 = vld [vmem:[%s9 + $0x28] sm:$0xff]
        %v1451 = vld [vmem:[%s9 + $0x30] sm:$0xff]
        %v1452 = vld [vmem:[%s9 + $0x38] sm:$0xff]
        %v1453 = vld [vmem:[%s10] sm:$0x1]
        %v1455 = vperm.slane %v1453, 0
        %vm1457 = vcmask 523264
        %v1459 = vsel %vm1457, %v1444, 0
        %1461 = vmatpush.msra.mxu0 0.0
        %1462 = vmatpush.msra.mxu0 0.0
        %1463 = vmatpush.msra.mxu0 0.0
        %1464 = vmatpush.msra.mxu0 0.0
        %1465 = vmatpush.msra.mxu0 0.0
        %1466 = vmatpush.msra.mxu0 0.0
        %1467 = vmatpush.msra.mxu0 0.0
        %1468 = vmatpush.msra.mxu0 0.0
        %1469 = vmatpush.msra.mxu0 %v1452
        %1470 = vmatpush.msra.mxu0 %v1451
        %1471 = vmatpush.msra.mxu0 %v1450
        %1472 = vmatpush.msra.mxu0 %v1449
        %1473 = vmatpush.msra.mxu0 %v1448
        %1474 = vmatpush.msra.mxu0 %v1447
        %1475 = vmatpush.msra.mxu0 %v1446
        %1476 = vmatpush.msra.mxu0 %v1445
        %1477 = vmatmul.f32.gmra.mxu0 %v1459
        %v1478 = vpop.f32.mrf.mxu0
        %v1479 = vadd.f32 %v1455, %v1478
        %1480 = vdwg.mxu0
        %v1481 = vadd.f32 %v1412, %v1479
        %v1482 = vsel %vm555, %v1481, 0.0
        %1483 = vadd.xlane.f32.xlu0 %v1482
        %v1484 = vpop.xlane.xlu0 %1483
        %v1485 = vmul.f32 %v1484, %v1383
        %v1486 = vsub.f32 %v1481, %v1485
        %v1487 = vmul.f32 %v1486, %v1486
        %v1488 = vsel %vm555, %v1487, 0.0
        %1489 = vadd.xlane.f32.xlu0 %v1488
        %v1490 = vpop.xlane.xlu0 %1489
        %v1491 = vmul.f32 %v1490, %v1383
        %v1492 = vadd.f32 %v1491, 1e-05
        %v1493 = vrsqrt.pop %v1492
        %v1494 = vmul.f32 %v1493, %v1492
        %v1495 = vmul.f32 %v1494, %v1493
        %v1496 = vmul.f32 0.5, %v1495
        %v1497 = vsub.f32 1.5, %v1496
        %v1498 = vmul.f32 %v1493, %v1497
        %vm1499 = vweird.f32 %v1492
        %vm1500 = vweird.f32 %v1493
        %vm1501 = vmor %vm1499, %vm1500
        %v1502 = vsel %vm1501, %v1493, %v1498
        %v1503 = vmul.f32 %v1486, %v1502
        %v1504 = vld [vmem:[%s13] sm:$0x1]
        %v1506 = vperm.slane %v1504, 0
        %v1508 = vmul.f32 %v1503, %v1506
        %v1509 = vld [vmem:[%s14] sm:$0x1]
        %v1511 = vperm.slane %v1509, 0
        %v1513 = vadd.f32 %v1508, %v1511
        %1514 = vst.msk [vmem:[%s545] sm:$0xff] %vm555, %v1513
        %s1515 = sand.u32 %s377, 1
        %s1516 = scalar_lea.sflag [#allocation4], %s1515
        %s1517 = sand.u32 %s377, 1
        %s1518 = smul.addr %s1517, 8
        %s1519 = scalar_lea.vmem [#allocation7], %s1518
        // Predicated region
        $region89: #{tpu_custom_call.1} parent=79 // pred_check
          %p1520 = pneg %p387
        $region90: #{tpu_custom_call.1} parent=79 // pred_check_branch
          %1522 = sbr.rel (%p1520) target = $region92
        $region91: #{tpu_custom_call.1} parent=79 // pred_region
          %1524 = vsyncadd %s1516, 0
          %s1525 = sadd.s32 %s38, %s37
          %s1526 = smul.addr %s1525, 8
          %s1527 = scalar_lea.hbm %s15, %s1526
          %s1529 = sshll.u32 %s1519, 4
          %s1530 = int_to_ptr.vmem [resolvable:$true] %s1529
          %s1531 = sshll.u32 %s1527, 4
          %s1532 = int_to_ptr.hbm [resolvable:$true] %s1531
          %1534 = dma.vmem_to_hbm [thread:$0]  %s1530, 128, %s1532, %s1516
        $region92: #{tpu_custom_call.1} parent=79 // pred_fallthru
          _
      $region80: #{tpu_custom_call.1} parent=5 // pred_fallthru
        _
      %p1535 = scmp.le.s32.totalorder 2, %s28
      // Predicated region
      $region93: #{tpu_custom_call.1} parent=5 // pred_check
        %p1536 = pneg %p1535
      $region94: #{tpu_custom_call.1} parent=5 // pred_check_branch
        %1538 = sbr.rel (%p1536) target = $region96
      $region95: #{tpu_custom_call.1} parent=5 // pred_region
        %s1539 = ssub.s32 %s28, 2
        // Predicated region
        $region97: #{tpu_custom_call.1} parent=95 // pred_check
          %p1540 = pneg %p393
        $region98: #{tpu_custom_call.1} parent=95 // pred_check_branch
          %1542 = sbr.rel (%p1540) target = $region100
        $region99: #{tpu_custom_call.1} parent=95 // pred_region
          %s1543 = sand.u32 %s378, 1
          %s1544 = scalar_lea.sflag [#allocation4], %s1543
          %s1545 = sand.u32 %s378, 1
          %s1546 = smul.addr %s1545, 8
          %s1547 = scalar_lea.vmem [#allocation7], %s1546
          %1549 = dma.done %s1544, 128
        $region100: #{tpu_custom_call.1} parent=95 // pred_fallthru
          _
      $region96: #{tpu_custom_call.1} parent=5 // pred_fallthru
        _
    $region6: #{tpu_custom_call.1} parent=1 // loop_footer
      %s32 = sadd.s32 1, %s28
    $region7: #{tpu_custom_call.1} parent=1 // loop_footer_branch
      %27 = sbr.rel target = $region3
    $region8: #{tpu_custom_call.1} parent=1 // loop_exit
      _
    %1550 = vsyncpa [#allocation3], 1
    %s1551 = scalar_lea.sflag [#allocation3], 1
    %1552 = vsyncpa %s1551, 1
    %1553 = vsyncpa [#allocation6], 1
    %1554 = vsyncpa [#allocation4], 1
    %s1555 = scalar_lea.sflag [#allocation4], 1
    %1556 = vsyncpa %s1555, 1

</llo_original>
